<compile_context>
chip_gen: v5e
topology: v5e:2x2
jax: 0.10.0
libtpu: 0.0.40
codegen_flags: <defaults>
</compile_context>

<pallas_src>
import math

import jax
import jax.numpy as jnp
import numpy as np
from jax.experimental import pallas as pl
from jax.experimental.pallas import tpu as pltpu

D_MODEL = 100
SEQ_LEN = 150
NHEAD = 10
HEAD_DIM = D_MODEL // NHEAD          # 10
FF_DIM = 2048                        # nn.TransformerEncoderLayer default
FF_CHUNK = 512                       # FFN hidden processed in 4 lane chunks
LN_EPS = 1e-5
LEAKY_SLOPE = 0.01                   # nn.LeakyReLU default
SQRT_D = math.sqrt(float(D_MODEL))

D_PAD = 128                          # lane-dense model dim (zero padded 100 -> 128)
S_PAD = 152                          # sublane-aligned sequence length (150 -> 152)


# ----------------------------------------------------------------------------
# Pallas kernel: one block of `bt` batch elements per grid step
# ----------------------------------------------------------------------------
def net_kernel(x_ref, pe_ref,
               wqkv_ref, bqkv_ref, wo_ref, bo_ref,
               ln1_g_ref, ln1_b_ref,
               wf1_ref, bf1_ref, wf2_ref, bf2_ref,
               ln2_g_ref, ln2_b_ref,
               pool_ref, wl1_ref, bl1_ref, wl2_ref, bl2_ref,
               out_ref,
               qkv_s, attn_s):
    rows = x_ref.shape[0]            # bt * S_PAD
    bt = rows // S_PAD

    lane = jax.lax.broadcasted_iota(jnp.int32, (1, D_PAD), 1)
    lane_mask = (lane < D_MODEL).astype(jnp.float32)                 # (1, 128)
    key_pos = jax.lax.broadcasted_iota(jnp.int32, (1, S_PAD), 1)
    key_bias = jnp.where(key_pos < SEQ_LEN, 0.0, -1e30)              # (1, 152)

    def layer_norm(zv, gamma, beta):
        # padded lanes (>= 100) are zero by construction; divide by the real
        # feature count and mask before the variance / affine so they stay 0.
        zv = zv * lane_mask
        mu = jnp.sum(zv, axis=-1, keepdims=True) * (1.0 / D_MODEL)
        zc = (zv - mu) * lane_mask
        var = jnp.sum(zc * zc, axis=-1, keepdims=True) * (1.0 / D_MODEL)
        return zc * jax.lax.rsqrt(var + LN_EPS) * gamma + beta

    # ---- positional encoding + fused QKV projection over the whole block ----
    x2 = x_ref[...] * SQRT_D + pe_ref[...]                            # (rows, 128)
    qkv_s[...] = (jnp.dot(x2, wqkv_ref[...],
                          preferred_element_type=jnp.float32) + bqkv_ref[...])

    # ---- multi-head self-attention, one batch element at a time ----
    scale = 1.0 / math.sqrt(float(HEAD_DIM))
    wo = wo_ref[...]                                                  # (128, 128)
    for b in range(bt):                                               # static, small
        r0 = b * S_PAD
        q_b = qkv_s[r0:r0 + S_PAD, 0:D_PAD]
        k_b = qkv_s[r0:r0 + S_PAD, D_PAD:2 * D_PAD]
        v_b = qkv_s[r0:r0 + S_PAD, 2 * D_PAD:3 * D_PAD]
        k_bT = k_b.T                                                  # shared by all heads

        def head_body(h, acc):
            # lane mask over the 10 columns of head h: equivalent to slicing
            # q_h / v_h but keeps operands 128-lane dense (same MXU cost).
            hmask = ((lane >= h * HEAD_DIM) &
                     (lane < (h + 1) * HEAD_DIM)).astype(jnp.float32)  # (1,128)
            s = jnp.dot(q_b * hmask, k_bT,
                        preferred_element_type=jnp.float32) * scale + key_bias
            s = s - jnp.max(s, axis=-1, keepdims=True)
            p = jnp.exp(s)
            p = p * pl.reciprocal(jnp.sum(p, axis=-1, keepdims=True), approx=True)
            # fold the output projection per head: P @ (V_h @ Wo^T_h)
            vwo = jnp.dot(v_b * hmask, wo, preferred_element_type=jnp.float32)
            return acc + jnp.dot(p, vwo, preferred_element_type=jnp.float32)

        acc = jax.lax.fori_loop(0, NHEAD, head_body,
                                jnp.zeros((S_PAD, D_PAD), jnp.float32))
        attn_s[r0:r0 + S_PAD, :] = acc + bo_ref[...]

    # ---- residual + LayerNorm 1 ----
    y = layer_norm(x2 + attn_s[...], ln1_g_ref[...], ln1_b_ref[...])

    # ---- feed-forward 100 -> 2048 -> 100 (ReLU), chunked over the hidden dim ----
    ff = jnp.zeros((rows, D_PAD), jnp.float32)
    for c in range(FF_DIM // FF_CHUNK):
        lo = c * FF_CHUNK
        hid = (jnp.dot(y, wf1_ref[:, lo:lo + FF_CHUNK],
                       preferred_element_type=jnp.float32)
               + bf1_ref[:, lo:lo + FF_CHUNK])
        hid = jnp.maximum(hid, 0.0)
        ff = ff + jnp.dot(hid, wf2_ref[lo:lo + FF_CHUNK, :],
                          preferred_element_type=jnp.float32)

    # ---- residual + LayerNorm 2 ----
    z = layer_norm(y + ff + bf2_ref[...], ln2_g_ref[...], ln2_b_ref[...])

    # ---- mean over the 150 real positions (pooling matmul), head MLP, sigmoid ----
    pooled = jnp.dot(pool_ref[...], z, preferred_element_type=jnp.float32)   # (bt,128)
    t = jnp.dot(pooled, wl1_ref[...], preferred_element_type=jnp.float32) + bl1_ref[...]
    t = jnp.where(t >= 0.0, t, LEAKY_SLOPE * t)                              # LeakyReLU
    t = jnp.dot(t, wl2_ref[...], preferred_element_type=jnp.float32) + bl2_ref[...]
    out_ref[...] = (1.0 / (1.0 + jnp.exp(-t))).astype(out_ref.dtype)         # sigmoid


# ----------------------------------------------------------------------------
# Wrapper: pad to lane/sublane-dense shapes, build fused weights, launch kernel
# ----------------------------------------------------------------------------
def _pad2(a, r, c):
    a = jnp.asarray(a, jnp.float32)
    return jnp.pad(a, ((0, r - a.shape[0]), (0, c - a.shape[1])))


def _pad_row(v, n):
    v = jnp.asarray(v, jnp.float32)
    return jnp.pad(v, (0, n - v.shape[0])).reshape(1, n)


def net_forward_pallas(states, params, *, block_batch=4):
    B, S, D = states.shape
    assert S == SEQ_LEN and D == D_MODEL
    bt = max(1, min(block_batch, B))
    b_pad = ((B + bt - 1) // bt) * bt
    n_blocks = b_pad // bt

    # input: (B,150,100) -> zero pad -> (b_pad,152,128) -> flatten rows
    x = jnp.pad(states.astype(jnp.float32),
                ((0, b_pad - B), (0, S_PAD - SEQ_LEN), (0, D_PAD - D_MODEL)))
    x = x.reshape(b_pad * S_PAD, D_PAD)

    pe = _pad2(params["pe"], S_PAD, D_PAD)
    pe_t = jnp.tile(pe, (bt, 1))                                      # (bt*152, 128)

    # fused QKV projection weight (128, 384): [Wq^T | Wk^T | Wv^T], zero padded
    wqkv = jnp.concatenate([_pad2(params["Wq"].T, D_PAD, D_PAD),
                            _pad2(params["Wk"].T, D_PAD, D_PAD),
                            _pad2(params["Wv"].T, D_PAD, D_PAD)], axis=1)
    bqkv = jnp.concatenate([_pad_row(params["bq"], D_PAD),
                            _pad_row(params["bk"], D_PAD),
                            _pad_row(params["bv"], D_PAD)], axis=1)   # (1, 384)
    wo = _pad2(params["Wo"].T, D_PAD, D_PAD)
    bo = _pad_row(params["bo"], D_PAD)

    g1 = _pad_row(params["ln1_g"], D_PAD)
    be1 = _pad_row(params["ln1_b"], D_PAD)
    g2 = _pad_row(params["ln2_g"], D_PAD)
    be2 = _pad_row(params["ln2_b"], D_PAD)

    wf1 = _pad2(params["W_ff1"].T, D_PAD, FF_DIM)                     # (128, 2048)
    bf1 = jnp.asarray(params["b_ff1"], jnp.float32).reshape(1, FF_DIM)
    wf2 = _pad2(params["W_ff2"].T, FF_DIM, D_PAD)                     # (2048, 128)
    bf2 = _pad_row(params["b_ff2"], D_PAD)

    # pooling matrix: mean over the 150 real rows of each element in the block
    pool = np.zeros((bt, bt * S_PAD), np.float32)
    for b in range(bt):
        pool[b, b * S_PAD:b * S_PAD + SEQ_LEN] = 1.0 / SEQ_LEN
    pool = jnp.asarray(pool)

    wl1 = _pad2(params["W_l1"].T, D_PAD, 50)                          # (128, 50)
    bl1 = jnp.asarray(params["b_l1"], jnp.float32).reshape(1, 50)
    wl2 = jnp.asarray(params["W_l2"], jnp.float32).T                  # (50, 3)
    bl2 = jnp.asarray(params["b_l2"], jnp.float32).reshape(1, 3)

    weights = (pe_t, wqkv, bqkv, wo, bo, g1, be1,
               wf1, bf1, wf2, bf2, g2, be2,
               pool, wl1, bl1, wl2, bl2)

    in_specs = [pl.BlockSpec((bt * S_PAD, D_PAD), lambda i: (i, 0))]
    in_specs += [pl.BlockSpec(w.shape, lambda i: (0, 0)) for w in weights]

    out = pl.pallas_call(
        net_kernel,
        out_shape=jax.ShapeDtypeStruct((n_blocks, bt, 3), jnp.float32),
        grid=(n_blocks,),
        in_specs=in_specs,
        out_specs=pl.BlockSpec((None, bt, 3), lambda i: (i, 0, 0)),
        scratch_shapes=[pltpu.VMEM((bt * S_PAD, 3 * D_PAD), jnp.float32),  # qkv
                        pltpu.VMEM((bt * S_PAD, D_PAD), jnp.float32)],     # attn out
        compiler_params=pltpu.CompilerParams(
            dimension_semantics=("parallel",),          # v7x: shard blocks over 2 TCs
            vmem_limit_bytes=32 * 1024 * 1024),
    )(x, *weights)
    return out.reshape(b_pad, 3)[:B]


# ----------------------------------------------------------------------------
# Pure-JAX reference (same math, used for a sanity check)
# ----------------------------------------------------------------------------
def net_forward_ref(states, params):
    B = states.shape[0]
    x = states * SQRT_D + params["pe"][None]
    q = x @ params["Wq"].T + params["bq"]
    k = x @ params["Wk"].T + params["bk"]
    v = x @ params["Wv"].T + params["bv"]
    q = q.reshape(B, SEQ_LEN, NHEAD, HEAD_DIM)
    k = k.reshape(B, SEQ_LEN, NHEAD, HEAD_DIM)
    v = v.reshape(B, SEQ_LEN, NHEAD, HEAD_DIM)
    s = jnp.einsum("bqhd,bkhd->bhqk", q, k) / math.sqrt(float(HEAD_DIM))
    p = jax.nn.softmax(s, axis=-1)
    ctx = jnp.einsum("bhqk,bkhd->bqhd", p, v).reshape(B, SEQ_LEN, D_MODEL)
    attn = ctx @ params["Wo"].T + params["bo"]

    def ln(z, g, b):
        mu = jnp.mean(z, axis=-1, keepdims=True)
        var = jnp.mean((z - mu) ** 2, axis=-1, keepdims=True)
        return (z - mu) / jnp.sqrt(var + LN_EPS) * g + b

    x = ln(x + attn, params["ln1_g"], params["ln1_b"])
    h = jnp.maximum(x @ params["W_ff1"].T + params["b_ff1"], 0.0)
    x = ln(x + h @ params["W_ff2"].T + params["b_ff2"], params["ln2_g"], params["ln2_b"])
    pooled = jnp.mean(x, axis=1)
    y = pooled @ params["W_l1"].T + params["b_l1"]
    y = jnp.where(y >= 0.0, y, LEAKY_SLOPE * y)
    y = y @ params["W_l2"].T + params["b_l2"]
    return jax.nn.sigmoid(y)


# ----------------------------------------------------------------------------
# Deterministic parameter construction
# ----------------------------------------------------------------------------
def make_positional_encoding():
    pe = np.zeros((SEQ_LEN, D_MODEL), dtype=np.float32)
    for pos in range(SEQ_LEN):
        for i in range(0, D_MODEL, 2):
            pe[pos, i] = math.sin(pos / 10000 ** (2 * i / D_MODEL))
            pe[pos, i + 1] = math.cos(pos / 10000 ** (2 * (i + 1) / D_MODEL))
    return jnp.asarray(pe)


def make_params(key):
    ks = jax.random.split(key, 12)
    n = lambda k, shape, s=0.05: (s * jax.random.normal(k, shape)).astype(jnp.float32)
    return {
        "pe": make_positional_encoding(),
        "Wq": n(ks[0], (D_MODEL, D_MODEL)), "bq": n(ks[1], (D_MODEL,)),
        "Wk": n(ks[2], (D_MODEL, D_MODEL)), "bk": n(ks[3], (D_MODEL,)),
        "Wv": n(ks[4], (D_MODEL, D_MODEL)), "bv": n(ks[5], (D_MODEL,)),
        "Wo": n(ks[6], (D_MODEL, D_MODEL)), "bo": jnp.zeros((D_MODEL,), jnp.float32),
        "ln1_g": jnp.ones((D_MODEL,), jnp.float32), "ln1_b": jnp.zeros((D_MODEL,), jnp.float32),
        "ln2_g": jnp.ones((D_MODEL,), jnp.float32), "ln2_b": jnp.zeros((D_MODEL,), jnp.float32),
        "W_ff1": n(ks[7], (FF_DIM, D_MODEL)), "b_ff1": jnp.zeros((FF_DIM,), jnp.float32),
        "W_ff2": n(ks[8], (D_MODEL, FF_DIM)), "b_ff2": jnp.zeros((D_MODEL,), jnp.float32),
        "W_l1": n(ks[9], (50, D_MODEL)), "b_l1": n(ks[10], (50,)),
        "W_l2": n(ks[11], (3, 50)), "b_l2": jnp.zeros((3,), jnp.float32),
    }


if __name__ == "__main__":
    key = jax.random.PRNGKey(0)
    pkey, xkey = jax.random.split(key)
    params = make_params(pkey)

    B = 2
    states = jax.random.normal(xkey, (B, SEQ_LEN, D_MODEL), dtype=jnp.float32)

    out = jax.block_until_ready(net_forward_pallas(states, params))
    ref = jax.block_until_ready(net_forward_ref(states, params))

    assert out.shape == (B, 3)
    assert bool(jnp.all(jnp.isfinite(out)))
    # approx-reciprocal softmax normalization => slightly looser tolerance
    np.testing.assert_allclose(np.asarray(out), np.asarray(ref), rtol=5e-3, atol=1e-3)

    print("KERNEL_OK")
</pallas_src>

<mosaic_0001>
module attributes {stable_mosaic.version = 11 : i64} {
  func.func @net_kernel(%arg0: i32, %arg1: memref<304x128xf32, #tpu.memory_space<vmem>>, %arg2: memref<304x128xf32, #tpu.memory_space<vmem>>, %arg3: memref<128x384xf32, #tpu.memory_space<vmem>>, %arg4: memref<1x384xf32, #tpu.memory_space<vmem>>, %arg5: memref<128x128xf32, #tpu.memory_space<vmem>>, %arg6: memref<1x128xf32, #tpu.memory_space<vmem>>, %arg7: memref<1x128xf32, #tpu.memory_space<vmem>>, %arg8: memref<1x128xf32, #tpu.memory_space<vmem>>, %arg9: memref<128x2048xf32, #tpu.memory_space<vmem>>, %arg10: memref<1x2048xf32, #tpu.memory_space<vmem>>, %arg11: memref<2048x128xf32, #tpu.memory_space<vmem>>, %arg12: memref<1x128xf32, #tpu.memory_space<vmem>>, %arg13: memref<1x128xf32, #tpu.memory_space<vmem>>, %arg14: memref<1x128xf32, #tpu.memory_space<vmem>>, %arg15: memref<2x304xf32, #tpu.memory_space<vmem>>, %arg16: memref<128x50xf32, #tpu.memory_space<vmem>>, %arg17: memref<1x50xf32, #tpu.memory_space<vmem>>, %arg18: memref<50x3xf32, #tpu.memory_space<vmem>>, %arg19: memref<1x3xf32, #tpu.memory_space<vmem>>, %arg20: memref<1x2x3xf32, #tpu.memory_space<vmem>>, %arg21: memref<304x384xf32, #tpu.memory_space<vmem>>, %arg22: memref<304x128xf32, #tpu.memory_space<vmem>>) attributes {dimension_semantics = [#tpu.dimension_semantics<parallel>], iteration_bounds = array<i64: 1>, scalar_prefetch = 0 : i64, scratch_operands = 2 : i64, tpu.core_type = #tpu.core_type<tc>, window_params = [{transform_indices = @transform_0, window_bounds = array<i64: 304, 128>}, {pipeline_mode = #tpu.pipeline_mode<synchronous>, transform_indices = @transform_1, window_bounds = array<i64: 304, 128>}, {pipeline_mode = #tpu.pipeline_mode<synchronous>, transform_indices = @transform_2, window_bounds = array<i64: 128, 384>}, {pipeline_mode = #tpu.pipeline_mode<synchronous>, transform_indices = @transform_3, window_bounds = array<i64: 1, 384>}, {pipeline_mode = #tpu.pipeline_mode<synchronous>, transform_indices = @transform_4, window_bounds = array<i64: 128, 128>}, {pipeline_mode = #tpu.pipeline_mode<synchronous>, transform_indices = @transform_5, window_bounds = array<i64: 1, 128>}, {pipeline_mode = #tpu.pipeline_mode<synchronous>, transform_indices = @transform_6, window_bounds = array<i64: 1, 128>}, {pipeline_mode = #tpu.pipeline_mode<synchronous>, transform_indices = @transform_7, window_bounds = array<i64: 1, 128>}, {pipeline_mode = #tpu.pipeline_mode<synchronous>, transform_indices = @transform_8, window_bounds = array<i64: 128, 2048>}, {pipeline_mode = #tpu.pipeline_mode<synchronous>, transform_indices = @transform_9, window_bounds = array<i64: 1, 2048>}, {pipeline_mode = #tpu.pipeline_mode<synchronous>, transform_indices = @transform_10, window_bounds = array<i64: 2048, 128>}, {pipeline_mode = #tpu.pipeline_mode<synchronous>, transform_indices = @transform_11, window_bounds = array<i64: 1, 128>}, {pipeline_mode = #tpu.pipeline_mode<synchronous>, transform_indices = @transform_12, window_bounds = array<i64: 1, 128>}, {pipeline_mode = #tpu.pipeline_mode<synchronous>, transform_indices = @transform_13, window_bounds = array<i64: 1, 128>}, {pipeline_mode = #tpu.pipeline_mode<synchronous>, transform_indices = @transform_14, window_bounds = array<i64: 2, 304>}, {pipeline_mode = #tpu.pipeline_mode<synchronous>, transform_indices = @transform_15, window_bounds = array<i64: 128, 50>}, {pipeline_mode = #tpu.pipeline_mode<synchronous>, transform_indices = @transform_16, window_bounds = array<i64: 1, 50>}, {pipeline_mode = #tpu.pipeline_mode<synchronous>, transform_indices = @transform_17, window_bounds = array<i64: 50, 3>}, {pipeline_mode = #tpu.pipeline_mode<synchronous>, transform_indices = @transform_18, window_bounds = array<i64: 1, 3>}, {transform_indices = @transform_19, window_bounds = array<i64: 1, 2, 3>}]} {
    %0 = tpu.iota {dimensions = array<i32: 1>} : vector<1x128xi32>
    %c100_i32 = arith.constant 100 : i32
    %1 = vector.broadcast %c100_i32 : i32 to vector<1x128xi32>
    %2 = arith.cmpi slt, %0, %1 : vector<1x128xi32>
    %3 = arith.extui %2 : vector<1x128xi1> to vector<1x128xi32>
    %4 = arith.sitofp %3 : vector<1x128xi32> to vector<1x128xf32>
    %5 = tpu.iota {dimensions = array<i32: 1>} : vector<1x152xi32>
    %c150_i32 = arith.constant 150 : i32
    %6 = vector.broadcast %c150_i32 : i32 to vector<1x152xi32>
    %7 = arith.cmpi slt, %5, %6 : vector<1x152xi32>
    %cst = arith.constant 0.000000e+00 : f32
    %cst_0 = arith.constant -1.000000e+30 : f32
    %8 = vector.broadcast %cst : f32 to vector<1x152xf32>
    %9 = vector.broadcast %cst_0 : f32 to vector<1x152xf32>
    %10 = arith.select %7, %8, %9 : vector<1x152xi1>, vector<1x152xf32>
    %c0 = arith.constant 0 : index
    %c0_1 = arith.constant 0 : index
    %11 = vector.load %arg1[%c0, %c0_1] : memref<304x128xf32, #tpu.memory_space<vmem>>, vector<304x128xf32>
    %cst_2 = arith.constant 1.000000e+01 : f32
    %12 = vector.broadcast %cst_2 : f32 to vector<304x128xf32>
    %13 = arith.mulf %11, %12 : vector<304x128xf32>
    %c0_3 = arith.constant 0 : index
    %c0_4 = arith.constant 0 : index
    %14 = vector.load %arg2[%c0_3, %c0_4] : memref<304x128xf32, #tpu.memory_space<vmem>>, vector<304x128xf32>
    %15 = arith.addf %13, %14 : vector<304x128xf32>
    %c0_5 = arith.constant 0 : index
    %c0_6 = arith.constant 0 : index
    %16 = vector.load %arg3[%c0_5, %c0_6] : memref<128x384xf32, #tpu.memory_space<vmem>>, vector<128x384xf32>
    %cst_7 = arith.constant dense<0.000000e+00> : vector<304x384xf32>
    %17 = tpu.matmul %15, %16, %cst_7 {dimension_numbers = #tpu.dot_dimension_numbers<[1], [0], [0], [1], [0, 0, 1, 1], [], []>} : vector<304x128xf32>, vector<128x384xf32>, vector<304x384xf32> -> vector<304x384xf32>
    %c0_8 = arith.constant 0 : index
    %c0_9 = arith.constant 0 : index
    %18 = vector.load %arg4[%c0_8, %c0_9] : memref<1x384xf32, #tpu.memory_space<vmem>>, vector<1x384xf32>
    %19 = vector.broadcast %18 : vector<1x384xf32> to vector<304x384xf32>
    %20 = arith.addf %17, %19 : vector<304x384xf32>
    %c0_10 = arith.constant 0 : index
    %c0_11 = arith.constant 0 : index
    %21 = vector.load %arg21[%c0_10, %c0_11] : memref<304x384xf32, #tpu.memory_space<vmem>>, vector<304x384xf32>
    tpu.vector_store %arg21[%c0_10, %c0_11], %20 {strides = array<i32>} : memref<304x384xf32, #tpu.memory_space<vmem>>, vector<304x384xf32>,
    %c0_12 = arith.constant 0 : index
    %c0_13 = arith.constant 0 : index
    %22 = vector.load %arg5[%c0_12, %c0_13] : memref<128x128xf32, #tpu.memory_space<vmem>>, vector<128x128xf32>
    %c0_14 = arith.constant 0 : index
    %c0_15 = arith.constant 0 : index
    %23 = vector.load %arg21[%c0_14, %c0_15] : memref<304x384xf32, #tpu.memory_space<vmem>>, vector<152x128xf32>
    %c0_16 = arith.constant 0 : index
    %c128 = arith.constant 128 : index
    %24 = vector.load %arg21[%c0_16, %c128] : memref<304x384xf32, #tpu.memory_space<vmem>>, vector<152x128xf32>
    %c0_17 = arith.constant 0 : index
    %c256 = arith.constant 256 : index
    %25 = vector.load %arg21[%c0_17, %c256] : memref<304x384xf32, #tpu.memory_space<vmem>>, vector<152x128xf32>
    %26 = tpu.transpose %24, [1, 0] : vector<152x128xf32> -> vector<128x152xf32>
    %cst_18 = arith.constant 0.000000e+00 : f32
    %27 = vector.broadcast %cst_18 : f32 to vector<152x128xf32>
    %c0_i32 = arith.constant 0 : i32
    %c10_i32 = arith.constant 10 : i32
    %28 = arith.addi %c0_i32, %c10_i32 : i32
    %c1_i32 = arith.constant 1 : i32
    %29 = scf.for %arg23 = %c0_i32 to %28 step %c1_i32 iter_args(%arg24 = %27) -> (vector<152x128xf32>)  : i32 {
      %c10_i32_115 = arith.constant 10 : i32
      %171 = arith.muli %arg23, %c10_i32_115 : i32
      %172 = vector.broadcast %171 : i32 to vector<1x128xi32>
      %173 = arith.cmpi sge, %0, %172 : vector<1x128xi32>
      %c1_i32_116 = arith.constant 1 : i32
      %174 = arith.addi %arg23, %c1_i32_116 : i32
      %c10_i32_117 = arith.constant 10 : i32
      %175 = arith.muli %174, %c10_i32_117 : i32
      %176 = vector.broadcast %175 : i32 to vector<1x128xi32>
      %177 = arith.cmpi slt, %0, %176 : vector<1x128xi32>
      %178 = arith.andi %173, %177 : vector<1x128xi1>
      %179 = arith.extui %178 : vector<1x128xi1> to vector<1x128xi32>
      %180 = arith.sitofp %179 : vector<1x128xi32> to vector<1x128xf32>
      %181 = vector.broadcast %180 : vector<1x128xf32> to vector<152x128xf32>
      %182 = arith.mulf %23, %181 : vector<152x128xf32>
      %cst_118 = arith.constant dense<0.000000e+00> : vector<152x152xf32>
      %183 = tpu.matmul %182, %26, %cst_118 {dimension_numbers = #tpu.dot_dimension_numbers<[1], [0], [0], [1], [0, 0, 1, 1], [], []>} : vector<152x128xf32>, vector<128x152xf32>, vector<152x152xf32> -> vector<152x152xf32>
      %cst_119 = arith.constant 0.316227764 : f32
      %184 = vector.broadcast %cst_119 : f32 to vector<152x152xf32>
      %185 = arith.mulf %183, %184 : vector<152x152xf32>
      %186 = vector.broadcast %10 : vector<1x152xf32> to vector<152x152xf32>
      %187 = arith.addf %185, %186 : vector<152x152xf32>
      %cst_120 = arith.constant dense<0xFF800000> : vector<152xf32>
      %188 = vector.multi_reduction <maximumf>, %187, %cst_120 [1] : vector<152x152xf32> to vector<152xf32>
      %189 = vector.shape_cast %188 : vector<152xf32> to vector<152x1xf32>
      %190 = vector.broadcast %189 : vector<152x1xf32> to vector<152x152xf32>
      %191 = arith.subf %187, %190 : vector<152x152xf32>
      %192 = math.exp %191 : vector<152x152xf32>
      %cst_121 = arith.constant dense<0.000000e+00> : vector<152xf32>
      %193 = vector.multi_reduction <add>, %192, %cst_121 [1] : vector<152x152xf32> to vector<152xf32>
      %194 = vector.shape_cast %193 : vector<152xf32> to vector<152x1xf32>
      %195 = tpu.reciprocal %194 {approx = true} : vector<152x1xf32> -> vector<152x1xf32>
      %196 = vector.broadcast %195 : vector<152x1xf32> to vector<152x152xf32>
      %197 = arith.mulf %192, %196 : vector<152x152xf32>
      %198 = vector.broadcast %180 : vector<1x128xf32> to vector<152x128xf32>
      %199 = arith.mulf %25, %198 : vector<152x128xf32>
      %cst_122 = arith.constant dense<0.000000e+00> : vector<152x128xf32>
      %200 = tpu.matmul %199, %22, %cst_122 {dimension_numbers = #tpu.dot_dimension_numbers<[1], [0], [0], [1], [0, 0, 1, 1], [], []>} : vector<152x128xf32>, vector<128x128xf32>, vector<152x128xf32> -> vector<152x128xf32>
      %cst_123 = arith.constant dense<0.000000e+00> : vector<152x128xf32>
      %201 = tpu.matmul %197, %200, %cst_123 {dimension_numbers = #tpu.dot_dimension_numbers<[1], [0], [0], [1], [0, 0, 1, 1], [], []>} : vector<152x152xf32>, vector<152x128xf32>, vector<152x128xf32> -> vector<152x128xf32>
      %202 = arith.addf %arg24, %201 : vector<152x128xf32>
      scf.yield %202 : vector<152x128xf32>
    }
    %c10_i32_19 = arith.constant 10 : i32
    %c0_20 = arith.constant 0 : index
    %c0_21 = arith.constant 0 : index
    %30 = vector.load %arg6[%c0_20, %c0_21] : memref<1x128xf32, #tpu.memory_space<vmem>>, vector<1x128xf32>
    %31 = vector.broadcast %30 : vector<1x128xf32> to vector<152x128xf32>
    %32 = arith.addf %29, %31 : vector<152x128xf32>
    %c0_22 = arith.constant 0 : index
    %c0_23 = arith.constant 0 : index
    %33 = vector.load %arg22[%c0_22, %c0_23] : memref<304x128xf32, #tpu.memory_space<vmem>>, vector<152x128xf32>
    tpu.vector_store %arg22[%c0_22, %c0_23], %32 {strides = array<i32>} : memref<304x128xf32, #tpu.memory_space<vmem>>, vector<152x128xf32>,
    %c152 = arith.constant 152 : index
    %c0_24 = arith.constant 0 : index
    %34 = vector.load %arg21[%c152, %c0_24] : memref<304x384xf32, #tpu.memory_space<vmem>>, vector<152x128xf32>
    %c152_25 = arith.constant 152 : index
    %c128_26 = arith.constant 128 : index
    %35 = vector.load %arg21[%c152_25, %c128_26] : memref<304x384xf32, #tpu.memory_space<vmem>>, vector<152x128xf32>
    %c152_27 = arith.constant 152 : index
    %c256_28 = arith.constant 256 : index
    %36 = vector.load %arg21[%c152_27, %c256_28] : memref<304x384xf32, #tpu.memory_space<vmem>>, vector<152x128xf32>
    %37 = tpu.transpose %35, [1, 0] : vector<152x128xf32> -> vector<128x152xf32>
    %cst_29 = arith.constant 0.000000e+00 : f32
    %38 = vector.broadcast %cst_29 : f32 to vector<152x128xf32>
    %c0_i32_30 = arith.constant 0 : i32
    %c10_i32_31 = arith.constant 10 : i32
    %39 = arith.addi %c0_i32_30, %c10_i32_31 : i32
    %c1_i32_32 = arith.constant 1 : i32
    %40 = scf.for %arg23 = %c0_i32_30 to %39 step %c1_i32_32 iter_args(%arg24 = %38) -> (vector<152x128xf32>)  : i32 {
      %c10_i32_115 = arith.constant 10 : i32
      %171 = arith.muli %arg23, %c10_i32_115 : i32
      %172 = vector.broadcast %171 : i32 to vector<1x128xi32>
      %173 = arith.cmpi sge, %0, %172 : vector<1x128xi32>
      %c1_i32_116 = arith.constant 1 : i32
      %174 = arith.addi %arg23, %c1_i32_116 : i32
      %c10_i32_117 = arith.constant 10 : i32
      %175 = arith.muli %174, %c10_i32_117 : i32
      %176 = vector.broadcast %175 : i32 to vector<1x128xi32>
      %177 = arith.cmpi slt, %0, %176 : vector<1x128xi32>
      %178 = arith.andi %173, %177 : vector<1x128xi1>
      %179 = arith.extui %178 : vector<1x128xi1> to vector<1x128xi32>
      %180 = arith.sitofp %179 : vector<1x128xi32> to vector<1x128xf32>
      %181 = vector.broadcast %180 : vector<1x128xf32> to vector<152x128xf32>
      %182 = arith.mulf %34, %181 : vector<152x128xf32>
      %cst_118 = arith.constant dense<0.000000e+00> : vector<152x152xf32>
      %183 = tpu.matmul %182, %37, %cst_118 {dimension_numbers = #tpu.dot_dimension_numbers<[1], [0], [0], [1], [0, 0, 1, 1], [], []>} : vector<152x128xf32>, vector<128x152xf32>, vector<152x152xf32> -> vector<152x152xf32>
      %cst_119 = arith.constant 0.316227764 : f32
      %184 = vector.broadcast %cst_119 : f32 to vector<152x152xf32>
      %185 = arith.mulf %183, %184 : vector<152x152xf32>
      %186 = vector.broadcast %10 : vector<1x152xf32> to vector<152x152xf32>
      %187 = arith.addf %185, %186 : vector<152x152xf32>
      %cst_120 = arith.constant dense<0xFF800000> : vector<152xf32>
      %188 = vector.multi_reduction <maximumf>, %187, %cst_120 [1] : vector<152x152xf32> to vector<152xf32>
      %189 = vector.shape_cast %188 : vector<152xf32> to vector<152x1xf32>
      %190 = vector.broadcast %189 : vector<152x1xf32> to vector<152x152xf32>
      %191 = arith.subf %187, %190 : vector<152x152xf32>
      %192 = math.exp %191 : vector<152x152xf32>
      %cst_121 = arith.constant dense<0.000000e+00> : vector<152xf32>
      %193 = vector.multi_reduction <add>, %192, %cst_121 [1] : vector<152x152xf32> to vector<152xf32>
      %194 = vector.shape_cast %193 : vector<152xf32> to vector<152x1xf32>
      %195 = tpu.reciprocal %194 {approx = true} : vector<152x1xf32> -> vector<152x1xf32>
      %196 = vector.broadcast %195 : vector<152x1xf32> to vector<152x152xf32>
      %197 = arith.mulf %192, %196 : vector<152x152xf32>
      %198 = vector.broadcast %180 : vector<1x128xf32> to vector<152x128xf32>
      %199 = arith.mulf %36, %198 : vector<152x128xf32>
      %cst_122 = arith.constant dense<0.000000e+00> : vector<152x128xf32>
      %200 = tpu.matmul %199, %22, %cst_122 {dimension_numbers = #tpu.dot_dimension_numbers<[1], [0], [0], [1], [0, 0, 1, 1], [], []>} : vector<152x128xf32>, vector<128x128xf32>, vector<152x128xf32> -> vector<152x128xf32>
      %cst_123 = arith.constant dense<0.000000e+00> : vector<152x128xf32>
      %201 = tpu.matmul %197, %200, %cst_123 {dimension_numbers = #tpu.dot_dimension_numbers<[1], [0], [0], [1], [0, 0, 1, 1], [], []>} : vector<152x152xf32>, vector<152x128xf32>, vector<152x128xf32> -> vector<152x128xf32>
      %202 = arith.addf %arg24, %201 : vector<152x128xf32>
      scf.yield %202 : vector<152x128xf32>
    }
    %c10_i32_33 = arith.constant 10 : i32
    %c0_34 = arith.constant 0 : index
    %c0_35 = arith.constant 0 : index
    %41 = vector.load %arg6[%c0_34, %c0_35] : memref<1x128xf32, #tpu.memory_space<vmem>>, vector<1x128xf32>
    %42 = vector.broadcast %41 : vector<1x128xf32> to vector<152x128xf32>
    %43 = arith.addf %40, %42 : vector<152x128xf32>
    %c152_36 = arith.constant 152 : index
    %c0_37 = arith.constant 0 : index
    %44 = vector.load %arg22[%c152_36, %c0_37] : memref<304x128xf32, #tpu.memory_space<vmem>>, vector<152x128xf32>
    tpu.vector_store %arg22[%c152_36, %c0_37], %43 {strides = array<i32>} : memref<304x128xf32, #tpu.memory_space<vmem>>, vector<152x128xf32>,
    %c0_38 = arith.constant 0 : index
    %c0_39 = arith.constant 0 : index
    %45 = vector.load %arg22[%c0_38, %c0_39] : memref<304x128xf32, #tpu.memory_space<vmem>>, vector<304x128xf32>
    %46 = arith.addf %15, %45 : vector<304x128xf32>
    %c0_40 = arith.constant 0 : index
    %c0_41 = arith.constant 0 : index
    %47 = vector.load %arg7[%c0_40, %c0_41] : memref<1x128xf32, #tpu.memory_space<vmem>>, vector<1x128xf32>
    %c0_42 = arith.constant 0 : index
    %c0_43 = arith.constant 0 : index
    %48 = vector.load %arg8[%c0_42, %c0_43] : memref<1x128xf32, #tpu.memory_space<vmem>>, vector<1x128xf32>
    %49 = vector.broadcast %4 : vector<1x128xf32> to vector<304x128xf32>
    %50 = arith.mulf %46, %49 : vector<304x128xf32>
    %cst_44 = arith.constant dense<0.000000e+00> : vector<304xf32>
    %51 = vector.multi_reduction <add>, %50, %cst_44 [1] : vector<304x128xf32> to vector<304xf32>
    %52 = vector.shape_cast %51 : vector<304xf32> to vector<304x1xf32>
    %cst_45 = arith.constant 0.00999999977 : f32
    %53 = vector.broadcast %cst_45 : f32 to vector<304x1xf32>
    %54 = arith.mulf %52, %53 : vector<304x1xf32>
    %55 = vector.broadcast %54 : vector<304x1xf32> to vector<304x128xf32>
    %56 = arith.subf %50, %55 : vector<304x128xf32>
    %57 = vector.broadcast %4 : vector<1x128xf32> to vector<304x128xf32>
    %58 = arith.mulf %56, %57 : vector<304x128xf32>
    %59 = arith.mulf %58, %58 : vector<304x128xf32>
    %cst_46 = arith.constant dense<0.000000e+00> : vector<304xf32>
    %60 = vector.multi_reduction <add>, %59, %cst_46 [1] : vector<304x128xf32> to vector<304xf32>
    %61 = vector.shape_cast %60 : vector<304xf32> to vector<304x1xf32>
    %cst_47 = arith.constant 0.00999999977 : f32
    %62 = vector.broadcast %cst_47 : f32 to vector<304x1xf32>
    %63 = arith.mulf %61, %62 : vector<304x1xf32>
    %cst_48 = arith.constant 9.99999974E-6 : f32
    %64 = vector.broadcast %cst_48 : f32 to vector<304x1xf32>
    %65 = arith.addf %63, %64 : vector<304x1xf32>
    %66 = math.rsqrt %65 : vector<304x1xf32>
    %67 = vector.broadcast %66 : vector<304x1xf32> to vector<304x128xf32>
    %68 = arith.mulf %58, %67 : vector<304x128xf32>
    %69 = vector.broadcast %47 : vector<1x128xf32> to vector<304x128xf32>
    %70 = arith.mulf %68, %69 : vector<304x128xf32>
    %71 = vector.broadcast %48 : vector<1x128xf32> to vector<304x128xf32>
    %72 = arith.addf %70, %71 : vector<304x128xf32>
    %cst_49 = arith.constant 0.000000e+00 : f32
    %73 = vector.broadcast %cst_49 : f32 to vector<304x128xf32>
    %c0_50 = arith.constant 0 : index
    %c0_51 = arith.constant 0 : index
    %74 = vector.load %arg9[%c0_50, %c0_51] : memref<128x2048xf32, #tpu.memory_space<vmem>>, vector<128x512xf32>
    %cst_52 = arith.constant dense<0.000000e+00> : vector<304x512xf32>
    %75 = tpu.matmul %72, %74, %cst_52 {dimension_numbers = #tpu.dot_dimension_numbers<[1], [0], [0], [1], [0, 0, 1, 1], [], []>} : vector<304x128xf32>, vector<128x512xf32>, vector<304x512xf32> -> vector<304x512xf32>
    %c0_53 = arith.constant 0 : index
    %c0_54 = arith.constant 0 : index
    %76 = vector.load %arg10[%c0_53, %c0_54] : memref<1x2048xf32, #tpu.memory_space<vmem>>, vector<1x512xf32>
    %77 = vector.broadcast %76 : vector<1x512xf32> to vector<304x512xf32>
    %78 = arith.addf %75, %77 : vector<304x512xf32>
    %cst_55 = arith.constant 0.000000e+00 : f32
    %79 = vector.broadcast %cst_55 : f32 to vector<304x512xf32>
    %80 = arith.maximumf %78, %79 : vector<304x512xf32>
    %c0_56 = arith.constant 0 : index
    %c0_57 = arith.constant 0 : index
    %81 = vector.load %arg11[%c0_56, %c0_57] : memref<2048x128xf32, #tpu.memory_space<vmem>>, vector<512x128xf32>
    %cst_58 = arith.constant dense<0.000000e+00> : vector<304x128xf32>
    %82 = tpu.matmul %80, %81, %cst_58 {dimension_numbers = #tpu.dot_dimension_numbers<[1], [0], [0], [1], [0, 0, 1, 1], [], []>} : vector<304x512xf32>, vector<512x128xf32>, vector<304x128xf32> -> vector<304x128xf32>
    %83 = arith.addf %73, %82 : vector<304x128xf32>
    %c0_59 = arith.constant 0 : index
    %c512 = arith.constant 512 : index
    %84 = vector.load %arg9[%c0_59, %c512] : memref<128x2048xf32, #tpu.memory_space<vmem>>, vector<128x512xf32>
    %cst_60 = arith.constant dense<0.000000e+00> : vector<304x512xf32>
    %85 = tpu.matmul %72, %84, %cst_60 {dimension_numbers = #tpu.dot_dimension_numbers<[1], [0], [0], [1], [0, 0, 1, 1], [], []>} : vector<304x128xf32>, vector<128x512xf32>, vector<304x512xf32> -> vector<304x512xf32>
    %c0_61 = arith.constant 0 : index
    %c512_62 = arith.constant 512 : index
    %86 = vector.load %arg10[%c0_61, %c512_62] : memref<1x2048xf32, #tpu.memory_space<vmem>>, vector<1x512xf32>
    %87 = vector.broadcast %86 : vector<1x512xf32> to vector<304x512xf32>
    %88 = arith.addf %85, %87 : vector<304x512xf32>
    %cst_63 = arith.constant 0.000000e+00 : f32
    %89 = vector.broadcast %cst_63 : f32 to vector<304x512xf32>
    %90 = arith.maximumf %88, %89 : vector<304x512xf32>
    %c512_64 = arith.constant 512 : index
    %c0_65 = arith.constant 0 : index
    %91 = vector.load %arg11[%c512_64, %c0_65] : memref<2048x128xf32, #tpu.memory_space<vmem>>, vector<512x128xf32>
    %cst_66 = arith.constant dense<0.000000e+00> : vector<304x128xf32>
    %92 = tpu.matmul %90, %91, %cst_66 {dimension_numbers = #tpu.dot_dimension_numbers<[1], [0], [0], [1], [0, 0, 1, 1], [], []>} : vector<304x512xf32>, vector<512x128xf32>, vector<304x128xf32> -> vector<304x128xf32>
    %93 = arith.addf %83, %92 : vector<304x128xf32>
    %c0_67 = arith.constant 0 : index
    %c1024 = arith.constant 1024 : index
    %94 = vector.load %arg9[%c0_67, %c1024] : memref<128x2048xf32, #tpu.memory_space<vmem>>, vector<128x512xf32>
    %cst_68 = arith.constant dense<0.000000e+00> : vector<304x512xf32>
    %95 = tpu.matmul %72, %94, %cst_68 {dimension_numbers = #tpu.dot_dimension_numbers<[1], [0], [0], [1], [0, 0, 1, 1], [], []>} : vector<304x128xf32>, vector<128x512xf32>, vector<304x512xf32> -> vector<304x512xf32>
    %c0_69 = arith.constant 0 : index
    %c1024_70 = arith.constant 1024 : index
    %96 = vector.load %arg10[%c0_69, %c1024_70] : memref<1x2048xf32, #tpu.memory_space<vmem>>, vector<1x512xf32>
    %97 = vector.broadcast %96 : vector<1x512xf32> to vector<304x512xf32>
    %98 = arith.addf %95, %97 : vector<304x512xf32>
    %cst_71 = arith.constant 0.000000e+00 : f32
    %99 = vector.broadcast %cst_71 : f32 to vector<304x512xf32>
    %100 = arith.maximumf %98, %99 : vector<304x512xf32>
    %c1024_72 = arith.constant 1024 : index
    %c0_73 = arith.constant 0 : index
    %101 = vector.load %arg11[%c1024_72, %c0_73] : memref<2048x128xf32, #tpu.memory_space<vmem>>, vector<512x128xf32>
    %cst_74 = arith.constant dense<0.000000e+00> : vector<304x128xf32>
    %102 = tpu.matmul %100, %101, %cst_74 {dimension_numbers = #tpu.dot_dimension_numbers<[1], [0], [0], [1], [0, 0, 1, 1], [], []>} : vector<304x512xf32>, vector<512x128xf32>, vector<304x128xf32> -> vector<304x128xf32>
    %103 = arith.addf %93, %102 : vector<304x128xf32>
    %c0_75 = arith.constant 0 : index
    %c1536 = arith.constant 1536 : index
    %104 = vector.load %arg9[%c0_75, %c1536] : memref<128x2048xf32, #tpu.memory_space<vmem>>, vector<128x512xf32>
    %cst_76 = arith.constant dense<0.000000e+00> : vector<304x512xf32>
    %105 = tpu.matmul %72, %104, %cst_76 {dimension_numbers = #tpu.dot_dimension_numbers<[1], [0], [0], [1], [0, 0, 1, 1], [], []>} : vector<304x128xf32>, vector<128x512xf32>, vector<304x512xf32> -> vector<304x512xf32>
    %c0_77 = arith.constant 0 : index
    %c1536_78 = arith.constant 1536 : index
    %106 = vector.load %arg10[%c0_77, %c1536_78] : memref<1x2048xf32, #tpu.memory_space<vmem>>, vector<1x512xf32>
    %107 = vector.broadcast %106 : vector<1x512xf32> to vector<304x512xf32>
    %108 = arith.addf %105, %107 : vector<304x512xf32>
    %cst_79 = arith.constant 0.000000e+00 : f32
    %109 = vector.broadcast %cst_79 : f32 to vector<304x512xf32>
    %110 = arith.maximumf %108, %109 : vector<304x512xf32>
    %c1536_80 = arith.constant 1536 : index
    %c0_81 = arith.constant 0 : index
    %111 = vector.load %arg11[%c1536_80, %c0_81] : memref<2048x128xf32, #tpu.memory_space<vmem>>, vector<512x128xf32>
    %cst_82 = arith.constant dense<0.000000e+00> : vector<304x128xf32>
    %112 = tpu.matmul %110, %111, %cst_82 {dimension_numbers = #tpu.dot_dimension_numbers<[1], [0], [0], [1], [0, 0, 1, 1], [], []>} : vector<304x512xf32>, vector<512x128xf32>, vector<304x128xf32> -> vector<304x128xf32>
    %113 = arith.addf %103, %112 : vector<304x128xf32>
    %114 = arith.addf %72, %113 : vector<304x128xf32>
    %c0_83 = arith.constant 0 : index
    %c0_84 = arith.constant 0 : index
    %115 = vector.load %arg12[%c0_83, %c0_84] : memref<1x128xf32, #tpu.memory_space<vmem>>, vector<1x128xf32>
    %116 = vector.broadcast %115 : vector<1x128xf32> to vector<304x128xf32>
    %117 = arith.addf %114, %116 : vector<304x128xf32>
    %c0_85 = arith.constant 0 : index
    %c0_86 = arith.constant 0 : index
    %118 = vector.load %arg13[%c0_85, %c0_86] : memref<1x128xf32, #tpu.memory_space<vmem>>, vector<1x128xf32>
    %c0_87 = arith.constant 0 : index
    %c0_88 = arith.constant 0 : index
    %119 = vector.load %arg14[%c0_87, %c0_88] : memref<1x128xf32, #tpu.memory_space<vmem>>, vector<1x128xf32>
    %120 = vector.broadcast %4 : vector<1x128xf32> to vector<304x128xf32>
    %121 = arith.mulf %117, %120 : vector<304x128xf32>
    %cst_89 = arith.constant dense<0.000000e+00> : vector<304xf32>
    %122 = vector.multi_reduction <add>, %121, %cst_89 [1] : vector<304x128xf32> to vector<304xf32>
    %123 = vector.shape_cast %122 : vector<304xf32> to vector<304x1xf32>
    %cst_90 = arith.constant 0.00999999977 : f32
    %124 = vector.broadcast %cst_90 : f32 to vector<304x1xf32>
    %125 = arith.mulf %123, %124 : vector<304x1xf32>
    %126 = vector.broadcast %125 : vector<304x1xf32> to vector<304x128xf32>
    %127 = arith.subf %121, %126 : vector<304x128xf32>
    %128 = vector.broadcast %4 : vector<1x128xf32> to vector<304x128xf32>
    %129 = arith.mulf %127, %128 : vector<304x128xf32>
    %130 = arith.mulf %129, %129 : vector<304x128xf32>
    %cst_91 = arith.constant dense<0.000000e+00> : vector<304xf32>
    %131 = vector.multi_reduction <add>, %130, %cst_91 [1] : vector<304x128xf32> to vector<304xf32>
    %132 = vector.shape_cast %131 : vector<304xf32> to vector<304x1xf32>
    %cst_92 = arith.constant 0.00999999977 : f32
    %133 = vector.broadcast %cst_92 : f32 to vector<304x1xf32>
    %134 = arith.mulf %132, %133 : vector<304x1xf32>
    %cst_93 = arith.constant 9.99999974E-6 : f32
    %135 = vector.broadcast %cst_93 : f32 to vector<304x1xf32>
    %136 = arith.addf %134, %135 : vector<304x1xf32>
    %137 = math.rsqrt %136 : vector<304x1xf32>
    %138 = vector.broadcast %137 : vector<304x1xf32> to vector<304x128xf32>
    %139 = arith.mulf %129, %138 : vector<304x128xf32>
    %140 = vector.broadcast %118 : vector<1x128xf32> to vector<304x128xf32>
    %141 = arith.mulf %139, %140 : vector<304x128xf32>
    %142 = vector.broadcast %119 : vector<1x128xf32> to vector<304x128xf32>
    %143 = arith.addf %141, %142 : vector<304x128xf32>
    %c0_94 = arith.constant 0 : index
    %c0_95 = arith.constant 0 : index
    %144 = vector.load %arg15[%c0_94, %c0_95] : memref<2x304xf32, #tpu.memory_space<vmem>>, vector<2x304xf32>
    %cst_96 = arith.constant dense<0.000000e+00> : vector<2x128xf32>
    %145 = tpu.matmul %144, %143, %cst_96 {dimension_numbers = #tpu.dot_dimension_numbers<[1], [0], [0], [1], [0, 0, 1, 1], [], []>} : vector<2x304xf32>, vector<304x128xf32>, vector<2x128xf32> -> vector<2x128xf32>
    %c0_97 = arith.constant 0 : index
    %c0_98 = arith.constant 0 : index
    %146 = vector.load %arg16[%c0_97, %c0_98] : memref<128x50xf32, #tpu.memory_space<vmem>>, vector<128x50xf32>
    %cst_99 = arith.constant dense<0.000000e+00> : vector<2x50xf32>
    %147 = tpu.matmul %145, %146, %cst_99 {dimension_numbers = #tpu.dot_dimension_numbers<[1], [0], [0], [1], [0, 0, 1, 1], [], []>} : vector<2x128xf32>, vector<128x50xf32>, vector<2x50xf32> -> vector<2x50xf32>
    %c0_100 = arith.constant 0 : index
    %c0_101 = arith.constant 0 : index
    %148 = vector.load %arg17[%c0_100, %c0_101] : memref<1x50xf32, #tpu.memory_space<vmem>>, vector<1x50xf32>
    %149 = vector.broadcast %148 : vector<1x50xf32> to vector<2x50xf32>
    %150 = arith.addf %147, %149 : vector<2x50xf32>
    %cst_102 = arith.constant 0.000000e+00 : f32
    %151 = vector.broadcast %cst_102 : f32 to vector<2x50xf32>
    %152 = arith.cmpf oge, %150, %151 : vector<2x50xf32>
    %cst_103 = arith.constant 0.00999999977 : f32
    %153 = vector.broadcast %cst_103 : f32 to vector<2x50xf32>
    %154 = arith.mulf %153, %150 : vector<2x50xf32>
    %155 = arith.select %152, %150, %154 : vector<2x50xi1>, vector<2x50xf32>
    %c0_104 = arith.constant 0 : index
    %c0_105 = arith.constant 0 : index
    %156 = vector.load %arg18[%c0_104, %c0_105] : memref<50x3xf32, #tpu.memory_space<vmem>>, vector<50x3xf32>
    %cst_106 = arith.constant dense<0.000000e+00> : vector<2x3xf32>
    %157 = tpu.matmul %155, %156, %cst_106 {dimension_numbers = #tpu.dot_dimension_numbers<[1], [0], [0], [1], [0, 0, 1, 1], [], []>} : vector<2x50xf32>, vector<50x3xf32>, vector<2x3xf32> -> vector<2x3xf32>
    %c0_107 = arith.constant 0 : index
    %c0_108 = arith.constant 0 : index
    %158 = vector.load %arg19[%c0_107, %c0_108] : memref<1x3xf32, #tpu.memory_space<vmem>>, vector<1x3xf32>
    %159 = vector.broadcast %158 : vector<1x3xf32> to vector<2x3xf32>
    %160 = arith.addf %157, %159 : vector<2x3xf32>
    %cst_109 = arith.constant 0.000000e+00 : f32
    %161 = vector.broadcast %cst_109 : f32 to vector<2x3xf32>
    %162 = arith.subf %161, %160 : vector<2x3xf32>
    %163 = math.exp %162 : vector<2x3xf32>
    %cst_110 = arith.constant 1.000000e+00 : f32
    %164 = vector.broadcast %cst_110 : f32 to vector<2x3xf32>
    %165 = arith.addf %164, %163 : vector<2x3xf32>
    %cst_111 = arith.constant 1.000000e+00 : f32
    %166 = vector.broadcast %cst_111 : f32 to vector<2x3xf32>
    %167 = arith.divf %166, %165 : vector<2x3xf32>
    %c0_112 = arith.constant 0 : index
    %c0_113 = arith.constant 0 : index
    %c0_114 = arith.constant 0 : index
    %168 = vector.load %arg20[%c0_112, %c0_113, %c0_114] : memref<1x2x3xf32, #tpu.memory_space<vmem>>, vector<1x2x3xf32>
    %169 = vector.shape_cast %168 : vector<1x2x3xf32> to vector<2x3xf32>
    %170 = vector.shape_cast %167 : vector<2x3xf32> to vector<1x2x3xf32>
    tpu.vector_store %arg20[%c0_112, %c0_113, %c0_114], %170 {strides = array<i32>} : memref<1x2x3xf32, #tpu.memory_space<vmem>>, vector<1x2x3xf32>,
    return
  }
  func.func @transform_0(%arg0: i32) -> (i32, i32) {
    %c0_i32 = arith.constant 0 : i32
    %c0_i32_0 = arith.constant 0 : i32
    return %arg0, %c0_i32 : i32, i32
  }
  func.func @transform_1(%arg0: i32) -> (i32, i32) {
    %c0_i32 = arith.constant 0 : i32
    %c0_i32_0 = arith.constant 0 : i32
    %c0_i32_1 = arith.constant 0 : i32
    return %c0_i32, %c0_i32_0 : i32, i32
  }
  func.func @transform_2(%arg0: i32) -> (i32, i32) {
    %c0_i32 = arith.constant 0 : i32
    %c0_i32_0 = arith.constant 0 : i32
    %c0_i32_1 = arith.constant 0 : i32
    return %c0_i32, %c0_i32_0 : i32, i32
  }
  func.func @transform_3(%arg0: i32) -> (i32, i32) {
    %c0_i32 = arith.constant 0 : i32
    %c0_i32_0 = arith.constant 0 : i32
    %c0_i32_1 = arith.constant 0 : i32
    return %c0_i32, %c0_i32_0 : i32, i32
  }
  func.func @transform_4(%arg0: i32) -> (i32, i32) {
    %c0_i32 = arith.constant 0 : i32
    %c0_i32_0 = arith.constant 0 : i32
    %c0_i32_1 = arith.constant 0 : i32
    return %c0_i32, %c0_i32_0 : i32, i32
  }
  func.func @transform_5(%arg0: i32) -> (i32, i32) {
    %c0_i32 = arith.constant 0 : i32
    %c0_i32_0 = arith.constant 0 : i32
    %c0_i32_1 = arith.constant 0 : i32
    return %c0_i32, %c0_i32_0 : i32, i32
  }
  func.func @transform_6(%arg0: i32) -> (i32, i32) {
    %c0_i32 = arith.constant 0 : i32
    %c0_i32_0 = arith.constant 0 : i32
    %c0_i32_1 = arith.constant 0 : i32
    return %c0_i32, %c0_i32_0 : i32, i32
  }
  func.func @transform_7(%arg0: i32) -> (i32, i32) {
    %c0_i32 = arith.constant 0 : i32
    %c0_i32_0 = arith.constant 0 : i32
    %c0_i32_1 = arith.constant 0 : i32
    return %c0_i32, %c0_i32_0 : i32, i32
  }
  func.func @transform_8(%arg0: i32) -> (i32, i32) {
    %c0_i32 = arith.constant 0 : i32
    %c0_i32_0 = arith.constant 0 : i32
    %c0_i32_1 = arith.constant 0 : i32
    return %c0_i32, %c0_i32_0 : i32, i32
  }
  func.func @transform_9(%arg0: i32) -> (i32, i32) {
    %c0_i32 = arith.constant 0 : i32
    %c0_i32_0 = arith.constant 0 : i32
    %c0_i32_1 = arith.constant 0 : i32
    return %c0_i32, %c0_i32_0 : i32, i32
  }
  func.func @transform_10(%arg0: i32) -> (i32, i32) {
    %c0_i32 = arith.constant 0 : i32
    %c0_i32_0 = arith.constant 0 : i32
    %c0_i32_1 = arith.constant 0 : i32
    return %c0_i32, %c0_i32_0 : i32, i32
  }
  func.func @transform_11(%arg0: i32) -> (i32, i32) {
    %c0_i32 = arith.constant 0 : i32
    %c0_i32_0 = arith.constant 0 : i32
    %c0_i32_1 = arith.constant 0 : i32
    return %c0_i32, %c0_i32_0 : i32, i32
  }
  func.func @transform_12(%arg0: i32) -> (i32, i32) {
    %c0_i32 = arith.constant 0 : i32
    %c0_i32_0 = arith.constant 0 : i32
    %c0_i32_1 = arith.constant 0 : i32
    return %c0_i32, %c0_i32_0 : i32, i32
  }
  func.func @transform_13(%arg0: i32) -> (i32, i32) {
    %c0_i32 = arith.constant 0 : i32
    %c0_i32_0 = arith.constant 0 : i32
    %c0_i32_1 = arith.constant 0 : i32
    return %c0_i32, %c0_i32_0 : i32, i32
  }
  func.func @transform_14(%arg0: i32) -> (i32, i32) {
    %c0_i32 = arith.constant 0 : i32
    %c0_i32_0 = arith.constant 0 : i32
    %c0_i32_1 = arith.constant 0 : i32
    return %c0_i32, %c0_i32_0 : i32, i32
  }
  func.func @transform_15(%arg0: i32) -> (i32, i32) {
    %c0_i32 = arith.constant 0 : i32
    %c0_i32_0 = arith.constant 0 : i32
    %c0_i32_1 = arith.constant 0 : i32
    return %c0_i32, %c0_i32_0 : i32, i32
  }
  func.func @transform_16(%arg0: i32) -> (i32, i32) {
    %c0_i32 = arith.constant 0 : i32
    %c0_i32_0 = arith.constant 0 : i32
    %c0_i32_1 = arith.constant 0 : i32
    return %c0_i32, %c0_i32_0 : i32, i32
  }
  func.func @transform_17(%arg0: i32) -> (i32, i32) {
    %c0_i32 = arith.constant 0 : i32
    %c0_i32_0 = arith.constant 0 : i32
    %c0_i32_1 = arith.constant 0 : i32
    return %c0_i32, %c0_i32_0 : i32, i32
  }
  func.func @transform_18(%arg0: i32) -> (i32, i32) {
    %c0_i32 = arith.constant 0 : i32
    %c0_i32_0 = arith.constant 0 : i32
    %c0_i32_1 = arith.constant 0 : i32
    return %c0_i32, %c0_i32_0 : i32, i32
  }
  func.func @transform_19(%arg0: i32) -> (i32, i32, i32) {
    %c0_i32 = arith.constant 0 : i32
    %c0_i32_0 = arith.constant 0 : i32
    %c0_i32_1 = arith.constant 0 : i32
    return %arg0, %c0_i32, %c0_i32_0 : i32, i32, i32
  }
}

</mosaic_0001>

<llo_original>
// kernel: tpu_custom_call.1
$region0: #{tpu_custom_call.1}
  #allocation0 [shape = 'u32[]', space=smem, size = 0x4, offset = 0x4, fixed_abs, tag = 'smem constant byte address 0x4 - core index']
  #allocation1 [shape = 'u32[72,128]{1,0:T(1,128)}', space=vmem, size = 0x9000, scoped, tag = 'internal scratch']
  #allocation2 [shape = 'f32[304,384]{1,0:T(8,128)}', space=vmem, size = 0x72000, scoped, tag = 'scratch operand']
  #allocation3 [shape = 'f32[304,128]{1,0:T(8,128)}', space=vmem, size = 0x26000, scoped, tag = 'scratch operand']
  %s0 = inlined_call_operand.hbm [shape: f32[304,128], index: 0, kind: input, shape index: {}]
  %s1 = inlined_call_operand.hbm [shape: f32[304,128], index: 1, kind: input, shape index: {}]
  %s2 = inlined_call_operand.hbm [shape: f32[128,384], index: 2, kind: input, shape index: {}]
  %s3 = inlined_call_operand.vmem [shape: f32[1,384], index: 3, kind: input, shape index: {}]
  %s4 = inlined_call_operand.vmem [shape: f32[128,128], index: 4, kind: input, shape index: {}]
  %s5 = inlined_call_operand.vmem [shape: f32[1,128], index: 5, kind: input, shape index: {}]
  %s6 = inlined_call_operand.vmem [shape: f32[1,128], index: 6, kind: input, shape index: {}]
  %s7 = inlined_call_operand.vmem [shape: f32[1,128], index: 7, kind: input, shape index: {}]
  %s8 = inlined_call_operand.hbm [shape: f32[128,2048], index: 8, kind: input, shape index: {}]
  %s9 = inlined_call_operand.vmem [shape: f32[1,2048], index: 9, kind: input, shape index: {}]
  %s10 = inlined_call_operand.hbm [shape: f32[2048,128], index: 10, kind: input, shape index: {}]
  %s11 = inlined_call_operand.vmem [shape: f32[1,128], index: 11, kind: input, shape index: {}]
  %s12 = inlined_call_operand.vmem [shape: f32[1,128], index: 12, kind: input, shape index: {}]
  %s13 = inlined_call_operand.vmem [shape: f32[1,128], index: 13, kind: input, shape index: {}]
  %s14 = inlined_call_operand.vmem [shape: f32[2,304], index: 14, kind: input, shape index: {}]
  %s15 = inlined_call_operand.vmem [shape: f32[128,50], index: 15, kind: input, shape index: {}]
  %s16 = inlined_call_operand.vmem [shape: f32[1,50], index: 16, kind: input, shape index: {}]
  %s17 = inlined_call_operand.vmem [shape: f32[50,3], index: 17, kind: input, shape index: {}]
  %s18 = inlined_call_operand.vmem [shape: f32[1,3], index: 18, kind: input, shape index: {}]
  %s19 = inlined_call_operand.hbm [shape: f32[1,2,3], index: 19, kind: output, shape index: {}]
  %s20 = sld [smem:[#allocation0]]
  $region120: #{tpu_custom_call.1} parent=0
    _
  %s22 = ssub.s32 1, %s20
  %s23 = scalar_select 0, %s22, %s20
  $region1: #{tpu_custom_call.1} parent=0
    #allocation4 [shape = 'u8[155648]{0}', space=vmem, size = 0x26000, scoped, tag = 'input window, operand 0, single buffered']
    #allocation5 [shape = 's32[1]{0}', space=sflag, size = 0x4, scoped, tag = 'scoped memory for tpu_custom_call.1']
    #allocation6 [shape = 's32[1]{0}', space=sflag, size = 0x4, scoped, tag = 'scoped memory for tpu_custom_call.1']
    #allocation7 [shape = 'u8[155648]{0}', space=vmem, size = 0x26000, scoped, tag = 'input window, operand 1, single buffered']
    #allocation8 [shape = 's32[1]{0}', space=sflag, size = 0x4, scoped, tag = 'scoped memory for tpu_custom_call.1']
    #allocation9 [shape = 'u8[196608]{0}', space=vmem, size = 0x30000, scoped, tag = 'input window, operand 2, single buffered']
    #allocation10 [shape = 'u8[1048576]{0}', space=vmem, size = 0x100000, scoped, tag = 'input window, operand 8, single buffered']
    #allocation11 [shape = 's32[1]{0}', space=sflag, size = 0x4, scoped, tag = 'scoped memory for tpu_custom_call.1']
    #allocation12 [shape = 'u8[1048576]{0}', space=vmem, size = 0x100000, scoped, tag = 'input window, operand 10, single buffered']
    #allocation13 [shape = 'u8[1024]{0}', space=vmem, size = 0x400, scoped, tag = 'output window, operand 0, single buffered']
    %24 = vsyncpa [#allocation5], 0
    %25 = vsyncpa [#allocation8], 0
    %26 = vsyncpa [#allocation11], 0
    %27 = vsyncpa [#allocation6], 0
    // Predicated region
    $region2: #{tpu_custom_call.1} parent=1 // pred_check
      _
    $region3: #{tpu_custom_call.1} parent=1 // pred_check_branch
      %29 = sbr.rel (0) target = $region5
    $region4: #{tpu_custom_call.1} parent=1 // pred_region
      %31 = vsyncadd [#allocation5], 0
      %s32 = sshll.u32 %s0, 4
      %s33 = int_to_ptr.hbm [resolvable:$true] %s32
      %s34 = sshll.u32 [#allocation4], 4
      %s35 = int_to_ptr.vmem [resolvable:$true] %s34
      %40 = dma.hbm_to_vmem [thread:$0]  %s33, 4864, %s35, [#allocation5], 128, 128, 8
    $region5: #{tpu_custom_call.1} parent=1 // pred_fallthru
      _
    // Predicated region
    $region6: #{tpu_custom_call.1} parent=1 // pred_check
      _
    $region7: #{tpu_custom_call.1} parent=1 // pred_check_branch
      %42 = sbr.rel (0) target = $region9
    $region8: #{tpu_custom_call.1} parent=1 // pred_region
      %44 = vsyncadd [#allocation8], 0
      %s45 = sshll.u32 %s1, 4
      %s46 = int_to_ptr.hbm [resolvable:$true] %s45
      %s47 = sshll.u32 [#allocation7], 4
      %s48 = int_to_ptr.vmem [resolvable:$true] %s47
      %53 = dma.hbm_to_vmem [thread:$0]  %s46, 4864, %s48, [#allocation8], 128, 128, 8
    $region9: #{tpu_custom_call.1} parent=1 // pred_fallthru
      _
    // Predicated region
    $region10: #{tpu_custom_call.1} parent=1 // pred_check
      _
    $region11: #{tpu_custom_call.1} parent=1 // pred_check_branch
      %55 = sbr.rel (0) target = $region13
    $region12: #{tpu_custom_call.1} parent=1 // pred_region
      %57 = vsyncadd [#allocation8], 0
      %s58 = sshll.u32 %s2, 4
      %s59 = int_to_ptr.hbm [resolvable:$true] %s58
      %s60 = sshll.u32 [#allocation9], 4
      %s61 = int_to_ptr.vmem [resolvable:$true] %s60
      %66 = dma.hbm_to_vmem [thread:$0]  %s59, 6144, %s61, [#allocation8], 384, 384, 24
    $region13: #{tpu_custom_call.1} parent=1 // pred_fallthru
      _
    // Predicated region
    $region14: #{tpu_custom_call.1} parent=1 // pred_check
      _
    $region15: #{tpu_custom_call.1} parent=1 // pred_check_branch
      %68 = sbr.rel (0) target = $region17
    $region16: #{tpu_custom_call.1} parent=1 // pred_region
      _
    $region17: #{tpu_custom_call.1} parent=1 // pred_fallthru
      _
    // Predicated region
    $region18: #{tpu_custom_call.1} parent=1 // pred_check
      _
    $region19: #{tpu_custom_call.1} parent=1 // pred_check_branch
      %70 = sbr.rel (0) target = $region21
    $region20: #{tpu_custom_call.1} parent=1 // pred_region
      _
    $region21: #{tpu_custom_call.1} parent=1 // pred_fallthru
      _
    // Predicated region
    $region22: #{tpu_custom_call.1} parent=1 // pred_check
      _
    $region23: #{tpu_custom_call.1} parent=1 // pred_check_branch
      %72 = sbr.rel (0) target = $region25
    $region24: #{tpu_custom_call.1} parent=1 // pred_region
      _
    $region25: #{tpu_custom_call.1} parent=1 // pred_fallthru
      _
    // Predicated region
    $region26: #{tpu_custom_call.1} parent=1 // pred_check
      _
    $region27: #{tpu_custom_call.1} parent=1 // pred_check_branch
      %74 = sbr.rel (0) target = $region29
    $region28: #{tpu_custom_call.1} parent=1 // pred_region
      _
    $region29: #{tpu_custom_call.1} parent=1 // pred_fallthru
      _
    // Predicated region
    $region30: #{tpu_custom_call.1} parent=1 // pred_check
      _
    $region31: #{tpu_custom_call.1} parent=1 // pred_check_branch
      %76 = sbr.rel (0) target = $region33
    $region32: #{tpu_custom_call.1} parent=1 // pred_region
      _
    $region33: #{tpu_custom_call.1} parent=1 // pred_fallthru
      _
    // Predicated region
    $region34: #{tpu_custom_call.1} parent=1 // pred_check
      _
    $region35: #{tpu_custom_call.1} parent=1 // pred_check_branch
      %78 = sbr.rel (0) target = $region37
    $region36: #{tpu_custom_call.1} parent=1 // pred_region
      %80 = vsyncadd [#allocation11], 0
      %s81 = sshll.u32 %s8, 4
      %s82 = int_to_ptr.hbm [resolvable:$true] %s81
      %s83 = sshll.u32 [#allocation10], 4
      %s84 = int_to_ptr.vmem [resolvable:$true] %s83
      %89 = dma.hbm_to_vmem [thread:$0]  %s82, 32768, %s84, [#allocation11], 2048, 2048, 128
    $region37: #{tpu_custom_call.1} parent=1 // pred_fallthru
      _
    // Predicated region
    $region38: #{tpu_custom_call.1} parent=1 // pred_check
      _
    $region39: #{tpu_custom_call.1} parent=1 // pred_check_branch
      %91 = sbr.rel (0) target = $region41
    $region40: #{tpu_custom_call.1} parent=1 // pred_region
      _
    $region41: #{tpu_custom_call.1} parent=1 // pred_fallthru
      _
    // Predicated region
    $region42: #{tpu_custom_call.1} parent=1 // pred_check
      _
    $region43: #{tpu_custom_call.1} parent=1 // pred_check_branch
      %93 = sbr.rel (0) target = $region45
    $region44: #{tpu_custom_call.1} parent=1 // pred_region
      %95 = vsyncadd [#allocation11], 0
      %s96 = sshll.u32 %s10, 4
      %s97 = int_to_ptr.hbm [resolvable:$true] %s96
      %s98 = sshll.u32 [#allocation12], 4
      %s99 = int_to_ptr.vmem [resolvable:$true] %s98
      %104 = dma.hbm_to_vmem [thread:$0]  %s97, 32768, %s99, [#allocation11], 128, 128, 8
    $region45: #{tpu_custom_call.1} parent=1 // pred_fallthru
      _
    // Predicated region
    $region46: #{tpu_custom_call.1} parent=1 // pred_check
      _
    $region47: #{tpu_custom_call.1} parent=1 // pred_check_branch
      %106 = sbr.rel (0) target = $region49
    $region48: #{tpu_custom_call.1} parent=1 // pred_region
      _
    $region49: #{tpu_custom_call.1} parent=1 // pred_fallthru
      _
    // Predicated region
    $region50: #{tpu_custom_call.1} parent=1 // pred_check
      _
    $region51: #{tpu_custom_call.1} parent=1 // pred_check_branch
      %108 = sbr.rel (0) target = $region53
    $region52: #{tpu_custom_call.1} parent=1 // pred_region
      _
    $region53: #{tpu_custom_call.1} parent=1 // pred_fallthru
      _
    // Predicated region
    $region54: #{tpu_custom_call.1} parent=1 // pred_check
      _
    $region55: #{tpu_custom_call.1} parent=1 // pred_check_branch
      %110 = sbr.rel (0) target = $region57
    $region56: #{tpu_custom_call.1} parent=1 // pred_region
      _
    $region57: #{tpu_custom_call.1} parent=1 // pred_fallthru
      _
    // Predicated region
    $region58: #{tpu_custom_call.1} parent=1 // pred_check
      _
    $region59: #{tpu_custom_call.1} parent=1 // pred_check_branch
      %112 = sbr.rel (0) target = $region61
    $region60: #{tpu_custom_call.1} parent=1 // pred_region
      _
    $region61: #{tpu_custom_call.1} parent=1 // pred_fallthru
      _
    // Predicated region
    $region62: #{tpu_custom_call.1} parent=1 // pred_check
      _
    $region63: #{tpu_custom_call.1} parent=1 // pred_check_branch
      %114 = sbr.rel (0) target = $region65
    $region64: #{tpu_custom_call.1} parent=1 // pred_region
      _
    $region65: #{tpu_custom_call.1} parent=1 // pred_fallthru
      _
    // Predicated region
    $region66: #{tpu_custom_call.1} parent=1 // pred_check
      _
    $region67: #{tpu_custom_call.1} parent=1 // pred_check_branch
      %116 = sbr.rel (0) target = $region69
    $region68: #{tpu_custom_call.1} parent=1 // pred_region
      _
    $region69: #{tpu_custom_call.1} parent=1 // pred_fallthru
      _
    // Predicated region
    $region70: #{tpu_custom_call.1} parent=1 // pred_check
      _
    $region71: #{tpu_custom_call.1} parent=1 // pred_check_branch
      %118 = sbr.rel (0) target = $region73
    $region72: #{tpu_custom_call.1} parent=1 // pred_region
      _
    $region73: #{tpu_custom_call.1} parent=1 // pred_fallthru
      _
    // Predicated region
    $region74: #{tpu_custom_call.1} parent=1 // pred_check
      _
    $region75: #{tpu_custom_call.1} parent=1 // pred_check_branch
      %120 = sbr.rel (0) target = $region77
    $region76: #{tpu_custom_call.1} parent=1 // pred_region
      _
    $region77: #{tpu_custom_call.1} parent=1 // pred_fallthru
      _
    // Predicated region
    $region78: #{tpu_custom_call.1} parent=1 // pred_check
      _
    $region79: #{tpu_custom_call.1} parent=1 // pred_check_branch
      %122 = sbr.rel (0) target = $region81
    $region80: #{tpu_custom_call.1} parent=1 // pred_region
      %124 = dma.done [#allocation5], 4864
    $region81: #{tpu_custom_call.1} parent=1 // pred_fallthru
      _
    // Predicated region
    $region82: #{tpu_custom_call.1} parent=1 // pred_check
      _
    $region83: #{tpu_custom_call.1} parent=1 // pred_check_branch
      %126 = sbr.rel (0) target = $region85
    $region84: #{tpu_custom_call.1} parent=1 // pred_region
      %128 = dma.done [#allocation8], 4864
    $region85: #{tpu_custom_call.1} parent=1 // pred_fallthru
      _
    // Predicated region
    $region86: #{tpu_custom_call.1} parent=1 // pred_check
      _
    $region87: #{tpu_custom_call.1} parent=1 // pred_check_branch
      %130 = sbr.rel (0) target = $region89
    $region88: #{tpu_custom_call.1} parent=1 // pred_region
      %132 = dma.done [#allocation8], 6144
    $region89: #{tpu_custom_call.1} parent=1 // pred_fallthru
      _
    // Predicated region
    $region90: #{tpu_custom_call.1} parent=1 // pred_check
      _
    $region91: #{tpu_custom_call.1} parent=1 // pred_check_branch
      %134 = sbr.rel (0) target = $region93
    $region92: #{tpu_custom_call.1} parent=1 // pred_region
      %136 = dma.done [#allocation11], 32768
    $region93: #{tpu_custom_call.1} parent=1 // pred_fallthru
      _
    // Predicated region
    $region94: #{tpu_custom_call.1} parent=1 // pred_check
      _
    $region95: #{tpu_custom_call.1} parent=1 // pred_check_branch
      %138 = sbr.rel (0) target = $region97
    $region96: #{tpu_custom_call.1} parent=1 // pred_region
      %140 = dma.done [#allocation11], 32768
    $region97: #{tpu_custom_call.1} parent=1 // pred_fallthru
      _
    %v141 = vlaneseq
    %v142 = vand.u32 %v141, 127
    %vm143 = vcmp.lt.s32.totalorder %v142, 100
    %v144 = vsel %vm143, 1, 0
    %v145 = vcvt.s32.f32 %v144
    %v146 = vadd.s32 %v142, 128
    %vm147 = vcmp.lt.s32.totalorder %v142, 150
    %vm148 = vcmp.lt.s32.totalorder %v146, 150
    %v149 = vsel %vm147, 0.0, -1e+30
    %v150 = vsel %vm148, 0.0, -1e+30
    %v151 = vld [vmem:[#allocation4] sm:$0xff]
    %v152 = vld [vmem:[#allocation4 + $0x8] sm:$0xff]
    %v153 = vld [vmem:[#allocation4 + $0x10] sm:$0xff]
    %v154 = vld [vmem:[#allocation4 + $0x18] sm:$0xff]
    %v155 = vld [vmem:[#allocation4 + $0x20] sm:$0xff]
    %v156 = vld [vmem:[#allocation4 + $0x28] sm:$0xff]
    %v157 = vld [vmem:[#allocation4 + $0x30] sm:$0xff]
    %v158 = vld [vmem:[#allocation4 + $0x38] sm:$0xff]
    %v159 = vld [vmem:[#allocation4 + $0x40] sm:$0xff]
    %v160 = vld [vmem:[#allocation4 + $0x48] sm:$0xff]
    %v161 = vld [vmem:[#allocation4 + $0x50] sm:$0xff]
    %v162 = vld [vmem:[#allocation4 + $0x58] sm:$0xff]
    %v163 = vld [vmem:[#allocation4 + $0x60] sm:$0xff]
    %v164 = vld [vmem:[#allocation4 + $0x68] sm:$0xff]
    %v165 = vld [vmem:[#allocation4 + $0x70] sm:$0xff]
    %v166 = vld [vmem:[#allocation4 + $0x78] sm:$0xff]
    %v167 = vld [vmem:[#allocation4 + $0x80] sm:$0xff]
    %v168 = vld [vmem:[#allocation4 + $0x88] sm:$0xff]
    %v169 = vld [vmem:[#allocation4 + $0x90] sm:$0xff]
    %v170 = vld [vmem:[#allocation4 + $0x98] sm:$0xff]
    %v171 = vld [vmem:[#allocation4 + $0xa0] sm:$0xff]
    %v172 = vld [vmem:[#allocation4 + $0xa8] sm:$0xff]
    %v173 = vld [vmem:[#allocation4 + $0xb0] sm:$0xff]
    %v174 = vld [vmem:[#allocation4 + $0xb8] sm:$0xff]
    %v175 = vld [vmem:[#allocation4 + $0xc0] sm:$0xff]
    %v176 = vld [vmem:[#allocation4 + $0xc8] sm:$0xff]
    %v177 = vld [vmem:[#allocation4 + $0xd0] sm:$0xff]
    %v178 = vld [vmem:[#allocation4 + $0xd8] sm:$0xff]
    %v179 = vld [vmem:[#allocation4 + $0xe0] sm:$0xff]
    %v180 = vld [vmem:[#allocation4 + $0xe8] sm:$0xff]
    %v181 = vld [vmem:[#allocation4 + $0xf0] sm:$0xff]
    %v182 = vld [vmem:[#allocation4 + $0xf8] sm:$0xff]
    %v183 = vld [vmem:[#allocation4 + $0x100] sm:$0xff]
    %v184 = vld [vmem:[#allocation4 + $0x108] sm:$0xff]
    %v185 = vld [vmem:[#allocation4 + $0x110] sm:$0xff]
    %v186 = vld [vmem:[#allocation4 + $0x118] sm:$0xff]
    %v187 = vld [vmem:[#allocation4 + $0x120] sm:$0xff]
    %v188 = vld [vmem:[#allocation4 + $0x128] sm:$0xff]
    %v189 = vmul.f32 %v151, 10.0
    %v190 = vmul.f32 %v152, 10.0
    %v191 = vmul.f32 %v153, 10.0
    %v192 = vmul.f32 %v154, 10.0
    %v193 = vmul.f32 %v155, 10.0
    %v194 = vmul.f32 %v156, 10.0
    %v195 = vmul.f32 %v157, 10.0
    %v196 = vmul.f32 %v158, 10.0
    %v197 = vmul.f32 %v159, 10.0
    %v198 = vmul.f32 %v160, 10.0
    %v199 = vmul.f32 %v161, 10.0
    %v200 = vmul.f32 %v162, 10.0
    %v201 = vmul.f32 %v163, 10.0
    %v202 = vmul.f32 %v164, 10.0
    %v203 = vmul.f32 %v165, 10.0
    %v204 = vmul.f32 %v166, 10.0
    %v205 = vmul.f32 %v167, 10.0
    %v206 = vmul.f32 %v168, 10.0
    %v207 = vmul.f32 %v169, 10.0
    %v208 = vmul.f32 %v170, 10.0
    %v209 = vmul.f32 %v171, 10.0
    %v210 = vmul.f32 %v172, 10.0
    %v211 = vmul.f32 %v173, 10.0
    %v212 = vmul.f32 %v174, 10.0
    %v213 = vmul.f32 %v175, 10.0
    %v214 = vmul.f32 %v176, 10.0
    %v215 = vmul.f32 %v177, 10.0
    %v216 = vmul.f32 %v178, 10.0
    %v217 = vmul.f32 %v179, 10.0
    %v218 = vmul.f32 %v180, 10.0
    %v219 = vmul.f32 %v181, 10.0
    %v220 = vmul.f32 %v182, 10.0
    %v221 = vmul.f32 %v183, 10.0
    %v222 = vmul.f32 %v184, 10.0
    %v223 = vmul.f32 %v185, 10.0
    %v224 = vmul.f32 %v186, 10.0
    %v225 = vmul.f32 %v187, 10.0
    %v226 = vmul.f32 %v188, 10.0
    %v227 = vld [vmem:[#allocation7] sm:$0xff]
    %v228 = vld [vmem:[#allocation7 + $0x8] sm:$0xff]
    %v229 = vld [vmem:[#allocation7 + $0x10] sm:$0xff]
    %v230 = vld [vmem:[#allocation7 + $0x18] sm:$0xff]
    %v231 = vld [vmem:[#allocation7 + $0x20] sm:$0xff]
    %v232 = vld [vmem:[#allocation7 + $0x28] sm:$0xff]
    %v233 = vld [vmem:[#allocation7 + $0x30] sm:$0xff]
    %v234 = vld [vmem:[#allocation7 + $0x38] sm:$0xff]
    %v235 = vld [vmem:[#allocation7 + $0x40] sm:$0xff]
    %v236 = vld [vmem:[#allocation7 + $0x48] sm:$0xff]
    %v237 = vld [vmem:[#allocation7 + $0x50] sm:$0xff]
    %v238 = vld [vmem:[#allocation7 + $0x58] sm:$0xff]
    %v239 = vld [vmem:[#allocation7 + $0x60] sm:$0xff]
    %v240 = vld [vmem:[#allocation7 + $0x68] sm:$0xff]
    %v241 = vld [vmem:[#allocation7 + $0x70] sm:$0xff]
    %v242 = vld [vmem:[#allocation7 + $0x78] sm:$0xff]
    %v243 = vld [vmem:[#allocation7 + $0x80] sm:$0xff]
    %v244 = vld [vmem:[#allocation7 + $0x88] sm:$0xff]
    %v245 = vld [vmem:[#allocation7 + $0x90] sm:$0xff]
    %v246 = vld [vmem:[#allocation7 + $0x98] sm:$0xff]
    %v247 = vld [vmem:[#allocation7 + $0xa0] sm:$0xff]
    %v248 = vld [vmem:[#allocation7 + $0xa8] sm:$0xff]
    %v249 = vld [vmem:[#allocation7 + $0xb0] sm:$0xff]
    %v250 = vld [vmem:[#allocation7 + $0xb8] sm:$0xff]
    %v251 = vld [vmem:[#allocation7 + $0xc0] sm:$0xff]
    %v252 = vld [vmem:[#allocation7 + $0xc8] sm:$0xff]
    %v253 = vld [vmem:[#allocation7 + $0xd0] sm:$0xff]
    %v254 = vld [vmem:[#allocation7 + $0xd8] sm:$0xff]
    %v255 = vld [vmem:[#allocation7 + $0xe0] sm:$0xff]
    %v256 = vld [vmem:[#allocation7 + $0xe8] sm:$0xff]
    %v257 = vld [vmem:[#allocation7 + $0xf0] sm:$0xff]
    %v258 = vld [vmem:[#allocation7 + $0xf8] sm:$0xff]
    %v259 = vld [vmem:[#allocation7 + $0x100] sm:$0xff]
    %v260 = vld [vmem:[#allocation7 + $0x108] sm:$0xff]
    %v261 = vld [vmem:[#allocation7 + $0x110] sm:$0xff]
    %v262 = vld [vmem:[#allocation7 + $0x118] sm:$0xff]
    %v263 = vld [vmem:[#allocation7 + $0x120] sm:$0xff]
    %v264 = vld [vmem:[#allocation7 + $0x128] sm:$0xff]
    %v265 = vadd.f32 %v189, %v227
    %v266 = vadd.f32 %v190, %v228
    %v267 = vadd.f32 %v191, %v229
    %v268 = vadd.f32 %v192, %v230
    %v269 = vadd.f32 %v193, %v231
    %v270 = vadd.f32 %v194, %v232
    %v271 = vadd.f32 %v195, %v233
    %v272 = vadd.f32 %v196, %v234
    %v273 = vadd.f32 %v197, %v235
    %v274 = vadd.f32 %v198, %v236
    %v275 = vadd.f32 %v199, %v237
    %v276 = vadd.f32 %v200, %v238
    %v277 = vadd.f32 %v201, %v239
    %v278 = vadd.f32 %v202, %v240
    %v279 = vadd.f32 %v203, %v241
    %v280 = vadd.f32 %v204, %v242
    %v281 = vadd.f32 %v205, %v243
    %v282 = vadd.f32 %v206, %v244
    %v283 = vadd.f32 %v207, %v245
    %v284 = vadd.f32 %v208, %v246
    %v285 = vadd.f32 %v209, %v247
    %v286 = vadd.f32 %v210, %v248
    %v287 = vadd.f32 %v211, %v249
    %v288 = vadd.f32 %v212, %v250
    %v289 = vadd.f32 %v213, %v251
    %v290 = vadd.f32 %v214, %v252
    %v291 = vadd.f32 %v215, %v253
    %v292 = vadd.f32 %v216, %v254
    %v293 = vadd.f32 %v217, %v255
    %v294 = vadd.f32 %v218, %v256
    %v295 = vadd.f32 %v219, %v257
    %v296 = vadd.f32 %v220, %v258
    %v297 = vadd.f32 %v221, %v259
    %v298 = vadd.f32 %v222, %v260
    %v299 = vadd.f32 %v223, %v261
    %v300 = vadd.f32 %v224, %v262
    %v301 = vadd.f32 %v225, %v263
    %v302 = vadd.f32 %v226, %v264
    %v303 = vld [vmem:[#allocation9] sm:$0xff]
    %v304 = vld [vmem:[#allocation9 + $0x8] sm:$0xff]
    %v305 = vld [vmem:[#allocation9 + $0x10] sm:$0xff]
    %v306 = vld [vmem:[#allocation9 + $0x18] sm:$0xff]
    %v307 = vld [vmem:[#allocation9 + $0x20] sm:$0xff]
    %v308 = vld [vmem:[#allocation9 + $0x28] sm:$0xff]
    %v309 = vld [vmem:[#allocation9 + $0x30] sm:$0xff]
    %v310 = vld [vmem:[#allocation9 + $0x38] sm:$0xff]
    %v311 = vld [vmem:[#allocation9 + $0x40] sm:$0xff]
    %v312 = vld [vmem:[#allocation9 + $0x48] sm:$0xff]
    %v313 = vld [vmem:[#allocation9 + $0x50] sm:$0xff]
    %v314 = vld [vmem:[#allocation9 + $0x58] sm:$0xff]
    %v315 = vld [vmem:[#allocation9 + $0x60] sm:$0xff]
    %v316 = vld [vmem:[#allocation9 + $0x68] sm:$0xff]
    %v317 = vld [vmem:[#allocation9 + $0x70] sm:$0xff]
    %v318 = vld [vmem:[#allocation9 + $0x78] sm:$0xff]
    %v319 = vld [vmem:[#allocation9 + $0x80] sm:$0xff]
    %v320 = vld [vmem:[#allocation9 + $0x88] sm:$0xff]
    %v321 = vld [vmem:[#allocation9 + $0x90] sm:$0xff]
    %v322 = vld [vmem:[#allocation9 + $0x98] sm:$0xff]
    %v323 = vld [vmem:[#allocation9 + $0xa0] sm:$0xff]
    %v324 = vld [vmem:[#allocation9 + $0xa8] sm:$0xff]
    %v325 = vld [vmem:[#allocation9 + $0xb0] sm:$0xff]
    %v326 = vld [vmem:[#allocation9 + $0xb8] sm:$0xff]
    %v327 = vld [vmem:[#allocation9 + $0xc0] sm:$0xff]
    %v328 = vld [vmem:[#allocation9 + $0xc8] sm:$0xff]
    %v329 = vld [vmem:[#allocation9 + $0xd0] sm:$0xff]
    %v330 = vld [vmem:[#allocation9 + $0xd8] sm:$0xff]
    %v331 = vld [vmem:[#allocation9 + $0xe0] sm:$0xff]
    %v332 = vld [vmem:[#allocation9 + $0xe8] sm:$0xff]
    %v333 = vld [vmem:[#allocation9 + $0xf0] sm:$0xff]
    %v334 = vld [vmem:[#allocation9 + $0xf8] sm:$0xff]
    %v335 = vld [vmem:[#allocation9 + $0x100] sm:$0xff]
    %v336 = vld [vmem:[#allocation9 + $0x108] sm:$0xff]
    %v337 = vld [vmem:[#allocation9 + $0x110] sm:$0xff]
    %v338 = vld [vmem:[#allocation9 + $0x118] sm:$0xff]
    %v339 = vld [vmem:[#allocation9 + $0x120] sm:$0xff]
    %v340 = vld [vmem:[#allocation9 + $0x128] sm:$0xff]
    %v341 = vld [vmem:[#allocation9 + $0x130] sm:$0xff]
    %v342 = vld [vmem:[#allocation9 + $0x138] sm:$0xff]
    %v343 = vld [vmem:[#allocation9 + $0x140] sm:$0xff]
    %v344 = vld [vmem:[#allocation9 + $0x148] sm:$0xff]
    %v345 = vld [vmem:[#allocation9 + $0x150] sm:$0xff]
    %v346 = vld [vmem:[#allocation9 + $0x158] sm:$0xff]
    %v347 = vld [vmem:[#allocation9 + $0x160] sm:$0xff]
    %v348 = vld [vmem:[#allocation9 + $0x168] sm:$0xff]
    %v349 = vld [vmem:[#allocation9 + $0x170] sm:$0xff]
    %v350 = vld [vmem:[#allocation9 + $0x178] sm:$0xff]
    %v351 = vld [vmem:[%s3] sm:$0x7]
    %v353 = vperm.slane %v351, 0
    %v354 = vperm.slane %v351, 1
    %v355 = vperm.slane %v351, 2
    %359 = vmatpush.msra.mxu0 %v348
    %360 = vmatpush.msra.mxu0 %v345
    %361 = vmatpush.msra.mxu0 %v342
    %362 = vmatpush.msra.mxu0 %v339
    %363 = vmatpush.msra.mxu0 %v336
    %364 = vmatpush.msra.mxu0 %v333
    %365 = vmatpush.msra.mxu0 %v330
    %366 = vmatpush.msra.mxu0 %v327
    %367 = vmatpush.msra.mxu0 %v324
    %368 = vmatpush.msra.mxu0 %v321
    %369 = vmatpush.msra.mxu0 %v318
    %370 = vmatpush.msra.mxu0 %v315
    %371 = vmatpush.msra.mxu0 %v312
    %372 = vmatpush.msra.mxu0 %v309
    %373 = vmatpush.msra.mxu0 %v306
    %374 = vmatpush.msra.mxu0 %v303
    %375 = vmatmul.f32.gmra.mxu0 %v265
    %v376 = vpop.f32.mrf.mxu0
    %v377 = vadd.f32 %v353, %v376
    %378 = vmatmul.f32.gmra.mxu0 %v266
    %v379 = vpop.f32.mrf.mxu0
    %v380 = vadd.f32 %v353, %v379
    %381 = vmatmul.f32.gmra.mxu0 %v267
    %v382 = vpop.f32.mrf.mxu0
    %v383 = vadd.f32 %v353, %v382
    %384 = vmatmul.f32.gmra.mxu0 %v268
    %v385 = vpop.f32.mrf.mxu0
    %v386 = vadd.f32 %v353, %v385
    %387 = vmatmul.f32.gmra.mxu0 %v269
    %v388 = vpop.f32.mrf.mxu0
    %v389 = vadd.f32 %v353, %v388
    %390 = vmatmul.f32.gmra.mxu0 %v270
    %v391 = vpop.f32.mrf.mxu0
    %v392 = vadd.f32 %v353, %v391
    %393 = vmatmul.f32.gmra.mxu0 %v271
    %v394 = vpop.f32.mrf.mxu0
    %v395 = vadd.f32 %v353, %v394
    %396 = vmatmul.f32.gmra.mxu0 %v272
    %v397 = vpop.f32.mrf.mxu0
    %v398 = vadd.f32 %v353, %v397
    %399 = vmatmul.f32.gmra.mxu0 %v273
    %v400 = vpop.f32.mrf.mxu0
    %v401 = vadd.f32 %v353, %v400
    %402 = vmatmul.f32.gmra.mxu0 %v274
    %v403 = vpop.f32.mrf.mxu0
    %v404 = vadd.f32 %v353, %v403
    %405 = vmatmul.f32.gmra.mxu0 %v275
    %v406 = vpop.f32.mrf.mxu0
    %v407 = vadd.f32 %v353, %v406
    %408 = vmatmul.f32.gmra.mxu0 %v276
    %v409 = vpop.f32.mrf.mxu0
    %v410 = vadd.f32 %v353, %v409
    %411 = vmatmul.f32.gmra.mxu0 %v277
    %v412 = vpop.f32.mrf.mxu0
    %v413 = vadd.f32 %v353, %v412
    %414 = vmatmul.f32.gmra.mxu0 %v278
    %v415 = vpop.f32.mrf.mxu0
    %v416 = vadd.f32 %v353, %v415
    %417 = vmatmul.f32.gmra.mxu0 %v279
    %v418 = vpop.f32.mrf.mxu0
    %v419 = vadd.f32 %v353, %v418
    %420 = vmatmul.f32.gmra.mxu0 %v280
    %v421 = vpop.f32.mrf.mxu0
    %v422 = vadd.f32 %v353, %v421
    %423 = vmatmul.f32.gmra.mxu0 %v281
    %v424 = vpop.f32.mrf.mxu0
    %v425 = vadd.f32 %v353, %v424
    %426 = vmatmul.f32.gmra.mxu0 %v282
    %v427 = vpop.f32.mrf.mxu0
    %v428 = vadd.f32 %v353, %v427
    %429 = vmatmul.f32.gmra.mxu0 %v283
    %v430 = vpop.f32.mrf.mxu0
    %v431 = vadd.f32 %v353, %v430
    %432 = vmatmul.f32.gmra.mxu0 %v284
    %v433 = vpop.f32.mrf.mxu0
    %v434 = vadd.f32 %v353, %v433
    %435 = vmatmul.f32.gmra.mxu0 %v285
    %v436 = vpop.f32.mrf.mxu0
    %v437 = vadd.f32 %v353, %v436
    %438 = vmatmul.f32.gmra.mxu0 %v286
    %v439 = vpop.f32.mrf.mxu0
    %v440 = vadd.f32 %v353, %v439
    %441 = vmatmul.f32.gmra.mxu0 %v287
    %v442 = vpop.f32.mrf.mxu0
    %v443 = vadd.f32 %v353, %v442
    %444 = vmatmul.f32.gmra.mxu0 %v288
    %v445 = vpop.f32.mrf.mxu0
    %v446 = vadd.f32 %v353, %v445
    %447 = vmatmul.f32.gmra.mxu0 %v289
    %v448 = vpop.f32.mrf.mxu0
    %v449 = vadd.f32 %v353, %v448
    %450 = vmatmul.f32.gmra.mxu0 %v290
    %v451 = vpop.f32.mrf.mxu0
    %v452 = vadd.f32 %v353, %v451
    %453 = vmatmul.f32.gmra.mxu0 %v291
    %v454 = vpop.f32.mrf.mxu0
    %v455 = vadd.f32 %v353, %v454
    %456 = vmatmul.f32.gmra.mxu0 %v292
    %v457 = vpop.f32.mrf.mxu0
    %v458 = vadd.f32 %v353, %v457
    %459 = vmatmul.f32.gmra.mxu0 %v293
    %v460 = vpop.f32.mrf.mxu0
    %v461 = vadd.f32 %v353, %v460
    %462 = vmatmul.f32.gmra.mxu0 %v294
    %v463 = vpop.f32.mrf.mxu0
    %v464 = vadd.f32 %v353, %v463
    %465 = vmatmul.f32.gmra.mxu0 %v295
    %v466 = vpop.f32.mrf.mxu0
    %v467 = vadd.f32 %v353, %v466
    %468 = vmatmul.f32.gmra.mxu0 %v296
    %v469 = vpop.f32.mrf.mxu0
    %v470 = vadd.f32 %v353, %v469
    %471 = vmatmul.f32.gmra.mxu0 %v297
    %v472 = vpop.f32.mrf.mxu0
    %v473 = vadd.f32 %v353, %v472
    %474 = vmatmul.f32.gmra.mxu0 %v298
    %v475 = vpop.f32.mrf.mxu0
    %v476 = vadd.f32 %v353, %v475
    %477 = vmatmul.f32.gmra.mxu0 %v299
    %v478 = vpop.f32.mrf.mxu0
    %v479 = vadd.f32 %v353, %v478
    %480 = vmatmul.f32.gmra.mxu0 %v300
    %v481 = vpop.f32.mrf.mxu0
    %v482 = vadd.f32 %v353, %v481
    %483 = vmatmul.f32.gmra.mxu0 %v301
    %v484 = vpop.f32.mrf.mxu0
    %v485 = vadd.f32 %v353, %v484
    %486 = vmatmul.f32.gmra.mxu0 %v302
    %v487 = vpop.f32.mrf.mxu0
    %v488 = vadd.f32 %v353, %v487
    %489 = vdwg.mxu0
    %490 = vmatpush.msra.mxu0 %v349
    %491 = vmatpush.msra.mxu0 %v346
    %492 = vmatpush.msra.mxu0 %v343
    %493 = vmatpush.msra.mxu0 %v340
    %494 = vmatpush.msra.mxu0 %v337
    %495 = vmatpush.msra.mxu0 %v334
    %496 = vmatpush.msra.mxu0 %v331
    %497 = vmatpush.msra.mxu0 %v328
    %498 = vmatpush.msra.mxu0 %v325
    %499 = vmatpush.msra.mxu0 %v322
    %500 = vmatpush.msra.mxu0 %v319
    %501 = vmatpush.msra.mxu0 %v316
    %502 = vmatpush.msra.mxu0 %v313
    %503 = vmatpush.msra.mxu0 %v310
    %504 = vmatpush.msra.mxu0 %v307
    %505 = vmatpush.msra.mxu0 %v304
    %506 = vmatmul.f32.gmra.mxu0 %v265
    %v507 = vpop.f32.mrf.mxu0
    %v508 = vadd.f32 %v354, %v507
    %509 = vmatmul.f32.gmra.mxu0 %v266
    %v510 = vpop.f32.mrf.mxu0
    %v511 = vadd.f32 %v354, %v510
    %512 = vmatmul.f32.gmra.mxu0 %v267
    %v513 = vpop.f32.mrf.mxu0
    %v514 = vadd.f32 %v354, %v513
    %515 = vmatmul.f32.gmra.mxu0 %v268
    %v516 = vpop.f32.mrf.mxu0
    %v517 = vadd.f32 %v354, %v516
    %518 = vmatmul.f32.gmra.mxu0 %v269
    %v519 = vpop.f32.mrf.mxu0
    %v520 = vadd.f32 %v354, %v519
    %521 = vmatmul.f32.gmra.mxu0 %v270
    %v522 = vpop.f32.mrf.mxu0
    %v523 = vadd.f32 %v354, %v522
    %524 = vmatmul.f32.gmra.mxu0 %v271
    %v525 = vpop.f32.mrf.mxu0
    %v526 = vadd.f32 %v354, %v525
    %527 = vmatmul.f32.gmra.mxu0 %v272
    %v528 = vpop.f32.mrf.mxu0
    %v529 = vadd.f32 %v354, %v528
    %530 = vmatmul.f32.gmra.mxu0 %v273
    %v531 = vpop.f32.mrf.mxu0
    %v532 = vadd.f32 %v354, %v531
    %533 = vmatmul.f32.gmra.mxu0 %v274
    %v534 = vpop.f32.mrf.mxu0
    %v535 = vadd.f32 %v354, %v534
    %536 = vmatmul.f32.gmra.mxu0 %v275
    %v537 = vpop.f32.mrf.mxu0
    %v538 = vadd.f32 %v354, %v537
    %539 = vmatmul.f32.gmra.mxu0 %v276
    %v540 = vpop.f32.mrf.mxu0
    %v541 = vadd.f32 %v354, %v540
    %542 = vmatmul.f32.gmra.mxu0 %v277
    %v543 = vpop.f32.mrf.mxu0
    %v544 = vadd.f32 %v354, %v543
    %545 = vmatmul.f32.gmra.mxu0 %v278
    %v546 = vpop.f32.mrf.mxu0
    %v547 = vadd.f32 %v354, %v546
    %548 = vmatmul.f32.gmra.mxu0 %v279
    %v549 = vpop.f32.mrf.mxu0
    %v550 = vadd.f32 %v354, %v549
    %551 = vmatmul.f32.gmra.mxu0 %v280
    %v552 = vpop.f32.mrf.mxu0
    %v553 = vadd.f32 %v354, %v552
    %554 = vmatmul.f32.gmra.mxu0 %v281
    %v555 = vpop.f32.mrf.mxu0
    %v556 = vadd.f32 %v354, %v555
    %557 = vmatmul.f32.gmra.mxu0 %v282
    %v558 = vpop.f32.mrf.mxu0
    %v559 = vadd.f32 %v354, %v558
    %560 = vmatmul.f32.gmra.mxu0 %v283
    %v561 = vpop.f32.mrf.mxu0
    %v562 = vadd.f32 %v354, %v561
    %563 = vmatmul.f32.gmra.mxu0 %v284
    %v564 = vpop.f32.mrf.mxu0
    %v565 = vadd.f32 %v354, %v564
    %566 = vmatmul.f32.gmra.mxu0 %v285
    %v567 = vpop.f32.mrf.mxu0
    %v568 = vadd.f32 %v354, %v567
    %569 = vmatmul.f32.gmra.mxu0 %v286
    %v570 = vpop.f32.mrf.mxu0
    %v571 = vadd.f32 %v354, %v570
    %572 = vmatmul.f32.gmra.mxu0 %v287
    %v573 = vpop.f32.mrf.mxu0
    %v574 = vadd.f32 %v354, %v573
    %575 = vmatmul.f32.gmra.mxu0 %v288
    %v576 = vpop.f32.mrf.mxu0
    %v577 = vadd.f32 %v354, %v576
    %578 = vmatmul.f32.gmra.mxu0 %v289
    %v579 = vpop.f32.mrf.mxu0
    %v580 = vadd.f32 %v354, %v579
    %581 = vmatmul.f32.gmra.mxu0 %v290
    %v582 = vpop.f32.mrf.mxu0
    %v583 = vadd.f32 %v354, %v582
    %584 = vmatmul.f32.gmra.mxu0 %v291
    %v585 = vpop.f32.mrf.mxu0
    %v586 = vadd.f32 %v354, %v585
    %587 = vmatmul.f32.gmra.mxu0 %v292
    %v588 = vpop.f32.mrf.mxu0
    %v589 = vadd.f32 %v354, %v588
    %590 = vmatmul.f32.gmra.mxu0 %v293
    %v591 = vpop.f32.mrf.mxu0
    %v592 = vadd.f32 %v354, %v591
    %593 = vmatmul.f32.gmra.mxu0 %v294
    %v594 = vpop.f32.mrf.mxu0
    %v595 = vadd.f32 %v354, %v594
    %596 = vmatmul.f32.gmra.mxu0 %v295
    %v597 = vpop.f32.mrf.mxu0
    %v598 = vadd.f32 %v354, %v597
    %599 = vmatmul.f32.gmra.mxu0 %v296
    %v600 = vpop.f32.mrf.mxu0
    %v601 = vadd.f32 %v354, %v600
    %602 = vmatmul.f32.gmra.mxu0 %v297
    %v603 = vpop.f32.mrf.mxu0
    %v604 = vadd.f32 %v354, %v603
    %605 = vmatmul.f32.gmra.mxu0 %v298
    %v606 = vpop.f32.mrf.mxu0
    %v607 = vadd.f32 %v354, %v606
    %608 = vmatmul.f32.gmra.mxu0 %v299
    %v609 = vpop.f32.mrf.mxu0
    %v610 = vadd.f32 %v354, %v609
    %611 = vmatmul.f32.gmra.mxu0 %v300
    %v612 = vpop.f32.mrf.mxu0
    %v613 = vadd.f32 %v354, %v612
    %614 = vmatmul.f32.gmra.mxu0 %v301
    %v615 = vpop.f32.mrf.mxu0
    %v616 = vadd.f32 %v354, %v615
    %617 = vmatmul.f32.gmra.mxu0 %v302
    %v618 = vpop.f32.mrf.mxu0
    %v619 = vadd.f32 %v354, %v618
    %620 = vdwg.mxu0
    %621 = vmatpush.msra.mxu0 %v350
    %622 = vmatpush.msra.mxu0 %v347
    %623 = vmatpush.msra.mxu0 %v344
    %624 = vmatpush.msra.mxu0 %v341
    %625 = vmatpush.msra.mxu0 %v338
    %626 = vmatpush.msra.mxu0 %v335
    %627 = vmatpush.msra.mxu0 %v332
    %628 = vmatpush.msra.mxu0 %v329
    %629 = vmatpush.msra.mxu0 %v326
    %630 = vmatpush.msra.mxu0 %v323
    %631 = vmatpush.msra.mxu0 %v320
    %632 = vmatpush.msra.mxu0 %v317
    %633 = vmatpush.msra.mxu0 %v314
    %634 = vmatpush.msra.mxu0 %v311
    %635 = vmatpush.msra.mxu0 %v308
    %636 = vmatpush.msra.mxu0 %v305
    %637 = vmatmul.f32.gmra.mxu0 %v265
    %v638 = vpop.f32.mrf.mxu0
    %v639 = vadd.f32 %v355, %v638
    %640 = vmatmul.f32.gmra.mxu0 %v266
    %v641 = vpop.f32.mrf.mxu0
    %v642 = vadd.f32 %v355, %v641
    %643 = vmatmul.f32.gmra.mxu0 %v267
    %v644 = vpop.f32.mrf.mxu0
    %v645 = vadd.f32 %v355, %v644
    %646 = vmatmul.f32.gmra.mxu0 %v268
    %v647 = vpop.f32.mrf.mxu0
    %v648 = vadd.f32 %v355, %v647
    %649 = vmatmul.f32.gmra.mxu0 %v269
    %v650 = vpop.f32.mrf.mxu0
    %v651 = vadd.f32 %v355, %v650
    %652 = vmatmul.f32.gmra.mxu0 %v270
    %v653 = vpop.f32.mrf.mxu0
    %v654 = vadd.f32 %v355, %v653
    %655 = vmatmul.f32.gmra.mxu0 %v271
    %v656 = vpop.f32.mrf.mxu0
    %v657 = vadd.f32 %v355, %v656
    %658 = vmatmul.f32.gmra.mxu0 %v272
    %v659 = vpop.f32.mrf.mxu0
    %v660 = vadd.f32 %v355, %v659
    %661 = vmatmul.f32.gmra.mxu0 %v273
    %v662 = vpop.f32.mrf.mxu0
    %v663 = vadd.f32 %v355, %v662
    %664 = vmatmul.f32.gmra.mxu0 %v274
    %v665 = vpop.f32.mrf.mxu0
    %v666 = vadd.f32 %v355, %v665
    %667 = vmatmul.f32.gmra.mxu0 %v275
    %v668 = vpop.f32.mrf.mxu0
    %v669 = vadd.f32 %v355, %v668
    %670 = vmatmul.f32.gmra.mxu0 %v276
    %v671 = vpop.f32.mrf.mxu0
    %v672 = vadd.f32 %v355, %v671
    %673 = vmatmul.f32.gmra.mxu0 %v277
    %v674 = vpop.f32.mrf.mxu0
    %v675 = vadd.f32 %v355, %v674
    %676 = vmatmul.f32.gmra.mxu0 %v278
    %v677 = vpop.f32.mrf.mxu0
    %v678 = vadd.f32 %v355, %v677
    %679 = vmatmul.f32.gmra.mxu0 %v279
    %v680 = vpop.f32.mrf.mxu0
    %v681 = vadd.f32 %v355, %v680
    %682 = vmatmul.f32.gmra.mxu0 %v280
    %v683 = vpop.f32.mrf.mxu0
    %v684 = vadd.f32 %v355, %v683
    %685 = vmatmul.f32.gmra.mxu0 %v281
    %v686 = vpop.f32.mrf.mxu0
    %v687 = vadd.f32 %v355, %v686
    %688 = vmatmul.f32.gmra.mxu0 %v282
    %v689 = vpop.f32.mrf.mxu0
    %v690 = vadd.f32 %v355, %v689
    %691 = vmatmul.f32.gmra.mxu0 %v283
    %v692 = vpop.f32.mrf.mxu0
    %v693 = vadd.f32 %v355, %v692
    %694 = vmatmul.f32.gmra.mxu0 %v284
    %v695 = vpop.f32.mrf.mxu0
    %v696 = vadd.f32 %v355, %v695
    %697 = vmatmul.f32.gmra.mxu0 %v285
    %v698 = vpop.f32.mrf.mxu0
    %v699 = vadd.f32 %v355, %v698
    %700 = vmatmul.f32.gmra.mxu0 %v286
    %v701 = vpop.f32.mrf.mxu0
    %v702 = vadd.f32 %v355, %v701
    %703 = vmatmul.f32.gmra.mxu0 %v287
    %v704 = vpop.f32.mrf.mxu0
    %v705 = vadd.f32 %v355, %v704
    %706 = vmatmul.f32.gmra.mxu0 %v288
    %v707 = vpop.f32.mrf.mxu0
    %v708 = vadd.f32 %v355, %v707
    %709 = vmatmul.f32.gmra.mxu0 %v289
    %v710 = vpop.f32.mrf.mxu0
    %v711 = vadd.f32 %v355, %v710
    %712 = vmatmul.f32.gmra.mxu0 %v290
    %v713 = vpop.f32.mrf.mxu0
    %v714 = vadd.f32 %v355, %v713
    %715 = vmatmul.f32.gmra.mxu0 %v291
    %v716 = vpop.f32.mrf.mxu0
    %v717 = vadd.f32 %v355, %v716
    %718 = vmatmul.f32.gmra.mxu0 %v292
    %v719 = vpop.f32.mrf.mxu0
    %v720 = vadd.f32 %v355, %v719
    %721 = vmatmul.f32.gmra.mxu0 %v293
    %v722 = vpop.f32.mrf.mxu0
    %v723 = vadd.f32 %v355, %v722
    %724 = vmatmul.f32.gmra.mxu0 %v294
    %v725 = vpop.f32.mrf.mxu0
    %v726 = vadd.f32 %v355, %v725
    %727 = vmatmul.f32.gmra.mxu0 %v295
    %v728 = vpop.f32.mrf.mxu0
    %v729 = vadd.f32 %v355, %v728
    %730 = vmatmul.f32.gmra.mxu0 %v296
    %v731 = vpop.f32.mrf.mxu0
    %v732 = vadd.f32 %v355, %v731
    %733 = vmatmul.f32.gmra.mxu0 %v297
    %v734 = vpop.f32.mrf.mxu0
    %v735 = vadd.f32 %v355, %v734
    %736 = vmatmul.f32.gmra.mxu0 %v298
    %v737 = vpop.f32.mrf.mxu0
    %v738 = vadd.f32 %v355, %v737
    %739 = vmatmul.f32.gmra.mxu0 %v299
    %v740 = vpop.f32.mrf.mxu0
    %v741 = vadd.f32 %v355, %v740
    %742 = vmatmul.f32.gmra.mxu0 %v300
    %v743 = vpop.f32.mrf.mxu0
    %v744 = vadd.f32 %v355, %v743
    %745 = vmatmul.f32.gmra.mxu0 %v301
    %v746 = vpop.f32.mrf.mxu0
    %v747 = vadd.f32 %v355, %v746
    %748 = vmatmul.f32.gmra.mxu0 %v302
    %v749 = vpop.f32.mrf.mxu0
    %v750 = vadd.f32 %v355, %v749
    %751 = vdwg.mxu0
    %752 = vst [vmem:[#allocation2] sm:$0xff] %v377
    %753 = vst [vmem:[#allocation2 + $0x8] sm:$0xff] %v508
    %754 = vst [vmem:[#allocation2 + $0x10] sm:$0xff] %v639
    %755 = vst [vmem:[#allocation2 + $0x18] sm:$0xff] %v380
    %756 = vst [vmem:[#allocation2 + $0x20] sm:$0xff] %v511
    %757 = vst [vmem:[#allocation2 + $0x28] sm:$0xff] %v642
    %758 = vst [vmem:[#allocation2 + $0x30] sm:$0xff] %v383
    %759 = vst [vmem:[#allocation2 + $0x38] sm:$0xff] %v514
    %760 = vst [vmem:[#allocation2 + $0x40] sm:$0xff] %v645
    %761 = vst [vmem:[#allocation2 + $0x48] sm:$0xff] %v386
    %762 = vst [vmem:[#allocation2 + $0x50] sm:$0xff] %v517
    %763 = vst [vmem:[#allocation2 + $0x58] sm:$0xff] %v648
    %764 = vst [vmem:[#allocation2 + $0x60] sm:$0xff] %v389
    %765 = vst [vmem:[#allocation2 + $0x68] sm:$0xff] %v520
    %766 = vst [vmem:[#allocation2 + $0x70] sm:$0xff] %v651
    %767 = vst [vmem:[#allocation2 + $0x78] sm:$0xff] %v392
    %768 = vst [vmem:[#allocation2 + $0x80] sm:$0xff] %v523
    %769 = vst [vmem:[#allocation2 + $0x88] sm:$0xff] %v654
    %770 = vst [vmem:[#allocation2 + $0x90] sm:$0xff] %v395
    %771 = vst [vmem:[#allocation2 + $0x98] sm:$0xff] %v526
    %772 = vst [vmem:[#allocation2 + $0xa0] sm:$0xff] %v657
    %773 = vst [vmem:[#allocation2 + $0xa8] sm:$0xff] %v398
    %774 = vst [vmem:[#allocation2 + $0xb0] sm:$0xff] %v529
    %775 = vst [vmem:[#allocation2 + $0xb8] sm:$0xff] %v660
    %776 = vst [vmem:[#allocation2 + $0xc0] sm:$0xff] %v401
    %777 = vst [vmem:[#allocation2 + $0xc8] sm:$0xff] %v532
    %778 = vst [vmem:[#allocation2 + $0xd0] sm:$0xff] %v663
    %779 = vst [vmem:[#allocation2 + $0xd8] sm:$0xff] %v404
    %780 = vst [vmem:[#allocation2 + $0xe0] sm:$0xff] %v535
    %781 = vst [vmem:[#allocation2 + $0xe8] sm:$0xff] %v666
    %782 = vst [vmem:[#allocation2 + $0xf0] sm:$0xff] %v407
    %783 = vst [vmem:[#allocation2 + $0xf8] sm:$0xff] %v538
    %784 = vst [vmem:[#allocation2 + $0x100] sm:$0xff] %v669
    %785 = vst [vmem:[#allocation2 + $0x108] sm:$0xff] %v410
    %786 = vst [vmem:[#allocation2 + $0x110] sm:$0xff] %v541
    %787 = vst [vmem:[#allocation2 + $0x118] sm:$0xff] %v672
    %788 = vst [vmem:[#allocation2 + $0x120] sm:$0xff] %v413
    %789 = vst [vmem:[#allocation2 + $0x128] sm:$0xff] %v544
    %790 = vst [vmem:[#allocation2 + $0x130] sm:$0xff] %v675
    %791 = vst [vmem:[#allocation2 + $0x138] sm:$0xff] %v416
    %792 = vst [vmem:[#allocation2 + $0x140] sm:$0xff] %v547
    %793 = vst [vmem:[#allocation2 + $0x148] sm:$0xff] %v678
    %794 = vst [vmem:[#allocation2 + $0x150] sm:$0xff] %v419
    %795 = vst [vmem:[#allocation2 + $0x158] sm:$0xff] %v550
    %796 = vst [vmem:[#allocation2 + $0x160] sm:$0xff] %v681
    %797 = vst [vmem:[#allocation2 + $0x168] sm:$0xff] %v422
    %798 = vst [vmem:[#allocation2 + $0x170] sm:$0xff] %v553
    %799 = vst [vmem:[#allocation2 + $0x178] sm:$0xff] %v684
    %800 = vst [vmem:[#allocation2 + $0x180] sm:$0xff] %v425
    %801 = vst [vmem:[#allocation2 + $0x188] sm:$0xff] %v556
    %802 = vst [vmem:[#allocation2 + $0x190] sm:$0xff] %v687
    %803 = vst [vmem:[#allocation2 + $0x198] sm:$0xff] %v428
    %804 = vst [vmem:[#allocation2 + $0x1a0] sm:$0xff] %v559
    %805 = vst [vmem:[#allocation2 + $0x1a8] sm:$0xff] %v690
    %806 = vst [vmem:[#allocation2 + $0x1b0] sm:$0xff] %v431
    %807 = vst [vmem:[#allocation2 + $0x1b8] sm:$0xff] %v562
    %808 = vst [vmem:[#allocation2 + $0x1c0] sm:$0xff] %v693
    %809 = vst [vmem:[#allocation2 + $0x1c8] sm:$0xff] %v434
    %810 = vst [vmem:[#allocation2 + $0x1d0] sm:$0xff] %v565
    %811 = vst [vmem:[#allocation2 + $0x1d8] sm:$0xff] %v696
    %812 = vst [vmem:[#allocation2 + $0x1e0] sm:$0xff] %v437
    %813 = vst [vmem:[#allocation2 + $0x1e8] sm:$0xff] %v568
    %814 = vst [vmem:[#allocation2 + $0x1f0] sm:$0xff] %v699
    %815 = vst [vmem:[#allocation2 + $0x1f8] sm:$0xff] %v440
    %816 = vst [vmem:[#allocation2 + $0x200] sm:$0xff] %v571
    %817 = vst [vmem:[#allocation2 + $0x208] sm:$0xff] %v702
    %818 = vst [vmem:[#allocation2 + $0x210] sm:$0xff] %v443
    %819 = vst [vmem:[#allocation2 + $0x218] sm:$0xff] %v574
    %820 = vst [vmem:[#allocation2 + $0x220] sm:$0xff] %v705
    %821 = vst [vmem:[#allocation2 + $0x228] sm:$0xff] %v446
    %822 = vst [vmem:[#allocation2 + $0x230] sm:$0xff] %v577
    %823 = vst [vmem:[#allocation2 + $0x238] sm:$0xff] %v708
    %824 = vst [vmem:[#allocation2 + $0x240] sm:$0xff] %v449
    %825 = vst [vmem:[#allocation2 + $0x248] sm:$0xff] %v580
    %826 = vst [vmem:[#allocation2 + $0x250] sm:$0xff] %v711
    %827 = vst [vmem:[#allocation2 + $0x258] sm:$0xff] %v452
    %828 = vst [vmem:[#allocation2 + $0x260] sm:$0xff] %v583
    %829 = vst [vmem:[#allocation2 + $0x268] sm:$0xff] %v714
    %830 = vst [vmem:[#allocation2 + $0x270] sm:$0xff] %v455
    %831 = vst [vmem:[#allocation2 + $0x278] sm:$0xff] %v586
    %832 = vst [vmem:[#allocation2 + $0x280] sm:$0xff] %v717
    %833 = vst [vmem:[#allocation2 + $0x288] sm:$0xff] %v458
    %834 = vst [vmem:[#allocation2 + $0x290] sm:$0xff] %v589
    %835 = vst [vmem:[#allocation2 + $0x298] sm:$0xff] %v720
    %836 = vst [vmem:[#allocation2 + $0x2a0] sm:$0xff] %v461
    %837 = vst [vmem:[#allocation2 + $0x2a8] sm:$0xff] %v592
    %838 = vst [vmem:[#allocation2 + $0x2b0] sm:$0xff] %v723
    %839 = vst [vmem:[#allocation2 + $0x2b8] sm:$0xff] %v464
    %840 = vst [vmem:[#allocation2 + $0x2c0] sm:$0xff] %v595
    %841 = vst [vmem:[#allocation2 + $0x2c8] sm:$0xff] %v726
    %842 = vst [vmem:[#allocation2 + $0x2d0] sm:$0xff] %v467
    %843 = vst [vmem:[#allocation2 + $0x2d8] sm:$0xff] %v598
    %844 = vst [vmem:[#allocation2 + $0x2e0] sm:$0xff] %v729
    %845 = vst [vmem:[#allocation2 + $0x2e8] sm:$0xff] %v470
    %846 = vst [vmem:[#allocation2 + $0x2f0] sm:$0xff] %v601
    %847 = vst [vmem:[#allocation2 + $0x2f8] sm:$0xff] %v732
    %848 = vst [vmem:[#allocation2 + $0x300] sm:$0xff] %v473
    %849 = vst [vmem:[#allocation2 + $0x308] sm:$0xff] %v604
    %850 = vst [vmem:[#allocation2 + $0x310] sm:$0xff] %v735
    %851 = vst [vmem:[#allocation2 + $0x318] sm:$0xff] %v476
    %852 = vst [vmem:[#allocation2 + $0x320] sm:$0xff] %v607
    %853 = vst [vmem:[#allocation2 + $0x328] sm:$0xff] %v738
    %854 = vst [vmem:[#allocation2 + $0x330] sm:$0xff] %v479
    %855 = vst [vmem:[#allocation2 + $0x338] sm:$0xff] %v610
    %856 = vst [vmem:[#allocation2 + $0x340] sm:$0xff] %v741
    %857 = vst [vmem:[#allocation2 + $0x348] sm:$0xff] %v482
    %858 = vst [vmem:[#allocation2 + $0x350] sm:$0xff] %v613
    %859 = vst [vmem:[#allocation2 + $0x358] sm:$0xff] %v744
    %860 = vst [vmem:[#allocation2 + $0x360] sm:$0xff] %v485
    %861 = vst [vmem:[#allocation2 + $0x368] sm:$0xff] %v616
    %862 = vst [vmem:[#allocation2 + $0x370] sm:$0xff] %v747
    %863 = vst [vmem:[#allocation2 + $0x378] sm:$0xff] %v488
    %864 = vst [vmem:[#allocation2 + $0x380] sm:$0xff] %v619
    %865 = vst [vmem:[#allocation2 + $0x388] sm:$0xff] %v750
    %v866 = vld [vmem:[%s4] sm:$0xff]
    %v867 = vld [vmem:[%s4 + $0x8] sm:$0xff]
    %v868 = vld [vmem:[%s4 + $0x10] sm:$0xff]
    %v869 = vld [vmem:[%s4 + $0x18] sm:$0xff]
    %v870 = vld [vmem:[%s4 + $0x20] sm:$0xff]
    %v871 = vld [vmem:[%s4 + $0x28] sm:$0xff]
    %v872 = vld [vmem:[%s4 + $0x30] sm:$0xff]
    %v873 = vld [vmem:[%s4 + $0x38] sm:$0xff]
    %v874 = vld [vmem:[%s4 + $0x40] sm:$0xff]
    %v875 = vld [vmem:[%s4 + $0x48] sm:$0xff]
    %v876 = vld [vmem:[%s4 + $0x50] sm:$0xff]
    %v877 = vld [vmem:[%s4 + $0x58] sm:$0xff]
    %v878 = vld [vmem:[%s4 + $0x60] sm:$0xff]
    %v879 = vld [vmem:[%s4 + $0x68] sm:$0xff]
    %v880 = vld [vmem:[%s4 + $0x70] sm:$0xff]
    %v881 = vld [vmem:[%s4 + $0x78] sm:$0xff]
    %v882 = vld [vmem:[#allocation2] sm:$0xff]
    %v883 = vld [vmem:[#allocation2 + $0x18] sm:$0xff]
    %v884 = vld [vmem:[#allocation2 + $0x30] sm:$0xff]
    %v885 = vld [vmem:[#allocation2 + $0x48] sm:$0xff]
    %v886 = vld [vmem:[#allocation2 + $0x60] sm:$0xff]
    %v887 = vld [vmem:[#allocation2 + $0x78] sm:$0xff]
    %v888 = vld [vmem:[#allocation2 + $0x90] sm:$0xff]
    %v889 = vld [vmem:[#allocation2 + $0xa8] sm:$0xff]
    %v890 = vld [vmem:[#allocation2 + $0xc0] sm:$0xff]
    %v891 = vld [vmem:[#allocation2 + $0xd8] sm:$0xff]
    %v892 = vld [vmem:[#allocation2 + $0xf0] sm:$0xff]
    %v893 = vld [vmem:[#allocation2 + $0x108] sm:$0xff]
    %v894 = vld [vmem:[#allocation2 + $0x120] sm:$0xff]
    %v895 = vld [vmem:[#allocation2 + $0x138] sm:$0xff]
    %v896 = vld [vmem:[#allocation2 + $0x150] sm:$0xff]
    %v897 = vld [vmem:[#allocation2 + $0x168] sm:$0xff]
    %v898 = vld [vmem:[#allocation2 + $0x180] sm:$0xff]
    %v899 = vld [vmem:[#allocation2 + $0x198] sm:$0xff]
    %v900 = vld [vmem:[#allocation2 + $0x1b0] sm:$0xff]
    %v901 = vld [vmem:[#allocation2 + $0x8] sm:$0xff]
    %v902 = vld [vmem:[#allocation2 + $0x20] sm:$0xff]
    %v903 = vld [vmem:[#allocation2 + $0x38] sm:$0xff]
    %v904 = vld [vmem:[#allocation2 + $0x50] sm:$0xff]
    %v905 = vld [vmem:[#allocation2 + $0x68] sm:$0xff]
    %v906 = vld [vmem:[#allocation2 + $0x80] sm:$0xff]
    %v907 = vld [vmem:[#allocation2 + $0x98] sm:$0xff]
    %v908 = vld [vmem:[#allocation2 + $0xb0] sm:$0xff]
    %v909 = vld [vmem:[#allocation2 + $0xc8] sm:$0xff]
    %v910 = vld [vmem:[#allocation2 + $0xe0] sm:$0xff]
    %v911 = vld [vmem:[#allocation2 + $0xf8] sm:$0xff]
    %v912 = vld [vmem:[#allocation2 + $0x110] sm:$0xff]
    %v913 = vld [vmem:[#allocation2 + $0x128] sm:$0xff]
    %v914 = vld [vmem:[#allocation2 + $0x140] sm:$0xff]
    %v915 = vld [vmem:[#allocation2 + $0x158] sm:$0xff]
    %v916 = vld [vmem:[#allocation2 + $0x170] sm:$0xff]
    %v917 = vld [vmem:[#allocation2 + $0x188] sm:$0xff]
    %v918 = vld [vmem:[#allocation2 + $0x1a0] sm:$0xff]
    %v919 = vld [vmem:[#allocation2 + $0x1b8] sm:$0xff]
    %v920 = vld [vmem:[#allocation2 + $0x10] sm:$0xff]
    %v921 = vld [vmem:[#allocation2 + $0x28] sm:$0xff]
    %v922 = vld [vmem:[#allocation2 + $0x40] sm:$0xff]
    %v923 = vld [vmem:[#allocation2 + $0x58] sm:$0xff]
    %v924 = vld [vmem:[#allocation2 + $0x70] sm:$0xff]
    %v925 = vld [vmem:[#allocation2 + $0x88] sm:$0xff]
    %v926 = vld [vmem:[#allocation2 + $0xa0] sm:$0xff]
    %v927 = vld [vmem:[#allocation2 + $0xb8] sm:$0xff]
    %v928 = vld [vmem:[#allocation2 + $0xd0] sm:$0xff]
    %v929 = vld [vmem:[#allocation2 + $0xe8] sm:$0xff]
    %v930 = vld [vmem:[#allocation2 + $0x100] sm:$0xff]
    %v931 = vld [vmem:[#allocation2 + $0x118] sm:$0xff]
    %v932 = vld [vmem:[#allocation2 + $0x130] sm:$0xff]
    %v933 = vld [vmem:[#allocation2 + $0x148] sm:$0xff]
    %v934 = vld [vmem:[#allocation2 + $0x160] sm:$0xff]
    %v935 = vld [vmem:[#allocation2 + $0x178] sm:$0xff]
    %v936 = vld [vmem:[#allocation2 + $0x190] sm:$0xff]
    %v937 = vld [vmem:[#allocation2 + $0x1a8] sm:$0xff]
    %v938 = vld [vmem:[#allocation2 + $0x1c0] sm:$0xff]
    loop: start=0, step=1, limit=10
    $region98: #{tpu_custom_call.1} parent=1 // loop_pre_header
      _
    $region99: #{tpu_custom_call.1} parent=1 // loop_header
      %s940 = sphi 0, %s944
      %p941 = scmp.ge.s32.totalorder %s940, 10
      %v945 = vphi 0.0, %v1839
      %v946 = vphi 0.0, %v1840
      %v947 = vphi 0.0, %v1841
      %v948 = vphi 0.0, %v1842
      %v949 = vphi 0.0, %v1843
      %v950 = vphi 0.0, %v1844
      %v951 = vphi 0.0, %v1845
      %v952 = vphi 0.0, %v1846
      %v953 = vphi 0.0, %v1847
      %v954 = vphi 0.0, %v1848
      %v955 = vphi 0.0, %v1849
      %v956 = vphi 0.0, %v1850
      %v957 = vphi 0.0, %v1851
      %v958 = vphi 0.0, %v1852
      %v959 = vphi 0.0, %v1853
      %v960 = vphi 0.0, %v1854
      %v961 = vphi 0.0, %v1855
      %v962 = vphi 0.0, %v1856
      %v963 = vphi 0.0, %v1857
    $region100: #{tpu_custom_call.1} parent=1 // loop_header_branch
      %943 = sbr.rel (%p941) target = $region104
    $region101: #{tpu_custom_call.1} parent=1 // loop_body
      %s964 = smul.u32 %s940, 10
      %v965 = vstv %s964
      %vm966 = vcmp.ge.s32.totalorder %v142, %v965
      %s967 = sadd.s32 %s940, 1
      %s968 = smul.u32 %s967, 10
      %v969 = vstv %s968
      %vm970 = vcmp.lt.s32.totalorder %v142, %v969
      %vm971 = vmand %vm966, %vm970
      %v972 = vsel %vm971, 1, 0
      %v973 = vcvt.s32.f32 %v972
      %v974 = vmul.f32 %v882, %v973
      %v975 = vmul.f32 %v883, %v973
      %v976 = vmul.f32 %v884, %v973
      %v977 = vmul.f32 %v885, %v973
      %v978 = vmul.f32 %v886, %v973
      %v979 = vmul.f32 %v887, %v973
      %v980 = vmul.f32 %v888, %v973
      %v981 = vmul.f32 %v889, %v973
      %v982 = vmul.f32 %v890, %v973
      %v983 = vmul.f32 %v891, %v973
      %v984 = vmul.f32 %v892, %v973
      %v985 = vmul.f32 %v893, %v973
      %v986 = vmul.f32 %v894, %v973
      %v987 = vmul.f32 %v895, %v973
      %v988 = vmul.f32 %v896, %v973
      %v989 = vmul.f32 %v897, %v973
      %v990 = vmul.f32 %v898, %v973
      %v991 = vmul.f32 %v899, %v973
      %v992 = vmul.f32 %v900, %v973
      %993 = vmatpush.xpose.msra.mxu0 %v916
      %994 = vmatpush.xpose.msra.mxu0 %v915
      %995 = vmatpush.xpose.msra.mxu0 %v914
      %996 = vmatpush.xpose.msra.mxu0 %v913
      %997 = vmatpush.xpose.msra.mxu0 %v912
      %998 = vmatpush.xpose.msra.mxu0 %v911
      %999 = vmatpush.xpose.msra.mxu0 %v910
      %1000 = vmatpush.xpose.msra.mxu0 %v909
      %1001 = vmatpush.xpose.msra.mxu0 %v908
      %1002 = vmatpush.xpose.msra.mxu0 %v907
      %1003 = vmatpush.xpose.msra.mxu0 %v906
      %1004 = vmatpush.xpose.msra.mxu0 %v905
      %1005 = vmatpush.xpose.msra.mxu0 %v904
      %1006 = vmatpush.xpose.msra.mxu0 %v903
      %1007 = vmatpush.xpose.msra.mxu0 %v902
      %1008 = vmatpush.xpose.msra.mxu0 %v901
      %1009 = vmatmul.f32.gmra.mxu0 %v974
      %v1010 = vpop.f32.mrf.mxu0
      %v1011 = vadd.f32 0.0, %v1010
      %1012 = vmatmul.f32.gmra.mxu0 %v975
      %v1013 = vpop.f32.mrf.mxu0
      %v1014 = vadd.f32 0.0, %v1013
      %1015 = vmatmul.f32.gmra.mxu0 %v976
      %v1016 = vpop.f32.mrf.mxu0
      %v1017 = vadd.f32 0.0, %v1016
      %1018 = vmatmul.f32.gmra.mxu0 %v977
      %v1019 = vpop.f32.mrf.mxu0
      %v1020 = vadd.f32 0.0, %v1019
      %1021 = vmatmul.f32.gmra.mxu0 %v978
      %v1022 = vpop.f32.mrf.mxu0
      %v1023 = vadd.f32 0.0, %v1022
      %1024 = vmatmul.f32.gmra.mxu0 %v979
      %v1025 = vpop.f32.mrf.mxu0
      %v1026 = vadd.f32 0.0, %v1025
      %1027 = vmatmul.f32.gmra.mxu0 %v980
      %v1028 = vpop.f32.mrf.mxu0
      %v1029 = vadd.f32 0.0, %v1028
      %1030 = vmatmul.f32.gmra.mxu0 %v981
      %v1031 = vpop.f32.mrf.mxu0
      %v1032 = vadd.f32 0.0, %v1031
      %1033 = vmatmul.f32.gmra.mxu0 %v982
      %v1034 = vpop.f32.mrf.mxu0
      %v1035 = vadd.f32 0.0, %v1034
      %1036 = vmatmul.f32.gmra.mxu0 %v983
      %v1037 = vpop.f32.mrf.mxu0
      %v1038 = vadd.f32 0.0, %v1037
      %1039 = vmatmul.f32.gmra.mxu0 %v984
      %v1040 = vpop.f32.mrf.mxu0
      %v1041 = vadd.f32 0.0, %v1040
      %1042 = vmatmul.f32.gmra.mxu0 %v985
      %v1043 = vpop.f32.mrf.mxu0
      %v1044 = vadd.f32 0.0, %v1043
      %1045 = vmatmul.f32.gmra.mxu0 %v986
      %v1046 = vpop.f32.mrf.mxu0
      %v1047 = vadd.f32 0.0, %v1046
      %1048 = vmatmul.f32.gmra.mxu0 %v987
      %v1049 = vpop.f32.mrf.mxu0
      %v1050 = vadd.f32 0.0, %v1049
      %1051 = vmatmul.f32.gmra.mxu0 %v988
      %v1052 = vpop.f32.mrf.mxu0
      %v1053 = vadd.f32 0.0, %v1052
      %1054 = vmatmul.f32.gmra.mxu0 %v989
      %v1055 = vpop.f32.mrf.mxu0
      %v1056 = vadd.f32 0.0, %v1055
      %1057 = vmatmul.f32.gmra.mxu0 %v990
      %v1058 = vpop.f32.mrf.mxu0
      %v1059 = vadd.f32 0.0, %v1058
      %1060 = vmatmul.f32.gmra.mxu0 %v991
      %v1061 = vpop.f32.mrf.mxu0
      %v1062 = vadd.f32 0.0, %v1061
      %1063 = vmatmul.f32.gmra.mxu0 %v992
      %v1064 = vpop.f32.mrf.mxu0
      %v1065 = vadd.f32 0.0, %v1064
      %1066 = vdwg.mxu0
      %1067 = vmatpush.xpose.msra.mxu0 0.0
      %1068 = vmatpush.xpose.msra.mxu0 0.0
      %1069 = vmatpush.xpose.msra.mxu0 0.0
      %1070 = vmatpush.xpose.msra.mxu0 0.0
      %1071 = vmatpush.xpose.msra.mxu0 0.0
      %1072 = vmatpush.xpose.msra.mxu0 0.0
      %1073 = vmatpush.xpose.msra.mxu0 0.0
      %1074 = vmatpush.xpose.msra.mxu0 0.0
      %1075 = vmatpush.xpose.msra.mxu0 0.0
      %1076 = vmatpush.xpose.msra.mxu0 0.0
      %1077 = vmatpush.xpose.msra.mxu0 0.0
      %1078 = vmatpush.xpose.msra.mxu0 0.0
      %1079 = vmatpush.xpose.msra.mxu0 0.0
      %1080 = vmatpush.xpose.msra.mxu0 %v919
      %1081 = vmatpush.xpose.msra.mxu0 %v918
      %1082 = vmatpush.xpose.msra.mxu0 %v917
      %1083 = vmatmul.f32.gmra.mxu0 %v974
      %v1084 = vpop.f32.mrf.mxu0
      %v1085 = vadd.f32 0.0, %v1084
      %1086 = vmatmul.f32.gmra.mxu0 %v975
      %v1087 = vpop.f32.mrf.mxu0
      %v1088 = vadd.f32 0.0, %v1087
      %1089 = vmatmul.f32.gmra.mxu0 %v976
      %v1090 = vpop.f32.mrf.mxu0
      %v1091 = vadd.f32 0.0, %v1090
      %1092 = vmatmul.f32.gmra.mxu0 %v977
      %v1093 = vpop.f32.mrf.mxu0
      %v1094 = vadd.f32 0.0, %v1093
      %1095 = vmatmul.f32.gmra.mxu0 %v978
      %v1096 = vpop.f32.mrf.mxu0
      %v1097 = vadd.f32 0.0, %v1096
      %1098 = vmatmul.f32.gmra.mxu0 %v979
      %v1099 = vpop.f32.mrf.mxu0
      %v1100 = vadd.f32 0.0, %v1099
      %1101 = vmatmul.f32.gmra.mxu0 %v980
      %v1102 = vpop.f32.mrf.mxu0
      %v1103 = vadd.f32 0.0, %v1102
      %1104 = vmatmul.f32.gmra.mxu0 %v981
      %v1105 = vpop.f32.mrf.mxu0
      %v1106 = vadd.f32 0.0, %v1105
      %1107 = vmatmul.f32.gmra.mxu0 %v982
      %v1108 = vpop.f32.mrf.mxu0
      %v1109 = vadd.f32 0.0, %v1108
      %1110 = vmatmul.f32.gmra.mxu0 %v983
      %v1111 = vpop.f32.mrf.mxu0
      %v1112 = vadd.f32 0.0, %v1111
      %1113 = vmatmul.f32.gmra.mxu0 %v984
      %v1114 = vpop.f32.mrf.mxu0
      %v1115 = vadd.f32 0.0, %v1114
      %1116 = vmatmul.f32.gmra.mxu0 %v985
      %v1117 = vpop.f32.mrf.mxu0
      %v1118 = vadd.f32 0.0, %v1117
      %1119 = vmatmul.f32.gmra.mxu0 %v986
      %v1120 = vpop.f32.mrf.mxu0
      %v1121 = vadd.f32 0.0, %v1120
      %1122 = vmatmul.f32.gmra.mxu0 %v987
      %v1123 = vpop.f32.mrf.mxu0
      %v1124 = vadd.f32 0.0, %v1123
      %1125 = vmatmul.f32.gmra.mxu0 %v988
      %v1126 = vpop.f32.mrf.mxu0
      %v1127 = vadd.f32 0.0, %v1126
      %1128 = vmatmul.f32.gmra.mxu0 %v989
      %v1129 = vpop.f32.mrf.mxu0
      %v1130 = vadd.f32 0.0, %v1129
      %1131 = vmatmul.f32.gmra.mxu0 %v990
      %v1132 = vpop.f32.mrf.mxu0
      %v1133 = vadd.f32 0.0, %v1132
      %1134 = vmatmul.f32.gmra.mxu0 %v991
      %v1135 = vpop.f32.mrf.mxu0
      %v1136 = vadd.f32 0.0, %v1135
      %1137 = vmatmul.f32.gmra.mxu0 %v992
      %v1138 = vpop.f32.mrf.mxu0
      %v1139 = vadd.f32 0.0, %v1138
      %1140 = vdwg.mxu0
      %v1141 = vmul.f32 %v1011, 0.31622776
      %v1142 = vmul.f32 %v1085, 0.31622776
      %v1143 = vmul.f32 %v1014, 0.31622776
      %v1144 = vmul.f32 %v1088, 0.31622776
      %v1145 = vmul.f32 %v1017, 0.31622776
      %v1146 = vmul.f32 %v1091, 0.31622776
      %v1147 = vmul.f32 %v1020, 0.31622776
      %v1148 = vmul.f32 %v1094, 0.31622776
      %v1149 = vmul.f32 %v1023, 0.31622776
      %v1150 = vmul.f32 %v1097, 0.31622776
      %v1151 = vmul.f32 %v1026, 0.31622776
      %v1152 = vmul.f32 %v1100, 0.31622776
      %v1153 = vmul.f32 %v1029, 0.31622776
      %v1154 = vmul.f32 %v1103, 0.31622776
      %v1155 = vmul.f32 %v1032, 0.31622776
      %v1156 = vmul.f32 %v1106, 0.31622776
      %v1157 = vmul.f32 %v1035, 0.31622776
      %v1158 = vmul.f32 %v1109, 0.31622776
      %v1159 = vmul.f32 %v1038, 0.31622776
      %v1160 = vmul.f32 %v1112, 0.31622776
      %v1161 = vmul.f32 %v1041, 0.31622776
      %v1162 = vmul.f32 %v1115, 0.31622776
      %v1163 = vmul.f32 %v1044, 0.31622776
      %v1164 = vmul.f32 %v1118, 0.31622776
      %v1165 = vmul.f32 %v1047, 0.31622776
      %v1166 = vmul.f32 %v1121, 0.31622776
      %v1167 = vmul.f32 %v1050, 0.31622776
      %v1168 = vmul.f32 %v1124, 0.31622776
      %v1169 = vmul.f32 %v1053, 0.31622776
      %v1170 = vmul.f32 %v1127, 0.31622776
      %v1171 = vmul.f32 %v1056, 0.31622776
      %v1172 = vmul.f32 %v1130, 0.31622776
      %v1173 = vmul.f32 %v1059, 0.31622776
      %v1174 = vmul.f32 %v1133, 0.31622776
      %v1175 = vmul.f32 %v1062, 0.31622776
      %v1176 = vmul.f32 %v1136, 0.31622776
      %v1177 = vmul.f32 %v1065, 0.31622776
      %v1178 = vmul.f32 %v1139, 0.31622776
      %v1179 = vadd.f32 %v1141, %v149
      %v1180 = vadd.f32 %v1142, %v150
      %v1181 = vadd.f32 %v1143, %v149
      %v1182 = vadd.f32 %v1144, %v150
      %v1183 = vadd.f32 %v1145, %v149
      %v1184 = vadd.f32 %v1146, %v150
      %v1185 = vadd.f32 %v1147, %v149
      %v1186 = vadd.f32 %v1148, %v150
      %v1187 = vadd.f32 %v1149, %v149
      %v1188 = vadd.f32 %v1150, %v150
      %v1189 = vadd.f32 %v1151, %v149
      %v1190 = vadd.f32 %v1152, %v150
      %v1191 = vadd.f32 %v1153, %v149
      %v1192 = vadd.f32 %v1154, %v150
      %v1193 = vadd.f32 %v1155, %v149
      %v1194 = vadd.f32 %v1156, %v150
      %v1195 = vadd.f32 %v1157, %v149
      %v1196 = vadd.f32 %v1158, %v150
      %v1197 = vadd.f32 %v1159, %v149
      %v1198 = vadd.f32 %v1160, %v150
      %v1199 = vadd.f32 %v1161, %v149
      %v1200 = vadd.f32 %v1162, %v150
      %v1201 = vadd.f32 %v1163, %v149
      %v1202 = vadd.f32 %v1164, %v150
      %v1203 = vadd.f32 %v1165, %v149
      %v1204 = vadd.f32 %v1166, %v150
      %v1205 = vadd.f32 %v1167, %v149
      %v1206 = vadd.f32 %v1168, %v150
      %v1207 = vadd.f32 %v1169, %v149
      %v1208 = vadd.f32 %v1170, %v150
      %v1209 = vadd.f32 %v1171, %v149
      %v1210 = vadd.f32 %v1172, %v150
      %v1211 = vadd.f32 %v1173, %v149
      %v1212 = vadd.f32 %v1174, %v150
      %v1213 = vadd.f32 %v1175, %v149
      %v1214 = vadd.f32 %v1176, %v150
      %v1215 = vadd.f32 %v1177, %v149
      %v1216 = vadd.f32 %v1178, %v150
      %vm1217 = vcmask 195584
      %v1218 = vsel %vm1217, %v1180, -inf
      %v1219 = vmax.f32 %v1179, %v1218
      %1220 = vmax.xlane.f32.xlu0 %v1219
      %v1221 = vpop.xlane.xlu0 %1220
      %v1222 = vsel %vm1217, %v1182, -inf
      %v1223 = vmax.f32 %v1181, %v1222
      %1224 = vmax.xlane.f32.xlu0 %v1223
      %v1225 = vpop.xlane.xlu0 %1224
      %v1226 = vsel %vm1217, %v1184, -inf
      %v1227 = vmax.f32 %v1183, %v1226
      %1228 = vmax.xlane.f32.xlu0 %v1227
      %v1229 = vpop.xlane.xlu0 %1228
      %v1230 = vsel %vm1217, %v1186, -inf
      %v1231 = vmax.f32 %v1185, %v1230
      %1232 = vmax.xlane.f32.xlu0 %v1231
      %v1233 = vpop.xlane.xlu0 %1232
      %v1234 = vsel %vm1217, %v1188, -inf
      %v1235 = vmax.f32 %v1187, %v1234
      %1236 = vmax.xlane.f32.xlu0 %v1235
      %v1237 = vpop.xlane.xlu0 %1236
      %v1238 = vsel %vm1217, %v1190, -inf
      %v1239 = vmax.f32 %v1189, %v1238
      %1240 = vmax.xlane.f32.xlu0 %v1239
      %v1241 = vpop.xlane.xlu0 %1240
      %v1242 = vsel %vm1217, %v1192, -inf
      %v1243 = vmax.f32 %v1191, %v1242
      %1244 = vmax.xlane.f32.xlu0 %v1243
      %v1245 = vpop.xlane.xlu0 %1244
      %v1246 = vsel %vm1217, %v1194, -inf
      %v1247 = vmax.f32 %v1193, %v1246
      %1248 = vmax.xlane.f32.xlu0 %v1247
      %v1249 = vpop.xlane.xlu0 %1248
      %v1250 = vsel %vm1217, %v1196, -inf
      %v1251 = vmax.f32 %v1195, %v1250
      %1252 = vmax.xlane.f32.xlu0 %v1251
      %v1253 = vpop.xlane.xlu0 %1252
      %v1254 = vsel %vm1217, %v1198, -inf
      %v1255 = vmax.f32 %v1197, %v1254
      %1256 = vmax.xlane.f32.xlu0 %v1255
      %v1257 = vpop.xlane.xlu0 %1256
      %v1258 = vsel %vm1217, %v1200, -inf
      %v1259 = vmax.f32 %v1199, %v1258
      %1260 = vmax.xlane.f32.xlu0 %v1259
      %v1261 = vpop.xlane.xlu0 %1260
      %v1262 = vsel %vm1217, %v1202, -inf
      %v1263 = vmax.f32 %v1201, %v1262
      %1264 = vmax.xlane.f32.xlu0 %v1263
      %v1265 = vpop.xlane.xlu0 %1264
      %v1266 = vsel %vm1217, %v1204, -inf
      %v1267 = vmax.f32 %v1203, %v1266
      %1268 = vmax.xlane.f32.xlu0 %v1267
      %v1269 = vpop.xlane.xlu0 %1268
      %v1270 = vsel %vm1217, %v1206, -inf
      %v1271 = vmax.f32 %v1205, %v1270
      %1272 = vmax.xlane.f32.xlu0 %v1271
      %v1273 = vpop.xlane.xlu0 %1272
      %v1274 = vsel %vm1217, %v1208, -inf
      %v1275 = vmax.f32 %v1207, %v1274
      %1276 = vmax.xlane.f32.xlu0 %v1275
      %v1277 = vpop.xlane.xlu0 %1276
      %v1278 = vsel %vm1217, %v1210, -inf
      %v1279 = vmax.f32 %v1209, %v1278
      %1280 = vmax.xlane.f32.xlu0 %v1279
      %v1281 = vpop.xlane.xlu0 %1280
      %v1282 = vsel %vm1217, %v1212, -inf
      %v1283 = vmax.f32 %v1211, %v1282
      %1284 = vmax.xlane.f32.xlu0 %v1283
      %v1285 = vpop.xlane.xlu0 %1284
      %v1286 = vsel %vm1217, %v1214, -inf
      %v1287 = vmax.f32 %v1213, %v1286
      %1288 = vmax.xlane.f32.xlu0 %v1287
      %v1289 = vpop.xlane.xlu0 %1288
      %v1290 = vsel %vm1217, %v1216, -inf
      %v1291 = vmax.f32 %v1215, %v1290
      %1292 = vmax.xlane.f32.xlu0 %v1291
      %v1293 = vpop.xlane.xlu0 %1292
      %v1294 = vsub.f32 %v1179, %v1221
      %v1295 = vsub.f32 %v1180, %v1221
      %v1296 = vsub.f32 %v1181, %v1225
      %v1297 = vsub.f32 %v1182, %v1225
      %v1298 = vsub.f32 %v1183, %v1229
      %v1299 = vsub.f32 %v1184, %v1229
      %v1300 = vsub.f32 %v1185, %v1233
      %v1301 = vsub.f32 %v1186, %v1233
      %v1302 = vsub.f32 %v1187, %v1237
      %v1303 = vsub.f32 %v1188, %v1237
      %v1304 = vsub.f32 %v1189, %v1241
      %v1305 = vsub.f32 %v1190, %v1241
      %v1306 = vsub.f32 %v1191, %v1245
      %v1307 = vsub.f32 %v1192, %v1245
      %v1308 = vsub.f32 %v1193, %v1249
      %v1309 = vsub.f32 %v1194, %v1249
      %v1310 = vsub.f32 %v1195, %v1253
      %v1311 = vsub.f32 %v1196, %v1253
      %v1312 = vsub.f32 %v1197, %v1257
      %v1313 = vsub.f32 %v1198, %v1257
      %v1314 = vsub.f32 %v1199, %v1261
      %v1315 = vsub.f32 %v1200, %v1261
      %v1316 = vsub.f32 %v1201, %v1265
      %v1317 = vsub.f32 %v1202, %v1265
      %v1318 = vsub.f32 %v1203, %v1269
      %v1319 = vsub.f32 %v1204, %v1269
      %v1320 = vsub.f32 %v1205, %v1273
      %v1321 = vsub.f32 %v1206, %v1273
      %v1322 = vsub.f32 %v1207, %v1277
      %v1323 = vsub.f32 %v1208, %v1277
      %v1324 = vsub.f32 %v1209, %v1281
      %v1325 = vsub.f32 %v1210, %v1281
      %v1326 = vsub.f32 %v1211, %v1285
      %v1327 = vsub.f32 %v1212, %v1285
      %v1328 = vsub.f32 %v1213, %v1289
      %v1329 = vsub.f32 %v1214, %v1289
      %v1330 = vsub.f32 %v1215, %v1293
      %v1331 = vsub.f32 %v1216, %v1293
      %v1332 = vmul.f32 %v1294, 1.442695
      %v1333 = vpow.pop %v1332
      %v1334 = vmul.f32 %v1295, 1.442695
      %v1335 = vpow.pop %v1334
      %v1336 = vmul.f32 %v1296, 1.442695
      %v1337 = vpow.pop %v1336
      %v1338 = vmul.f32 %v1297, 1.442695
      %v1339 = vpow.pop %v1338
      %v1340 = vmul.f32 %v1298, 1.442695
      %v1341 = vpow.pop %v1340
      %v1342 = vmul.f32 %v1299, 1.442695
      %v1343 = vpow.pop %v1342
      %v1344 = vmul.f32 %v1300, 1.442695
      %v1345 = vpow.pop %v1344
      %v1346 = vmul.f32 %v1301, 1.442695
      %v1347 = vpow.pop %v1346
      %v1348 = vmul.f32 %v1302, 1.442695
      %v1349 = vpow.pop %v1348
      %v1350 = vmul.f32 %v1303, 1.442695
      %v1351 = vpow.pop %v1350
      %v1352 = vmul.f32 %v1304, 1.442695
      %v1353 = vpow.pop %v1352
      %v1354 = vmul.f32 %v1305, 1.442695
      %v1355 = vpow.pop %v1354
      %v1356 = vmul.f32 %v1306, 1.442695
      %v1357 = vpow.pop %v1356
      %v1358 = vmul.f32 %v1307, 1.442695
      %v1359 = vpow.pop %v1358
      %v1360 = vmul.f32 %v1308, 1.442695
      %v1361 = vpow.pop %v1360
      %v1362 = vmul.f32 %v1309, 1.442695
      %v1363 = vpow.pop %v1362
      %v1364 = vmul.f32 %v1310, 1.442695
      %v1365 = vpow.pop %v1364
      %v1366 = vmul.f32 %v1311, 1.442695
      %v1367 = vpow.pop %v1366
      %v1368 = vmul.f32 %v1312, 1.442695
      %v1369 = vpow.pop %v1368
      %v1370 = vmul.f32 %v1313, 1.442695
      %v1371 = vpow.pop %v1370
      %v1372 = vmul.f32 %v1314, 1.442695
      %v1373 = vpow.pop %v1372
      %v1374 = vmul.f32 %v1315, 1.442695
      %v1375 = vpow.pop %v1374
      %v1376 = vmul.f32 %v1316, 1.442695
      %v1377 = vpow.pop %v1376
      %v1378 = vmul.f32 %v1317, 1.442695
      %v1379 = vpow.pop %v1378
      %v1380 = vmul.f32 %v1318, 1.442695
      %v1381 = vpow.pop %v1380
      %v1382 = vmul.f32 %v1319, 1.442695
      %v1383 = vpow.pop %v1382
      %v1384 = vmul.f32 %v1320, 1.442695
      %v1385 = vpow.pop %v1384
      %v1386 = vmul.f32 %v1321, 1.442695
      %v1387 = vpow.pop %v1386
      %v1388 = vmul.f32 %v1322, 1.442695
      %v1389 = vpow.pop %v1388
      %v1390 = vmul.f32 %v1323, 1.442695
      %v1391 = vpow.pop %v1390
      %v1392 = vmul.f32 %v1324, 1.442695
      %v1393 = vpow.pop %v1392
      %v1394 = vmul.f32 %v1325, 1.442695
      %v1395 = vpow.pop %v1394
      %v1396 = vmul.f32 %v1326, 1.442695
      %v1397 = vpow.pop %v1396
      %v1398 = vmul.f32 %v1327, 1.442695
      %v1399 = vpow.pop %v1398
      %v1400 = vmul.f32 %v1328, 1.442695
      %v1401 = vpow.pop %v1400
      %v1402 = vmul.f32 %v1329, 1.442695
      %v1403 = vpow.pop %v1402
      %v1404 = vmul.f32 %v1330, 1.442695
      %v1405 = vpow.pop %v1404
      %v1406 = vmul.f32 %v1331, 1.442695
      %v1407 = vpow.pop %v1406
      %v1408 = vsel %vm1217, %v1335, 0.0
      %v1409 = vadd.f32 %v1333, %v1408
      %1410 = vadd.xlane.f32.xlu0 %v1409
      %v1411 = vpop.xlane.xlu0 %1410
      %v1412 = vsel %vm1217, %v1339, 0.0
      %v1413 = vadd.f32 %v1337, %v1412
      %1414 = vadd.xlane.f32.xlu0 %v1413
      %v1415 = vpop.xlane.xlu0 %1414
      %v1416 = vsel %vm1217, %v1343, 0.0
      %v1417 = vadd.f32 %v1341, %v1416
      %1418 = vadd.xlane.f32.xlu0 %v1417
      %v1419 = vpop.xlane.xlu0 %1418
      %v1420 = vsel %vm1217, %v1347, 0.0
      %v1421 = vadd.f32 %v1345, %v1420
      %1422 = vadd.xlane.f32.xlu0 %v1421
      %v1423 = vpop.xlane.xlu0 %1422
      %v1424 = vsel %vm1217, %v1351, 0.0
      %v1425 = vadd.f32 %v1349, %v1424
      %1426 = vadd.xlane.f32.xlu0 %v1425
      %v1427 = vpop.xlane.xlu0 %1426
      %v1428 = vsel %vm1217, %v1355, 0.0
      %v1429 = vadd.f32 %v1353, %v1428
      %1430 = vadd.xlane.f32.xlu0 %v1429
      %v1431 = vpop.xlane.xlu0 %1430
      %v1432 = vsel %vm1217, %v1359, 0.0
      %v1433 = vadd.f32 %v1357, %v1432
      %1434 = vadd.xlane.f32.xlu0 %v1433
      %v1435 = vpop.xlane.xlu0 %1434
      %v1436 = vsel %vm1217, %v1363, 0.0
      %v1437 = vadd.f32 %v1361, %v1436
      %1438 = vadd.xlane.f32.xlu0 %v1437
      %v1439 = vpop.xlane.xlu0 %1438
      %v1440 = vsel %vm1217, %v1367, 0.0
      %v1441 = vadd.f32 %v1365, %v1440
      %1442 = vadd.xlane.f32.xlu0 %v1441
      %v1443 = vpop.xlane.xlu0 %1442
      %v1444 = vsel %vm1217, %v1371, 0.0
      %v1445 = vadd.f32 %v1369, %v1444
      %1446 = vadd.xlane.f32.xlu0 %v1445
      %v1447 = vpop.xlane.xlu0 %1446
      %v1448 = vsel %vm1217, %v1375, 0.0
      %v1449 = vadd.f32 %v1373, %v1448
      %1450 = vadd.xlane.f32.xlu0 %v1449
      %v1451 = vpop.xlane.xlu0 %1450
      %v1452 = vsel %vm1217, %v1379, 0.0
      %v1453 = vadd.f32 %v1377, %v1452
      %1454 = vadd.xlane.f32.xlu0 %v1453
      %v1455 = vpop.xlane.xlu0 %1454
      %v1456 = vsel %vm1217, %v1383, 0.0
      %v1457 = vadd.f32 %v1381, %v1456
      %1458 = vadd.xlane.f32.xlu0 %v1457
      %v1459 = vpop.xlane.xlu0 %1458
      %v1460 = vsel %vm1217, %v1387, 0.0
      %v1461 = vadd.f32 %v1385, %v1460
      %1462 = vadd.xlane.f32.xlu0 %v1461
      %v1463 = vpop.xlane.xlu0 %1462
      %v1464 = vsel %vm1217, %v1391, 0.0
      %v1465 = vadd.f32 %v1389, %v1464
      %1466 = vadd.xlane.f32.xlu0 %v1465
      %v1467 = vpop.xlane.xlu0 %1466
      %v1468 = vsel %vm1217, %v1395, 0.0
      %v1469 = vadd.f32 %v1393, %v1468
      %1470 = vadd.xlane.f32.xlu0 %v1469
      %v1471 = vpop.xlane.xlu0 %1470
      %v1472 = vsel %vm1217, %v1399, 0.0
      %v1473 = vadd.f32 %v1397, %v1472
      %1474 = vadd.xlane.f32.xlu0 %v1473
      %v1475 = vpop.xlane.xlu0 %1474
      %v1476 = vsel %vm1217, %v1403, 0.0
      %v1477 = vadd.f32 %v1401, %v1476
      %1478 = vadd.xlane.f32.xlu0 %v1477
      %v1479 = vpop.xlane.xlu0 %1478
      %v1480 = vsel %vm1217, %v1407, 0.0
      %v1481 = vadd.f32 %v1405, %v1480
      %1482 = vadd.xlane.f32.xlu0 %v1481
      %v1483 = vpop.xlane.xlu0 %1482
      %v1484 = vrcp.pop %v1411
      %v1485 = vrcp.pop %v1415
      %v1486 = vrcp.pop %v1419
      %v1487 = vrcp.pop %v1423
      %v1488 = vrcp.pop %v1427
      %v1489 = vrcp.pop %v1431
      %v1490 = vrcp.pop %v1435
      %v1491 = vrcp.pop %v1439
      %v1492 = vrcp.pop %v1443
      %v1493 = vrcp.pop %v1447
      %v1494 = vrcp.pop %v1451
      %v1495 = vrcp.pop %v1455
      %v1496 = vrcp.pop %v1459
      %v1497 = vrcp.pop %v1463
      %v1498 = vrcp.pop %v1467
      %v1499 = vrcp.pop %v1471
      %v1500 = vrcp.pop %v1475
      %v1501 = vrcp.pop %v1479
      %v1502 = vrcp.pop %v1483
      %v1503 = vmul.f32 %v1333, %v1484
      %v1504 = vmul.f32 %v1335, %v1484
      %v1505 = vmul.f32 %v1337, %v1485
      %v1506 = vmul.f32 %v1339, %v1485
      %v1507 = vmul.f32 %v1341, %v1486
      %v1508 = vmul.f32 %v1343, %v1486
      %v1509 = vmul.f32 %v1345, %v1487
      %v1510 = vmul.f32 %v1347, %v1487
      %v1511 = vmul.f32 %v1349, %v1488
      %v1512 = vmul.f32 %v1351, %v1488
      %v1513 = vmul.f32 %v1353, %v1489
      %v1514 = vmul.f32 %v1355, %v1489
      %v1515 = vmul.f32 %v1357, %v1490
      %v1516 = vmul.f32 %v1359, %v1490
      %v1517 = vmul.f32 %v1361, %v1491
      %v1518 = vmul.f32 %v1363, %v1491
      %v1519 = vmul.f32 %v1365, %v1492
      %v1520 = vmul.f32 %v1367, %v1492
      %v1521 = vmul.f32 %v1369, %v1493
      %v1522 = vmul.f32 %v1371, %v1493
      %v1523 = vmul.f32 %v1373, %v1494
      %v1524 = vmul.f32 %v1375, %v1494
      %v1525 = vmul.f32 %v1377, %v1495
      %v1526 = vmul.f32 %v1379, %v1495
      %v1527 = vmul.f32 %v1381, %v1496
      %v1528 = vmul.f32 %v1383, %v1496
      %v1529 = vmul.f32 %v1385, %v1497
      %v1530 = vmul.f32 %v1387, %v1497
      %v1531 = vmul.f32 %v1389, %v1498
      %v1532 = vmul.f32 %v1391, %v1498
      %v1533 = vmul.f32 %v1393, %v1499
      %v1534 = vmul.f32 %v1395, %v1499
      %v1535 = vmul.f32 %v1397, %v1500
      %v1536 = vmul.f32 %v1399, %v1500
      %v1537 = vmul.f32 %v1401, %v1501
      %v1538 = vmul.f32 %v1403, %v1501
      %v1539 = vmul.f32 %v1405, %v1502
      %v1540 = vmul.f32 %v1407, %v1502
      %v1541 = vmul.f32 %v920, %v973
      %v1542 = vmul.f32 %v921, %v973
      %v1543 = vmul.f32 %v922, %v973
      %v1544 = vmul.f32 %v923, %v973
      %v1545 = vmul.f32 %v924, %v973
      %v1546 = vmul.f32 %v925, %v973
      %v1547 = vmul.f32 %v926, %v973
      %v1548 = vmul.f32 %v927, %v973
      %v1549 = vmul.f32 %v928, %v973
      %v1550 = vmul.f32 %v929, %v973
      %v1551 = vmul.f32 %v930, %v973
      %v1552 = vmul.f32 %v931, %v973
      %v1553 = vmul.f32 %v932, %v973
      %v1554 = vmul.f32 %v933, %v973
      %v1555 = vmul.f32 %v934, %v973
      %v1556 = vmul.f32 %v935, %v973
      %v1557 = vmul.f32 %v936, %v973
      %v1558 = vmul.f32 %v937, %v973
      %v1559 = vmul.f32 %v938, %v973
      %1560 = vmatpush.msra.mxu0 %v881
      %1561 = vmatpush.msra.mxu0 %v880
      %1562 = vmatpush.msra.mxu0 %v879
      %1563 = vmatpush.msra.mxu0 %v878
      %1564 = vmatpush.msra.mxu0 %v877
      %1565 = vmatpush.msra.mxu0 %v876
      %1566 = vmatpush.msra.mxu0 %v875
      %1567 = vmatpush.msra.mxu0 %v874
      %1568 = vmatpush.msra.mxu0 %v873
      %1569 = vmatpush.msra.mxu0 %v872
      %1570 = vmatpush.msra.mxu0 %v871
      %1571 = vmatpush.msra.mxu0 %v870
      %1572 = vmatpush.msra.mxu0 %v869
      %1573 = vmatpush.msra.mxu0 %v868
      %1574 = vmatpush.msra.mxu0 %v867
      %1575 = vmatpush.msra.mxu0 %v866
      %1576 = vmatmul.f32.gmra.mxu0 %v1541
      %v1577 = vpop.f32.mrf.mxu0
      %v1578 = vadd.f32 0.0, %v1577
      %1579 = vmatmul.f32.gmra.mxu0 %v1542
      %v1580 = vpop.f32.mrf.mxu0
      %v1581 = vadd.f32 0.0, %v1580
      %1582 = vmatmul.f32.gmra.mxu0 %v1543
      %v1583 = vpop.f32.mrf.mxu0
      %v1584 = vadd.f32 0.0, %v1583
      %1585 = vmatmul.f32.gmra.mxu0 %v1544
      %v1586 = vpop.f32.mrf.mxu0
      %v1587 = vadd.f32 0.0, %v1586
      %1588 = vmatmul.f32.gmra.mxu0 %v1545
      %v1589 = vpop.f32.mrf.mxu0
      %v1590 = vadd.f32 0.0, %v1589
      %1591 = vmatmul.f32.gmra.mxu0 %v1546
      %v1592 = vpop.f32.mrf.mxu0
      %v1593 = vadd.f32 0.0, %v1592
      %1594 = vmatmul.f32.gmra.mxu0 %v1547
      %v1595 = vpop.f32.mrf.mxu0
      %v1596 = vadd.f32 0.0, %v1595
      %1597 = vmatmul.f32.gmra.mxu0 %v1548
      %v1598 = vpop.f32.mrf.mxu0
      %v1599 = vadd.f32 0.0, %v1598
      %1600 = vmatmul.f32.gmra.mxu0 %v1549
      %v1601 = vpop.f32.mrf.mxu0
      %v1602 = vadd.f32 0.0, %v1601
      %1603 = vmatmul.f32.gmra.mxu0 %v1550
      %v1604 = vpop.f32.mrf.mxu0
      %v1605 = vadd.f32 0.0, %v1604
      %1606 = vmatmul.f32.gmra.mxu0 %v1551
      %v1607 = vpop.f32.mrf.mxu0
      %v1608 = vadd.f32 0.0, %v1607
      %1609 = vmatmul.f32.gmra.mxu0 %v1552
      %v1610 = vpop.f32.mrf.mxu0
      %v1611 = vadd.f32 0.0, %v1610
      %1612 = vmatmul.f32.gmra.mxu0 %v1553
      %v1613 = vpop.f32.mrf.mxu0
      %v1614 = vadd.f32 0.0, %v1613
      %1615 = vmatmul.f32.gmra.mxu0 %v1554
      %v1616 = vpop.f32.mrf.mxu0
      %v1617 = vadd.f32 0.0, %v1616
      %1618 = vmatmul.f32.gmra.mxu0 %v1555
      %v1619 = vpop.f32.mrf.mxu0
      %v1620 = vadd.f32 0.0, %v1619
      %1621 = vmatmul.f32.gmra.mxu0 %v1556
      %v1622 = vpop.f32.mrf.mxu0
      %v1623 = vadd.f32 0.0, %v1622
      %1624 = vmatmul.f32.gmra.mxu0 %v1557
      %v1625 = vpop.f32.mrf.mxu0
      %v1626 = vadd.f32 0.0, %v1625
      %1627 = vmatmul.f32.gmra.mxu0 %v1558
      %v1628 = vpop.f32.mrf.mxu0
      %v1629 = vadd.f32 0.0, %v1628
      %1630 = vmatmul.f32.gmra.mxu0 %v1559
      %v1631 = vpop.f32.mrf.mxu0
      %v1632 = vadd.f32 0.0, %v1631
      %1633 = vdwg.mxu0
      %v1635 = vsel %vm1217, %v1504, 0
      %v1638 = vsel %vm1217, %v1506, 0
      %v1641 = vsel %vm1217, %v1508, 0
      %v1644 = vsel %vm1217, %v1510, 0
      %v1647 = vsel %vm1217, %v1512, 0
      %v1650 = vsel %vm1217, %v1514, 0
      %v1653 = vsel %vm1217, %v1516, 0
      %v1656 = vsel %vm1217, %v1518, 0
      %v1659 = vsel %vm1217, %v1520, 0
      %v1662 = vsel %vm1217, %v1522, 0
      %v1665 = vsel %vm1217, %v1524, 0
      %v1668 = vsel %vm1217, %v1526, 0
      %v1671 = vsel %vm1217, %v1528, 0
      %v1674 = vsel %vm1217, %v1530, 0
      %v1677 = vsel %vm1217, %v1532, 0
      %v1680 = vsel %vm1217, %v1534, 0
      %v1683 = vsel %vm1217, %v1536, 0
      %v1686 = vsel %vm1217, %v1538, 0
      %v1689 = vsel %vm1217, %v1540, 0
      %1691 = vmatpush.msra.mxu0 %v1623
      %1692 = vmatpush.msra.mxu0 %v1620
      %1693 = vmatpush.msra.mxu0 %v1617
      %1694 = vmatpush.msra.mxu0 %v1614
      %1695 = vmatpush.msra.mxu0 %v1611
      %1696 = vmatpush.msra.mxu0 %v1608
      %1697 = vmatpush.msra.mxu0 %v1605
      %1698 = vmatpush.msra.mxu0 %v1602
      %1699 = vmatpush.msra.mxu0 %v1599
      %1700 = vmatpush.msra.mxu0 %v1596
      %1701 = vmatpush.msra.mxu0 %v1593
      %1702 = vmatpush.msra.mxu0 %v1590
      %1703 = vmatpush.msra.mxu0 %v1587
      %1704 = vmatpush.msra.mxu0 %v1584
      %1705 = vmatpush.msra.mxu0 %v1581
      %1706 = vmatpush.msra.mxu0 %v1578
      %1707 = vmatmul.f32.gmra.mxu0 %v1503
      %v1708 = vpop.f32.mrf.mxu0
      %v1709 = vadd.f32 0.0, %v1708
      %1710 = vmatmul.f32.gmra.mxu0 %v1505
      %v1711 = vpop.f32.mrf.mxu0
      %v1712 = vadd.f32 0.0, %v1711
      %1713 = vmatmul.f32.gmra.mxu0 %v1507
      %v1714 = vpop.f32.mrf.mxu0
      %v1715 = vadd.f32 0.0, %v1714
      %1716 = vmatmul.f32.gmra.mxu0 %v1509
      %v1717 = vpop.f32.mrf.mxu0
      %v1718 = vadd.f32 0.0, %v1717
      %1719 = vmatmul.f32.gmra.mxu0 %v1511
      %v1720 = vpop.f32.mrf.mxu0
      %v1721 = vadd.f32 0.0, %v1720
      %1722 = vmatmul.f32.gmra.mxu0 %v1513
      %v1723 = vpop.f32.mrf.mxu0
      %v1724 = vadd.f32 0.0, %v1723
      %1725 = vmatmul.f32.gmra.mxu0 %v1515
      %v1726 = vpop.f32.mrf.mxu0
      %v1727 = vadd.f32 0.0, %v1726
      %1728 = vmatmul.f32.gmra.mxu0 %v1517
      %v1729 = vpop.f32.mrf.mxu0
      %v1730 = vadd.f32 0.0, %v1729
      %1731 = vmatmul.f32.gmra.mxu0 %v1519
      %v1732 = vpop.f32.mrf.mxu0
      %v1733 = vadd.f32 0.0, %v1732
      %1734 = vmatmul.f32.gmra.mxu0 %v1521
      %v1735 = vpop.f32.mrf.mxu0
      %v1736 = vadd.f32 0.0, %v1735
      %1737 = vmatmul.f32.gmra.mxu0 %v1523
      %v1738 = vpop.f32.mrf.mxu0
      %v1739 = vadd.f32 0.0, %v1738
      %1740 = vmatmul.f32.gmra.mxu0 %v1525
      %v1741 = vpop.f32.mrf.mxu0
      %v1742 = vadd.f32 0.0, %v1741
      %1743 = vmatmul.f32.gmra.mxu0 %v1527
      %v1744 = vpop.f32.mrf.mxu0
      %v1745 = vadd.f32 0.0, %v1744
      %1746 = vmatmul.f32.gmra.mxu0 %v1529
      %v1747 = vpop.f32.mrf.mxu0
      %v1748 = vadd.f32 0.0, %v1747
      %1749 = vmatmul.f32.gmra.mxu0 %v1531
      %v1750 = vpop.f32.mrf.mxu0
      %v1751 = vadd.f32 0.0, %v1750
      %1752 = vmatmul.f32.gmra.mxu0 %v1533
      %v1753 = vpop.f32.mrf.mxu0
      %v1754 = vadd.f32 0.0, %v1753
      %1755 = vmatmul.f32.gmra.mxu0 %v1535
      %v1756 = vpop.f32.mrf.mxu0
      %v1757 = vadd.f32 0.0, %v1756
      %1758 = vmatmul.f32.gmra.mxu0 %v1537
      %v1759 = vpop.f32.mrf.mxu0
      %v1760 = vadd.f32 0.0, %v1759
      %1761 = vmatmul.f32.gmra.mxu0 %v1539
      %v1762 = vpop.f32.mrf.mxu0
      %v1763 = vadd.f32 0.0, %v1762
      %1764 = vdwg.mxu0
      %1765 = vmatpush.msra.mxu0 0.0
      %1766 = vmatpush.msra.mxu0 0.0
      %1767 = vmatpush.msra.mxu0 0.0
      %1768 = vmatpush.msra.mxu0 0.0
      %1769 = vmatpush.msra.mxu0 0.0
      %1770 = vmatpush.msra.mxu0 0.0
      %1771 = vmatpush.msra.mxu0 0.0
      %1772 = vmatpush.msra.mxu0 0.0
      %1773 = vmatpush.msra.mxu0 0.0
      %1774 = vmatpush.msra.mxu0 0.0
      %1775 = vmatpush.msra.mxu0 0.0
      %1776 = vmatpush.msra.mxu0 0.0
      %1777 = vmatpush.msra.mxu0 0.0
      %1778 = vmatpush.msra.mxu0 %v1632
      %1779 = vmatpush.msra.mxu0 %v1629
      %1780 = vmatpush.msra.mxu0 %v1626
      %1781 = vmatmul.f32.gmra.mxu0 %v1635
      %v1782 = vpop.f32.mrf.mxu0
      %v1783 = vadd.f32 %v1709, %v1782
      %1784 = vmatmul.f32.gmra.mxu0 %v1638
      %v1785 = vpop.f32.mrf.mxu0
      %v1786 = vadd.f32 %v1712, %v1785
      %1787 = vmatmul.f32.gmra.mxu0 %v1641
      %v1788 = vpop.f32.mrf.mxu0
      %v1789 = vadd.f32 %v1715, %v1788
      %1790 = vmatmul.f32.gmra.mxu0 %v1644
      %v1791 = vpop.f32.mrf.mxu0
      %v1792 = vadd.f32 %v1718, %v1791
      %1793 = vmatmul.f32.gmra.mxu0 %v1647
      %v1794 = vpop.f32.mrf.mxu0
      %v1795 = vadd.f32 %v1721, %v1794
      %1796 = vmatmul.f32.gmra.mxu0 %v1650
      %v1797 = vpop.f32.mrf.mxu0
      %v1798 = vadd.f32 %v1724, %v1797
      %1799 = vmatmul.f32.gmra.mxu0 %v1653
      %v1800 = vpop.f32.mrf.mxu0
      %v1801 = vadd.f32 %v1727, %v1800
      %1802 = vmatmul.f32.gmra.mxu0 %v1656
      %v1803 = vpop.f32.mrf.mxu0
      %v1804 = vadd.f32 %v1730, %v1803
      %1805 = vmatmul.f32.gmra.mxu0 %v1659
      %v1806 = vpop.f32.mrf.mxu0
      %v1807 = vadd.f32 %v1733, %v1806
      %1808 = vmatmul.f32.gmra.mxu0 %v1662
      %v1809 = vpop.f32.mrf.mxu0
      %v1810 = vadd.f32 %v1736, %v1809
      %1811 = vmatmul.f32.gmra.mxu0 %v1665
      %v1812 = vpop.f32.mrf.mxu0
      %v1813 = vadd.f32 %v1739, %v1812
      %1814 = vmatmul.f32.gmra.mxu0 %v1668
      %v1815 = vpop.f32.mrf.mxu0
      %v1816 = vadd.f32 %v1742, %v1815
      %1817 = vmatmul.f32.gmra.mxu0 %v1671
      %v1818 = vpop.f32.mrf.mxu0
      %v1819 = vadd.f32 %v1745, %v1818
      %1820 = vmatmul.f32.gmra.mxu0 %v1674
      %v1821 = vpop.f32.mrf.mxu0
      %v1822 = vadd.f32 %v1748, %v1821
      %1823 = vmatmul.f32.gmra.mxu0 %v1677
      %v1824 = vpop.f32.mrf.mxu0
      %v1825 = vadd.f32 %v1751, %v1824
      %1826 = vmatmul.f32.gmra.mxu0 %v1680
      %v1827 = vpop.f32.mrf.mxu0
      %v1828 = vadd.f32 %v1754, %v1827
      %1829 = vmatmul.f32.gmra.mxu0 %v1683
      %v1830 = vpop.f32.mrf.mxu0
      %v1831 = vadd.f32 %v1757, %v1830
      %1832 = vmatmul.f32.gmra.mxu0 %v1686
      %v1833 = vpop.f32.mrf.mxu0
      %v1834 = vadd.f32 %v1760, %v1833
      %1835 = vmatmul.f32.gmra.mxu0 %v1689
      %v1836 = vpop.f32.mrf.mxu0
      %v1837 = vadd.f32 %v1763, %v1836
      %1838 = vdwg.mxu0
      %v1839 = vadd.f32 %v945, %v1783
      %v1840 = vadd.f32 %v946, %v1786
      %v1841 = vadd.f32 %v947, %v1789
      %v1842 = vadd.f32 %v948, %v1792
      %v1843 = vadd.f32 %v949, %v1795
      %v1844 = vadd.f32 %v950, %v1798
      %v1845 = vadd.f32 %v951, %v1801
      %v1846 = vadd.f32 %v952, %v1804
      %v1847 = vadd.f32 %v953, %v1807
      %v1848 = vadd.f32 %v954, %v1810
      %v1849 = vadd.f32 %v955, %v1813
      %v1850 = vadd.f32 %v956, %v1816
      %v1851 = vadd.f32 %v957, %v1819
      %v1852 = vadd.f32 %v958, %v1822
      %v1853 = vadd.f32 %v959, %v1825
      %v1854 = vadd.f32 %v960, %v1828
      %v1855 = vadd.f32 %v961, %v1831
      %v1856 = vadd.f32 %v962, %v1834
      %v1857 = vadd.f32 %v963, %v1837
    $region102: #{tpu_custom_call.1} parent=1 // loop_footer
      %s944 = sadd.s32 1, %s940
    $region103: #{tpu_custom_call.1} parent=1 // loop_footer_branch
      %939 = sbr.rel target = $region99
    $region104: #{tpu_custom_call.1} parent=1 // loop_exit
      _
    %v1858 = vld [vmem:[%s5] sm:$0x1]
    %v1860 = vperm.slane %v1858, 0
    %v1862 = vadd.f32 %v945, %v1860
    %v1863 = vadd.f32 %v946, %v1860
    %v1864 = vadd.f32 %v947, %v1860
    %v1865 = vadd.f32 %v948, %v1860
    %v1866 = vadd.f32 %v949, %v1860
    %v1867 = vadd.f32 %v950, %v1860
    %v1868 = vadd.f32 %v951, %v1860
    %v1869 = vadd.f32 %v952, %v1860
    %v1870 = vadd.f32 %v953, %v1860
    %v1871 = vadd.f32 %v954, %v1860
    %v1872 = vadd.f32 %v955, %v1860
    %v1873 = vadd.f32 %v956, %v1860
    %v1874 = vadd.f32 %v957, %v1860
    %v1875 = vadd.f32 %v958, %v1860
    %v1876 = vadd.f32 %v959, %v1860
    %v1877 = vadd.f32 %v960, %v1860
    %v1878 = vadd.f32 %v961, %v1860
    %v1879 = vadd.f32 %v962, %v1860
    %v1880 = vadd.f32 %v963, %v1860
    %1881 = vst [vmem:[#allocation3] sm:$0xff] %v1862
    %1882 = vst [vmem:[#allocation3 + $0x8] sm:$0xff] %v1863
    %1883 = vst [vmem:[#allocation3 + $0x10] sm:$0xff] %v1864
    %1884 = vst [vmem:[#allocation3 + $0x18] sm:$0xff] %v1865
    %1885 = vst [vmem:[#allocation3 + $0x20] sm:$0xff] %v1866
    %1886 = vst [vmem:[#allocation3 + $0x28] sm:$0xff] %v1867
    %1887 = vst [vmem:[#allocation3 + $0x30] sm:$0xff] %v1868
    %1888 = vst [vmem:[#allocation3 + $0x38] sm:$0xff] %v1869
    %1889 = vst [vmem:[#allocation3 + $0x40] sm:$0xff] %v1870
    %1890 = vst [vmem:[#allocation3 + $0x48] sm:$0xff] %v1871
    %1891 = vst [vmem:[#allocation3 + $0x50] sm:$0xff] %v1872
    %1892 = vst [vmem:[#allocation3 + $0x58] sm:$0xff] %v1873
    %1893 = vst [vmem:[#allocation3 + $0x60] sm:$0xff] %v1874
    %1894 = vst [vmem:[#allocation3 + $0x68] sm:$0xff] %v1875
    %1895 = vst [vmem:[#allocation3 + $0x70] sm:$0xff] %v1876
    %1896 = vst [vmem:[#allocation3 + $0x78] sm:$0xff] %v1877
    %1897 = vst [vmem:[#allocation3 + $0x80] sm:$0xff] %v1878
    %1898 = vst [vmem:[#allocation3 + $0x88] sm:$0xff] %v1879
    %1899 = vst [vmem:[#allocation3 + $0x90] sm:$0xff] %v1880
    %v1900 = vld [vmem:[#allocation2 + $0x1c8] sm:$0xff]
    %v1901 = vld [vmem:[#allocation2 + $0x1e0] sm:$0xff]
    %v1902 = vld [vmem:[#allocation2 + $0x1f8] sm:$0xff]
    %v1903 = vld [vmem:[#allocation2 + $0x210] sm:$0xff]
    %v1904 = vld [vmem:[#allocation2 + $0x228] sm:$0xff]
    %v1905 = vld [vmem:[#allocation2 + $0x240] sm:$0xff]
    %v1906 = vld [vmem:[#allocation2 + $0x258] sm:$0xff]
    %v1907 = vld [vmem:[#allocation2 + $0x270] sm:$0xff]
    %v1908 = vld [vmem:[#allocation2 + $0x288] sm:$0xff]
    %v1909 = vld [vmem:[#allocation2 + $0x2a0] sm:$0xff]
    %v1910 = vld [vmem:[#allocation2 + $0x2b8] sm:$0xff]
    %v1911 = vld [vmem:[#allocation2 + $0x2d0] sm:$0xff]
    %v1912 = vld [vmem:[#allocation2 + $0x2e8] sm:$0xff]
    %v1913 = vld [vmem:[#allocation2 + $0x300] sm:$0xff]
    %v1914 = vld [vmem:[#allocation2 + $0x318] sm:$0xff]
    %v1915 = vld [vmem:[#allocation2 + $0x330] sm:$0xff]
    %v1916 = vld [vmem:[#allocation2 + $0x348] sm:$0xff]
    %v1917 = vld [vmem:[#allocation2 + $0x360] sm:$0xff]
    %v1918 = vld [vmem:[#allocation2 + $0x378] sm:$0xff]
    %v1919 = vld [vmem:[#allocation2 + $0x1d0] sm:$0xff]
    %v1920 = vld [vmem:[#allocation2 + $0x1e8] sm:$0xff]
    %v1921 = vld [vmem:[#allocation2 + $0x200] sm:$0xff]
    %v1922 = vld [vmem:[#allocation2 + $0x218] sm:$0xff]
    %v1923 = vld [vmem:[#allocation2 + $0x230] sm:$0xff]
    %v1924 = vld [vmem:[#allocation2 + $0x248] sm:$0xff]
    %v1925 = vld [vmem:[#allocation2 + $0x260] sm:$0xff]
    %v1926 = vld [vmem:[#allocation2 + $0x278] sm:$0xff]
    %v1927 = vld [vmem:[#allocation2 + $0x290] sm:$0xff]
    %v1928 = vld [vmem:[#allocation2 + $0x2a8] sm:$0xff]
    %v1929 = vld [vmem:[#allocation2 + $0x2c0] sm:$0xff]
    %v1930 = vld [vmem:[#allocation2 + $0x2d8] sm:$0xff]
    %v1931 = vld [vmem:[#allocation2 + $0x2f0] sm:$0xff]
    %v1932 = vld [vmem:[#allocation2 + $0x308] sm:$0xff]
    %v1933 = vld [vmem:[#allocation2 + $0x320] sm:$0xff]
    %v1934 = vld [vmem:[#allocation2 + $0x338] sm:$0xff]
    %v1935 = vld [vmem:[#allocation2 + $0x350] sm:$0xff]
    %v1936 = vld [vmem:[#allocation2 + $0x368] sm:$0xff]
    %v1937 = vld [vmem:[#allocation2 + $0x380] sm:$0xff]
    %v1938 = vld [vmem:[#allocation2 + $0x1d8] sm:$0xff]
    %v1939 = vld [vmem:[#allocation2 + $0x1f0] sm:$0xff]
    %v1940 = vld [vmem:[#allocation2 + $0x208] sm:$0xff]
    %v1941 = vld [vmem:[#allocation2 + $0x220] sm:$0xff]
    %v1942 = vld [vmem:[#allocation2 + $0x238] sm:$0xff]
    %v1943 = vld [vmem:[#allocation2 + $0x250] sm:$0xff]
    %v1944 = vld [vmem:[#allocation2 + $0x268] sm:$0xff]
    %v1945 = vld [vmem:[#allocation2 + $0x280] sm:$0xff]
    %v1946 = vld [vmem:[#allocation2 + $0x298] sm:$0xff]
    %v1947 = vld [vmem:[#allocation2 + $0x2b0] sm:$0xff]
    %v1948 = vld [vmem:[#allocation2 + $0x2c8] sm:$0xff]
    %v1949 = vld [vmem:[#allocation2 + $0x2e0] sm:$0xff]
    %v1950 = vld [vmem:[#allocation2 + $0x2f8] sm:$0xff]
    %v1951 = vld [vmem:[#allocation2 + $0x310] sm:$0xff]
    %v1952 = vld [vmem:[#allocation2 + $0x328] sm:$0xff]
    %v1953 = vld [vmem:[#allocation2 + $0x340] sm:$0xff]
    %v1954 = vld [vmem:[#allocation2 + $0x358] sm:$0xff]
    %v1955 = vld [vmem:[#allocation2 + $0x370] sm:$0xff]
    %v1956 = vld [vmem:[#allocation2 + $0x388] sm:$0xff]
    loop: start=0, step=1, limit=10
    $region105: #{tpu_custom_call.1} parent=1 // loop_pre_header
      _
    $region106: #{tpu_custom_call.1} parent=1 // loop_header
      %s1958 = sphi 0, %s1962
      %p1959 = scmp.ge.s32.totalorder %s1958, 10
      %v1963 = vphi 0.0, %v2857
      %v1964 = vphi 0.0, %v2858
      %v1965 = vphi 0.0, %v2859
      %v1966 = vphi 0.0, %v2860
      %v1967 = vphi 0.0, %v2861
      %v1968 = vphi 0.0, %v2862
      %v1969 = vphi 0.0, %v2863
      %v1970 = vphi 0.0, %v2864
      %v1971 = vphi 0.0, %v2865
      %v1972 = vphi 0.0, %v2866
      %v1973 = vphi 0.0, %v2867
      %v1974 = vphi 0.0, %v2868
      %v1975 = vphi 0.0, %v2869
      %v1976 = vphi 0.0, %v2870
      %v1977 = vphi 0.0, %v2871
      %v1978 = vphi 0.0, %v2872
      %v1979 = vphi 0.0, %v2873
      %v1980 = vphi 0.0, %v2874
      %v1981 = vphi 0.0, %v2875
    $region107: #{tpu_custom_call.1} parent=1 // loop_header_branch
      %1961 = sbr.rel (%p1959) target = $region111
    $region108: #{tpu_custom_call.1} parent=1 // loop_body
      %s1982 = smul.u32 %s1958, 10
      %v1983 = vstv %s1982
      %vm1984 = vcmp.ge.s32.totalorder %v142, %v1983
      %s1985 = sadd.s32 %s1958, 1
      %s1986 = smul.u32 %s1985, 10
      %v1987 = vstv %s1986
      %vm1988 = vcmp.lt.s32.totalorder %v142, %v1987
      %vm1989 = vmand %vm1984, %vm1988
      %v1990 = vsel %vm1989, 1, 0
      %v1991 = vcvt.s32.f32 %v1990
      %v1992 = vmul.f32 %v1900, %v1991
      %v1993 = vmul.f32 %v1901, %v1991
      %v1994 = vmul.f32 %v1902, %v1991
      %v1995 = vmul.f32 %v1903, %v1991
      %v1996 = vmul.f32 %v1904, %v1991
      %v1997 = vmul.f32 %v1905, %v1991
      %v1998 = vmul.f32 %v1906, %v1991
      %v1999 = vmul.f32 %v1907, %v1991
      %v2000 = vmul.f32 %v1908, %v1991
      %v2001 = vmul.f32 %v1909, %v1991
      %v2002 = vmul.f32 %v1910, %v1991
      %v2003 = vmul.f32 %v1911, %v1991
      %v2004 = vmul.f32 %v1912, %v1991
      %v2005 = vmul.f32 %v1913, %v1991
      %v2006 = vmul.f32 %v1914, %v1991
      %v2007 = vmul.f32 %v1915, %v1991
      %v2008 = vmul.f32 %v1916, %v1991
      %v2009 = vmul.f32 %v1917, %v1991
      %v2010 = vmul.f32 %v1918, %v1991
      %2011 = vmatpush.xpose.msra.mxu0 %v1934
      %2012 = vmatpush.xpose.msra.mxu0 %v1933
      %2013 = vmatpush.xpose.msra.mxu0 %v1932
      %2014 = vmatpush.xpose.msra.mxu0 %v1931
      %2015 = vmatpush.xpose.msra.mxu0 %v1930
      %2016 = vmatpush.xpose.msra.mxu0 %v1929
      %2017 = vmatpush.xpose.msra.mxu0 %v1928
      %2018 = vmatpush.xpose.msra.mxu0 %v1927
      %2019 = vmatpush.xpose.msra.mxu0 %v1926
      %2020 = vmatpush.xpose.msra.mxu0 %v1925
      %2021 = vmatpush.xpose.msra.mxu0 %v1924
      %2022 = vmatpush.xpose.msra.mxu0 %v1923
      %2023 = vmatpush.xpose.msra.mxu0 %v1922
      %2024 = vmatpush.xpose.msra.mxu0 %v1921
      %2025 = vmatpush.xpose.msra.mxu0 %v1920
      %2026 = vmatpush.xpose.msra.mxu0 %v1919
      %2027 = vmatmul.f32.gmra.mxu0 %v1992
      %v2028 = vpop.f32.mrf.mxu0
      %v2029 = vadd.f32 0.0, %v2028
      %2030 = vmatmul.f32.gmra.mxu0 %v1993
      %v2031 = vpop.f32.mrf.mxu0
      %v2032 = vadd.f32 0.0, %v2031
      %2033 = vmatmul.f32.gmra.mxu0 %v1994
      %v2034 = vpop.f32.mrf.mxu0
      %v2035 = vadd.f32 0.0, %v2034
      %2036 = vmatmul.f32.gmra.mxu0 %v1995
      %v2037 = vpop.f32.mrf.mxu0
      %v2038 = vadd.f32 0.0, %v2037
      %2039 = vmatmul.f32.gmra.mxu0 %v1996
      %v2040 = vpop.f32.mrf.mxu0
      %v2041 = vadd.f32 0.0, %v2040
      %2042 = vmatmul.f32.gmra.mxu0 %v1997
      %v2043 = vpop.f32.mrf.mxu0
      %v2044 = vadd.f32 0.0, %v2043
      %2045 = vmatmul.f32.gmra.mxu0 %v1998
      %v2046 = vpop.f32.mrf.mxu0
      %v2047 = vadd.f32 0.0, %v2046
      %2048 = vmatmul.f32.gmra.mxu0 %v1999
      %v2049 = vpop.f32.mrf.mxu0
      %v2050 = vadd.f32 0.0, %v2049
      %2051 = vmatmul.f32.gmra.mxu0 %v2000
      %v2052 = vpop.f32.mrf.mxu0
      %v2053 = vadd.f32 0.0, %v2052
      %2054 = vmatmul.f32.gmra.mxu0 %v2001
      %v2055 = vpop.f32.mrf.mxu0
      %v2056 = vadd.f32 0.0, %v2055
      %2057 = vmatmul.f32.gmra.mxu0 %v2002
      %v2058 = vpop.f32.mrf.mxu0
      %v2059 = vadd.f32 0.0, %v2058
      %2060 = vmatmul.f32.gmra.mxu0 %v2003
      %v2061 = vpop.f32.mrf.mxu0
      %v2062 = vadd.f32 0.0, %v2061
      %2063 = vmatmul.f32.gmra.mxu0 %v2004
      %v2064 = vpop.f32.mrf.mxu0
      %v2065 = vadd.f32 0.0, %v2064
      %2066 = vmatmul.f32.gmra.mxu0 %v2005
      %v2067 = vpop.f32.mrf.mxu0
      %v2068 = vadd.f32 0.0, %v2067
      %2069 = vmatmul.f32.gmra.mxu0 %v2006
      %v2070 = vpop.f32.mrf.mxu0
      %v2071 = vadd.f32 0.0, %v2070
      %2072 = vmatmul.f32.gmra.mxu0 %v2007
      %v2073 = vpop.f32.mrf.mxu0
      %v2074 = vadd.f32 0.0, %v2073
      %2075 = vmatmul.f32.gmra.mxu0 %v2008
      %v2076 = vpop.f32.mrf.mxu0
      %v2077 = vadd.f32 0.0, %v2076
      %2078 = vmatmul.f32.gmra.mxu0 %v2009
      %v2079 = vpop.f32.mrf.mxu0
      %v2080 = vadd.f32 0.0, %v2079
      %2081 = vmatmul.f32.gmra.mxu0 %v2010
      %v2082 = vpop.f32.mrf.mxu0
      %v2083 = vadd.f32 0.0, %v2082
      %2084 = vdwg.mxu0
      %2085 = vmatpush.xpose.msra.mxu0 0.0
      %2086 = vmatpush.xpose.msra.mxu0 0.0
      %2087 = vmatpush.xpose.msra.mxu0 0.0
      %2088 = vmatpush.xpose.msra.mxu0 0.0
      %2089 = vmatpush.xpose.msra.mxu0 0.0
      %2090 = vmatpush.xpose.msra.mxu0 0.0
      %2091 = vmatpush.xpose.msra.mxu0 0.0
      %2092 = vmatpush.xpose.msra.mxu0 0.0
      %2093 = vmatpush.xpose.msra.mxu0 0.0
      %2094 = vmatpush.xpose.msra.mxu0 0.0
      %2095 = vmatpush.xpose.msra.mxu0 0.0
      %2096 = vmatpush.xpose.msra.mxu0 0.0
      %2097 = vmatpush.xpose.msra.mxu0 0.0
      %2098 = vmatpush.xpose.msra.mxu0 %v1937
      %2099 = vmatpush.xpose.msra.mxu0 %v1936
      %2100 = vmatpush.xpose.msra.mxu0 %v1935
      %2101 = vmatmul.f32.gmra.mxu0 %v1992
      %v2102 = vpop.f32.mrf.mxu0
      %v2103 = vadd.f32 0.0, %v2102
      %2104 = vmatmul.f32.gmra.mxu0 %v1993
      %v2105 = vpop.f32.mrf.mxu0
      %v2106 = vadd.f32 0.0, %v2105
      %2107 = vmatmul.f32.gmra.mxu0 %v1994
      %v2108 = vpop.f32.mrf.mxu0
      %v2109 = vadd.f32 0.0, %v2108
      %2110 = vmatmul.f32.gmra.mxu0 %v1995
      %v2111 = vpop.f32.mrf.mxu0
      %v2112 = vadd.f32 0.0, %v2111
      %2113 = vmatmul.f32.gmra.mxu0 %v1996
      %v2114 = vpop.f32.mrf.mxu0
      %v2115 = vadd.f32 0.0, %v2114
      %2116 = vmatmul.f32.gmra.mxu0 %v1997
      %v2117 = vpop.f32.mrf.mxu0
      %v2118 = vadd.f32 0.0, %v2117
      %2119 = vmatmul.f32.gmra.mxu0 %v1998
      %v2120 = vpop.f32.mrf.mxu0
      %v2121 = vadd.f32 0.0, %v2120
      %2122 = vmatmul.f32.gmra.mxu0 %v1999
      %v2123 = vpop.f32.mrf.mxu0
      %v2124 = vadd.f32 0.0, %v2123
      %2125 = vmatmul.f32.gmra.mxu0 %v2000
      %v2126 = vpop.f32.mrf.mxu0
      %v2127 = vadd.f32 0.0, %v2126
      %2128 = vmatmul.f32.gmra.mxu0 %v2001
      %v2129 = vpop.f32.mrf.mxu0
      %v2130 = vadd.f32 0.0, %v2129
      %2131 = vmatmul.f32.gmra.mxu0 %v2002
      %v2132 = vpop.f32.mrf.mxu0
      %v2133 = vadd.f32 0.0, %v2132
      %2134 = vmatmul.f32.gmra.mxu0 %v2003
      %v2135 = vpop.f32.mrf.mxu0
      %v2136 = vadd.f32 0.0, %v2135
      %2137 = vmatmul.f32.gmra.mxu0 %v2004
      %v2138 = vpop.f32.mrf.mxu0
      %v2139 = vadd.f32 0.0, %v2138
      %2140 = vmatmul.f32.gmra.mxu0 %v2005
      %v2141 = vpop.f32.mrf.mxu0
      %v2142 = vadd.f32 0.0, %v2141
      %2143 = vmatmul.f32.gmra.mxu0 %v2006
      %v2144 = vpop.f32.mrf.mxu0
      %v2145 = vadd.f32 0.0, %v2144
      %2146 = vmatmul.f32.gmra.mxu0 %v2007
      %v2147 = vpop.f32.mrf.mxu0
      %v2148 = vadd.f32 0.0, %v2147
      %2149 = vmatmul.f32.gmra.mxu0 %v2008
      %v2150 = vpop.f32.mrf.mxu0
      %v2151 = vadd.f32 0.0, %v2150
      %2152 = vmatmul.f32.gmra.mxu0 %v2009
      %v2153 = vpop.f32.mrf.mxu0
      %v2154 = vadd.f32 0.0, %v2153
      %2155 = vmatmul.f32.gmra.mxu0 %v2010
      %v2156 = vpop.f32.mrf.mxu0
      %v2157 = vadd.f32 0.0, %v2156
      %2158 = vdwg.mxu0
      %v2159 = vmul.f32 %v2029, 0.31622776
      %v2160 = vmul.f32 %v2103, 0.31622776
      %v2161 = vmul.f32 %v2032, 0.31622776
      %v2162 = vmul.f32 %v2106, 0.31622776
      %v2163 = vmul.f32 %v2035, 0.31622776
      %v2164 = vmul.f32 %v2109, 0.31622776
      %v2165 = vmul.f32 %v2038, 0.31622776
      %v2166 = vmul.f32 %v2112, 0.31622776
      %v2167 = vmul.f32 %v2041, 0.31622776
      %v2168 = vmul.f32 %v2115, 0.31622776
      %v2169 = vmul.f32 %v2044, 0.31622776
      %v2170 = vmul.f32 %v2118, 0.31622776
      %v2171 = vmul.f32 %v2047, 0.31622776
      %v2172 = vmul.f32 %v2121, 0.31622776
      %v2173 = vmul.f32 %v2050, 0.31622776
      %v2174 = vmul.f32 %v2124, 0.31622776
      %v2175 = vmul.f32 %v2053, 0.31622776
      %v2176 = vmul.f32 %v2127, 0.31622776
      %v2177 = vmul.f32 %v2056, 0.31622776
      %v2178 = vmul.f32 %v2130, 0.31622776
      %v2179 = vmul.f32 %v2059, 0.31622776
      %v2180 = vmul.f32 %v2133, 0.31622776
      %v2181 = vmul.f32 %v2062, 0.31622776
      %v2182 = vmul.f32 %v2136, 0.31622776
      %v2183 = vmul.f32 %v2065, 0.31622776
      %v2184 = vmul.f32 %v2139, 0.31622776
      %v2185 = vmul.f32 %v2068, 0.31622776
      %v2186 = vmul.f32 %v2142, 0.31622776
      %v2187 = vmul.f32 %v2071, 0.31622776
      %v2188 = vmul.f32 %v2145, 0.31622776
      %v2189 = vmul.f32 %v2074, 0.31622776
      %v2190 = vmul.f32 %v2148, 0.31622776
      %v2191 = vmul.f32 %v2077, 0.31622776
      %v2192 = vmul.f32 %v2151, 0.31622776
      %v2193 = vmul.f32 %v2080, 0.31622776
      %v2194 = vmul.f32 %v2154, 0.31622776
      %v2195 = vmul.f32 %v2083, 0.31622776
      %v2196 = vmul.f32 %v2157, 0.31622776
      %v2197 = vadd.f32 %v2159, %v149
      %v2198 = vadd.f32 %v2160, %v150
      %v2199 = vadd.f32 %v2161, %v149
      %v2200 = vadd.f32 %v2162, %v150
      %v2201 = vadd.f32 %v2163, %v149
      %v2202 = vadd.f32 %v2164, %v150
      %v2203 = vadd.f32 %v2165, %v149
      %v2204 = vadd.f32 %v2166, %v150
      %v2205 = vadd.f32 %v2167, %v149
      %v2206 = vadd.f32 %v2168, %v150
      %v2207 = vadd.f32 %v2169, %v149
      %v2208 = vadd.f32 %v2170, %v150
      %v2209 = vadd.f32 %v2171, %v149
      %v2210 = vadd.f32 %v2172, %v150
      %v2211 = vadd.f32 %v2173, %v149
      %v2212 = vadd.f32 %v2174, %v150
      %v2213 = vadd.f32 %v2175, %v149
      %v2214 = vadd.f32 %v2176, %v150
      %v2215 = vadd.f32 %v2177, %v149
      %v2216 = vadd.f32 %v2178, %v150
      %v2217 = vadd.f32 %v2179, %v149
      %v2218 = vadd.f32 %v2180, %v150
      %v2219 = vadd.f32 %v2181, %v149
      %v2220 = vadd.f32 %v2182, %v150
      %v2221 = vadd.f32 %v2183, %v149
      %v2222 = vadd.f32 %v2184, %v150
      %v2223 = vadd.f32 %v2185, %v149
      %v2224 = vadd.f32 %v2186, %v150
      %v2225 = vadd.f32 %v2187, %v149
      %v2226 = vadd.f32 %v2188, %v150
      %v2227 = vadd.f32 %v2189, %v149
      %v2228 = vadd.f32 %v2190, %v150
      %v2229 = vadd.f32 %v2191, %v149
      %v2230 = vadd.f32 %v2192, %v150
      %v2231 = vadd.f32 %v2193, %v149
      %v2232 = vadd.f32 %v2194, %v150
      %v2233 = vadd.f32 %v2195, %v149
      %v2234 = vadd.f32 %v2196, %v150
      %vm2235 = vcmask 195584
      %v2236 = vsel %vm2235, %v2198, -inf
      %v2237 = vmax.f32 %v2197, %v2236
      %2238 = vmax.xlane.f32.xlu0 %v2237
      %v2239 = vpop.xlane.xlu0 %2238
      %v2240 = vsel %vm2235, %v2200, -inf
      %v2241 = vmax.f32 %v2199, %v2240
      %2242 = vmax.xlane.f32.xlu0 %v2241
      %v2243 = vpop.xlane.xlu0 %2242
      %v2244 = vsel %vm2235, %v2202, -inf
      %v2245 = vmax.f32 %v2201, %v2244
      %2246 = vmax.xlane.f32.xlu0 %v2245
      %v2247 = vpop.xlane.xlu0 %2246
      %v2248 = vsel %vm2235, %v2204, -inf
      %v2249 = vmax.f32 %v2203, %v2248
      %2250 = vmax.xlane.f32.xlu0 %v2249
      %v2251 = vpop.xlane.xlu0 %2250
      %v2252 = vsel %vm2235, %v2206, -inf
      %v2253 = vmax.f32 %v2205, %v2252
      %2254 = vmax.xlane.f32.xlu0 %v2253
      %v2255 = vpop.xlane.xlu0 %2254
      %v2256 = vsel %vm2235, %v2208, -inf
      %v2257 = vmax.f32 %v2207, %v2256
      %2258 = vmax.xlane.f32.xlu0 %v2257
      %v2259 = vpop.xlane.xlu0 %2258
      %v2260 = vsel %vm2235, %v2210, -inf
      %v2261 = vmax.f32 %v2209, %v2260
      %2262 = vmax.xlane.f32.xlu0 %v2261
      %v2263 = vpop.xlane.xlu0 %2262
      %v2264 = vsel %vm2235, %v2212, -inf
      %v2265 = vmax.f32 %v2211, %v2264
      %2266 = vmax.xlane.f32.xlu0 %v2265
      %v2267 = vpop.xlane.xlu0 %2266
      %v2268 = vsel %vm2235, %v2214, -inf
      %v2269 = vmax.f32 %v2213, %v2268
      %2270 = vmax.xlane.f32.xlu0 %v2269
      %v2271 = vpop.xlane.xlu0 %2270
      %v2272 = vsel %vm2235, %v2216, -inf
      %v2273 = vmax.f32 %v2215, %v2272
      %2274 = vmax.xlane.f32.xlu0 %v2273
      %v2275 = vpop.xlane.xlu0 %2274
      %v2276 = vsel %vm2235, %v2218, -inf
      %v2277 = vmax.f32 %v2217, %v2276
      %2278 = vmax.xlane.f32.xlu0 %v2277
      %v2279 = vpop.xlane.xlu0 %2278
      %v2280 = vsel %vm2235, %v2220, -inf
      %v2281 = vmax.f32 %v2219, %v2280
      %2282 = vmax.xlane.f32.xlu0 %v2281
      %v2283 = vpop.xlane.xlu0 %2282
      %v2284 = vsel %vm2235, %v2222, -inf
      %v2285 = vmax.f32 %v2221, %v2284
      %2286 = vmax.xlane.f32.xlu0 %v2285
      %v2287 = vpop.xlane.xlu0 %2286
      %v2288 = vsel %vm2235, %v2224, -inf
      %v2289 = vmax.f32 %v2223, %v2288
      %2290 = vmax.xlane.f32.xlu0 %v2289
      %v2291 = vpop.xlane.xlu0 %2290
      %v2292 = vsel %vm2235, %v2226, -inf
      %v2293 = vmax.f32 %v2225, %v2292
      %2294 = vmax.xlane.f32.xlu0 %v2293
      %v2295 = vpop.xlane.xlu0 %2294
      %v2296 = vsel %vm2235, %v2228, -inf
      %v2297 = vmax.f32 %v2227, %v2296
      %2298 = vmax.xlane.f32.xlu0 %v2297
      %v2299 = vpop.xlane.xlu0 %2298
      %v2300 = vsel %vm2235, %v2230, -inf
      %v2301 = vmax.f32 %v2229, %v2300
      %2302 = vmax.xlane.f32.xlu0 %v2301
      %v2303 = vpop.xlane.xlu0 %2302
      %v2304 = vsel %vm2235, %v2232, -inf
      %v2305 = vmax.f32 %v2231, %v2304
      %2306 = vmax.xlane.f32.xlu0 %v2305
      %v2307 = vpop.xlane.xlu0 %2306
      %v2308 = vsel %vm2235, %v2234, -inf
      %v2309 = vmax.f32 %v2233, %v2308
      %2310 = vmax.xlane.f32.xlu0 %v2309
      %v2311 = vpop.xlane.xlu0 %2310
      %v2312 = vsub.f32 %v2197, %v2239
      %v2313 = vsub.f32 %v2198, %v2239
      %v2314 = vsub.f32 %v2199, %v2243
      %v2315 = vsub.f32 %v2200, %v2243
      %v2316 = vsub.f32 %v2201, %v2247
      %v2317 = vsub.f32 %v2202, %v2247
      %v2318 = vsub.f32 %v2203, %v2251
      %v2319 = vsub.f32 %v2204, %v2251
      %v2320 = vsub.f32 %v2205, %v2255
      %v2321 = vsub.f32 %v2206, %v2255
      %v2322 = vsub.f32 %v2207, %v2259
      %v2323 = vsub.f32 %v2208, %v2259
      %v2324 = vsub.f32 %v2209, %v2263
      %v2325 = vsub.f32 %v2210, %v2263
      %v2326 = vsub.f32 %v2211, %v2267
      %v2327 = vsub.f32 %v2212, %v2267
      %v2328 = vsub.f32 %v2213, %v2271
      %v2329 = vsub.f32 %v2214, %v2271
      %v2330 = vsub.f32 %v2215, %v2275
      %v2331 = vsub.f32 %v2216, %v2275
      %v2332 = vsub.f32 %v2217, %v2279
      %v2333 = vsub.f32 %v2218, %v2279
      %v2334 = vsub.f32 %v2219, %v2283
      %v2335 = vsub.f32 %v2220, %v2283
      %v2336 = vsub.f32 %v2221, %v2287
      %v2337 = vsub.f32 %v2222, %v2287
      %v2338 = vsub.f32 %v2223, %v2291
      %v2339 = vsub.f32 %v2224, %v2291
      %v2340 = vsub.f32 %v2225, %v2295
      %v2341 = vsub.f32 %v2226, %v2295
      %v2342 = vsub.f32 %v2227, %v2299
      %v2343 = vsub.f32 %v2228, %v2299
      %v2344 = vsub.f32 %v2229, %v2303
      %v2345 = vsub.f32 %v2230, %v2303
      %v2346 = vsub.f32 %v2231, %v2307
      %v2347 = vsub.f32 %v2232, %v2307
      %v2348 = vsub.f32 %v2233, %v2311
      %v2349 = vsub.f32 %v2234, %v2311
      %v2350 = vmul.f32 %v2312, 1.442695
      %v2351 = vpow.pop %v2350
      %v2352 = vmul.f32 %v2313, 1.442695
      %v2353 = vpow.pop %v2352
      %v2354 = vmul.f32 %v2314, 1.442695
      %v2355 = vpow.pop %v2354
      %v2356 = vmul.f32 %v2315, 1.442695
      %v2357 = vpow.pop %v2356
      %v2358 = vmul.f32 %v2316, 1.442695
      %v2359 = vpow.pop %v2358
      %v2360 = vmul.f32 %v2317, 1.442695
      %v2361 = vpow.pop %v2360
      %v2362 = vmul.f32 %v2318, 1.442695
      %v2363 = vpow.pop %v2362
      %v2364 = vmul.f32 %v2319, 1.442695
      %v2365 = vpow.pop %v2364
      %v2366 = vmul.f32 %v2320, 1.442695
      %v2367 = vpow.pop %v2366
      %v2368 = vmul.f32 %v2321, 1.442695
      %v2369 = vpow.pop %v2368
      %v2370 = vmul.f32 %v2322, 1.442695
      %v2371 = vpow.pop %v2370
      %v2372 = vmul.f32 %v2323, 1.442695
      %v2373 = vpow.pop %v2372
      %v2374 = vmul.f32 %v2324, 1.442695
      %v2375 = vpow.pop %v2374
      %v2376 = vmul.f32 %v2325, 1.442695
      %v2377 = vpow.pop %v2376
      %v2378 = vmul.f32 %v2326, 1.442695
      %v2379 = vpow.pop %v2378
      %v2380 = vmul.f32 %v2327, 1.442695
      %v2381 = vpow.pop %v2380
      %v2382 = vmul.f32 %v2328, 1.442695
      %v2383 = vpow.pop %v2382
      %v2384 = vmul.f32 %v2329, 1.442695
      %v2385 = vpow.pop %v2384
      %v2386 = vmul.f32 %v2330, 1.442695
      %v2387 = vpow.pop %v2386
      %v2388 = vmul.f32 %v2331, 1.442695
      %v2389 = vpow.pop %v2388
      %v2390 = vmul.f32 %v2332, 1.442695
      %v2391 = vpow.pop %v2390
      %v2392 = vmul.f32 %v2333, 1.442695
      %v2393 = vpow.pop %v2392
      %v2394 = vmul.f32 %v2334, 1.442695
      %v2395 = vpow.pop %v2394
      %v2396 = vmul.f32 %v2335, 1.442695
      %v2397 = vpow.pop %v2396
      %v2398 = vmul.f32 %v2336, 1.442695
      %v2399 = vpow.pop %v2398
      %v2400 = vmul.f32 %v2337, 1.442695
      %v2401 = vpow.pop %v2400
      %v2402 = vmul.f32 %v2338, 1.442695
      %v2403 = vpow.pop %v2402
      %v2404 = vmul.f32 %v2339, 1.442695
      %v2405 = vpow.pop %v2404
      %v2406 = vmul.f32 %v2340, 1.442695
      %v2407 = vpow.pop %v2406
      %v2408 = vmul.f32 %v2341, 1.442695
      %v2409 = vpow.pop %v2408
      %v2410 = vmul.f32 %v2342, 1.442695
      %v2411 = vpow.pop %v2410
      %v2412 = vmul.f32 %v2343, 1.442695
      %v2413 = vpow.pop %v2412
      %v2414 = vmul.f32 %v2344, 1.442695
      %v2415 = vpow.pop %v2414
      %v2416 = vmul.f32 %v2345, 1.442695
      %v2417 = vpow.pop %v2416
      %v2418 = vmul.f32 %v2346, 1.442695
      %v2419 = vpow.pop %v2418
      %v2420 = vmul.f32 %v2347, 1.442695
      %v2421 = vpow.pop %v2420
      %v2422 = vmul.f32 %v2348, 1.442695
      %v2423 = vpow.pop %v2422
      %v2424 = vmul.f32 %v2349, 1.442695
      %v2425 = vpow.pop %v2424
      %v2426 = vsel %vm2235, %v2353, 0.0
      %v2427 = vadd.f32 %v2351, %v2426
      %2428 = vadd.xlane.f32.xlu0 %v2427
      %v2429 = vpop.xlane.xlu0 %2428
      %v2430 = vsel %vm2235, %v2357, 0.0
      %v2431 = vadd.f32 %v2355, %v2430
      %2432 = vadd.xlane.f32.xlu0 %v2431
      %v2433 = vpop.xlane.xlu0 %2432
      %v2434 = vsel %vm2235, %v2361, 0.0
      %v2435 = vadd.f32 %v2359, %v2434
      %2436 = vadd.xlane.f32.xlu0 %v2435
      %v2437 = vpop.xlane.xlu0 %2436
      %v2438 = vsel %vm2235, %v2365, 0.0
      %v2439 = vadd.f32 %v2363, %v2438
      %2440 = vadd.xlane.f32.xlu0 %v2439
      %v2441 = vpop.xlane.xlu0 %2440
      %v2442 = vsel %vm2235, %v2369, 0.0
      %v2443 = vadd.f32 %v2367, %v2442
      %2444 = vadd.xlane.f32.xlu0 %v2443
      %v2445 = vpop.xlane.xlu0 %2444
      %v2446 = vsel %vm2235, %v2373, 0.0
      %v2447 = vadd.f32 %v2371, %v2446
      %2448 = vadd.xlane.f32.xlu0 %v2447
      %v2449 = vpop.xlane.xlu0 %2448
      %v2450 = vsel %vm2235, %v2377, 0.0
      %v2451 = vadd.f32 %v2375, %v2450
      %2452 = vadd.xlane.f32.xlu0 %v2451
      %v2453 = vpop.xlane.xlu0 %2452
      %v2454 = vsel %vm2235, %v2381, 0.0
      %v2455 = vadd.f32 %v2379, %v2454
      %2456 = vadd.xlane.f32.xlu0 %v2455
      %v2457 = vpop.xlane.xlu0 %2456
      %v2458 = vsel %vm2235, %v2385, 0.0
      %v2459 = vadd.f32 %v2383, %v2458
      %2460 = vadd.xlane.f32.xlu0 %v2459
      %v2461 = vpop.xlane.xlu0 %2460
      %v2462 = vsel %vm2235, %v2389, 0.0
      %v2463 = vadd.f32 %v2387, %v2462
      %2464 = vadd.xlane.f32.xlu0 %v2463
      %v2465 = vpop.xlane.xlu0 %2464
      %v2466 = vsel %vm2235, %v2393, 0.0
      %v2467 = vadd.f32 %v2391, %v2466
      %2468 = vadd.xlane.f32.xlu0 %v2467
      %v2469 = vpop.xlane.xlu0 %2468
      %v2470 = vsel %vm2235, %v2397, 0.0
      %v2471 = vadd.f32 %v2395, %v2470
      %2472 = vadd.xlane.f32.xlu0 %v2471
      %v2473 = vpop.xlane.xlu0 %2472
      %v2474 = vsel %vm2235, %v2401, 0.0
      %v2475 = vadd.f32 %v2399, %v2474
      %2476 = vadd.xlane.f32.xlu0 %v2475
      %v2477 = vpop.xlane.xlu0 %2476
      %v2478 = vsel %vm2235, %v2405, 0.0
      %v2479 = vadd.f32 %v2403, %v2478
      %2480 = vadd.xlane.f32.xlu0 %v2479
      %v2481 = vpop.xlane.xlu0 %2480
      %v2482 = vsel %vm2235, %v2409, 0.0
      %v2483 = vadd.f32 %v2407, %v2482
      %2484 = vadd.xlane.f32.xlu0 %v2483
      %v2485 = vpop.xlane.xlu0 %2484
      %v2486 = vsel %vm2235, %v2413, 0.0
      %v2487 = vadd.f32 %v2411, %v2486
      %2488 = vadd.xlane.f32.xlu0 %v2487
      %v2489 = vpop.xlane.xlu0 %2488
      %v2490 = vsel %vm2235, %v2417, 0.0
      %v2491 = vadd.f32 %v2415, %v2490
      %2492 = vadd.xlane.f32.xlu0 %v2491
      %v2493 = vpop.xlane.xlu0 %2492
      %v2494 = vsel %vm2235, %v2421, 0.0
      %v2495 = vadd.f32 %v2419, %v2494
      %2496 = vadd.xlane.f32.xlu0 %v2495
      %v2497 = vpop.xlane.xlu0 %2496
      %v2498 = vsel %vm2235, %v2425, 0.0
      %v2499 = vadd.f32 %v2423, %v2498
      %2500 = vadd.xlane.f32.xlu0 %v2499
      %v2501 = vpop.xlane.xlu0 %2500
      %v2502 = vrcp.pop %v2429
      %v2503 = vrcp.pop %v2433
      %v2504 = vrcp.pop %v2437
      %v2505 = vrcp.pop %v2441
      %v2506 = vrcp.pop %v2445
      %v2507 = vrcp.pop %v2449
      %v2508 = vrcp.pop %v2453
      %v2509 = vrcp.pop %v2457
      %v2510 = vrcp.pop %v2461
      %v2511 = vrcp.pop %v2465
      %v2512 = vrcp.pop %v2469
      %v2513 = vrcp.pop %v2473
      %v2514 = vrcp.pop %v2477
      %v2515 = vrcp.pop %v2481
      %v2516 = vrcp.pop %v2485
      %v2517 = vrcp.pop %v2489
      %v2518 = vrcp.pop %v2493
      %v2519 = vrcp.pop %v2497
      %v2520 = vrcp.pop %v2501
      %v2521 = vmul.f32 %v2351, %v2502
      %v2522 = vmul.f32 %v2353, %v2502
      %v2523 = vmul.f32 %v2355, %v2503
      %v2524 = vmul.f32 %v2357, %v2503
      %v2525 = vmul.f32 %v2359, %v2504
      %v2526 = vmul.f32 %v2361, %v2504
      %v2527 = vmul.f32 %v2363, %v2505
      %v2528 = vmul.f32 %v2365, %v2505
      %v2529 = vmul.f32 %v2367, %v2506
      %v2530 = vmul.f32 %v2369, %v2506
      %v2531 = vmul.f32 %v2371, %v2507
      %v2532 = vmul.f32 %v2373, %v2507
      %v2533 = vmul.f32 %v2375, %v2508
      %v2534 = vmul.f32 %v2377, %v2508
      %v2535 = vmul.f32 %v2379, %v2509
      %v2536 = vmul.f32 %v2381, %v2509
      %v2537 = vmul.f32 %v2383, %v2510
      %v2538 = vmul.f32 %v2385, %v2510
      %v2539 = vmul.f32 %v2387, %v2511
      %v2540 = vmul.f32 %v2389, %v2511
      %v2541 = vmul.f32 %v2391, %v2512
      %v2542 = vmul.f32 %v2393, %v2512
      %v2543 = vmul.f32 %v2395, %v2513
      %v2544 = vmul.f32 %v2397, %v2513
      %v2545 = vmul.f32 %v2399, %v2514
      %v2546 = vmul.f32 %v2401, %v2514
      %v2547 = vmul.f32 %v2403, %v2515
      %v2548 = vmul.f32 %v2405, %v2515
      %v2549 = vmul.f32 %v2407, %v2516
      %v2550 = vmul.f32 %v2409, %v2516
      %v2551 = vmul.f32 %v2411, %v2517
      %v2552 = vmul.f32 %v2413, %v2517
      %v2553 = vmul.f32 %v2415, %v2518
      %v2554 = vmul.f32 %v2417, %v2518
      %v2555 = vmul.f32 %v2419, %v2519
      %v2556 = vmul.f32 %v2421, %v2519
      %v2557 = vmul.f32 %v2423, %v2520
      %v2558 = vmul.f32 %v2425, %v2520
      %v2559 = vmul.f32 %v1938, %v1991
      %v2560 = vmul.f32 %v1939, %v1991
      %v2561 = vmul.f32 %v1940, %v1991
      %v2562 = vmul.f32 %v1941, %v1991
      %v2563 = vmul.f32 %v1942, %v1991
      %v2564 = vmul.f32 %v1943, %v1991
      %v2565 = vmul.f32 %v1944, %v1991
      %v2566 = vmul.f32 %v1945, %v1991
      %v2567 = vmul.f32 %v1946, %v1991
      %v2568 = vmul.f32 %v1947, %v1991
      %v2569 = vmul.f32 %v1948, %v1991
      %v2570 = vmul.f32 %v1949, %v1991
      %v2571 = vmul.f32 %v1950, %v1991
      %v2572 = vmul.f32 %v1951, %v1991
      %v2573 = vmul.f32 %v1952, %v1991
      %v2574 = vmul.f32 %v1953, %v1991
      %v2575 = vmul.f32 %v1954, %v1991
      %v2576 = vmul.f32 %v1955, %v1991
      %v2577 = vmul.f32 %v1956, %v1991
      %2578 = vmatpush.msra.mxu0 %v881
      %2579 = vmatpush.msra.mxu0 %v880
      %2580 = vmatpush.msra.mxu0 %v879
      %2581 = vmatpush.msra.mxu0 %v878
      %2582 = vmatpush.msra.mxu0 %v877
      %2583 = vmatpush.msra.mxu0 %v876
      %2584 = vmatpush.msra.mxu0 %v875
      %2585 = vmatpush.msra.mxu0 %v874
      %2586 = vmatpush.msra.mxu0 %v873
      %2587 = vmatpush.msra.mxu0 %v872
      %2588 = vmatpush.msra.mxu0 %v871
      %2589 = vmatpush.msra.mxu0 %v870
      %2590 = vmatpush.msra.mxu0 %v869
      %2591 = vmatpush.msra.mxu0 %v868
      %2592 = vmatpush.msra.mxu0 %v867
      %2593 = vmatpush.msra.mxu0 %v866
      %2594 = vmatmul.f32.gmra.mxu0 %v2559
      %v2595 = vpop.f32.mrf.mxu0
      %v2596 = vadd.f32 0.0, %v2595
      %2597 = vmatmul.f32.gmra.mxu0 %v2560
      %v2598 = vpop.f32.mrf.mxu0
      %v2599 = vadd.f32 0.0, %v2598
      %2600 = vmatmul.f32.gmra.mxu0 %v2561
      %v2601 = vpop.f32.mrf.mxu0
      %v2602 = vadd.f32 0.0, %v2601
      %2603 = vmatmul.f32.gmra.mxu0 %v2562
      %v2604 = vpop.f32.mrf.mxu0
      %v2605 = vadd.f32 0.0, %v2604
      %2606 = vmatmul.f32.gmra.mxu0 %v2563
      %v2607 = vpop.f32.mrf.mxu0
      %v2608 = vadd.f32 0.0, %v2607
      %2609 = vmatmul.f32.gmra.mxu0 %v2564
      %v2610 = vpop.f32.mrf.mxu0
      %v2611 = vadd.f32 0.0, %v2610
      %2612 = vmatmul.f32.gmra.mxu0 %v2565
      %v2613 = vpop.f32.mrf.mxu0
      %v2614 = vadd.f32 0.0, %v2613
      %2615 = vmatmul.f32.gmra.mxu0 %v2566
      %v2616 = vpop.f32.mrf.mxu0
      %v2617 = vadd.f32 0.0, %v2616
      %2618 = vmatmul.f32.gmra.mxu0 %v2567
      %v2619 = vpop.f32.mrf.mxu0
      %v2620 = vadd.f32 0.0, %v2619
      %2621 = vmatmul.f32.gmra.mxu0 %v2568
      %v2622 = vpop.f32.mrf.mxu0
      %v2623 = vadd.f32 0.0, %v2622
      %2624 = vmatmul.f32.gmra.mxu0 %v2569
      %v2625 = vpop.f32.mrf.mxu0
      %v2626 = vadd.f32 0.0, %v2625
      %2627 = vmatmul.f32.gmra.mxu0 %v2570
      %v2628 = vpop.f32.mrf.mxu0
      %v2629 = vadd.f32 0.0, %v2628
      %2630 = vmatmul.f32.gmra.mxu0 %v2571
      %v2631 = vpop.f32.mrf.mxu0
      %v2632 = vadd.f32 0.0, %v2631
      %2633 = vmatmul.f32.gmra.mxu0 %v2572
      %v2634 = vpop.f32.mrf.mxu0
      %v2635 = vadd.f32 0.0, %v2634
      %2636 = vmatmul.f32.gmra.mxu0 %v2573
      %v2637 = vpop.f32.mrf.mxu0
      %v2638 = vadd.f32 0.0, %v2637
      %2639 = vmatmul.f32.gmra.mxu0 %v2574
      %v2640 = vpop.f32.mrf.mxu0
      %v2641 = vadd.f32 0.0, %v2640
      %2642 = vmatmul.f32.gmra.mxu0 %v2575
      %v2643 = vpop.f32.mrf.mxu0
      %v2644 = vadd.f32 0.0, %v2643
      %2645 = vmatmul.f32.gmra.mxu0 %v2576
      %v2646 = vpop.f32.mrf.mxu0
      %v2647 = vadd.f32 0.0, %v2646
      %2648 = vmatmul.f32.gmra.mxu0 %v2577
      %v2649 = vpop.f32.mrf.mxu0
      %v2650 = vadd.f32 0.0, %v2649
      %2651 = vdwg.mxu0
      %v2653 = vsel %vm2235, %v2522, 0
      %v2656 = vsel %vm2235, %v2524, 0
      %v2659 = vsel %vm2235, %v2526, 0
      %v2662 = vsel %vm2235, %v2528, 0
      %v2665 = vsel %vm2235, %v2530, 0
      %v2668 = vsel %vm2235, %v2532, 0
      %v2671 = vsel %vm2235, %v2534, 0
      %v2674 = vsel %vm2235, %v2536, 0
      %v2677 = vsel %vm2235, %v2538, 0
      %v2680 = vsel %vm2235, %v2540, 0
      %v2683 = vsel %vm2235, %v2542, 0
      %v2686 = vsel %vm2235, %v2544, 0
      %v2689 = vsel %vm2235, %v2546, 0
      %v2692 = vsel %vm2235, %v2548, 0
      %v2695 = vsel %vm2235, %v2550, 0
      %v2698 = vsel %vm2235, %v2552, 0
      %v2701 = vsel %vm2235, %v2554, 0
      %v2704 = vsel %vm2235, %v2556, 0
      %v2707 = vsel %vm2235, %v2558, 0
      %2709 = vmatpush.msra.mxu0 %v2641
      %2710 = vmatpush.msra.mxu0 %v2638
      %2711 = vmatpush.msra.mxu0 %v2635
      %2712 = vmatpush.msra.mxu0 %v2632
      %2713 = vmatpush.msra.mxu0 %v2629
      %2714 = vmatpush.msra.mxu0 %v2626
      %2715 = vmatpush.msra.mxu0 %v2623
      %2716 = vmatpush.msra.mxu0 %v2620
      %2717 = vmatpush.msra.mxu0 %v2617
      %2718 = vmatpush.msra.mxu0 %v2614
      %2719 = vmatpush.msra.mxu0 %v2611
      %2720 = vmatpush.msra.mxu0 %v2608
      %2721 = vmatpush.msra.mxu0 %v2605
      %2722 = vmatpush.msra.mxu0 %v2602
      %2723 = vmatpush.msra.mxu0 %v2599
      %2724 = vmatpush.msra.mxu0 %v2596
      %2725 = vmatmul.f32.gmra.mxu0 %v2521
      %v2726 = vpop.f32.mrf.mxu0
      %v2727 = vadd.f32 0.0, %v2726
      %2728 = vmatmul.f32.gmra.mxu0 %v2523
      %v2729 = vpop.f32.mrf.mxu0
      %v2730 = vadd.f32 0.0, %v2729
      %2731 = vmatmul.f32.gmra.mxu0 %v2525
      %v2732 = vpop.f32.mrf.mxu0
      %v2733 = vadd.f32 0.0, %v2732
      %2734 = vmatmul.f32.gmra.mxu0 %v2527
      %v2735 = vpop.f32.mrf.mxu0
      %v2736 = vadd.f32 0.0, %v2735
      %2737 = vmatmul.f32.gmra.mxu0 %v2529
      %v2738 = vpop.f32.mrf.mxu0
      %v2739 = vadd.f32 0.0, %v2738
      %2740 = vmatmul.f32.gmra.mxu0 %v2531
      %v2741 = vpop.f32.mrf.mxu0
      %v2742 = vadd.f32 0.0, %v2741
      %2743 = vmatmul.f32.gmra.mxu0 %v2533
      %v2744 = vpop.f32.mrf.mxu0
      %v2745 = vadd.f32 0.0, %v2744
      %2746 = vmatmul.f32.gmra.mxu0 %v2535
      %v2747 = vpop.f32.mrf.mxu0
      %v2748 = vadd.f32 0.0, %v2747
      %2749 = vmatmul.f32.gmra.mxu0 %v2537
      %v2750 = vpop.f32.mrf.mxu0
      %v2751 = vadd.f32 0.0, %v2750
      %2752 = vmatmul.f32.gmra.mxu0 %v2539
      %v2753 = vpop.f32.mrf.mxu0
      %v2754 = vadd.f32 0.0, %v2753
      %2755 = vmatmul.f32.gmra.mxu0 %v2541
      %v2756 = vpop.f32.mrf.mxu0
      %v2757 = vadd.f32 0.0, %v2756
      %2758 = vmatmul.f32.gmra.mxu0 %v2543
      %v2759 = vpop.f32.mrf.mxu0
      %v2760 = vadd.f32 0.0, %v2759
      %2761 = vmatmul.f32.gmra.mxu0 %v2545
      %v2762 = vpop.f32.mrf.mxu0
      %v2763 = vadd.f32 0.0, %v2762
      %2764 = vmatmul.f32.gmra.mxu0 %v2547
      %v2765 = vpop.f32.mrf.mxu0
      %v2766 = vadd.f32 0.0, %v2765
      %2767 = vmatmul.f32.gmra.mxu0 %v2549
      %v2768 = vpop.f32.mrf.mxu0
      %v2769 = vadd.f32 0.0, %v2768
      %2770 = vmatmul.f32.gmra.mxu0 %v2551
      %v2771 = vpop.f32.mrf.mxu0
      %v2772 = vadd.f32 0.0, %v2771
      %2773 = vmatmul.f32.gmra.mxu0 %v2553
      %v2774 = vpop.f32.mrf.mxu0
      %v2775 = vadd.f32 0.0, %v2774
      %2776 = vmatmul.f32.gmra.mxu0 %v2555
      %v2777 = vpop.f32.mrf.mxu0
      %v2778 = vadd.f32 0.0, %v2777
      %2779 = vmatmul.f32.gmra.mxu0 %v2557
      %v2780 = vpop.f32.mrf.mxu0
      %v2781 = vadd.f32 0.0, %v2780
      %2782 = vdwg.mxu0
      %2783 = vmatpush.msra.mxu0 0.0
      %2784 = vmatpush.msra.mxu0 0.0
      %2785 = vmatpush.msra.mxu0 0.0
      %2786 = vmatpush.msra.mxu0 0.0
      %2787 = vmatpush.msra.mxu0 0.0
      %2788 = vmatpush.msra.mxu0 0.0
      %2789 = vmatpush.msra.mxu0 0.0
      %2790 = vmatpush.msra.mxu0 0.0
      %2791 = vmatpush.msra.mxu0 0.0
      %2792 = vmatpush.msra.mxu0 0.0
      %2793 = vmatpush.msra.mxu0 0.0
      %2794 = vmatpush.msra.mxu0 0.0
      %2795 = vmatpush.msra.mxu0 0.0
      %2796 = vmatpush.msra.mxu0 %v2650
      %2797 = vmatpush.msra.mxu0 %v2647
      %2798 = vmatpush.msra.mxu0 %v2644
      %2799 = vmatmul.f32.gmra.mxu0 %v2653
      %v2800 = vpop.f32.mrf.mxu0
      %v2801 = vadd.f32 %v2727, %v2800
      %2802 = vmatmul.f32.gmra.mxu0 %v2656
      %v2803 = vpop.f32.mrf.mxu0
      %v2804 = vadd.f32 %v2730, %v2803
      %2805 = vmatmul.f32.gmra.mxu0 %v2659
      %v2806 = vpop.f32.mrf.mxu0
      %v2807 = vadd.f32 %v2733, %v2806
      %2808 = vmatmul.f32.gmra.mxu0 %v2662
      %v2809 = vpop.f32.mrf.mxu0
      %v2810 = vadd.f32 %v2736, %v2809
      %2811 = vmatmul.f32.gmra.mxu0 %v2665
      %v2812 = vpop.f32.mrf.mxu0
      %v2813 = vadd.f32 %v2739, %v2812
      %2814 = vmatmul.f32.gmra.mxu0 %v2668
      %v2815 = vpop.f32.mrf.mxu0
      %v2816 = vadd.f32 %v2742, %v2815
      %2817 = vmatmul.f32.gmra.mxu0 %v2671
      %v2818 = vpop.f32.mrf.mxu0
      %v2819 = vadd.f32 %v2745, %v2818
      %2820 = vmatmul.f32.gmra.mxu0 %v2674
      %v2821 = vpop.f32.mrf.mxu0
      %v2822 = vadd.f32 %v2748, %v2821
      %2823 = vmatmul.f32.gmra.mxu0 %v2677
      %v2824 = vpop.f32.mrf.mxu0
      %v2825 = vadd.f32 %v2751, %v2824
      %2826 = vmatmul.f32.gmra.mxu0 %v2680
      %v2827 = vpop.f32.mrf.mxu0
      %v2828 = vadd.f32 %v2754, %v2827
      %2829 = vmatmul.f32.gmra.mxu0 %v2683
      %v2830 = vpop.f32.mrf.mxu0
      %v2831 = vadd.f32 %v2757, %v2830
      %2832 = vmatmul.f32.gmra.mxu0 %v2686
      %v2833 = vpop.f32.mrf.mxu0
      %v2834 = vadd.f32 %v2760, %v2833
      %2835 = vmatmul.f32.gmra.mxu0 %v2689
      %v2836 = vpop.f32.mrf.mxu0
      %v2837 = vadd.f32 %v2763, %v2836
      %2838 = vmatmul.f32.gmra.mxu0 %v2692
      %v2839 = vpop.f32.mrf.mxu0
      %v2840 = vadd.f32 %v2766, %v2839
      %2841 = vmatmul.f32.gmra.mxu0 %v2695
      %v2842 = vpop.f32.mrf.mxu0
      %v2843 = vadd.f32 %v2769, %v2842
      %2844 = vmatmul.f32.gmra.mxu0 %v2698
      %v2845 = vpop.f32.mrf.mxu0
      %v2846 = vadd.f32 %v2772, %v2845
      %2847 = vmatmul.f32.gmra.mxu0 %v2701
      %v2848 = vpop.f32.mrf.mxu0
      %v2849 = vadd.f32 %v2775, %v2848
      %2850 = vmatmul.f32.gmra.mxu0 %v2704
      %v2851 = vpop.f32.mrf.mxu0
      %v2852 = vadd.f32 %v2778, %v2851
      %2853 = vmatmul.f32.gmra.mxu0 %v2707
      %v2854 = vpop.f32.mrf.mxu0
      %v2855 = vadd.f32 %v2781, %v2854
      %2856 = vdwg.mxu0
      %v2857 = vadd.f32 %v1963, %v2801
      %v2858 = vadd.f32 %v1964, %v2804
      %v2859 = vadd.f32 %v1965, %v2807
      %v2860 = vadd.f32 %v1966, %v2810
      %v2861 = vadd.f32 %v1967, %v2813
      %v2862 = vadd.f32 %v1968, %v2816
      %v2863 = vadd.f32 %v1969, %v2819
      %v2864 = vadd.f32 %v1970, %v2822
      %v2865 = vadd.f32 %v1971, %v2825
      %v2866 = vadd.f32 %v1972, %v2828
      %v2867 = vadd.f32 %v1973, %v2831
      %v2868 = vadd.f32 %v1974, %v2834
      %v2869 = vadd.f32 %v1975, %v2837
      %v2870 = vadd.f32 %v1976, %v2840
      %v2871 = vadd.f32 %v1977, %v2843
      %v2872 = vadd.f32 %v1978, %v2846
      %v2873 = vadd.f32 %v1979, %v2849
      %v2874 = vadd.f32 %v1980, %v2852
      %v2875 = vadd.f32 %v1981, %v2855
    $region109: #{tpu_custom_call.1} parent=1 // loop_footer
      %s1962 = sadd.s32 1, %s1958
    $region110: #{tpu_custom_call.1} parent=1 // loop_footer_branch
      %1957 = sbr.rel target = $region106
    $region111: #{tpu_custom_call.1} parent=1 // loop_exit
      _
    %v2876 = vld [vmem:[%s5] sm:$0x1]
    %v2878 = vperm.slane %v2876, 0
    %v2880 = vadd.f32 %v1963, %v2878
    %v2881 = vadd.f32 %v1964, %v2878
    %v2882 = vadd.f32 %v1965, %v2878
    %v2883 = vadd.f32 %v1966, %v2878
    %v2884 = vadd.f32 %v1967, %v2878
    %v2885 = vadd.f32 %v1968, %v2878
    %v2886 = vadd.f32 %v1969, %v2878
    %v2887 = vadd.f32 %v1970, %v2878
    %v2888 = vadd.f32 %v1971, %v2878
    %v2889 = vadd.f32 %v1972, %v2878
    %v2890 = vadd.f32 %v1973, %v2878
    %v2891 = vadd.f32 %v1974, %v2878
    %v2892 = vadd.f32 %v1975, %v2878
    %v2893 = vadd.f32 %v1976, %v2878
    %v2894 = vadd.f32 %v1977, %v2878
    %v2895 = vadd.f32 %v1978, %v2878
    %v2896 = vadd.f32 %v1979, %v2878
    %v2897 = vadd.f32 %v1980, %v2878
    %v2898 = vadd.f32 %v1981, %v2878
    %2899 = vst [vmem:[#allocation3 + $0x98] sm:$0xff] %v2880
    %2900 = vst [vmem:[#allocation3 + $0xa0] sm:$0xff] %v2881
    %2901 = vst [vmem:[#allocation3 + $0xa8] sm:$0xff] %v2882
    %2902 = vst [vmem:[#allocation3 + $0xb0] sm:$0xff] %v2883
    %2903 = vst [vmem:[#allocation3 + $0xb8] sm:$0xff] %v2884
    %2904 = vst [vmem:[#allocation3 + $0xc0] sm:$0xff] %v2885
    %2905 = vst [vmem:[#allocation3 + $0xc8] sm:$0xff] %v2886
    %2906 = vst [vmem:[#allocation3 + $0xd0] sm:$0xff] %v2887
    %2907 = vst [vmem:[#allocation3 + $0xd8] sm:$0xff] %v2888
    %2908 = vst [vmem:[#allocation3 + $0xe0] sm:$0xff] %v2889
    %2909 = vst [vmem:[#allocation3 + $0xe8] sm:$0xff] %v2890
    %2910 = vst [vmem:[#allocation3 + $0xf0] sm:$0xff] %v2891
    %2911 = vst [vmem:[#allocation3 + $0xf8] sm:$0xff] %v2892
    %2912 = vst [vmem:[#allocation3 + $0x100] sm:$0xff] %v2893
    %2913 = vst [vmem:[#allocation3 + $0x108] sm:$0xff] %v2894
    %2914 = vst [vmem:[#allocation3 + $0x110] sm:$0xff] %v2895
    %2915 = vst [vmem:[#allocation3 + $0x118] sm:$0xff] %v2896
    %2916 = vst [vmem:[#allocation3 + $0x120] sm:$0xff] %v2897
    %2917 = vst [vmem:[#allocation3 + $0x128] sm:$0xff] %v2898
    %v2918 = vld [vmem:[#allocation3] sm:$0xff]
    %v2919 = vld [vmem:[#allocation3 + $0x8] sm:$0xff]
    %v2920 = vld [vmem:[#allocation3 + $0x10] sm:$0xff]
    %v2921 = vld [vmem:[#allocation3 + $0x18] sm:$0xff]
    %v2922 = vld [vmem:[#allocation3 + $0x20] sm:$0xff]
    %v2923 = vld [vmem:[#allocation3 + $0x28] sm:$0xff]
    %v2924 = vld [vmem:[#allocation3 + $0x30] sm:$0xff]
    %v2925 = vld [vmem:[#allocation3 + $0x38] sm:$0xff]
    %v2926 = vld [vmem:[#allocation3 + $0x40] sm:$0xff]
    %v2927 = vld [vmem:[#allocation3 + $0x48] sm:$0xff]
    %v2928 = vld [vmem:[#allocation3 + $0x50] sm:$0xff]
    %v2929 = vld [vmem:[#allocation3 + $0x58] sm:$0xff]
    %v2930 = vld [vmem:[#allocation3 + $0x60] sm:$0xff]
    %v2931 = vld [vmem:[#allocation3 + $0x68] sm:$0xff]
    %v2932 = vld [vmem:[#allocation3 + $0x70] sm:$0xff]
    %v2933 = vld [vmem:[#allocation3 + $0x78] sm:$0xff]
    %v2934 = vld [vmem:[#allocation3 + $0x80] sm:$0xff]
    %v2935 = vld [vmem:[#allocation3 + $0x88] sm:$0xff]
    %v2936 = vld [vmem:[#allocation3 + $0x90] sm:$0xff]
    %v2937 = vld [vmem:[#allocation3 + $0x98] sm:$0xff]
    %v2938 = vld [vmem:[#allocation3 + $0xa0] sm:$0xff]
    %v2939 = vld [vmem:[#allocation3 + $0xa8] sm:$0xff]
    %v2940 = vld [vmem:[#allocation3 + $0xb0] sm:$0xff]
    %v2941 = vld [vmem:[#allocation3 + $0xb8] sm:$0xff]
    %v2942 = vld [vmem:[#allocation3 + $0xc0] sm:$0xff]
    %v2943 = vld [vmem:[#allocation3 + $0xc8] sm:$0xff]
    %v2944 = vld [vmem:[#allocation3 + $0xd0] sm:$0xff]
    %v2945 = vld [vmem:[#allocation3 + $0xd8] sm:$0xff]
    %v2946 = vld [vmem:[#allocation3 + $0xe0] sm:$0xff]
    %v2947 = vld [vmem:[#allocation3 + $0xe8] sm:$0xff]
    %v2948 = vld [vmem:[#allocation3 + $0xf0] sm:$0xff]
    %v2949 = vld [vmem:[#allocation3 + $0xf8] sm:$0xff]
    %v2950 = vld [vmem:[#allocation3 + $0x100] sm:$0xff]
    %v2951 = vld [vmem:[#allocation3 + $0x108] sm:$0xff]
    %v2952 = vld [vmem:[#allocation3 + $0x110] sm:$0xff]
    %v2953 = vld [vmem:[#allocation3 + $0x118] sm:$0xff]
    %v2954 = vld [vmem:[#allocation3 + $0x120] sm:$0xff]
    %v2955 = vld [vmem:[#allocation3 + $0x128] sm:$0xff]
    %v2956 = vadd.f32 %v265, %v2918
    %v2957 = vadd.f32 %v266, %v2919
    %v2958 = vadd.f32 %v267, %v2920
    %v2959 = vadd.f32 %v268, %v2921
    %v2960 = vadd.f32 %v269, %v2922
    %v2961 = vadd.f32 %v270, %v2923
    %v2962 = vadd.f32 %v271, %v2924
    %v2963 = vadd.f32 %v272, %v2925
    %v2964 = vadd.f32 %v273, %v2926
    %v2965 = vadd.f32 %v274, %v2927
    %v2966 = vadd.f32 %v275, %v2928
    %v2967 = vadd.f32 %v276, %v2929
    %v2968 = vadd.f32 %v277, %v2930
    %v2969 = vadd.f32 %v278, %v2931
    %v2970 = vadd.f32 %v279, %v2932
    %v2971 = vadd.f32 %v280, %v2933
    %v2972 = vadd.f32 %v281, %v2934
    %v2973 = vadd.f32 %v282, %v2935
    %v2974 = vadd.f32 %v283, %v2936
    %v2975 = vadd.f32 %v284, %v2937
    %v2976 = vadd.f32 %v285, %v2938
    %v2977 = vadd.f32 %v286, %v2939
    %v2978 = vadd.f32 %v287, %v2940
    %v2979 = vadd.f32 %v288, %v2941
    %v2980 = vadd.f32 %v289, %v2942
    %v2981 = vadd.f32 %v290, %v2943
    %v2982 = vadd.f32 %v291, %v2944
    %v2983 = vadd.f32 %v292, %v2945
    %v2984 = vadd.f32 %v293, %v2946
    %v2985 = vadd.f32 %v294, %v2947
    %v2986 = vadd.f32 %v295, %v2948
    %v2987 = vadd.f32 %v296, %v2949
    %v2988 = vadd.f32 %v297, %v2950
    %v2989 = vadd.f32 %v298, %v2951
    %v2990 = vadd.f32 %v299, %v2952
    %v2991 = vadd.f32 %v300, %v2953
    %v2992 = vadd.f32 %v301, %v2954
    %v2993 = vadd.f32 %v302, %v2955
    %v2994 = vld [vmem:[%s6] sm:$0x1]
    %v2995 = vld [vmem:[%s7] sm:$0x1]
    %v2996 = vmul.f32 %v2956, %v145
    %v2997 = vmul.f32 %v2957, %v145
    %v2998 = vmul.f32 %v2958, %v145
    %v2999 = vmul.f32 %v2959, %v145
    %v3000 = vmul.f32 %v2960, %v145
    %v3001 = vmul.f32 %v2961, %v145
    %v3002 = vmul.f32 %v2962, %v145
    %v3003 = vmul.f32 %v2963, %v145
    %v3004 = vmul.f32 %v2964, %v145
    %v3005 = vmul.f32 %v2965, %v145
    %v3006 = vmul.f32 %v2966, %v145
    %v3007 = vmul.f32 %v2967, %v145
    %v3008 = vmul.f32 %v2968, %v145
    %v3009 = vmul.f32 %v2969, %v145
    %v3010 = vmul.f32 %v2970, %v145
    %v3011 = vmul.f32 %v2971, %v145
    %v3012 = vmul.f32 %v2972, %v145
    %v3013 = vmul.f32 %v2973, %v145
    %v3014 = vmul.f32 %v2974, %v145
    %v3015 = vmul.f32 %v2975, %v145
    %v3016 = vmul.f32 %v2976, %v145
    %v3017 = vmul.f32 %v2977, %v145
    %v3018 = vmul.f32 %v2978, %v145
    %v3019 = vmul.f32 %v2979, %v145
    %v3020 = vmul.f32 %v2980, %v145
    %v3021 = vmul.f32 %v2981, %v145
    %v3022 = vmul.f32 %v2982, %v145
    %v3023 = vmul.f32 %v2983, %v145
    %v3024 = vmul.f32 %v2984, %v145
    %v3025 = vmul.f32 %v2985, %v145
    %v3026 = vmul.f32 %v2986, %v145
    %v3027 = vmul.f32 %v2987, %v145
    %v3028 = vmul.f32 %v2988, %v145
    %v3029 = vmul.f32 %v2989, %v145
    %v3030 = vmul.f32 %v2990, %v145
    %v3031 = vmul.f32 %v2991, %v145
    %v3032 = vmul.f32 %v2992, %v145
    %v3033 = vmul.f32 %v2993, %v145
    %3034 = vadd.xlane.f32.xlu0 %v2996
    %v3035 = vpop.xlane.xlu0 %3034
    %3036 = vadd.xlane.f32.xlu0 %v2997
    %v3037 = vpop.xlane.xlu0 %3036
    %3038 = vadd.xlane.f32.xlu0 %v2998
    %v3039 = vpop.xlane.xlu0 %3038
    %3040 = vadd.xlane.f32.xlu0 %v2999
    %v3041 = vpop.xlane.xlu0 %3040
    %3042 = vadd.xlane.f32.xlu0 %v3000
    %v3043 = vpop.xlane.xlu0 %3042
    %3044 = vadd.xlane.f32.xlu0 %v3001
    %v3045 = vpop.xlane.xlu0 %3044
    %3046 = vadd.xlane.f32.xlu0 %v3002
    %v3047 = vpop.xlane.xlu0 %3046
    %3048 = vadd.xlane.f32.xlu0 %v3003
    %v3049 = vpop.xlane.xlu0 %3048
    %3050 = vadd.xlane.f32.xlu0 %v3004
    %v3051 = vpop.xlane.xlu0 %3050
    %3052 = vadd.xlane.f32.xlu0 %v3005
    %v3053 = vpop.xlane.xlu0 %3052
    %3054 = vadd.xlane.f32.xlu0 %v3006
    %v3055 = vpop.xlane.xlu0 %3054
    %3056 = vadd.xlane.f32.xlu0 %v3007
    %v3057 = vpop.xlane.xlu0 %3056
    %3058 = vadd.xlane.f32.xlu0 %v3008
    %v3059 = vpop.xlane.xlu0 %3058
    %3060 = vadd.xlane.f32.xlu0 %v3009
    %v3061 = vpop.xlane.xlu0 %3060
    %3062 = vadd.xlane.f32.xlu0 %v3010
    %v3063 = vpop.xlane.xlu0 %3062
    %3064 = vadd.xlane.f32.xlu0 %v3011
    %v3065 = vpop.xlane.xlu0 %3064
    %3066 = vadd.xlane.f32.xlu0 %v3012
    %v3067 = vpop.xlane.xlu0 %3066
    %3068 = vadd.xlane.f32.xlu0 %v3013
    %v3069 = vpop.xlane.xlu0 %3068
    %3070 = vadd.xlane.f32.xlu0 %v3014
    %v3071 = vpop.xlane.xlu0 %3070
    %3072 = vadd.xlane.f32.xlu0 %v3015
    %v3073 = vpop.xlane.xlu0 %3072
    %3074 = vadd.xlane.f32.xlu0 %v3016
    %v3075 = vpop.xlane.xlu0 %3074
    %3076 = vadd.xlane.f32.xlu0 %v3017
    %v3077 = vpop.xlane.xlu0 %3076
    %3078 = vadd.xlane.f32.xlu0 %v3018
    %v3079 = vpop.xlane.xlu0 %3078
    %3080 = vadd.xlane.f32.xlu0 %v3019
    %v3081 = vpop.xlane.xlu0 %3080
    %3082 = vadd.xlane.f32.xlu0 %v3020
    %v3083 = vpop.xlane.xlu0 %3082
    %3084 = vadd.xlane.f32.xlu0 %v3021
    %v3085 = vpop.xlane.xlu0 %3084
    %3086 = vadd.xlane.f32.xlu0 %v3022
    %v3087 = vpop.xlane.xlu0 %3086
    %3088 = vadd.xlane.f32.xlu0 %v3023
    %v3089 = vpop.xlane.xlu0 %3088
    %3090 = vadd.xlane.f32.xlu0 %v3024
    %v3091 = vpop.xlane.xlu0 %3090
    %3092 = vadd.xlane.f32.xlu0 %v3025
    %v3093 = vpop.xlane.xlu0 %3092
    %3094 = vadd.xlane.f32.xlu0 %v3026
    %v3095 = vpop.xlane.xlu0 %3094
    %3096 = vadd.xlane.f32.xlu0 %v3027
    %v3097 = vpop.xlane.xlu0 %3096
    %3098 = vadd.xlane.f32.xlu0 %v3028
    %v3099 = vpop.xlane.xlu0 %3098
    %3100 = vadd.xlane.f32.xlu0 %v3029
    %v3101 = vpop.xlane.xlu0 %3100
    %3102 = vadd.xlane.f32.xlu0 %v3030
    %v3103 = vpop.xlane.xlu0 %3102
    %3104 = vadd.xlane.f32.xlu0 %v3031
    %v3105 = vpop.xlane.xlu0 %3104
    %3106 = vadd.xlane.f32.xlu0 %v3032
    %v3107 = vpop.xlane.xlu0 %3106
    %3108 = vadd.xlane.f32.xlu0 %v3033
    %v3109 = vpop.xlane.xlu0 %3108
    %v3110 = vmul.f32 %v3035, 0.01
    %v3111 = vmul.f32 %v3037, 0.01
    %v3112 = vmul.f32 %v3039, 0.01
    %v3113 = vmul.f32 %v3041, 0.01
    %v3114 = vmul.f32 %v3043, 0.01
    %v3115 = vmul.f32 %v3045, 0.01
    %v3116 = vmul.f32 %v3047, 0.01
    %v3117 = vmul.f32 %v3049, 0.01
    %v3118 = vmul.f32 %v3051, 0.01
    %v3119 = vmul.f32 %v3053, 0.01
    %v3120 = vmul.f32 %v3055, 0.01
    %v3121 = vmul.f32 %v3057, 0.01
    %v3122 = vmul.f32 %v3059, 0.01
    %v3123 = vmul.f32 %v3061, 0.01
    %v3124 = vmul.f32 %v3063, 0.01
    %v3125 = vmul.f32 %v3065, 0.01
    %v3126 = vmul.f32 %v3067, 0.01
    %v3127 = vmul.f32 %v3069, 0.01
    %v3128 = vmul.f32 %v3071, 0.01
    %v3129 = vmul.f32 %v3073, 0.01
    %v3130 = vmul.f32 %v3075, 0.01
    %v3131 = vmul.f32 %v3077, 0.01
    %v3132 = vmul.f32 %v3079, 0.01
    %v3133 = vmul.f32 %v3081, 0.01
    %v3134 = vmul.f32 %v3083, 0.01
    %v3135 = vmul.f32 %v3085, 0.01
    %v3136 = vmul.f32 %v3087, 0.01
    %v3137 = vmul.f32 %v3089, 0.01
    %v3138 = vmul.f32 %v3091, 0.01
    %v3139 = vmul.f32 %v3093, 0.01
    %v3140 = vmul.f32 %v3095, 0.01
    %v3141 = vmul.f32 %v3097, 0.01
    %v3142 = vmul.f32 %v3099, 0.01
    %v3143 = vmul.f32 %v3101, 0.01
    %v3144 = vmul.f32 %v3103, 0.01
    %v3145 = vmul.f32 %v3105, 0.01
    %v3146 = vmul.f32 %v3107, 0.01
    %v3147 = vmul.f32 %v3109, 0.01
    %v3148 = vsub.f32 %v2996, %v3110
    %v3149 = vsub.f32 %v2997, %v3111
    %v3150 = vsub.f32 %v2998, %v3112
    %v3151 = vsub.f32 %v2999, %v3113
    %v3152 = vsub.f32 %v3000, %v3114
    %v3153 = vsub.f32 %v3001, %v3115
    %v3154 = vsub.f32 %v3002, %v3116
    %v3155 = vsub.f32 %v3003, %v3117
    %v3156 = vsub.f32 %v3004, %v3118
    %v3157 = vsub.f32 %v3005, %v3119
    %v3158 = vsub.f32 %v3006, %v3120
    %v3159 = vsub.f32 %v3007, %v3121
    %v3160 = vsub.f32 %v3008, %v3122
    %v3161 = vsub.f32 %v3009, %v3123
    %v3162 = vsub.f32 %v3010, %v3124
    %v3163 = vsub.f32 %v3011, %v3125
    %v3164 = vsub.f32 %v3012, %v3126
    %v3165 = vsub.f32 %v3013, %v3127
    %v3166 = vsub.f32 %v3014, %v3128
    %v3167 = vsub.f32 %v3015, %v3129
    %v3168 = vsub.f32 %v3016, %v3130
    %v3169 = vsub.f32 %v3017, %v3131
    %v3170 = vsub.f32 %v3018, %v3132
    %v3171 = vsub.f32 %v3019, %v3133
    %v3172 = vsub.f32 %v3020, %v3134
    %v3173 = vsub.f32 %v3021, %v3135
    %v3174 = vsub.f32 %v3022, %v3136
    %v3175 = vsub.f32 %v3023, %v3137
    %v3176 = vsub.f32 %v3024, %v3138
    %v3177 = vsub.f32 %v3025, %v3139
    %v3178 = vsub.f32 %v3026, %v3140
    %v3179 = vsub.f32 %v3027, %v3141
    %v3180 = vsub.f32 %v3028, %v3142
    %v3181 = vsub.f32 %v3029, %v3143
    %v3182 = vsub.f32 %v3030, %v3144
    %v3183 = vsub.f32 %v3031, %v3145
    %v3184 = vsub.f32 %v3032, %v3146
    %v3185 = vsub.f32 %v3033, %v3147
    %v3186 = vmul.f32 %v3148, %v145
    %v3187 = vmul.f32 %v3149, %v145
    %v3188 = vmul.f32 %v3150, %v145
    %v3189 = vmul.f32 %v3151, %v145
    %v3190 = vmul.f32 %v3152, %v145
    %v3191 = vmul.f32 %v3153, %v145
    %v3192 = vmul.f32 %v3154, %v145
    %v3193 = vmul.f32 %v3155, %v145
    %v3194 = vmul.f32 %v3156, %v145
    %v3195 = vmul.f32 %v3157, %v145
    %v3196 = vmul.f32 %v3158, %v145
    %v3197 = vmul.f32 %v3159, %v145
    %v3198 = vmul.f32 %v3160, %v145
    %v3199 = vmul.f32 %v3161, %v145
    %v3200 = vmul.f32 %v3162, %v145
    %v3201 = vmul.f32 %v3163, %v145
    %v3202 = vmul.f32 %v3164, %v145
    %v3203 = vmul.f32 %v3165, %v145
    %v3204 = vmul.f32 %v3166, %v145
    %v3205 = vmul.f32 %v3167, %v145
    %v3206 = vmul.f32 %v3168, %v145
    %v3207 = vmul.f32 %v3169, %v145
    %v3208 = vmul.f32 %v3170, %v145
    %v3209 = vmul.f32 %v3171, %v145
    %v3210 = vmul.f32 %v3172, %v145
    %v3211 = vmul.f32 %v3173, %v145
    %v3212 = vmul.f32 %v3174, %v145
    %v3213 = vmul.f32 %v3175, %v145
    %v3214 = vmul.f32 %v3176, %v145
    %v3215 = vmul.f32 %v3177, %v145
    %v3216 = vmul.f32 %v3178, %v145
    %v3217 = vmul.f32 %v3179, %v145
    %v3218 = vmul.f32 %v3180, %v145
    %v3219 = vmul.f32 %v3181, %v145
    %v3220 = vmul.f32 %v3182, %v145
    %v3221 = vmul.f32 %v3183, %v145
    %v3222 = vmul.f32 %v3184, %v145
    %v3223 = vmul.f32 %v3185, %v145
    %v3224 = vmul.f32 %v3186, %v3186
    %v3225 = vmul.f32 %v3187, %v3187
    %v3226 = vmul.f32 %v3188, %v3188
    %v3227 = vmul.f32 %v3189, %v3189
    %v3228 = vmul.f32 %v3190, %v3190
    %v3229 = vmul.f32 %v3191, %v3191
    %v3230 = vmul.f32 %v3192, %v3192
    %v3231 = vmul.f32 %v3193, %v3193
    %v3232 = vmul.f32 %v3194, %v3194
    %v3233 = vmul.f32 %v3195, %v3195
    %v3234 = vmul.f32 %v3196, %v3196
    %v3235 = vmul.f32 %v3197, %v3197
    %v3236 = vmul.f32 %v3198, %v3198
    %v3237 = vmul.f32 %v3199, %v3199
    %v3238 = vmul.f32 %v3200, %v3200
    %v3239 = vmul.f32 %v3201, %v3201
    %v3240 = vmul.f32 %v3202, %v3202
    %v3241 = vmul.f32 %v3203, %v3203
    %v3242 = vmul.f32 %v3204, %v3204
    %v3243 = vmul.f32 %v3205, %v3205
    %v3244 = vmul.f32 %v3206, %v3206
    %v3245 = vmul.f32 %v3207, %v3207
    %v3246 = vmul.f32 %v3208, %v3208
    %v3247 = vmul.f32 %v3209, %v3209
    %v3248 = vmul.f32 %v3210, %v3210
    %v3249 = vmul.f32 %v3211, %v3211
    %v3250 = vmul.f32 %v3212, %v3212
    %v3251 = vmul.f32 %v3213, %v3213
    %v3252 = vmul.f32 %v3214, %v3214
    %v3253 = vmul.f32 %v3215, %v3215
    %v3254 = vmul.f32 %v3216, %v3216
    %v3255 = vmul.f32 %v3217, %v3217
    %v3256 = vmul.f32 %v3218, %v3218
    %v3257 = vmul.f32 %v3219, %v3219
    %v3258 = vmul.f32 %v3220, %v3220
    %v3259 = vmul.f32 %v3221, %v3221
    %v3260 = vmul.f32 %v3222, %v3222
    %v3261 = vmul.f32 %v3223, %v3223
    %3262 = vadd.xlane.f32.xlu0 %v3224
    %v3263 = vpop.xlane.xlu0 %3262
    %3264 = vadd.xlane.f32.xlu0 %v3225
    %v3265 = vpop.xlane.xlu0 %3264
    %3266 = vadd.xlane.f32.xlu0 %v3226
    %v3267 = vpop.xlane.xlu0 %3266
    %3268 = vadd.xlane.f32.xlu0 %v3227
    %v3269 = vpop.xlane.xlu0 %3268
    %3270 = vadd.xlane.f32.xlu0 %v3228
    %v3271 = vpop.xlane.xlu0 %3270
    %3272 = vadd.xlane.f32.xlu0 %v3229
    %v3273 = vpop.xlane.xlu0 %3272
    %3274 = vadd.xlane.f32.xlu0 %v3230
    %v3275 = vpop.xlane.xlu0 %3274
    %3276 = vadd.xlane.f32.xlu0 %v3231
    %v3277 = vpop.xlane.xlu0 %3276
    %3278 = vadd.xlane.f32.xlu0 %v3232
    %v3279 = vpop.xlane.xlu0 %3278
    %3280 = vadd.xlane.f32.xlu0 %v3233
    %v3281 = vpop.xlane.xlu0 %3280
    %3282 = vadd.xlane.f32.xlu0 %v3234
    %v3283 = vpop.xlane.xlu0 %3282
    %3284 = vadd.xlane.f32.xlu0 %v3235
    %v3285 = vpop.xlane.xlu0 %3284
    %3286 = vadd.xlane.f32.xlu0 %v3236
    %v3287 = vpop.xlane.xlu0 %3286
    %3288 = vadd.xlane.f32.xlu0 %v3237
    %v3289 = vpop.xlane.xlu0 %3288
    %3290 = vadd.xlane.f32.xlu0 %v3238
    %v3291 = vpop.xlane.xlu0 %3290
    %3292 = vadd.xlane.f32.xlu0 %v3239
    %v3293 = vpop.xlane.xlu0 %3292
    %3294 = vadd.xlane.f32.xlu0 %v3240
    %v3295 = vpop.xlane.xlu0 %3294
    %3296 = vadd.xlane.f32.xlu0 %v3241
    %v3297 = vpop.xlane.xlu0 %3296
    %3298 = vadd.xlane.f32.xlu0 %v3242
    %v3299 = vpop.xlane.xlu0 %3298
    %3300 = vadd.xlane.f32.xlu0 %v3243
    %v3301 = vpop.xlane.xlu0 %3300
    %3302 = vadd.xlane.f32.xlu0 %v3244
    %v3303 = vpop.xlane.xlu0 %3302
    %3304 = vadd.xlane.f32.xlu0 %v3245
    %v3305 = vpop.xlane.xlu0 %3304
    %3306 = vadd.xlane.f32.xlu0 %v3246
    %v3307 = vpop.xlane.xlu0 %3306
    %3308 = vadd.xlane.f32.xlu0 %v3247
    %v3309 = vpop.xlane.xlu0 %3308
    %3310 = vadd.xlane.f32.xlu0 %v3248
    %v3311 = vpop.xlane.xlu0 %3310
    %3312 = vadd.xlane.f32.xlu0 %v3249
    %v3313 = vpop.xlane.xlu0 %3312
    %3314 = vadd.xlane.f32.xlu0 %v3250
    %v3315 = vpop.xlane.xlu0 %3314
    %3316 = vadd.xlane.f32.xlu0 %v3251
    %v3317 = vpop.xlane.xlu0 %3316
    %3318 = vadd.xlane.f32.xlu0 %v3252
    %v3319 = vpop.xlane.xlu0 %3318
    %3320 = vadd.xlane.f32.xlu0 %v3253
    %v3321 = vpop.xlane.xlu0 %3320
    %3322 = vadd.xlane.f32.xlu0 %v3254
    %v3323 = vpop.xlane.xlu0 %3322
    %3324 = vadd.xlane.f32.xlu0 %v3255
    %v3325 = vpop.xlane.xlu0 %3324
    %3326 = vadd.xlane.f32.xlu0 %v3256
    %v3327 = vpop.xlane.xlu0 %3326
    %3328 = vadd.xlane.f32.xlu0 %v3257
    %v3329 = vpop.xlane.xlu0 %3328
    %3330 = vadd.xlane.f32.xlu0 %v3258
    %v3331 = vpop.xlane.xlu0 %3330
    %3332 = vadd.xlane.f32.xlu0 %v3259
    %v3333 = vpop.xlane.xlu0 %3332
    %3334 = vadd.xlane.f32.xlu0 %v3260
    %v3335 = vpop.xlane.xlu0 %3334
    %3336 = vadd.xlane.f32.xlu0 %v3261
    %v3337 = vpop.xlane.xlu0 %3336
    %v3338 = vmul.f32 %v3263, 0.01
    %v3339 = vmul.f32 %v3265, 0.01
    %v3340 = vmul.f32 %v3267, 0.01
    %v3341 = vmul.f32 %v3269, 0.01
    %v3342 = vmul.f32 %v3271, 0.01
    %v3343 = vmul.f32 %v3273, 0.01
    %v3344 = vmul.f32 %v3275, 0.01
    %v3345 = vmul.f32 %v3277, 0.01
    %v3346 = vmul.f32 %v3279, 0.01
    %v3347 = vmul.f32 %v3281, 0.01
    %v3348 = vmul.f32 %v3283, 0.01
    %v3349 = vmul.f32 %v3285, 0.01
    %v3350 = vmul.f32 %v3287, 0.01
    %v3351 = vmul.f32 %v3289, 0.01
    %v3352 = vmul.f32 %v3291, 0.01
    %v3353 = vmul.f32 %v3293, 0.01
    %v3354 = vmul.f32 %v3295, 0.01
    %v3355 = vmul.f32 %v3297, 0.01
    %v3356 = vmul.f32 %v3299, 0.01
    %v3357 = vmul.f32 %v3301, 0.01
    %v3358 = vmul.f32 %v3303, 0.01
    %v3359 = vmul.f32 %v3305, 0.01
    %v3360 = vmul.f32 %v3307, 0.01
    %v3361 = vmul.f32 %v3309, 0.01
    %v3362 = vmul.f32 %v3311, 0.01
    %v3363 = vmul.f32 %v3313, 0.01
    %v3364 = vmul.f32 %v3315, 0.01
    %v3365 = vmul.f32 %v3317, 0.01
    %v3366 = vmul.f32 %v3319, 0.01
    %v3367 = vmul.f32 %v3321, 0.01
    %v3368 = vmul.f32 %v3323, 0.01
    %v3369 = vmul.f32 %v3325, 0.01
    %v3370 = vmul.f32 %v3327, 0.01
    %v3371 = vmul.f32 %v3329, 0.01
    %v3372 = vmul.f32 %v3331, 0.01
    %v3373 = vmul.f32 %v3333, 0.01
    %v3374 = vmul.f32 %v3335, 0.01
    %v3375 = vmul.f32 %v3337, 0.01
    %v3376 = vadd.f32 %v3338, 1e-05
    %v3377 = vadd.f32 %v3339, 1e-05
    %v3378 = vadd.f32 %v3340, 1e-05
    %v3379 = vadd.f32 %v3341, 1e-05
    %v3380 = vadd.f32 %v3342, 1e-05
    %v3381 = vadd.f32 %v3343, 1e-05
    %v3382 = vadd.f32 %v3344, 1e-05
    %v3383 = vadd.f32 %v3345, 1e-05
    %v3384 = vadd.f32 %v3346, 1e-05
    %v3385 = vadd.f32 %v3347, 1e-05
    %v3386 = vadd.f32 %v3348, 1e-05
    %v3387 = vadd.f32 %v3349, 1e-05
    %v3388 = vadd.f32 %v3350, 1e-05
    %v3389 = vadd.f32 %v3351, 1e-05
    %v3390 = vadd.f32 %v3352, 1e-05
    %v3391 = vadd.f32 %v3353, 1e-05
    %v3392 = vadd.f32 %v3354, 1e-05
    %v3393 = vadd.f32 %v3355, 1e-05
    %v3394 = vadd.f32 %v3356, 1e-05
    %v3395 = vadd.f32 %v3357, 1e-05
    %v3396 = vadd.f32 %v3358, 1e-05
    %v3397 = vadd.f32 %v3359, 1e-05
    %v3398 = vadd.f32 %v3360, 1e-05
    %v3399 = vadd.f32 %v3361, 1e-05
    %v3400 = vadd.f32 %v3362, 1e-05
    %v3401 = vadd.f32 %v3363, 1e-05
    %v3402 = vadd.f32 %v3364, 1e-05
    %v3403 = vadd.f32 %v3365, 1e-05
    %v3404 = vadd.f32 %v3366, 1e-05
    %v3405 = vadd.f32 %v3367, 1e-05
    %v3406 = vadd.f32 %v3368, 1e-05
    %v3407 = vadd.f32 %v3369, 1e-05
    %v3408 = vadd.f32 %v3370, 1e-05
    %v3409 = vadd.f32 %v3371, 1e-05
    %v3410 = vadd.f32 %v3372, 1e-05
    %v3411 = vadd.f32 %v3373, 1e-05
    %v3412 = vadd.f32 %v3374, 1e-05
    %v3413 = vadd.f32 %v3375, 1e-05
    %v3414 = vrsqrt.pop %v3376
    %v3415 = vmul.f32 %v3414, %v3376
    %v3416 = vmul.f32 %v3415, %v3414
    %v3417 = vmul.f32 0.5, %v3416
    %v3418 = vsub.f32 1.5, %v3417
    %v3419 = vmul.f32 %v3414, %v3418
    %vm3420 = vweird.f32 %v3376
    %vm3421 = vweird.f32 %v3414
    %vm3422 = vmor %vm3420, %vm3421
    %v3423 = vsel %vm3422, %v3414, %v3419
    %v3424 = vrsqrt.pop %v3377
    %v3425 = vmul.f32 %v3424, %v3377
    %v3426 = vmul.f32 %v3425, %v3424
    %v3427 = vmul.f32 0.5, %v3426
    %v3428 = vsub.f32 1.5, %v3427
    %v3429 = vmul.f32 %v3424, %v3428
    %vm3430 = vweird.f32 %v3377
    %vm3431 = vweird.f32 %v3424
    %vm3432 = vmor %vm3430, %vm3431
    %v3433 = vsel %vm3432, %v3424, %v3429
    %v3434 = vrsqrt.pop %v3378
    %v3435 = vmul.f32 %v3434, %v3378
    %v3436 = vmul.f32 %v3435, %v3434
    %v3437 = vmul.f32 0.5, %v3436
    %v3438 = vsub.f32 1.5, %v3437
    %v3439 = vmul.f32 %v3434, %v3438
    %vm3440 = vweird.f32 %v3378
    %vm3441 = vweird.f32 %v3434
    %vm3442 = vmor %vm3440, %vm3441
    %v3443 = vsel %vm3442, %v3434, %v3439
    %v3444 = vrsqrt.pop %v3379
    %v3445 = vmul.f32 %v3444, %v3379
    %v3446 = vmul.f32 %v3445, %v3444
    %v3447 = vmul.f32 0.5, %v3446
    %v3448 = vsub.f32 1.5, %v3447
    %v3449 = vmul.f32 %v3444, %v3448
    %vm3450 = vweird.f32 %v3379
    %vm3451 = vweird.f32 %v3444
    %vm3452 = vmor %vm3450, %vm3451
    %v3453 = vsel %vm3452, %v3444, %v3449
    %v3454 = vrsqrt.pop %v3380
    %v3455 = vmul.f32 %v3454, %v3380
    %v3456 = vmul.f32 %v3455, %v3454
    %v3457 = vmul.f32 0.5, %v3456
    %v3458 = vsub.f32 1.5, %v3457
    %v3459 = vmul.f32 %v3454, %v3458
    %vm3460 = vweird.f32 %v3380
    %vm3461 = vweird.f32 %v3454
    %vm3462 = vmor %vm3460, %vm3461
    %v3463 = vsel %vm3462, %v3454, %v3459
    %v3464 = vrsqrt.pop %v3381
    %v3465 = vmul.f32 %v3464, %v3381
    %v3466 = vmul.f32 %v3465, %v3464
    %v3467 = vmul.f32 0.5, %v3466
    %v3468 = vsub.f32 1.5, %v3467
    %v3469 = vmul.f32 %v3464, %v3468
    %vm3470 = vweird.f32 %v3381
    %vm3471 = vweird.f32 %v3464
    %vm3472 = vmor %vm3470, %vm3471
    %v3473 = vsel %vm3472, %v3464, %v3469
    %v3474 = vrsqrt.pop %v3382
    %v3475 = vmul.f32 %v3474, %v3382
    %v3476 = vmul.f32 %v3475, %v3474
    %v3477 = vmul.f32 0.5, %v3476
    %v3478 = vsub.f32 1.5, %v3477
    %v3479 = vmul.f32 %v3474, %v3478
    %vm3480 = vweird.f32 %v3382
    %vm3481 = vweird.f32 %v3474
    %vm3482 = vmor %vm3480, %vm3481
    %v3483 = vsel %vm3482, %v3474, %v3479
    %v3484 = vrsqrt.pop %v3383
    %v3485 = vmul.f32 %v3484, %v3383
    %v3486 = vmul.f32 %v3485, %v3484
    %v3487 = vmul.f32 0.5, %v3486
    %v3488 = vsub.f32 1.5, %v3487
    %v3489 = vmul.f32 %v3484, %v3488
    %vm3490 = vweird.f32 %v3383
    %vm3491 = vweird.f32 %v3484
    %vm3492 = vmor %vm3490, %vm3491
    %v3493 = vsel %vm3492, %v3484, %v3489
    %v3494 = vrsqrt.pop %v3384
    %v3495 = vmul.f32 %v3494, %v3384
    %v3496 = vmul.f32 %v3495, %v3494
    %v3497 = vmul.f32 0.5, %v3496
    %v3498 = vsub.f32 1.5, %v3497
    %v3499 = vmul.f32 %v3494, %v3498
    %vm3500 = vweird.f32 %v3384
    %vm3501 = vweird.f32 %v3494
    %vm3502 = vmor %vm3500, %vm3501
    %v3503 = vsel %vm3502, %v3494, %v3499
    %v3504 = vrsqrt.pop %v3385
    %v3505 = vmul.f32 %v3504, %v3385
    %v3506 = vmul.f32 %v3505, %v3504
    %v3507 = vmul.f32 0.5, %v3506
    %v3508 = vsub.f32 1.5, %v3507
    %v3509 = vmul.f32 %v3504, %v3508
    %vm3510 = vweird.f32 %v3385
    %vm3511 = vweird.f32 %v3504
    %vm3512 = vmor %vm3510, %vm3511
    %v3513 = vsel %vm3512, %v3504, %v3509
    %v3514 = vrsqrt.pop %v3386
    %v3515 = vmul.f32 %v3514, %v3386
    %v3516 = vmul.f32 %v3515, %v3514
    %v3517 = vmul.f32 0.5, %v3516
    %v3518 = vsub.f32 1.5, %v3517
    %v3519 = vmul.f32 %v3514, %v3518
    %vm3520 = vweird.f32 %v3386
    %vm3521 = vweird.f32 %v3514
    %vm3522 = vmor %vm3520, %vm3521
    %v3523 = vsel %vm3522, %v3514, %v3519
    %v3524 = vrsqrt.pop %v3387
    %v3525 = vmul.f32 %v3524, %v3387
    %v3526 = vmul.f32 %v3525, %v3524
    %v3527 = vmul.f32 0.5, %v3526
    %v3528 = vsub.f32 1.5, %v3527
    %v3529 = vmul.f32 %v3524, %v3528
    %vm3530 = vweird.f32 %v3387
    %vm3531 = vweird.f32 %v3524
    %vm3532 = vmor %vm3530, %vm3531
    %v3533 = vsel %vm3532, %v3524, %v3529
    %v3534 = vrsqrt.pop %v3388
    %v3535 = vmul.f32 %v3534, %v3388
    %v3536 = vmul.f32 %v3535, %v3534
    %v3537 = vmul.f32 0.5, %v3536
    %v3538 = vsub.f32 1.5, %v3537
    %v3539 = vmul.f32 %v3534, %v3538
    %vm3540 = vweird.f32 %v3388
    %vm3541 = vweird.f32 %v3534
    %vm3542 = vmor %vm3540, %vm3541
    %v3543 = vsel %vm3542, %v3534, %v3539
    %v3544 = vrsqrt.pop %v3389
    %v3545 = vmul.f32 %v3544, %v3389
    %v3546 = vmul.f32 %v3545, %v3544
    %v3547 = vmul.f32 0.5, %v3546
    %v3548 = vsub.f32 1.5, %v3547
    %v3549 = vmul.f32 %v3544, %v3548
    %vm3550 = vweird.f32 %v3389
    %vm3551 = vweird.f32 %v3544
    %vm3552 = vmor %vm3550, %vm3551
    %v3553 = vsel %vm3552, %v3544, %v3549
    %v3554 = vrsqrt.pop %v3390
    %v3555 = vmul.f32 %v3554, %v3390
    %v3556 = vmul.f32 %v3555, %v3554
    %v3557 = vmul.f32 0.5, %v3556
    %v3558 = vsub.f32 1.5, %v3557
    %v3559 = vmul.f32 %v3554, %v3558
    %vm3560 = vweird.f32 %v3390
    %vm3561 = vweird.f32 %v3554
    %vm3562 = vmor %vm3560, %vm3561
    %v3563 = vsel %vm3562, %v3554, %v3559
    %v3564 = vrsqrt.pop %v3391
    %v3565 = vmul.f32 %v3564, %v3391
    %v3566 = vmul.f32 %v3565, %v3564
    %v3567 = vmul.f32 0.5, %v3566
    %v3568 = vsub.f32 1.5, %v3567
    %v3569 = vmul.f32 %v3564, %v3568
    %vm3570 = vweird.f32 %v3391
    %vm3571 = vweird.f32 %v3564
    %vm3572 = vmor %vm3570, %vm3571
    %v3573 = vsel %vm3572, %v3564, %v3569
    %v3574 = vrsqrt.pop %v3392
    %v3575 = vmul.f32 %v3574, %v3392
    %v3576 = vmul.f32 %v3575, %v3574
    %v3577 = vmul.f32 0.5, %v3576
    %v3578 = vsub.f32 1.5, %v3577
    %v3579 = vmul.f32 %v3574, %v3578
    %vm3580 = vweird.f32 %v3392
    %vm3581 = vweird.f32 %v3574
    %vm3582 = vmor %vm3580, %vm3581
    %v3583 = vsel %vm3582, %v3574, %v3579
    %v3584 = vrsqrt.pop %v3393
    %v3585 = vmul.f32 %v3584, %v3393
    %v3586 = vmul.f32 %v3585, %v3584
    %v3587 = vmul.f32 0.5, %v3586
    %v3588 = vsub.f32 1.5, %v3587
    %v3589 = vmul.f32 %v3584, %v3588
    %vm3590 = vweird.f32 %v3393
    %vm3591 = vweird.f32 %v3584
    %vm3592 = vmor %vm3590, %vm3591
    %v3593 = vsel %vm3592, %v3584, %v3589
    %v3594 = vrsqrt.pop %v3394
    %v3595 = vmul.f32 %v3594, %v3394
    %v3596 = vmul.f32 %v3595, %v3594
    %v3597 = vmul.f32 0.5, %v3596
    %v3598 = vsub.f32 1.5, %v3597
    %v3599 = vmul.f32 %v3594, %v3598
    %vm3600 = vweird.f32 %v3394
    %vm3601 = vweird.f32 %v3594
    %vm3602 = vmor %vm3600, %vm3601
    %v3603 = vsel %vm3602, %v3594, %v3599
    %v3604 = vrsqrt.pop %v3395
    %v3605 = vmul.f32 %v3604, %v3395
    %v3606 = vmul.f32 %v3605, %v3604
    %v3607 = vmul.f32 0.5, %v3606
    %v3608 = vsub.f32 1.5, %v3607
    %v3609 = vmul.f32 %v3604, %v3608
    %vm3610 = vweird.f32 %v3395
    %vm3611 = vweird.f32 %v3604
    %vm3612 = vmor %vm3610, %vm3611
    %v3613 = vsel %vm3612, %v3604, %v3609
    %v3614 = vrsqrt.pop %v3396
    %v3615 = vmul.f32 %v3614, %v3396
    %v3616 = vmul.f32 %v3615, %v3614
    %v3617 = vmul.f32 0.5, %v3616
    %v3618 = vsub.f32 1.5, %v3617
    %v3619 = vmul.f32 %v3614, %v3618
    %vm3620 = vweird.f32 %v3396
    %vm3621 = vweird.f32 %v3614
    %vm3622 = vmor %vm3620, %vm3621
    %v3623 = vsel %vm3622, %v3614, %v3619
    %v3624 = vrsqrt.pop %v3397
    %v3625 = vmul.f32 %v3624, %v3397
    %v3626 = vmul.f32 %v3625, %v3624
    %v3627 = vmul.f32 0.5, %v3626
    %v3628 = vsub.f32 1.5, %v3627
    %v3629 = vmul.f32 %v3624, %v3628
    %vm3630 = vweird.f32 %v3397
    %vm3631 = vweird.f32 %v3624
    %vm3632 = vmor %vm3630, %vm3631
    %v3633 = vsel %vm3632, %v3624, %v3629
    %v3634 = vrsqrt.pop %v3398
    %v3635 = vmul.f32 %v3634, %v3398
    %v3636 = vmul.f32 %v3635, %v3634
    %v3637 = vmul.f32 0.5, %v3636
    %v3638 = vsub.f32 1.5, %v3637
    %v3639 = vmul.f32 %v3634, %v3638
    %vm3640 = vweird.f32 %v3398
    %vm3641 = vweird.f32 %v3634
    %vm3642 = vmor %vm3640, %vm3641
    %v3643 = vsel %vm3642, %v3634, %v3639
    %v3644 = vrsqrt.pop %v3399
    %v3645 = vmul.f32 %v3644, %v3399
    %v3646 = vmul.f32 %v3645, %v3644
    %v3647 = vmul.f32 0.5, %v3646
    %v3648 = vsub.f32 1.5, %v3647
    %v3649 = vmul.f32 %v3644, %v3648
    %vm3650 = vweird.f32 %v3399
    %vm3651 = vweird.f32 %v3644
    %vm3652 = vmor %vm3650, %vm3651
    %v3653 = vsel %vm3652, %v3644, %v3649
    %v3654 = vrsqrt.pop %v3400
    %v3655 = vmul.f32 %v3654, %v3400
    %v3656 = vmul.f32 %v3655, %v3654
    %v3657 = vmul.f32 0.5, %v3656
    %v3658 = vsub.f32 1.5, %v3657
    %v3659 = vmul.f32 %v3654, %v3658
    %vm3660 = vweird.f32 %v3400
    %vm3661 = vweird.f32 %v3654
    %vm3662 = vmor %vm3660, %vm3661
    %v3663 = vsel %vm3662, %v3654, %v3659
    %v3664 = vrsqrt.pop %v3401
    %v3665 = vmul.f32 %v3664, %v3401
    %v3666 = vmul.f32 %v3665, %v3664
    %v3667 = vmul.f32 0.5, %v3666
    %v3668 = vsub.f32 1.5, %v3667
    %v3669 = vmul.f32 %v3664, %v3668
    %vm3670 = vweird.f32 %v3401
    %vm3671 = vweird.f32 %v3664
    %vm3672 = vmor %vm3670, %vm3671
    %v3673 = vsel %vm3672, %v3664, %v3669
    %v3674 = vrsqrt.pop %v3402
    %v3675 = vmul.f32 %v3674, %v3402
    %v3676 = vmul.f32 %v3675, %v3674
    %v3677 = vmul.f32 0.5, %v3676
    %v3678 = vsub.f32 1.5, %v3677
    %v3679 = vmul.f32 %v3674, %v3678
    %vm3680 = vweird.f32 %v3402
    %vm3681 = vweird.f32 %v3674
    %vm3682 = vmor %vm3680, %vm3681
    %v3683 = vsel %vm3682, %v3674, %v3679
    %v3684 = vrsqrt.pop %v3403
    %v3685 = vmul.f32 %v3684, %v3403
    %v3686 = vmul.f32 %v3685, %v3684
    %v3687 = vmul.f32 0.5, %v3686
    %v3688 = vsub.f32 1.5, %v3687
    %v3689 = vmul.f32 %v3684, %v3688
    %vm3690 = vweird.f32 %v3403
    %vm3691 = vweird.f32 %v3684
    %vm3692 = vmor %vm3690, %vm3691
    %v3693 = vsel %vm3692, %v3684, %v3689
    %v3694 = vrsqrt.pop %v3404
    %v3695 = vmul.f32 %v3694, %v3404
    %v3696 = vmul.f32 %v3695, %v3694
    %v3697 = vmul.f32 0.5, %v3696
    %v3698 = vsub.f32 1.5, %v3697
    %v3699 = vmul.f32 %v3694, %v3698
    %vm3700 = vweird.f32 %v3404
    %vm3701 = vweird.f32 %v3694
    %vm3702 = vmor %vm3700, %vm3701
    %v3703 = vsel %vm3702, %v3694, %v3699
    %v3704 = vrsqrt.pop %v3405
    %v3705 = vmul.f32 %v3704, %v3405
    %v3706 = vmul.f32 %v3705, %v3704
    %v3707 = vmul.f32 0.5, %v3706
    %v3708 = vsub.f32 1.5, %v3707
    %v3709 = vmul.f32 %v3704, %v3708
    %vm3710 = vweird.f32 %v3405
    %vm3711 = vweird.f32 %v3704
    %vm3712 = vmor %vm3710, %vm3711
    %v3713 = vsel %vm3712, %v3704, %v3709
    %v3714 = vrsqrt.pop %v3406
    %v3715 = vmul.f32 %v3714, %v3406
    %v3716 = vmul.f32 %v3715, %v3714
    %v3717 = vmul.f32 0.5, %v3716
    %v3718 = vsub.f32 1.5, %v3717
    %v3719 = vmul.f32 %v3714, %v3718
    %vm3720 = vweird.f32 %v3406
    %vm3721 = vweird.f32 %v3714
    %vm3722 = vmor %vm3720, %vm3721
    %v3723 = vsel %vm3722, %v3714, %v3719
    %v3724 = vrsqrt.pop %v3407
    %v3725 = vmul.f32 %v3724, %v3407
    %v3726 = vmul.f32 %v3725, %v3724
    %v3727 = vmul.f32 0.5, %v3726
    %v3728 = vsub.f32 1.5, %v3727
    %v3729 = vmul.f32 %v3724, %v3728
    %vm3730 = vweird.f32 %v3407
    %vm3731 = vweird.f32 %v3724
    %vm3732 = vmor %vm3730, %vm3731
    %v3733 = vsel %vm3732, %v3724, %v3729
    %v3734 = vrsqrt.pop %v3408
    %v3735 = vmul.f32 %v3734, %v3408
    %v3736 = vmul.f32 %v3735, %v3734
    %v3737 = vmul.f32 0.5, %v3736
    %v3738 = vsub.f32 1.5, %v3737
    %v3739 = vmul.f32 %v3734, %v3738
    %vm3740 = vweird.f32 %v3408
    %vm3741 = vweird.f32 %v3734
    %vm3742 = vmor %vm3740, %vm3741
    %v3743 = vsel %vm3742, %v3734, %v3739
    %v3744 = vrsqrt.pop %v3409
    %v3745 = vmul.f32 %v3744, %v3409
    %v3746 = vmul.f32 %v3745, %v3744
    %v3747 = vmul.f32 0.5, %v3746
    %v3748 = vsub.f32 1.5, %v3747
    %v3749 = vmul.f32 %v3744, %v3748
    %vm3750 = vweird.f32 %v3409
    %vm3751 = vweird.f32 %v3744
    %vm3752 = vmor %vm3750, %vm3751
    %v3753 = vsel %vm3752, %v3744, %v3749
    %v3754 = vrsqrt.pop %v3410
    %v3755 = vmul.f32 %v3754, %v3410
    %v3756 = vmul.f32 %v3755, %v3754
    %v3757 = vmul.f32 0.5, %v3756
    %v3758 = vsub.f32 1.5, %v3757
    %v3759 = vmul.f32 %v3754, %v3758
    %vm3760 = vweird.f32 %v3410
    %vm3761 = vweird.f32 %v3754
    %vm3762 = vmor %vm3760, %vm3761
    %v3763 = vsel %vm3762, %v3754, %v3759
    %v3764 = vrsqrt.pop %v3411
    %v3765 = vmul.f32 %v3764, %v3411
    %v3766 = vmul.f32 %v3765, %v3764
    %v3767 = vmul.f32 0.5, %v3766
    %v3768 = vsub.f32 1.5, %v3767
    %v3769 = vmul.f32 %v3764, %v3768
    %vm3770 = vweird.f32 %v3411
    %vm3771 = vweird.f32 %v3764
    %vm3772 = vmor %vm3770, %vm3771
    %v3773 = vsel %vm3772, %v3764, %v3769
    %v3774 = vrsqrt.pop %v3412
    %v3775 = vmul.f32 %v3774, %v3412
    %v3776 = vmul.f32 %v3775, %v3774
    %v3777 = vmul.f32 0.5, %v3776
    %v3778 = vsub.f32 1.5, %v3777
    %v3779 = vmul.f32 %v3774, %v3778
    %vm3780 = vweird.f32 %v3412
    %vm3781 = vweird.f32 %v3774
    %vm3782 = vmor %vm3780, %vm3781
    %v3783 = vsel %vm3782, %v3774, %v3779
    %v3784 = vrsqrt.pop %v3413
    %v3785 = vmul.f32 %v3784, %v3413
    %v3786 = vmul.f32 %v3785, %v3784
    %v3787 = vmul.f32 0.5, %v3786
    %v3788 = vsub.f32 1.5, %v3787
    %v3789 = vmul.f32 %v3784, %v3788
    %vm3790 = vweird.f32 %v3413
    %vm3791 = vweird.f32 %v3784
    %vm3792 = vmor %vm3790, %vm3791
    %v3793 = vsel %vm3792, %v3784, %v3789
    %v3794 = vmul.f32 %v3186, %v3423
    %v3795 = vmul.f32 %v3187, %v3433
    %v3796 = vmul.f32 %v3188, %v3443
    %v3797 = vmul.f32 %v3189, %v3453
    %v3798 = vmul.f32 %v3190, %v3463
    %v3799 = vmul.f32 %v3191, %v3473
    %v3800 = vmul.f32 %v3192, %v3483
    %v3801 = vmul.f32 %v3193, %v3493
    %v3802 = vmul.f32 %v3194, %v3503
    %v3803 = vmul.f32 %v3195, %v3513
    %v3804 = vmul.f32 %v3196, %v3523
    %v3805 = vmul.f32 %v3197, %v3533
    %v3806 = vmul.f32 %v3198, %v3543
    %v3807 = vmul.f32 %v3199, %v3553
    %v3808 = vmul.f32 %v3200, %v3563
    %v3809 = vmul.f32 %v3201, %v3573
    %v3810 = vmul.f32 %v3202, %v3583
    %v3811 = vmul.f32 %v3203, %v3593
    %v3812 = vmul.f32 %v3204, %v3603
    %v3813 = vmul.f32 %v3205, %v3613
    %v3814 = vmul.f32 %v3206, %v3623
    %v3815 = vmul.f32 %v3207, %v3633
    %v3816 = vmul.f32 %v3208, %v3643
    %v3817 = vmul.f32 %v3209, %v3653
    %v3818 = vmul.f32 %v3210, %v3663
    %v3819 = vmul.f32 %v3211, %v3673
    %v3820 = vmul.f32 %v3212, %v3683
    %v3821 = vmul.f32 %v3213, %v3693
    %v3822 = vmul.f32 %v3214, %v3703
    %v3823 = vmul.f32 %v3215, %v3713
    %v3824 = vmul.f32 %v3216, %v3723
    %v3825 = vmul.f32 %v3217, %v3733
    %v3826 = vmul.f32 %v3218, %v3743
    %v3827 = vmul.f32 %v3219, %v3753
    %v3828 = vmul.f32 %v3220, %v3763
    %v3829 = vmul.f32 %v3221, %v3773
    %v3830 = vmul.f32 %v3222, %v3783
    %v3831 = vmul.f32 %v3223, %v3793
    %v3833 = vperm.slane %v2994, 0
    %v3835 = vmul.f32 %v3794, %v3833
    %v3836 = vmul.f32 %v3795, %v3833
    %v3837 = vmul.f32 %v3796, %v3833
    %v3838 = vmul.f32 %v3797, %v3833
    %v3839 = vmul.f32 %v3798, %v3833
    %v3840 = vmul.f32 %v3799, %v3833
    %v3841 = vmul.f32 %v3800, %v3833
    %v3842 = vmul.f32 %v3801, %v3833
    %v3843 = vmul.f32 %v3802, %v3833
    %v3844 = vmul.f32 %v3803, %v3833
    %v3845 = vmul.f32 %v3804, %v3833
    %v3846 = vmul.f32 %v3805, %v3833
    %v3847 = vmul.f32 %v3806, %v3833
    %v3848 = vmul.f32 %v3807, %v3833
    %v3849 = vmul.f32 %v3808, %v3833
    %v3850 = vmul.f32 %v3809, %v3833
    %v3851 = vmul.f32 %v3810, %v3833
    %v3852 = vmul.f32 %v3811, %v3833
    %v3853 = vmul.f32 %v3812, %v3833
    %v3854 = vmul.f32 %v3813, %v3833
    %v3855 = vmul.f32 %v3814, %v3833
    %v3856 = vmul.f32 %v3815, %v3833
    %v3857 = vmul.f32 %v3816, %v3833
    %v3858 = vmul.f32 %v3817, %v3833
    %v3859 = vmul.f32 %v3818, %v3833
    %v3860 = vmul.f32 %v3819, %v3833
    %v3861 = vmul.f32 %v3820, %v3833
    %v3862 = vmul.f32 %v3821, %v3833
    %v3863 = vmul.f32 %v3822, %v3833
    %v3864 = vmul.f32 %v3823, %v3833
    %v3865 = vmul.f32 %v3824, %v3833
    %v3866 = vmul.f32 %v3825, %v3833
    %v3867 = vmul.f32 %v3826, %v3833
    %v3868 = vmul.f32 %v3827, %v3833
    %v3869 = vmul.f32 %v3828, %v3833
    %v3870 = vmul.f32 %v3829, %v3833
    %v3871 = vmul.f32 %v3830, %v3833
    %v3872 = vmul.f32 %v3831, %v3833
    %v3874 = vperm.slane %v2995, 0
    %v3876 = vadd.f32 %v3835, %v3874
    %v3877 = vadd.f32 %v3836, %v3874
    %v3878 = vadd.f32 %v3837, %v3874
    %v3879 = vadd.f32 %v3838, %v3874
    %v3880 = vadd.f32 %v3839, %v3874
    %v3881 = vadd.f32 %v3840, %v3874
    %v3882 = vadd.f32 %v3841, %v3874
    %v3883 = vadd.f32 %v3842, %v3874
    %v3884 = vadd.f32 %v3843, %v3874
    %v3885 = vadd.f32 %v3844, %v3874
    %v3886 = vadd.f32 %v3845, %v3874
    %v3887 = vadd.f32 %v3846, %v3874
    %v3888 = vadd.f32 %v3847, %v3874
    %v3889 = vadd.f32 %v3848, %v3874
    %v3890 = vadd.f32 %v3849, %v3874
    %v3891 = vadd.f32 %v3850, %v3874
    %v3892 = vadd.f32 %v3851, %v3874
    %v3893 = vadd.f32 %v3852, %v3874
    %v3894 = vadd.f32 %v3853, %v3874
    %v3895 = vadd.f32 %v3854, %v3874
    %v3896 = vadd.f32 %v3855, %v3874
    %v3897 = vadd.f32 %v3856, %v3874
    %v3898 = vadd.f32 %v3857, %v3874
    %v3899 = vadd.f32 %v3858, %v3874
    %v3900 = vadd.f32 %v3859, %v3874
    %v3901 = vadd.f32 %v3860, %v3874
    %v3902 = vadd.f32 %v3861, %v3874
    %v3903 = vadd.f32 %v3862, %v3874
    %v3904 = vadd.f32 %v3863, %v3874
    %v3905 = vadd.f32 %v3864, %v3874
    %v3906 = vadd.f32 %v3865, %v3874
    %v3907 = vadd.f32 %v3866, %v3874
    %v3908 = vadd.f32 %v3867, %v3874
    %v3909 = vadd.f32 %v3868, %v3874
    %v3910 = vadd.f32 %v3869, %v3874
    %v3911 = vadd.f32 %v3870, %v3874
    %v3912 = vadd.f32 %v3871, %v3874
    %v3913 = vadd.f32 %v3872, %v3874
    %v3914 = vld [vmem:[#allocation10] sm:$0xff]
    %v3915 = vld [vmem:[#allocation10 + $0x8] sm:$0xff]
    %v3916 = vld [vmem:[#allocation10 + $0x10] sm:$0xff]
    %v3917 = vld [vmem:[#allocation10 + $0x18] sm:$0xff]
    %v3918 = vld [vmem:[#allocation10 + $0x80] sm:$0xff]
    %v3919 = vld [vmem:[#allocation10 + $0x88] sm:$0xff]
    %v3920 = vld [vmem:[#allocation10 + $0x90] sm:$0xff]
    %v3921 = vld [vmem:[#allocation10 + $0x98] sm:$0xff]
    %v3922 = vld [vmem:[#allocation10 + $0x100] sm:$0xff]
    %v3923 = vld [vmem:[#allocation10 + $0x108] sm:$0xff]
    %v3924 = vld [vmem:[#allocation10 + $0x110] sm:$0xff]
    %v3925 = vld [vmem:[#allocation10 + $0x118] sm:$0xff]
    %v3926 = vld [vmem:[#allocation10 + $0x180] sm:$0xff]
    %v3927 = vld [vmem:[#allocation10 + $0x188] sm:$0xff]
    %v3928 = vld [vmem:[#allocation10 + $0x190] sm:$0xff]
    %v3929 = vld [vmem:[#allocation10 + $0x198] sm:$0xff]
    %v3930 = vld [vmem:[#allocation10 + $0x200] sm:$0xff]
    %v3931 = vld [vmem:[#allocation10 + $0x208] sm:$0xff]
    %v3932 = vld [vmem:[#allocation10 + $0x210] sm:$0xff]
    %v3933 = vld [vmem:[#allocation10 + $0x218] sm:$0xff]
    %v3934 = vld [vmem:[#allocation10 + $0x280] sm:$0xff]
    %v3935 = vld [vmem:[#allocation10 + $0x288] sm:$0xff]
    %v3936 = vld [vmem:[#allocation10 + $0x290] sm:$0xff]
    %v3937 = vld [vmem:[#allocation10 + $0x298] sm:$0xff]
    %v3938 = vld [vmem:[#allocation10 + $0x300] sm:$0xff]
    %v3939 = vld [vmem:[#allocation10 + $0x308] sm:$0xff]
    %v3940 = vld [vmem:[#allocation10 + $0x310] sm:$0xff]
    %v3941 = vld [vmem:[#allocation10 + $0x318] sm:$0xff]
    %v3942 = vld [vmem:[#allocation10 + $0x380] sm:$0xff]
    %v3943 = vld [vmem:[#allocation10 + $0x388] sm:$0xff]
    %v3944 = vld [vmem:[#allocation10 + $0x390] sm:$0xff]
    %v3945 = vld [vmem:[#allocation10 + $0x398] sm:$0xff]
    %v3946 = vld [vmem:[#allocation10 + $0x400] sm:$0xff]
    %v3947 = vld [vmem:[#allocation10 + $0x408] sm:$0xff]
    %v3948 = vld [vmem:[#allocation10 + $0x410] sm:$0xff]
    %v3949 = vld [vmem:[#allocation10 + $0x418] sm:$0xff]
    %v3950 = vld [vmem:[#allocation10 + $0x480] sm:$0xff]
    %v3951 = vld [vmem:[#allocation10 + $0x488] sm:$0xff]
    %v3952 = vld [vmem:[#allocation10 + $0x490] sm:$0xff]
    %v3953 = vld [vmem:[#allocation10 + $0x498] sm:$0xff]
    %v3954 = vld [vmem:[#allocation10 + $0x500] sm:$0xff]
    %v3955 = vld [vmem:[#allocation10 + $0x508] sm:$0xff]
    %v3956 = vld [vmem:[#allocation10 + $0x510] sm:$0xff]
    %v3957 = vld [vmem:[#allocation10 + $0x518] sm:$0xff]
    %v3958 = vld [vmem:[#allocation10 + $0x580] sm:$0xff]
    %v3959 = vld [vmem:[#allocation10 + $0x588] sm:$0xff]
    %v3960 = vld [vmem:[#allocation10 + $0x590] sm:$0xff]
    %v3961 = vld [vmem:[#allocation10 + $0x598] sm:$0xff]
    %v3962 = vld [vmem:[#allocation10 + $0x600] sm:$0xff]
    %v3963 = vld [vmem:[#allocation10 + $0x608] sm:$0xff]
    %v3964 = vld [vmem:[#allocation10 + $0x610] sm:$0xff]
    %v3965 = vld [vmem:[#allocation10 + $0x618] sm:$0xff]
    %v3966 = vld [vmem:[#allocation10 + $0x680] sm:$0xff]
    %v3967 = vld [vmem:[#allocation10 + $0x688] sm:$0xff]
    %v3968 = vld [vmem:[#allocation10 + $0x690] sm:$0xff]
    %v3969 = vld [vmem:[#allocation10 + $0x698] sm:$0xff]
    %v3970 = vld [vmem:[#allocation10 + $0x700] sm:$0xff]
    %v3971 = vld [vmem:[#allocation10 + $0x708] sm:$0xff]
    %v3972 = vld [vmem:[#allocation10 + $0x710] sm:$0xff]
    %v3973 = vld [vmem:[#allocation10 + $0x718] sm:$0xff]
    %v3974 = vld [vmem:[#allocation10 + $0x780] sm:$0xff]
    %v3975 = vld [vmem:[#allocation10 + $0x788] sm:$0xff]
    %v3976 = vld [vmem:[#allocation10 + $0x790] sm:$0xff]
    %v3977 = vld [vmem:[#allocation10 + $0x798] sm:$0xff]
    %v3978 = vld [vmem:[%s9] sm:$0xf]
    %v3980 = vperm.slane %v3978, 0
    %v3981 = vperm.slane %v3978, 1
    %v3982 = vperm.slane %v3978, 2
    %v3983 = vperm.slane %v3978, 3
    %3988 = vmatpush.msra.mxu0 %v3974
    %3989 = vmatpush.msra.mxu0 %v3970
    %3990 = vmatpush.msra.mxu0 %v3966
    %3991 = vmatpush.msra.mxu0 %v3962
    %3992 = vmatpush.msra.mxu0 %v3958
    %3993 = vmatpush.msra.mxu0 %v3954
    %3994 = vmatpush.msra.mxu0 %v3950
    %3995 = vmatpush.msra.mxu0 %v3946
    %3996 = vmatpush.msra.mxu0 %v3942
    %3997 = vmatpush.msra.mxu0 %v3938
    %3998 = vmatpush.msra.mxu0 %v3934
    %3999 = vmatpush.msra.mxu0 %v3930
    %4000 = vmatpush.msra.mxu0 %v3926
    %4001 = vmatpush.msra.mxu0 %v3922
    %4002 = vmatpush.msra.mxu0 %v3918
    %4003 = vmatpush.msra.mxu0 %v3914
    %4004 = vmatmul.f32.gmra.mxu0 %v3876
    %v4005 = vpop.f32.mrf.mxu0
    %v4006 = vadd.f32 %v3980, %v4005
    %4007 = vmatmul.f32.gmra.mxu0 %v3877
    %v4008 = vpop.f32.mrf.mxu0
    %v4009 = vadd.f32 %v3980, %v4008
    %4010 = vmatmul.f32.gmra.mxu0 %v3878
    %v4011 = vpop.f32.mrf.mxu0
    %v4012 = vadd.f32 %v3980, %v4011
    %4013 = vmatmul.f32.gmra.mxu0 %v3879
    %v4014 = vpop.f32.mrf.mxu0
    %v4015 = vadd.f32 %v3980, %v4014
    %4016 = vmatmul.f32.gmra.mxu0 %v3880
    %v4017 = vpop.f32.mrf.mxu0
    %v4018 = vadd.f32 %v3980, %v4017
    %4019 = vmatmul.f32.gmra.mxu0 %v3881
    %v4020 = vpop.f32.mrf.mxu0
    %v4021 = vadd.f32 %v3980, %v4020
    %4022 = vmatmul.f32.gmra.mxu0 %v3882
    %v4023 = vpop.f32.mrf.mxu0
    %v4024 = vadd.f32 %v3980, %v4023
    %4025 = vmatmul.f32.gmra.mxu0 %v3883
    %v4026 = vpop.f32.mrf.mxu0
    %v4027 = vadd.f32 %v3980, %v4026
    %4028 = vmatmul.f32.gmra.mxu0 %v3884
    %v4029 = vpop.f32.mrf.mxu0
    %v4030 = vadd.f32 %v3980, %v4029
    %4031 = vmatmul.f32.gmra.mxu0 %v3885
    %v4032 = vpop.f32.mrf.mxu0
    %v4033 = vadd.f32 %v3980, %v4032
    %4034 = vmatmul.f32.gmra.mxu0 %v3886
    %v4035 = vpop.f32.mrf.mxu0
    %v4036 = vadd.f32 %v3980, %v4035
    %4037 = vmatmul.f32.gmra.mxu0 %v3887
    %v4038 = vpop.f32.mrf.mxu0
    %v4039 = vadd.f32 %v3980, %v4038
    %4040 = vmatmul.f32.gmra.mxu0 %v3888
    %v4041 = vpop.f32.mrf.mxu0
    %v4042 = vadd.f32 %v3980, %v4041
    %4043 = vmatmul.f32.gmra.mxu0 %v3889
    %v4044 = vpop.f32.mrf.mxu0
    %v4045 = vadd.f32 %v3980, %v4044
    %4046 = vmatmul.f32.gmra.mxu0 %v3890
    %v4047 = vpop.f32.mrf.mxu0
    %v4048 = vadd.f32 %v3980, %v4047
    %4049 = vmatmul.f32.gmra.mxu0 %v3891
    %v4050 = vpop.f32.mrf.mxu0
    %v4051 = vadd.f32 %v3980, %v4050
    %4052 = vmatmul.f32.gmra.mxu0 %v3892
    %v4053 = vpop.f32.mrf.mxu0
    %v4054 = vadd.f32 %v3980, %v4053
    %4055 = vmatmul.f32.gmra.mxu0 %v3893
    %v4056 = vpop.f32.mrf.mxu0
    %v4057 = vadd.f32 %v3980, %v4056
    %4058 = vmatmul.f32.gmra.mxu0 %v3894
    %v4059 = vpop.f32.mrf.mxu0
    %v4060 = vadd.f32 %v3980, %v4059
    %4061 = vmatmul.f32.gmra.mxu0 %v3895
    %v4062 = vpop.f32.mrf.mxu0
    %v4063 = vadd.f32 %v3980, %v4062
    %4064 = vmatmul.f32.gmra.mxu0 %v3896
    %v4065 = vpop.f32.mrf.mxu0
    %v4066 = vadd.f32 %v3980, %v4065
    %4067 = vmatmul.f32.gmra.mxu0 %v3897
    %v4068 = vpop.f32.mrf.mxu0
    %v4069 = vadd.f32 %v3980, %v4068
    %4070 = vmatmul.f32.gmra.mxu0 %v3898
    %v4071 = vpop.f32.mrf.mxu0
    %v4072 = vadd.f32 %v3980, %v4071
    %4073 = vmatmul.f32.gmra.mxu0 %v3899
    %v4074 = vpop.f32.mrf.mxu0
    %v4075 = vadd.f32 %v3980, %v4074
    %4076 = vmatmul.f32.gmra.mxu0 %v3900
    %v4077 = vpop.f32.mrf.mxu0
    %v4078 = vadd.f32 %v3980, %v4077
    %4079 = vmatmul.f32.gmra.mxu0 %v3901
    %v4080 = vpop.f32.mrf.mxu0
    %v4081 = vadd.f32 %v3980, %v4080
    %4082 = vmatmul.f32.gmra.mxu0 %v3902
    %v4083 = vpop.f32.mrf.mxu0
    %v4084 = vadd.f32 %v3980, %v4083
    %4085 = vmatmul.f32.gmra.mxu0 %v3903
    %v4086 = vpop.f32.mrf.mxu0
    %v4087 = vadd.f32 %v3980, %v4086
    %4088 = vmatmul.f32.gmra.mxu0 %v3904
    %v4089 = vpop.f32.mrf.mxu0
    %v4090 = vadd.f32 %v3980, %v4089
    %4091 = vmatmul.f32.gmra.mxu0 %v3905
    %v4092 = vpop.f32.mrf.mxu0
    %v4093 = vadd.f32 %v3980, %v4092
    %4094 = vmatmul.f32.gmra.mxu0 %v3906
    %v4095 = vpop.f32.mrf.mxu0
    %v4096 = vadd.f32 %v3980, %v4095
    %4097 = vmatmul.f32.gmra.mxu0 %v3907
    %v4098 = vpop.f32.mrf.mxu0
    %v4099 = vadd.f32 %v3980, %v4098
    %4100 = vmatmul.f32.gmra.mxu0 %v3908
    %v4101 = vpop.f32.mrf.mxu0
    %v4102 = vadd.f32 %v3980, %v4101
    %4103 = vmatmul.f32.gmra.mxu0 %v3909
    %v4104 = vpop.f32.mrf.mxu0
    %v4105 = vadd.f32 %v3980, %v4104
    %4106 = vmatmul.f32.gmra.mxu0 %v3910
    %v4107 = vpop.f32.mrf.mxu0
    %v4108 = vadd.f32 %v3980, %v4107
    %4109 = vmatmul.f32.gmra.mxu0 %v3911
    %v4110 = vpop.f32.mrf.mxu0
    %v4111 = vadd.f32 %v3980, %v4110
    %4112 = vmatmul.f32.gmra.mxu0 %v3912
    %v4113 = vpop.f32.mrf.mxu0
    %v4114 = vadd.f32 %v3980, %v4113
    %4115 = vmatmul.f32.gmra.mxu0 %v3913
    %v4116 = vpop.f32.mrf.mxu0
    %v4117 = vadd.f32 %v3980, %v4116
    %4118 = vdwg.mxu0
    %4119 = vmatpush.msra.mxu0 %v3975
    %4120 = vmatpush.msra.mxu0 %v3971
    %4121 = vmatpush.msra.mxu0 %v3967
    %4122 = vmatpush.msra.mxu0 %v3963
    %4123 = vmatpush.msra.mxu0 %v3959
    %4124 = vmatpush.msra.mxu0 %v3955
    %4125 = vmatpush.msra.mxu0 %v3951
    %4126 = vmatpush.msra.mxu0 %v3947
    %4127 = vmatpush.msra.mxu0 %v3943
    %4128 = vmatpush.msra.mxu0 %v3939
    %4129 = vmatpush.msra.mxu0 %v3935
    %4130 = vmatpush.msra.mxu0 %v3931
    %4131 = vmatpush.msra.mxu0 %v3927
    %4132 = vmatpush.msra.mxu0 %v3923
    %4133 = vmatpush.msra.mxu0 %v3919
    %4134 = vmatpush.msra.mxu0 %v3915
    %4135 = vmatmul.f32.gmra.mxu0 %v3876
    %v4136 = vpop.f32.mrf.mxu0
    %v4137 = vadd.f32 %v3981, %v4136
    %4138 = vmatmul.f32.gmra.mxu0 %v3877
    %v4139 = vpop.f32.mrf.mxu0
    %v4140 = vadd.f32 %v3981, %v4139
    %4141 = vmatmul.f32.gmra.mxu0 %v3878
    %v4142 = vpop.f32.mrf.mxu0
    %v4143 = vadd.f32 %v3981, %v4142
    %4144 = vmatmul.f32.gmra.mxu0 %v3879
    %v4145 = vpop.f32.mrf.mxu0
    %v4146 = vadd.f32 %v3981, %v4145
    %4147 = vmatmul.f32.gmra.mxu0 %v3880
    %v4148 = vpop.f32.mrf.mxu0
    %v4149 = vadd.f32 %v3981, %v4148
    %4150 = vmatmul.f32.gmra.mxu0 %v3881
    %v4151 = vpop.f32.mrf.mxu0
    %v4152 = vadd.f32 %v3981, %v4151
    %4153 = vmatmul.f32.gmra.mxu0 %v3882
    %v4154 = vpop.f32.mrf.mxu0
    %v4155 = vadd.f32 %v3981, %v4154
    %4156 = vmatmul.f32.gmra.mxu0 %v3883
    %v4157 = vpop.f32.mrf.mxu0
    %v4158 = vadd.f32 %v3981, %v4157
    %4159 = vmatmul.f32.gmra.mxu0 %v3884
    %v4160 = vpop.f32.mrf.mxu0
    %v4161 = vadd.f32 %v3981, %v4160
    %4162 = vmatmul.f32.gmra.mxu0 %v3885
    %v4163 = vpop.f32.mrf.mxu0
    %v4164 = vadd.f32 %v3981, %v4163
    %4165 = vmatmul.f32.gmra.mxu0 %v3886
    %v4166 = vpop.f32.mrf.mxu0
    %v4167 = vadd.f32 %v3981, %v4166
    %4168 = vmatmul.f32.gmra.mxu0 %v3887
    %v4169 = vpop.f32.mrf.mxu0
    %v4170 = vadd.f32 %v3981, %v4169
    %4171 = vmatmul.f32.gmra.mxu0 %v3888
    %v4172 = vpop.f32.mrf.mxu0
    %v4173 = vadd.f32 %v3981, %v4172
    %4174 = vmatmul.f32.gmra.mxu0 %v3889
    %v4175 = vpop.f32.mrf.mxu0
    %v4176 = vadd.f32 %v3981, %v4175
    %4177 = vmatmul.f32.gmra.mxu0 %v3890
    %v4178 = vpop.f32.mrf.mxu0
    %v4179 = vadd.f32 %v3981, %v4178
    %4180 = vmatmul.f32.gmra.mxu0 %v3891
    %v4181 = vpop.f32.mrf.mxu0
    %v4182 = vadd.f32 %v3981, %v4181
    %4183 = vmatmul.f32.gmra.mxu0 %v3892
    %v4184 = vpop.f32.mrf.mxu0
    %v4185 = vadd.f32 %v3981, %v4184
    %4186 = vmatmul.f32.gmra.mxu0 %v3893
    %v4187 = vpop.f32.mrf.mxu0
    %v4188 = vadd.f32 %v3981, %v4187
    %4189 = vmatmul.f32.gmra.mxu0 %v3894
    %v4190 = vpop.f32.mrf.mxu0
    %v4191 = vadd.f32 %v3981, %v4190
    %4192 = vmatmul.f32.gmra.mxu0 %v3895
    %v4193 = vpop.f32.mrf.mxu0
    %v4194 = vadd.f32 %v3981, %v4193
    %4195 = vmatmul.f32.gmra.mxu0 %v3896
    %v4196 = vpop.f32.mrf.mxu0
    %v4197 = vadd.f32 %v3981, %v4196
    %4198 = vmatmul.f32.gmra.mxu0 %v3897
    %v4199 = vpop.f32.mrf.mxu0
    %v4200 = vadd.f32 %v3981, %v4199
    %4201 = vmatmul.f32.gmra.mxu0 %v3898
    %v4202 = vpop.f32.mrf.mxu0
    %v4203 = vadd.f32 %v3981, %v4202
    %4204 = vmatmul.f32.gmra.mxu0 %v3899
    %v4205 = vpop.f32.mrf.mxu0
    %v4206 = vadd.f32 %v3981, %v4205
    %4207 = vmatmul.f32.gmra.mxu0 %v3900
    %v4208 = vpop.f32.mrf.mxu0
    %v4209 = vadd.f32 %v3981, %v4208
    %4210 = vmatmul.f32.gmra.mxu0 %v3901
    %v4211 = vpop.f32.mrf.mxu0
    %v4212 = vadd.f32 %v3981, %v4211
    %4213 = vmatmul.f32.gmra.mxu0 %v3902
    %v4214 = vpop.f32.mrf.mxu0
    %v4215 = vadd.f32 %v3981, %v4214
    %4216 = vmatmul.f32.gmra.mxu0 %v3903
    %v4217 = vpop.f32.mrf.mxu0
    %v4218 = vadd.f32 %v3981, %v4217
    %4219 = vmatmul.f32.gmra.mxu0 %v3904
    %v4220 = vpop.f32.mrf.mxu0
    %v4221 = vadd.f32 %v3981, %v4220
    %4222 = vmatmul.f32.gmra.mxu0 %v3905
    %v4223 = vpop.f32.mrf.mxu0
    %v4224 = vadd.f32 %v3981, %v4223
    %4225 = vmatmul.f32.gmra.mxu0 %v3906
    %v4226 = vpop.f32.mrf.mxu0
    %v4227 = vadd.f32 %v3981, %v4226
    %4228 = vmatmul.f32.gmra.mxu0 %v3907
    %v4229 = vpop.f32.mrf.mxu0
    %v4230 = vadd.f32 %v3981, %v4229
    %4231 = vmatmul.f32.gmra.mxu0 %v3908
    %v4232 = vpop.f32.mrf.mxu0
    %v4233 = vadd.f32 %v3981, %v4232
    %4234 = vmatmul.f32.gmra.mxu0 %v3909
    %v4235 = vpop.f32.mrf.mxu0
    %v4236 = vadd.f32 %v3981, %v4235
    %4237 = vmatmul.f32.gmra.mxu0 %v3910
    %v4238 = vpop.f32.mrf.mxu0
    %v4239 = vadd.f32 %v3981, %v4238
    %4240 = vmatmul.f32.gmra.mxu0 %v3911
    %v4241 = vpop.f32.mrf.mxu0
    %v4242 = vadd.f32 %v3981, %v4241
    %4243 = vmatmul.f32.gmra.mxu0 %v3912
    %v4244 = vpop.f32.mrf.mxu0
    %v4245 = vadd.f32 %v3981, %v4244
    %4246 = vmatmul.f32.gmra.mxu0 %v3913
    %v4247 = vpop.f32.mrf.mxu0
    %v4248 = vadd.f32 %v3981, %v4247
    %4249 = vdwg.mxu0
    %4250 = vmatpush.msra.mxu0 %v3976
    %4251 = vmatpush.msra.mxu0 %v3972
    %4252 = vmatpush.msra.mxu0 %v3968
    %4253 = vmatpush.msra.mxu0 %v3964
    %4254 = vmatpush.msra.mxu0 %v3960
    %4255 = vmatpush.msra.mxu0 %v3956
    %4256 = vmatpush.msra.mxu0 %v3952
    %4257 = vmatpush.msra.mxu0 %v3948
    %4258 = vmatpush.msra.mxu0 %v3944
    %4259 = vmatpush.msra.mxu0 %v3940
    %4260 = vmatpush.msra.mxu0 %v3936
    %4261 = vmatpush.msra.mxu0 %v3932
    %4262 = vmatpush.msra.mxu0 %v3928
    %4263 = vmatpush.msra.mxu0 %v3924
    %4264 = vmatpush.msra.mxu0 %v3920
    %4265 = vmatpush.msra.mxu0 %v3916
    %4266 = vmatmul.f32.gmra.mxu0 %v3876
    %v4267 = vpop.f32.mrf.mxu0
    %v4268 = vadd.f32 %v3982, %v4267
    %4269 = vmatmul.f32.gmra.mxu0 %v3877
    %v4270 = vpop.f32.mrf.mxu0
    %v4271 = vadd.f32 %v3982, %v4270
    %4272 = vmatmul.f32.gmra.mxu0 %v3878
    %v4273 = vpop.f32.mrf.mxu0
    %v4274 = vadd.f32 %v3982, %v4273
    %4275 = vmatmul.f32.gmra.mxu0 %v3879
    %v4276 = vpop.f32.mrf.mxu0
    %v4277 = vadd.f32 %v3982, %v4276
    %4278 = vmatmul.f32.gmra.mxu0 %v3880
    %v4279 = vpop.f32.mrf.mxu0
    %v4280 = vadd.f32 %v3982, %v4279
    %4281 = vmatmul.f32.gmra.mxu0 %v3881
    %v4282 = vpop.f32.mrf.mxu0
    %v4283 = vadd.f32 %v3982, %v4282
    %4284 = vmatmul.f32.gmra.mxu0 %v3882
    %v4285 = vpop.f32.mrf.mxu0
    %v4286 = vadd.f32 %v3982, %v4285
    %4287 = vmatmul.f32.gmra.mxu0 %v3883
    %v4288 = vpop.f32.mrf.mxu0
    %v4289 = vadd.f32 %v3982, %v4288
    %4290 = vmatmul.f32.gmra.mxu0 %v3884
    %v4291 = vpop.f32.mrf.mxu0
    %v4292 = vadd.f32 %v3982, %v4291
    %4293 = vmatmul.f32.gmra.mxu0 %v3885
    %v4294 = vpop.f32.mrf.mxu0
    %v4295 = vadd.f32 %v3982, %v4294
    %4296 = vmatmul.f32.gmra.mxu0 %v3886
    %v4297 = vpop.f32.mrf.mxu0
    %v4298 = vadd.f32 %v3982, %v4297
    %4299 = vmatmul.f32.gmra.mxu0 %v3887
    %v4300 = vpop.f32.mrf.mxu0
    %v4301 = vadd.f32 %v3982, %v4300
    %4302 = vmatmul.f32.gmra.mxu0 %v3888
    %v4303 = vpop.f32.mrf.mxu0
    %v4304 = vadd.f32 %v3982, %v4303
    %4305 = vmatmul.f32.gmra.mxu0 %v3889
    %v4306 = vpop.f32.mrf.mxu0
    %v4307 = vadd.f32 %v3982, %v4306
    %4308 = vmatmul.f32.gmra.mxu0 %v3890
    %v4309 = vpop.f32.mrf.mxu0
    %v4310 = vadd.f32 %v3982, %v4309
    %4311 = vmatmul.f32.gmra.mxu0 %v3891
    %v4312 = vpop.f32.mrf.mxu0
    %v4313 = vadd.f32 %v3982, %v4312
    %4314 = vmatmul.f32.gmra.mxu0 %v3892
    %v4315 = vpop.f32.mrf.mxu0
    %v4316 = vadd.f32 %v3982, %v4315
    %4317 = vmatmul.f32.gmra.mxu0 %v3893
    %v4318 = vpop.f32.mrf.mxu0
    %v4319 = vadd.f32 %v3982, %v4318
    %4320 = vmatmul.f32.gmra.mxu0 %v3894
    %v4321 = vpop.f32.mrf.mxu0
    %v4322 = vadd.f32 %v3982, %v4321
    %4323 = vmatmul.f32.gmra.mxu0 %v3895
    %v4324 = vpop.f32.mrf.mxu0
    %v4325 = vadd.f32 %v3982, %v4324
    %4326 = vmatmul.f32.gmra.mxu0 %v3896
    %v4327 = vpop.f32.mrf.mxu0
    %v4328 = vadd.f32 %v3982, %v4327
    %4329 = vmatmul.f32.gmra.mxu0 %v3897
    %v4330 = vpop.f32.mrf.mxu0
    %v4331 = vadd.f32 %v3982, %v4330
    %4332 = vmatmul.f32.gmra.mxu0 %v3898
    %v4333 = vpop.f32.mrf.mxu0
    %v4334 = vadd.f32 %v3982, %v4333
    %4335 = vmatmul.f32.gmra.mxu0 %v3899
    %v4336 = vpop.f32.mrf.mxu0
    %v4337 = vadd.f32 %v3982, %v4336
    %4338 = vmatmul.f32.gmra.mxu0 %v3900
    %v4339 = vpop.f32.mrf.mxu0
    %v4340 = vadd.f32 %v3982, %v4339
    %4341 = vmatmul.f32.gmra.mxu0 %v3901
    %v4342 = vpop.f32.mrf.mxu0
    %v4343 = vadd.f32 %v3982, %v4342
    %4344 = vmatmul.f32.gmra.mxu0 %v3902
    %v4345 = vpop.f32.mrf.mxu0
    %v4346 = vadd.f32 %v3982, %v4345
    %4347 = vmatmul.f32.gmra.mxu0 %v3903
    %v4348 = vpop.f32.mrf.mxu0
    %v4349 = vadd.f32 %v3982, %v4348
    %4350 = vmatmul.f32.gmra.mxu0 %v3904
    %v4351 = vpop.f32.mrf.mxu0
    %v4352 = vadd.f32 %v3982, %v4351
    %4353 = vmatmul.f32.gmra.mxu0 %v3905
    %v4354 = vpop.f32.mrf.mxu0
    %v4355 = vadd.f32 %v3982, %v4354
    %4356 = vmatmul.f32.gmra.mxu0 %v3906
    %v4357 = vpop.f32.mrf.mxu0
    %v4358 = vadd.f32 %v3982, %v4357
    %4359 = vmatmul.f32.gmra.mxu0 %v3907
    %v4360 = vpop.f32.mrf.mxu0
    %v4361 = vadd.f32 %v3982, %v4360
    %4362 = vmatmul.f32.gmra.mxu0 %v3908
    %v4363 = vpop.f32.mrf.mxu0
    %v4364 = vadd.f32 %v3982, %v4363
    %4365 = vmatmul.f32.gmra.mxu0 %v3909
    %v4366 = vpop.f32.mrf.mxu0
    %v4367 = vadd.f32 %v3982, %v4366
    %4368 = vmatmul.f32.gmra.mxu0 %v3910
    %v4369 = vpop.f32.mrf.mxu0
    %v4370 = vadd.f32 %v3982, %v4369
    %4371 = vmatmul.f32.gmra.mxu0 %v3911
    %v4372 = vpop.f32.mrf.mxu0
    %v4373 = vadd.f32 %v3982, %v4372
    %4374 = vmatmul.f32.gmra.mxu0 %v3912
    %v4375 = vpop.f32.mrf.mxu0
    %v4376 = vadd.f32 %v3982, %v4375
    %4377 = vmatmul.f32.gmra.mxu0 %v3913
    %v4378 = vpop.f32.mrf.mxu0
    %v4379 = vadd.f32 %v3982, %v4378
    %4380 = vdwg.mxu0
    %4381 = vmatpush.msra.mxu0 %v3977
    %4382 = vmatpush.msra.mxu0 %v3973
    %4383 = vmatpush.msra.mxu0 %v3969
    %4384 = vmatpush.msra.mxu0 %v3965
    %4385 = vmatpush.msra.mxu0 %v3961
    %4386 = vmatpush.msra.mxu0 %v3957
    %4387 = vmatpush.msra.mxu0 %v3953
    %4388 = vmatpush.msra.mxu0 %v3949
    %4389 = vmatpush.msra.mxu0 %v3945
    %4390 = vmatpush.msra.mxu0 %v3941
    %4391 = vmatpush.msra.mxu0 %v3937
    %4392 = vmatpush.msra.mxu0 %v3933
    %4393 = vmatpush.msra.mxu0 %v3929
    %4394 = vmatpush.msra.mxu0 %v3925
    %4395 = vmatpush.msra.mxu0 %v3921
    %4396 = vmatpush.msra.mxu0 %v3917
    %4397 = vmatmul.f32.gmra.mxu0 %v3876
    %v4398 = vpop.f32.mrf.mxu0
    %v4399 = vadd.f32 %v3983, %v4398
    %4400 = vmatmul.f32.gmra.mxu0 %v3877
    %v4401 = vpop.f32.mrf.mxu0
    %v4402 = vadd.f32 %v3983, %v4401
    %4403 = vmatmul.f32.gmra.mxu0 %v3878
    %v4404 = vpop.f32.mrf.mxu0
    %v4405 = vadd.f32 %v3983, %v4404
    %4406 = vmatmul.f32.gmra.mxu0 %v3879
    %v4407 = vpop.f32.mrf.mxu0
    %v4408 = vadd.f32 %v3983, %v4407
    %4409 = vmatmul.f32.gmra.mxu0 %v3880
    %v4410 = vpop.f32.mrf.mxu0
    %v4411 = vadd.f32 %v3983, %v4410
    %4412 = vmatmul.f32.gmra.mxu0 %v3881
    %v4413 = vpop.f32.mrf.mxu0
    %v4414 = vadd.f32 %v3983, %v4413
    %4415 = vmatmul.f32.gmra.mxu0 %v3882
    %v4416 = vpop.f32.mrf.mxu0
    %v4417 = vadd.f32 %v3983, %v4416
    %4418 = vmatmul.f32.gmra.mxu0 %v3883
    %v4419 = vpop.f32.mrf.mxu0
    %v4420 = vadd.f32 %v3983, %v4419
    %4421 = vmatmul.f32.gmra.mxu0 %v3884
    %v4422 = vpop.f32.mrf.mxu0
    %v4423 = vadd.f32 %v3983, %v4422
    %4424 = vmatmul.f32.gmra.mxu0 %v3885
    %v4425 = vpop.f32.mrf.mxu0
    %v4426 = vadd.f32 %v3983, %v4425
    %4427 = vmatmul.f32.gmra.mxu0 %v3886
    %v4428 = vpop.f32.mrf.mxu0
    %v4429 = vadd.f32 %v3983, %v4428
    %4430 = vmatmul.f32.gmra.mxu0 %v3887
    %v4431 = vpop.f32.mrf.mxu0
    %v4432 = vadd.f32 %v3983, %v4431
    %4433 = vmatmul.f32.gmra.mxu0 %v3888
    %v4434 = vpop.f32.mrf.mxu0
    %v4435 = vadd.f32 %v3983, %v4434
    %4436 = vmatmul.f32.gmra.mxu0 %v3889
    %v4437 = vpop.f32.mrf.mxu0
    %v4438 = vadd.f32 %v3983, %v4437
    %4439 = vmatmul.f32.gmra.mxu0 %v3890
    %v4440 = vpop.f32.mrf.mxu0
    %v4441 = vadd.f32 %v3983, %v4440
    %4442 = vmatmul.f32.gmra.mxu0 %v3891
    %v4443 = vpop.f32.mrf.mxu0
    %v4444 = vadd.f32 %v3983, %v4443
    %4445 = vmatmul.f32.gmra.mxu0 %v3892
    %v4446 = vpop.f32.mrf.mxu0
    %v4447 = vadd.f32 %v3983, %v4446
    %4448 = vmatmul.f32.gmra.mxu0 %v3893
    %v4449 = vpop.f32.mrf.mxu0
    %v4450 = vadd.f32 %v3983, %v4449
    %4451 = vmatmul.f32.gmra.mxu0 %v3894
    %v4452 = vpop.f32.mrf.mxu0
    %v4453 = vadd.f32 %v3983, %v4452
    %4454 = vmatmul.f32.gmra.mxu0 %v3895
    %v4455 = vpop.f32.mrf.mxu0
    %v4456 = vadd.f32 %v3983, %v4455
    %4457 = vmatmul.f32.gmra.mxu0 %v3896
    %v4458 = vpop.f32.mrf.mxu0
    %v4459 = vadd.f32 %v3983, %v4458
    %4460 = vmatmul.f32.gmra.mxu0 %v3897
    %v4461 = vpop.f32.mrf.mxu0
    %v4462 = vadd.f32 %v3983, %v4461
    %4463 = vmatmul.f32.gmra.mxu0 %v3898
    %v4464 = vpop.f32.mrf.mxu0
    %v4465 = vadd.f32 %v3983, %v4464
    %4466 = vmatmul.f32.gmra.mxu0 %v3899
    %v4467 = vpop.f32.mrf.mxu0
    %v4468 = vadd.f32 %v3983, %v4467
    %4469 = vmatmul.f32.gmra.mxu0 %v3900
    %v4470 = vpop.f32.mrf.mxu0
    %v4471 = vadd.f32 %v3983, %v4470
    %4472 = vmatmul.f32.gmra.mxu0 %v3901
    %v4473 = vpop.f32.mrf.mxu0
    %v4474 = vadd.f32 %v3983, %v4473
    %4475 = vmatmul.f32.gmra.mxu0 %v3902
    %v4476 = vpop.f32.mrf.mxu0
    %v4477 = vadd.f32 %v3983, %v4476
    %4478 = vmatmul.f32.gmra.mxu0 %v3903
    %v4479 = vpop.f32.mrf.mxu0
    %v4480 = vadd.f32 %v3983, %v4479
    %4481 = vmatmul.f32.gmra.mxu0 %v3904
    %v4482 = vpop.f32.mrf.mxu0
    %v4483 = vadd.f32 %v3983, %v4482
    %4484 = vmatmul.f32.gmra.mxu0 %v3905
    %v4485 = vpop.f32.mrf.mxu0
    %v4486 = vadd.f32 %v3983, %v4485
    %4487 = vmatmul.f32.gmra.mxu0 %v3906
    %v4488 = vpop.f32.mrf.mxu0
    %v4489 = vadd.f32 %v3983, %v4488
    %4490 = vmatmul.f32.gmra.mxu0 %v3907
    %v4491 = vpop.f32.mrf.mxu0
    %v4492 = vadd.f32 %v3983, %v4491
    %4493 = vmatmul.f32.gmra.mxu0 %v3908
    %v4494 = vpop.f32.mrf.mxu0
    %v4495 = vadd.f32 %v3983, %v4494
    %4496 = vmatmul.f32.gmra.mxu0 %v3909
    %v4497 = vpop.f32.mrf.mxu0
    %v4498 = vadd.f32 %v3983, %v4497
    %4499 = vmatmul.f32.gmra.mxu0 %v3910
    %v4500 = vpop.f32.mrf.mxu0
    %v4501 = vadd.f32 %v3983, %v4500
    %4502 = vmatmul.f32.gmra.mxu0 %v3911
    %v4503 = vpop.f32.mrf.mxu0
    %v4504 = vadd.f32 %v3983, %v4503
    %4505 = vmatmul.f32.gmra.mxu0 %v3912
    %v4506 = vpop.f32.mrf.mxu0
    %v4507 = vadd.f32 %v3983, %v4506
    %4508 = vmatmul.f32.gmra.mxu0 %v3913
    %v4509 = vpop.f32.mrf.mxu0
    %v4510 = vadd.f32 %v3983, %v4509
    %4511 = vdwg.mxu0
    %v4512 = vmax.f32 %v4006, 0.0
    %v4513 = vmax.f32 %v4137, 0.0
    %v4514 = vmax.f32 %v4268, 0.0
    %v4515 = vmax.f32 %v4399, 0.0
    %v4516 = vmax.f32 %v4009, 0.0
    %v4517 = vmax.f32 %v4140, 0.0
    %v4518 = vmax.f32 %v4271, 0.0
    %v4519 = vmax.f32 %v4402, 0.0
    %v4520 = vmax.f32 %v4012, 0.0
    %v4521 = vmax.f32 %v4143, 0.0
    %v4522 = vmax.f32 %v4274, 0.0
    %v4523 = vmax.f32 %v4405, 0.0
    %v4524 = vmax.f32 %v4015, 0.0
    %v4525 = vmax.f32 %v4146, 0.0
    %v4526 = vmax.f32 %v4277, 0.0
    %v4527 = vmax.f32 %v4408, 0.0
    %v4528 = vmax.f32 %v4018, 0.0
    %v4529 = vmax.f32 %v4149, 0.0
    %v4530 = vmax.f32 %v4280, 0.0
    %v4531 = vmax.f32 %v4411, 0.0
    %v4532 = vmax.f32 %v4021, 0.0
    %v4533 = vmax.f32 %v4152, 0.0
    %v4534 = vmax.f32 %v4283, 0.0
    %v4535 = vmax.f32 %v4414, 0.0
    %v4536 = vmax.f32 %v4024, 0.0
    %v4537 = vmax.f32 %v4155, 0.0
    %v4538 = vmax.f32 %v4286, 0.0
    %v4539 = vmax.f32 %v4417, 0.0
    %v4540 = vmax.f32 %v4027, 0.0
    %v4541 = vmax.f32 %v4158, 0.0
    %v4542 = vmax.f32 %v4289, 0.0
    %v4543 = vmax.f32 %v4420, 0.0
    %v4544 = vmax.f32 %v4030, 0.0
    %v4545 = vmax.f32 %v4161, 0.0
    %v4546 = vmax.f32 %v4292, 0.0
    %v4547 = vmax.f32 %v4423, 0.0
    %v4548 = vmax.f32 %v4033, 0.0
    %v4549 = vmax.f32 %v4164, 0.0
    %v4550 = vmax.f32 %v4295, 0.0
    %v4551 = vmax.f32 %v4426, 0.0
    %v4552 = vmax.f32 %v4036, 0.0
    %v4553 = vmax.f32 %v4167, 0.0
    %v4554 = vmax.f32 %v4298, 0.0
    %v4555 = vmax.f32 %v4429, 0.0
    %v4556 = vmax.f32 %v4039, 0.0
    %v4557 = vmax.f32 %v4170, 0.0
    %v4558 = vmax.f32 %v4301, 0.0
    %v4559 = vmax.f32 %v4432, 0.0
    %v4560 = vmax.f32 %v4042, 0.0
    %v4561 = vmax.f32 %v4173, 0.0
    %v4562 = vmax.f32 %v4304, 0.0
    %v4563 = vmax.f32 %v4435, 0.0
    %v4564 = vmax.f32 %v4045, 0.0
    %v4565 = vmax.f32 %v4176, 0.0
    %v4566 = vmax.f32 %v4307, 0.0
    %v4567 = vmax.f32 %v4438, 0.0
    %v4568 = vmax.f32 %v4048, 0.0
    %v4569 = vmax.f32 %v4179, 0.0
    %v4570 = vmax.f32 %v4310, 0.0
    %v4571 = vmax.f32 %v4441, 0.0
    %v4572 = vmax.f32 %v4051, 0.0
    %v4573 = vmax.f32 %v4182, 0.0
    %v4574 = vmax.f32 %v4313, 0.0
    %v4575 = vmax.f32 %v4444, 0.0
    %v4576 = vmax.f32 %v4054, 0.0
    %v4577 = vmax.f32 %v4185, 0.0
    %v4578 = vmax.f32 %v4316, 0.0
    %v4579 = vmax.f32 %v4447, 0.0
    %v4580 = vmax.f32 %v4057, 0.0
    %v4581 = vmax.f32 %v4188, 0.0
    %v4582 = vmax.f32 %v4319, 0.0
    %v4583 = vmax.f32 %v4450, 0.0
    %v4584 = vmax.f32 %v4060, 0.0
    %v4585 = vmax.f32 %v4191, 0.0
    %v4586 = vmax.f32 %v4322, 0.0
    %v4587 = vmax.f32 %v4453, 0.0
    %v4588 = vmax.f32 %v4063, 0.0
    %v4589 = vmax.f32 %v4194, 0.0
    %v4590 = vmax.f32 %v4325, 0.0
    %v4591 = vmax.f32 %v4456, 0.0
    %v4592 = vmax.f32 %v4066, 0.0
    %v4593 = vmax.f32 %v4197, 0.0
    %v4594 = vmax.f32 %v4328, 0.0
    %v4595 = vmax.f32 %v4459, 0.0
    %v4596 = vmax.f32 %v4069, 0.0
    %v4597 = vmax.f32 %v4200, 0.0
    %v4598 = vmax.f32 %v4331, 0.0
    %v4599 = vmax.f32 %v4462, 0.0
    %v4600 = vmax.f32 %v4072, 0.0
    %v4601 = vmax.f32 %v4203, 0.0
    %v4602 = vmax.f32 %v4334, 0.0
    %v4603 = vmax.f32 %v4465, 0.0
    %v4604 = vmax.f32 %v4075, 0.0
    %v4605 = vmax.f32 %v4206, 0.0
    %v4606 = vmax.f32 %v4337, 0.0
    %v4607 = vmax.f32 %v4468, 0.0
    %v4608 = vmax.f32 %v4078, 0.0
    %v4609 = vmax.f32 %v4209, 0.0
    %v4610 = vmax.f32 %v4340, 0.0
    %v4611 = vmax.f32 %v4471, 0.0
    %v4612 = vmax.f32 %v4081, 0.0
    %v4613 = vmax.f32 %v4212, 0.0
    %v4614 = vmax.f32 %v4343, 0.0
    %v4615 = vmax.f32 %v4474, 0.0
    %v4616 = vmax.f32 %v4084, 0.0
    %v4617 = vmax.f32 %v4215, 0.0
    %v4618 = vmax.f32 %v4346, 0.0
    %v4619 = vmax.f32 %v4477, 0.0
    %v4620 = vmax.f32 %v4087, 0.0
    %v4621 = vmax.f32 %v4218, 0.0
    %v4622 = vmax.f32 %v4349, 0.0
    %v4623 = vmax.f32 %v4480, 0.0
    %v4624 = vmax.f32 %v4090, 0.0
    %v4625 = vmax.f32 %v4221, 0.0
    %v4626 = vmax.f32 %v4352, 0.0
    %v4627 = vmax.f32 %v4483, 0.0
    %v4628 = vmax.f32 %v4093, 0.0
    %v4629 = vmax.f32 %v4224, 0.0
    %v4630 = vmax.f32 %v4355, 0.0
    %v4631 = vmax.f32 %v4486, 0.0
    %v4632 = vmax.f32 %v4096, 0.0
    %v4633 = vmax.f32 %v4227, 0.0
    %v4634 = vmax.f32 %v4358, 0.0
    %v4635 = vmax.f32 %v4489, 0.0
    %v4636 = vmax.f32 %v4099, 0.0
    %v4637 = vmax.f32 %v4230, 0.0
    %v4638 = vmax.f32 %v4361, 0.0
    %v4639 = vmax.f32 %v4492, 0.0
    %v4640 = vmax.f32 %v4102, 0.0
    %v4641 = vmax.f32 %v4233, 0.0
    %v4642 = vmax.f32 %v4364, 0.0
    %v4643 = vmax.f32 %v4495, 0.0
    %v4644 = vmax.f32 %v4105, 0.0
    %v4645 = vmax.f32 %v4236, 0.0
    %v4646 = vmax.f32 %v4367, 0.0
    %v4647 = vmax.f32 %v4498, 0.0
    %v4648 = vmax.f32 %v4108, 0.0
    %v4649 = vmax.f32 %v4239, 0.0
    %v4650 = vmax.f32 %v4370, 0.0
    %v4651 = vmax.f32 %v4501, 0.0
    %v4652 = vmax.f32 %v4111, 0.0
    %v4653 = vmax.f32 %v4242, 0.0
    %v4654 = vmax.f32 %v4373, 0.0
    %v4655 = vmax.f32 %v4504, 0.0
    %v4656 = vmax.f32 %v4114, 0.0
    %v4657 = vmax.f32 %v4245, 0.0
    %v4658 = vmax.f32 %v4376, 0.0
    %v4659 = vmax.f32 %v4507, 0.0
    %v4660 = vmax.f32 %v4117, 0.0
    %v4661 = vmax.f32 %v4248, 0.0
    %v4662 = vmax.f32 %v4379, 0.0
    %v4663 = vmax.f32 %v4510, 0.0
    %v4664 = vld [vmem:[#allocation12] sm:$0xff]
    %v4665 = vld [vmem:[#allocation12 + $0x8] sm:$0xff]
    %v4666 = vld [vmem:[#allocation12 + $0x10] sm:$0xff]
    %v4667 = vld [vmem:[#allocation12 + $0x18] sm:$0xff]
    %v4668 = vld [vmem:[#allocation12 + $0x20] sm:$0xff]
    %v4669 = vld [vmem:[#allocation12 + $0x28] sm:$0xff]
    %v4670 = vld [vmem:[#allocation12 + $0x30] sm:$0xff]
    %v4671 = vld [vmem:[#allocation12 + $0x38] sm:$0xff]
    %v4672 = vld [vmem:[#allocation12 + $0x40] sm:$0xff]
    %v4673 = vld [vmem:[#allocation12 + $0x48] sm:$0xff]
    %v4674 = vld [vmem:[#allocation12 + $0x50] sm:$0xff]
    %v4675 = vld [vmem:[#allocation12 + $0x58] sm:$0xff]
    %v4676 = vld [vmem:[#allocation12 + $0x60] sm:$0xff]
    %v4677 = vld [vmem:[#allocation12 + $0x68] sm:$0xff]
    %v4678 = vld [vmem:[#allocation12 + $0x70] sm:$0xff]
    %v4679 = vld [vmem:[#allocation12 + $0x78] sm:$0xff]
    %v4680 = vld [vmem:[#allocation12 + $0x80] sm:$0xff]
    %v4681 = vld [vmem:[#allocation12 + $0x88] sm:$0xff]
    %v4682 = vld [vmem:[#allocation12 + $0x90] sm:$0xff]
    %v4683 = vld [vmem:[#allocation12 + $0x98] sm:$0xff]
    %v4684 = vld [vmem:[#allocation12 + $0xa0] sm:$0xff]
    %v4685 = vld [vmem:[#allocation12 + $0xa8] sm:$0xff]
    %v4686 = vld [vmem:[#allocation12 + $0xb0] sm:$0xff]
    %v4687 = vld [vmem:[#allocation12 + $0xb8] sm:$0xff]
    %v4688 = vld [vmem:[#allocation12 + $0xc0] sm:$0xff]
    %v4689 = vld [vmem:[#allocation12 + $0xc8] sm:$0xff]
    %v4690 = vld [vmem:[#allocation12 + $0xd0] sm:$0xff]
    %v4691 = vld [vmem:[#allocation12 + $0xd8] sm:$0xff]
    %v4692 = vld [vmem:[#allocation12 + $0xe0] sm:$0xff]
    %v4693 = vld [vmem:[#allocation12 + $0xe8] sm:$0xff]
    %v4694 = vld [vmem:[#allocation12 + $0xf0] sm:$0xff]
    %v4695 = vld [vmem:[#allocation12 + $0xf8] sm:$0xff]
    %v4696 = vld [vmem:[#allocation12 + $0x100] sm:$0xff]
    %v4697 = vld [vmem:[#allocation12 + $0x108] sm:$0xff]
    %v4698 = vld [vmem:[#allocation12 + $0x110] sm:$0xff]
    %v4699 = vld [vmem:[#allocation12 + $0x118] sm:$0xff]
    %v4700 = vld [vmem:[#allocation12 + $0x120] sm:$0xff]
    %v4701 = vld [vmem:[#allocation12 + $0x128] sm:$0xff]
    %v4702 = vld [vmem:[#allocation12 + $0x130] sm:$0xff]
    %v4703 = vld [vmem:[#allocation12 + $0x138] sm:$0xff]
    %v4704 = vld [vmem:[#allocation12 + $0x140] sm:$0xff]
    %v4705 = vld [vmem:[#allocation12 + $0x148] sm:$0xff]
    %v4706 = vld [vmem:[#allocation12 + $0x150] sm:$0xff]
    %v4707 = vld [vmem:[#allocation12 + $0x158] sm:$0xff]
    %v4708 = vld [vmem:[#allocation12 + $0x160] sm:$0xff]
    %v4709 = vld [vmem:[#allocation12 + $0x168] sm:$0xff]
    %v4710 = vld [vmem:[#allocation12 + $0x170] sm:$0xff]
    %v4711 = vld [vmem:[#allocation12 + $0x178] sm:$0xff]
    %v4712 = vld [vmem:[#allocation12 + $0x180] sm:$0xff]
    %v4713 = vld [vmem:[#allocation12 + $0x188] sm:$0xff]
    %v4714 = vld [vmem:[#allocation12 + $0x190] sm:$0xff]
    %v4715 = vld [vmem:[#allocation12 + $0x198] sm:$0xff]
    %v4716 = vld [vmem:[#allocation12 + $0x1a0] sm:$0xff]
    %v4717 = vld [vmem:[#allocation12 + $0x1a8] sm:$0xff]
    %v4718 = vld [vmem:[#allocation12 + $0x1b0] sm:$0xff]
    %v4719 = vld [vmem:[#allocation12 + $0x1b8] sm:$0xff]
    %v4720 = vld [vmem:[#allocation12 + $0x1c0] sm:$0xff]
    %v4721 = vld [vmem:[#allocation12 + $0x1c8] sm:$0xff]
    %v4722 = vld [vmem:[#allocation12 + $0x1d0] sm:$0xff]
    %v4723 = vld [vmem:[#allocation12 + $0x1d8] sm:$0xff]
    %v4724 = vld [vmem:[#allocation12 + $0x1e0] sm:$0xff]
    %v4725 = vld [vmem:[#allocation12 + $0x1e8] sm:$0xff]
    %v4726 = vld [vmem:[#allocation12 + $0x1f0] sm:$0xff]
    %v4727 = vld [vmem:[#allocation12 + $0x1f8] sm:$0xff]
    %v4728 = vld [vmem:[#allocation10 + $0x20] sm:$0xff]
    %v4729 = vld [vmem:[#allocation10 + $0x28] sm:$0xff]
    %v4730 = vld [vmem:[#allocation10 + $0x30] sm:$0xff]
    %v4731 = vld [vmem:[#allocation10 + $0x38] sm:$0xff]
    %v4732 = vld [vmem:[#allocation10 + $0xa0] sm:$0xff]
    %v4733 = vld [vmem:[#allocation10 + $0xa8] sm:$0xff]
    %v4734 = vld [vmem:[#allocation10 + $0xb0] sm:$0xff]
    %v4735 = vld [vmem:[#allocation10 + $0xb8] sm:$0xff]
    %v4736 = vld [vmem:[#allocation10 + $0x120] sm:$0xff]
    %v4737 = vld [vmem:[#allocation10 + $0x128] sm:$0xff]
    %v4738 = vld [vmem:[#allocation10 + $0x130] sm:$0xff]
    %v4739 = vld [vmem:[#allocation10 + $0x138] sm:$0xff]
    %v4740 = vld [vmem:[#allocation10 + $0x1a0] sm:$0xff]
    %v4741 = vld [vmem:[#allocation10 + $0x1a8] sm:$0xff]
    %v4742 = vld [vmem:[#allocation10 + $0x1b0] sm:$0xff]
    %v4743 = vld [vmem:[#allocation10 + $0x1b8] sm:$0xff]
    %v4744 = vld [vmem:[#allocation10 + $0x220] sm:$0xff]
    %v4745 = vld [vmem:[#allocation10 + $0x228] sm:$0xff]
    %v4746 = vld [vmem:[#allocation10 + $0x230] sm:$0xff]
    %v4747 = vld [vmem:[#allocation10 + $0x238] sm:$0xff]
    %v4748 = vld [vmem:[#allocation10 + $0x2a0] sm:$0xff]
    %v4749 = vld [vmem:[#allocation10 + $0x2a8] sm:$0xff]
    %v4750 = vld [vmem:[#allocation10 + $0x2b0] sm:$0xff]
    %v4751 = vld [vmem:[#allocation10 + $0x2b8] sm:$0xff]
    %v4752 = vld [vmem:[#allocation10 + $0x320] sm:$0xff]
    %v4753 = vld [vmem:[#allocation10 + $0x328] sm:$0xff]
    %v4754 = vld [vmem:[#allocation10 + $0x330] sm:$0xff]
    %v4755 = vld [vmem:[#allocation10 + $0x338] sm:$0xff]
    %v4756 = vld [vmem:[#allocation10 + $0x3a0] sm:$0xff]
    %v4757 = vld [vmem:[#allocation10 + $0x3a8] sm:$0xff]
    %v4758 = vld [vmem:[#allocation10 + $0x3b0] sm:$0xff]
    %v4759 = vld [vmem:[#allocation10 + $0x3b8] sm:$0xff]
    %v4760 = vld [vmem:[#allocation10 + $0x420] sm:$0xff]
    %v4761 = vld [vmem:[#allocation10 + $0x428] sm:$0xff]
    %v4762 = vld [vmem:[#allocation10 + $0x430] sm:$0xff]
    %v4763 = vld [vmem:[#allocation10 + $0x438] sm:$0xff]
    %v4764 = vld [vmem:[#allocation10 + $0x4a0] sm:$0xff]
    %v4765 = vld [vmem:[#allocation10 + $0x4a8] sm:$0xff]
    %v4766 = vld [vmem:[#allocation10 + $0x4b0] sm:$0xff]
    %v4767 = vld [vmem:[#allocation10 + $0x4b8] sm:$0xff]
    %v4768 = vld [vmem:[#allocation10 + $0x520] sm:$0xff]
    %v4769 = vld [vmem:[#allocation10 + $0x528] sm:$0xff]
    %v4770 = vld [vmem:[#allocation10 + $0x530] sm:$0xff]
    %v4771 = vld [vmem:[#allocation10 + $0x538] sm:$0xff]
    %v4772 = vld [vmem:[#allocation10 + $0x5a0] sm:$0xff]
    %v4773 = vld [vmem:[#allocation10 + $0x5a8] sm:$0xff]
    %v4774 = vld [vmem:[#allocation10 + $0x5b0] sm:$0xff]
    %v4775 = vld [vmem:[#allocation10 + $0x5b8] sm:$0xff]
    %v4776 = vld [vmem:[#allocation10 + $0x620] sm:$0xff]
    %v4777 = vld [vmem:[#allocation10 + $0x628] sm:$0xff]
    %v4778 = vld [vmem:[#allocation10 + $0x630] sm:$0xff]
    %v4779 = vld [vmem:[#allocation10 + $0x638] sm:$0xff]
    %v4780 = vld [vmem:[#allocation10 + $0x6a0] sm:$0xff]
    %v4781 = vld [vmem:[#allocation10 + $0x6a8] sm:$0xff]
    %v4782 = vld [vmem:[#allocation10 + $0x6b0] sm:$0xff]
    %v4783 = vld [vmem:[#allocation10 + $0x6b8] sm:$0xff]
    %v4784 = vld [vmem:[#allocation10 + $0x720] sm:$0xff]
    %v4785 = vld [vmem:[#allocation10 + $0x728] sm:$0xff]
    %v4786 = vld [vmem:[#allocation10 + $0x730] sm:$0xff]
    %v4787 = vld [vmem:[#allocation10 + $0x738] sm:$0xff]
    %v4788 = vld [vmem:[#allocation10 + $0x7a0] sm:$0xff]
    %v4789 = vld [vmem:[#allocation10 + $0x7a8] sm:$0xff]
    %v4790 = vld [vmem:[#allocation10 + $0x7b0] sm:$0xff]
    %v4791 = vld [vmem:[#allocation10 + $0x7b8] sm:$0xff]
    %v4792 = vld [vmem:[%s9 + $0x4] sm:$0xf]
    %v4794 = vperm.slane %v4792, 0
    %v4795 = vperm.slane %v4792, 1
    %v4796 = vperm.slane %v4792, 2
    %v4797 = vperm.slane %v4792, 3
    %4802 = vmatpush.msra.mxu0 %v4788
    %4803 = vmatpush.msra.mxu0 %v4784
    %4804 = vmatpush.msra.mxu0 %v4780
    %4805 = vmatpush.msra.mxu0 %v4776
    %4806 = vmatpush.msra.mxu0 %v4772
    %4807 = vmatpush.msra.mxu0 %v4768
    %4808 = vmatpush.msra.mxu0 %v4764
    %4809 = vmatpush.msra.mxu0 %v4760
    %4810 = vmatpush.msra.mxu0 %v4756
    %4811 = vmatpush.msra.mxu0 %v4752
    %4812 = vmatpush.msra.mxu0 %v4748
    %4813 = vmatpush.msra.mxu0 %v4744
    %4814 = vmatpush.msra.mxu0 %v4740
    %4815 = vmatpush.msra.mxu0 %v4736
    %4816 = vmatpush.msra.mxu0 %v4732
    %4817 = vmatpush.msra.mxu0 %v4728
    %4818 = vmatmul.f32.gmra.mxu0 %v3876
    %v4819 = vpop.f32.mrf.mxu0
    %v4820 = vadd.f32 %v4794, %v4819
    %4821 = vmatmul.f32.gmra.mxu0 %v3877
    %v4822 = vpop.f32.mrf.mxu0
    %v4823 = vadd.f32 %v4794, %v4822
    %4824 = vmatmul.f32.gmra.mxu0 %v3878
    %v4825 = vpop.f32.mrf.mxu0
    %v4826 = vadd.f32 %v4794, %v4825
    %4827 = vmatmul.f32.gmra.mxu0 %v3879
    %v4828 = vpop.f32.mrf.mxu0
    %v4829 = vadd.f32 %v4794, %v4828
    %4830 = vmatmul.f32.gmra.mxu0 %v3880
    %v4831 = vpop.f32.mrf.mxu0
    %v4832 = vadd.f32 %v4794, %v4831
    %4833 = vmatmul.f32.gmra.mxu0 %v3881
    %v4834 = vpop.f32.mrf.mxu0
    %v4835 = vadd.f32 %v4794, %v4834
    %4836 = vmatmul.f32.gmra.mxu0 %v3882
    %v4837 = vpop.f32.mrf.mxu0
    %v4838 = vadd.f32 %v4794, %v4837
    %4839 = vmatmul.f32.gmra.mxu0 %v3883
    %v4840 = vpop.f32.mrf.mxu0
    %v4841 = vadd.f32 %v4794, %v4840
    %4842 = vmatmul.f32.gmra.mxu0 %v3884
    %v4843 = vpop.f32.mrf.mxu0
    %v4844 = vadd.f32 %v4794, %v4843
    %4845 = vmatmul.f32.gmra.mxu0 %v3885
    %v4846 = vpop.f32.mrf.mxu0
    %v4847 = vadd.f32 %v4794, %v4846
    %4848 = vmatmul.f32.gmra.mxu0 %v3886
    %v4849 = vpop.f32.mrf.mxu0
    %v4850 = vadd.f32 %v4794, %v4849
    %4851 = vmatmul.f32.gmra.mxu0 %v3887
    %v4852 = vpop.f32.mrf.mxu0
    %v4853 = vadd.f32 %v4794, %v4852
    %4854 = vmatmul.f32.gmra.mxu0 %v3888
    %v4855 = vpop.f32.mrf.mxu0
    %v4856 = vadd.f32 %v4794, %v4855
    %4857 = vmatmul.f32.gmra.mxu0 %v3889
    %v4858 = vpop.f32.mrf.mxu0
    %v4859 = vadd.f32 %v4794, %v4858
    %4860 = vmatmul.f32.gmra.mxu0 %v3890
    %v4861 = vpop.f32.mrf.mxu0
    %v4862 = vadd.f32 %v4794, %v4861
    %4863 = vmatmul.f32.gmra.mxu0 %v3891
    %v4864 = vpop.f32.mrf.mxu0
    %v4865 = vadd.f32 %v4794, %v4864
    %4866 = vmatmul.f32.gmra.mxu0 %v3892
    %v4867 = vpop.f32.mrf.mxu0
    %v4868 = vadd.f32 %v4794, %v4867
    %4869 = vmatmul.f32.gmra.mxu0 %v3893
    %v4870 = vpop.f32.mrf.mxu0
    %v4871 = vadd.f32 %v4794, %v4870
    %4872 = vmatmul.f32.gmra.mxu0 %v3894
    %v4873 = vpop.f32.mrf.mxu0
    %v4874 = vadd.f32 %v4794, %v4873
    %4875 = vmatmul.f32.gmra.mxu0 %v3895
    %v4876 = vpop.f32.mrf.mxu0
    %v4877 = vadd.f32 %v4794, %v4876
    %4878 = vmatmul.f32.gmra.mxu0 %v3896
    %v4879 = vpop.f32.mrf.mxu0
    %v4880 = vadd.f32 %v4794, %v4879
    %4881 = vmatmul.f32.gmra.mxu0 %v3897
    %v4882 = vpop.f32.mrf.mxu0
    %v4883 = vadd.f32 %v4794, %v4882
    %4884 = vmatmul.f32.gmra.mxu0 %v3898
    %v4885 = vpop.f32.mrf.mxu0
    %v4886 = vadd.f32 %v4794, %v4885
    %4887 = vmatmul.f32.gmra.mxu0 %v3899
    %v4888 = vpop.f32.mrf.mxu0
    %v4889 = vadd.f32 %v4794, %v4888
    %4890 = vmatmul.f32.gmra.mxu0 %v3900
    %v4891 = vpop.f32.mrf.mxu0
    %v4892 = vadd.f32 %v4794, %v4891
    %4893 = vmatmul.f32.gmra.mxu0 %v3901
    %v4894 = vpop.f32.mrf.mxu0
    %v4895 = vadd.f32 %v4794, %v4894
    %4896 = vmatmul.f32.gmra.mxu0 %v3902
    %v4897 = vpop.f32.mrf.mxu0
    %v4898 = vadd.f32 %v4794, %v4897
    %4899 = vmatmul.f32.gmra.mxu0 %v3903
    %v4900 = vpop.f32.mrf.mxu0
    %v4901 = vadd.f32 %v4794, %v4900
    %4902 = vmatmul.f32.gmra.mxu0 %v3904
    %v4903 = vpop.f32.mrf.mxu0
    %v4904 = vadd.f32 %v4794, %v4903
    %4905 = vmatmul.f32.gmra.mxu0 %v3905
    %v4906 = vpop.f32.mrf.mxu0
    %v4907 = vadd.f32 %v4794, %v4906
    %4908 = vmatmul.f32.gmra.mxu0 %v3906
    %v4909 = vpop.f32.mrf.mxu0
    %v4910 = vadd.f32 %v4794, %v4909
    %4911 = vmatmul.f32.gmra.mxu0 %v3907
    %v4912 = vpop.f32.mrf.mxu0
    %v4913 = vadd.f32 %v4794, %v4912
    %4914 = vmatmul.f32.gmra.mxu0 %v3908
    %v4915 = vpop.f32.mrf.mxu0
    %v4916 = vadd.f32 %v4794, %v4915
    %4917 = vmatmul.f32.gmra.mxu0 %v3909
    %v4918 = vpop.f32.mrf.mxu0
    %v4919 = vadd.f32 %v4794, %v4918
    %4920 = vmatmul.f32.gmra.mxu0 %v3910
    %v4921 = vpop.f32.mrf.mxu0
    %v4922 = vadd.f32 %v4794, %v4921
    %4923 = vmatmul.f32.gmra.mxu0 %v3911
    %v4924 = vpop.f32.mrf.mxu0
    %v4925 = vadd.f32 %v4794, %v4924
    %4926 = vmatmul.f32.gmra.mxu0 %v3912
    %v4927 = vpop.f32.mrf.mxu0
    %v4928 = vadd.f32 %v4794, %v4927
    %4929 = vmatmul.f32.gmra.mxu0 %v3913
    %v4930 = vpop.f32.mrf.mxu0
    %v4931 = vadd.f32 %v4794, %v4930
    %4932 = vdwg.mxu0
    %4933 = vmatpush.msra.mxu0 %v4789
    %4934 = vmatpush.msra.mxu0 %v4785
    %4935 = vmatpush.msra.mxu0 %v4781
    %4936 = vmatpush.msra.mxu0 %v4777
    %4937 = vmatpush.msra.mxu0 %v4773
    %4938 = vmatpush.msra.mxu0 %v4769
    %4939 = vmatpush.msra.mxu0 %v4765
    %4940 = vmatpush.msra.mxu0 %v4761
    %4941 = vmatpush.msra.mxu0 %v4757
    %4942 = vmatpush.msra.mxu0 %v4753
    %4943 = vmatpush.msra.mxu0 %v4749
    %4944 = vmatpush.msra.mxu0 %v4745
    %4945 = vmatpush.msra.mxu0 %v4741
    %4946 = vmatpush.msra.mxu0 %v4737
    %4947 = vmatpush.msra.mxu0 %v4733
    %4948 = vmatpush.msra.mxu0 %v4729
    %4949 = vmatmul.f32.gmra.mxu0 %v3876
    %v4950 = vpop.f32.mrf.mxu0
    %v4951 = vadd.f32 %v4795, %v4950
    %4952 = vmatmul.f32.gmra.mxu0 %v3877
    %v4953 = vpop.f32.mrf.mxu0
    %v4954 = vadd.f32 %v4795, %v4953
    %4955 = vmatmul.f32.gmra.mxu0 %v3878
    %v4956 = vpop.f32.mrf.mxu0
    %v4957 = vadd.f32 %v4795, %v4956
    %4958 = vmatmul.f32.gmra.mxu0 %v3879
    %v4959 = vpop.f32.mrf.mxu0
    %v4960 = vadd.f32 %v4795, %v4959
    %4961 = vmatmul.f32.gmra.mxu0 %v3880
    %v4962 = vpop.f32.mrf.mxu0
    %v4963 = vadd.f32 %v4795, %v4962
    %4964 = vmatmul.f32.gmra.mxu0 %v3881
    %v4965 = vpop.f32.mrf.mxu0
    %v4966 = vadd.f32 %v4795, %v4965
    %4967 = vmatmul.f32.gmra.mxu0 %v3882
    %v4968 = vpop.f32.mrf.mxu0
    %v4969 = vadd.f32 %v4795, %v4968
    %4970 = vmatmul.f32.gmra.mxu0 %v3883
    %v4971 = vpop.f32.mrf.mxu0
    %v4972 = vadd.f32 %v4795, %v4971
    %4973 = vmatmul.f32.gmra.mxu0 %v3884
    %v4974 = vpop.f32.mrf.mxu0
    %v4975 = vadd.f32 %v4795, %v4974
    %4976 = vmatmul.f32.gmra.mxu0 %v3885
    %v4977 = vpop.f32.mrf.mxu0
    %v4978 = vadd.f32 %v4795, %v4977
    %4979 = vmatmul.f32.gmra.mxu0 %v3886
    %v4980 = vpop.f32.mrf.mxu0
    %v4981 = vadd.f32 %v4795, %v4980
    %4982 = vmatmul.f32.gmra.mxu0 %v3887
    %v4983 = vpop.f32.mrf.mxu0
    %v4984 = vadd.f32 %v4795, %v4983
    %4985 = vmatmul.f32.gmra.mxu0 %v3888
    %v4986 = vpop.f32.mrf.mxu0
    %v4987 = vadd.f32 %v4795, %v4986
    %4988 = vmatmul.f32.gmra.mxu0 %v3889
    %v4989 = vpop.f32.mrf.mxu0
    %v4990 = vadd.f32 %v4795, %v4989
    %4991 = vmatmul.f32.gmra.mxu0 %v3890
    %v4992 = vpop.f32.mrf.mxu0
    %v4993 = vadd.f32 %v4795, %v4992
    %4994 = vmatmul.f32.gmra.mxu0 %v3891
    %v4995 = vpop.f32.mrf.mxu0
    %v4996 = vadd.f32 %v4795, %v4995
    %4997 = vmatmul.f32.gmra.mxu0 %v3892
    %v4998 = vpop.f32.mrf.mxu0
    %v4999 = vadd.f32 %v4795, %v4998
    %5000 = vmatmul.f32.gmra.mxu0 %v3893
    %v5001 = vpop.f32.mrf.mxu0
    %v5002 = vadd.f32 %v4795, %v5001
    %5003 = vmatmul.f32.gmra.mxu0 %v3894
    %v5004 = vpop.f32.mrf.mxu0
    %v5005 = vadd.f32 %v4795, %v5004
    %5006 = vmatmul.f32.gmra.mxu0 %v3895
    %v5007 = vpop.f32.mrf.mxu0
    %v5008 = vadd.f32 %v4795, %v5007
    %5009 = vmatmul.f32.gmra.mxu0 %v3896
    %v5010 = vpop.f32.mrf.mxu0
    %v5011 = vadd.f32 %v4795, %v5010
    %5012 = vmatmul.f32.gmra.mxu0 %v3897
    %v5013 = vpop.f32.mrf.mxu0
    %v5014 = vadd.f32 %v4795, %v5013
    %5015 = vmatmul.f32.gmra.mxu0 %v3898
    %v5016 = vpop.f32.mrf.mxu0
    %v5017 = vadd.f32 %v4795, %v5016
    %5018 = vmatmul.f32.gmra.mxu0 %v3899
    %v5019 = vpop.f32.mrf.mxu0
    %v5020 = vadd.f32 %v4795, %v5019
    %5021 = vmatmul.f32.gmra.mxu0 %v3900
    %v5022 = vpop.f32.mrf.mxu0
    %v5023 = vadd.f32 %v4795, %v5022
    %5024 = vmatmul.f32.gmra.mxu0 %v3901
    %v5025 = vpop.f32.mrf.mxu0
    %v5026 = vadd.f32 %v4795, %v5025
    %5027 = vmatmul.f32.gmra.mxu0 %v3902
    %v5028 = vpop.f32.mrf.mxu0
    %v5029 = vadd.f32 %v4795, %v5028
    %5030 = vmatmul.f32.gmra.mxu0 %v3903
    %v5031 = vpop.f32.mrf.mxu0
    %v5032 = vadd.f32 %v4795, %v5031
    %5033 = vmatmul.f32.gmra.mxu0 %v3904
    %v5034 = vpop.f32.mrf.mxu0
    %v5035 = vadd.f32 %v4795, %v5034
    %5036 = vmatmul.f32.gmra.mxu0 %v3905
    %v5037 = vpop.f32.mrf.mxu0
    %v5038 = vadd.f32 %v4795, %v5037
    %5039 = vmatmul.f32.gmra.mxu0 %v3906
    %v5040 = vpop.f32.mrf.mxu0
    %v5041 = vadd.f32 %v4795, %v5040
    %5042 = vmatmul.f32.gmra.mxu0 %v3907
    %v5043 = vpop.f32.mrf.mxu0
    %v5044 = vadd.f32 %v4795, %v5043
    %5045 = vmatmul.f32.gmra.mxu0 %v3908
    %v5046 = vpop.f32.mrf.mxu0
    %v5047 = vadd.f32 %v4795, %v5046
    %5048 = vmatmul.f32.gmra.mxu0 %v3909
    %v5049 = vpop.f32.mrf.mxu0
    %v5050 = vadd.f32 %v4795, %v5049
    %5051 = vmatmul.f32.gmra.mxu0 %v3910
    %v5052 = vpop.f32.mrf.mxu0
    %v5053 = vadd.f32 %v4795, %v5052
    %5054 = vmatmul.f32.gmra.mxu0 %v3911
    %v5055 = vpop.f32.mrf.mxu0
    %v5056 = vadd.f32 %v4795, %v5055
    %5057 = vmatmul.f32.gmra.mxu0 %v3912
    %v5058 = vpop.f32.mrf.mxu0
    %v5059 = vadd.f32 %v4795, %v5058
    %5060 = vmatmul.f32.gmra.mxu0 %v3913
    %v5061 = vpop.f32.mrf.mxu0
    %v5062 = vadd.f32 %v4795, %v5061
    %5063 = vdwg.mxu0
    %5064 = vmatpush.msra.mxu0 %v4790
    %5065 = vmatpush.msra.mxu0 %v4786
    %5066 = vmatpush.msra.mxu0 %v4782
    %5067 = vmatpush.msra.mxu0 %v4778
    %5068 = vmatpush.msra.mxu0 %v4774
    %5069 = vmatpush.msra.mxu0 %v4770
    %5070 = vmatpush.msra.mxu0 %v4766
    %5071 = vmatpush.msra.mxu0 %v4762
    %5072 = vmatpush.msra.mxu0 %v4758
    %5073 = vmatpush.msra.mxu0 %v4754
    %5074 = vmatpush.msra.mxu0 %v4750
    %5075 = vmatpush.msra.mxu0 %v4746
    %5076 = vmatpush.msra.mxu0 %v4742
    %5077 = vmatpush.msra.mxu0 %v4738
    %5078 = vmatpush.msra.mxu0 %v4734
    %5079 = vmatpush.msra.mxu0 %v4730
    %5080 = vmatmul.f32.gmra.mxu0 %v3876
    %v5081 = vpop.f32.mrf.mxu0
    %v5082 = vadd.f32 %v4796, %v5081
    %5083 = vmatmul.f32.gmra.mxu0 %v3877
    %v5084 = vpop.f32.mrf.mxu0
    %v5085 = vadd.f32 %v4796, %v5084
    %5086 = vmatmul.f32.gmra.mxu0 %v3878
    %v5087 = vpop.f32.mrf.mxu0
    %v5088 = vadd.f32 %v4796, %v5087
    %5089 = vmatmul.f32.gmra.mxu0 %v3879
    %v5090 = vpop.f32.mrf.mxu0
    %v5091 = vadd.f32 %v4796, %v5090
    %5092 = vmatmul.f32.gmra.mxu0 %v3880
    %v5093 = vpop.f32.mrf.mxu0
    %v5094 = vadd.f32 %v4796, %v5093
    %5095 = vmatmul.f32.gmra.mxu0 %v3881
    %v5096 = vpop.f32.mrf.mxu0
    %v5097 = vadd.f32 %v4796, %v5096
    %5098 = vmatmul.f32.gmra.mxu0 %v3882
    %v5099 = vpop.f32.mrf.mxu0
    %v5100 = vadd.f32 %v4796, %v5099
    %5101 = vmatmul.f32.gmra.mxu0 %v3883
    %v5102 = vpop.f32.mrf.mxu0
    %v5103 = vadd.f32 %v4796, %v5102
    %5104 = vmatmul.f32.gmra.mxu0 %v3884
    %v5105 = vpop.f32.mrf.mxu0
    %v5106 = vadd.f32 %v4796, %v5105
    %5107 = vmatmul.f32.gmra.mxu0 %v3885
    %v5108 = vpop.f32.mrf.mxu0
    %v5109 = vadd.f32 %v4796, %v5108
    %5110 = vmatmul.f32.gmra.mxu0 %v3886
    %v5111 = vpop.f32.mrf.mxu0
    %v5112 = vadd.f32 %v4796, %v5111
    %5113 = vmatmul.f32.gmra.mxu0 %v3887
    %v5114 = vpop.f32.mrf.mxu0
    %v5115 = vadd.f32 %v4796, %v5114
    %5116 = vmatmul.f32.gmra.mxu0 %v3888
    %v5117 = vpop.f32.mrf.mxu0
    %v5118 = vadd.f32 %v4796, %v5117
    %5119 = vmatmul.f32.gmra.mxu0 %v3889
    %v5120 = vpop.f32.mrf.mxu0
    %v5121 = vadd.f32 %v4796, %v5120
    %5122 = vmatmul.f32.gmra.mxu0 %v3890
    %v5123 = vpop.f32.mrf.mxu0
    %v5124 = vadd.f32 %v4796, %v5123
    %5125 = vmatmul.f32.gmra.mxu0 %v3891
    %v5126 = vpop.f32.mrf.mxu0
    %v5127 = vadd.f32 %v4796, %v5126
    %5128 = vmatmul.f32.gmra.mxu0 %v3892
    %v5129 = vpop.f32.mrf.mxu0
    %v5130 = vadd.f32 %v4796, %v5129
    %5131 = vmatmul.f32.gmra.mxu0 %v3893
    %v5132 = vpop.f32.mrf.mxu0
    %v5133 = vadd.f32 %v4796, %v5132
    %5134 = vmatmul.f32.gmra.mxu0 %v3894
    %v5135 = vpop.f32.mrf.mxu0
    %v5136 = vadd.f32 %v4796, %v5135
    %5137 = vmatmul.f32.gmra.mxu0 %v3895
    %v5138 = vpop.f32.mrf.mxu0
    %v5139 = vadd.f32 %v4796, %v5138
    %5140 = vmatmul.f32.gmra.mxu0 %v3896
    %v5141 = vpop.f32.mrf.mxu0
    %v5142 = vadd.f32 %v4796, %v5141
    %5143 = vmatmul.f32.gmra.mxu0 %v3897
    %v5144 = vpop.f32.mrf.mxu0
    %v5145 = vadd.f32 %v4796, %v5144
    %5146 = vmatmul.f32.gmra.mxu0 %v3898
    %v5147 = vpop.f32.mrf.mxu0
    %v5148 = vadd.f32 %v4796, %v5147
    %5149 = vmatmul.f32.gmra.mxu0 %v3899
    %v5150 = vpop.f32.mrf.mxu0
    %v5151 = vadd.f32 %v4796, %v5150
    %5152 = vmatmul.f32.gmra.mxu0 %v3900
    %v5153 = vpop.f32.mrf.mxu0
    %v5154 = vadd.f32 %v4796, %v5153
    %5155 = vmatmul.f32.gmra.mxu0 %v3901
    %v5156 = vpop.f32.mrf.mxu0
    %v5157 = vadd.f32 %v4796, %v5156
    %5158 = vmatmul.f32.gmra.mxu0 %v3902
    %v5159 = vpop.f32.mrf.mxu0
    %v5160 = vadd.f32 %v4796, %v5159
    %5161 = vmatmul.f32.gmra.mxu0 %v3903
    %v5162 = vpop.f32.mrf.mxu0
    %v5163 = vadd.f32 %v4796, %v5162
    %5164 = vmatmul.f32.gmra.mxu0 %v3904
    %v5165 = vpop.f32.mrf.mxu0
    %v5166 = vadd.f32 %v4796, %v5165
    %5167 = vmatmul.f32.gmra.mxu0 %v3905
    %v5168 = vpop.f32.mrf.mxu0
    %v5169 = vadd.f32 %v4796, %v5168
    %5170 = vmatmul.f32.gmra.mxu0 %v3906
    %v5171 = vpop.f32.mrf.mxu0
    %v5172 = vadd.f32 %v4796, %v5171
    %5173 = vmatmul.f32.gmra.mxu0 %v3907
    %v5174 = vpop.f32.mrf.mxu0
    %v5175 = vadd.f32 %v4796, %v5174
    %5176 = vmatmul.f32.gmra.mxu0 %v3908
    %v5177 = vpop.f32.mrf.mxu0
    %v5178 = vadd.f32 %v4796, %v5177
    %5179 = vmatmul.f32.gmra.mxu0 %v3909
    %v5180 = vpop.f32.mrf.mxu0
    %v5181 = vadd.f32 %v4796, %v5180
    %5182 = vmatmul.f32.gmra.mxu0 %v3910
    %v5183 = vpop.f32.mrf.mxu0
    %v5184 = vadd.f32 %v4796, %v5183
    %5185 = vmatmul.f32.gmra.mxu0 %v3911
    %v5186 = vpop.f32.mrf.mxu0
    %v5187 = vadd.f32 %v4796, %v5186
    %5188 = vmatmul.f32.gmra.mxu0 %v3912
    %v5189 = vpop.f32.mrf.mxu0
    %v5190 = vadd.f32 %v4796, %v5189
    %5191 = vmatmul.f32.gmra.mxu0 %v3913
    %v5192 = vpop.f32.mrf.mxu0
    %v5193 = vadd.f32 %v4796, %v5192
    %5194 = vdwg.mxu0
    %5195 = vmatpush.msra.mxu0 %v4791
    %5196 = vmatpush.msra.mxu0 %v4787
    %5197 = vmatpush.msra.mxu0 %v4783
    %5198 = vmatpush.msra.mxu0 %v4779
    %5199 = vmatpush.msra.mxu0 %v4775
    %5200 = vmatpush.msra.mxu0 %v4771
    %5201 = vmatpush.msra.mxu0 %v4767
    %5202 = vmatpush.msra.mxu0 %v4763
    %5203 = vmatpush.msra.mxu0 %v4759
    %5204 = vmatpush.msra.mxu0 %v4755
    %5205 = vmatpush.msra.mxu0 %v4751
    %5206 = vmatpush.msra.mxu0 %v4747
    %5207 = vmatpush.msra.mxu0 %v4743
    %5208 = vmatpush.msra.mxu0 %v4739
    %5209 = vmatpush.msra.mxu0 %v4735
    %5210 = vmatpush.msra.mxu0 %v4731
    %5211 = vmatmul.f32.gmra.mxu0 %v3876
    %v5212 = vpop.f32.mrf.mxu0
    %v5213 = vadd.f32 %v4797, %v5212
    %5214 = vmatmul.f32.gmra.mxu0 %v3877
    %v5215 = vpop.f32.mrf.mxu0
    %v5216 = vadd.f32 %v4797, %v5215
    %5217 = vmatmul.f32.gmra.mxu0 %v3878
    %v5218 = vpop.f32.mrf.mxu0
    %v5219 = vadd.f32 %v4797, %v5218
    %5220 = vmatmul.f32.gmra.mxu0 %v3879
    %v5221 = vpop.f32.mrf.mxu0
    %v5222 = vadd.f32 %v4797, %v5221
    %5223 = vmatmul.f32.gmra.mxu0 %v3880
    %v5224 = vpop.f32.mrf.mxu0
    %v5225 = vadd.f32 %v4797, %v5224
    %5226 = vmatmul.f32.gmra.mxu0 %v3881
    %v5227 = vpop.f32.mrf.mxu0
    %v5228 = vadd.f32 %v4797, %v5227
    %5229 = vmatmul.f32.gmra.mxu0 %v3882
    %v5230 = vpop.f32.mrf.mxu0
    %v5231 = vadd.f32 %v4797, %v5230
    %5232 = vmatmul.f32.gmra.mxu0 %v3883
    %v5233 = vpop.f32.mrf.mxu0
    %v5234 = vadd.f32 %v4797, %v5233
    %5235 = vmatmul.f32.gmra.mxu0 %v3884
    %v5236 = vpop.f32.mrf.mxu0
    %v5237 = vadd.f32 %v4797, %v5236
    %5238 = vmatmul.f32.gmra.mxu0 %v3885
    %v5239 = vpop.f32.mrf.mxu0
    %v5240 = vadd.f32 %v4797, %v5239
    %5241 = vmatmul.f32.gmra.mxu0 %v3886
    %v5242 = vpop.f32.mrf.mxu0
    %v5243 = vadd.f32 %v4797, %v5242
    %5244 = vmatmul.f32.gmra.mxu0 %v3887
    %v5245 = vpop.f32.mrf.mxu0
    %v5246 = vadd.f32 %v4797, %v5245
    %5247 = vmatmul.f32.gmra.mxu0 %v3888
    %v5248 = vpop.f32.mrf.mxu0
    %v5249 = vadd.f32 %v4797, %v5248
    %5250 = vmatmul.f32.gmra.mxu0 %v3889
    %v5251 = vpop.f32.mrf.mxu0
    %v5252 = vadd.f32 %v4797, %v5251
    %5253 = vmatmul.f32.gmra.mxu0 %v3890
    %v5254 = vpop.f32.mrf.mxu0
    %v5255 = vadd.f32 %v4797, %v5254
    %5256 = vmatmul.f32.gmra.mxu0 %v3891
    %v5257 = vpop.f32.mrf.mxu0
    %v5258 = vadd.f32 %v4797, %v5257
    %5259 = vmatmul.f32.gmra.mxu0 %v3892
    %v5260 = vpop.f32.mrf.mxu0
    %v5261 = vadd.f32 %v4797, %v5260
    %5262 = vmatmul.f32.gmra.mxu0 %v3893
    %v5263 = vpop.f32.mrf.mxu0
    %v5264 = vadd.f32 %v4797, %v5263
    %5265 = vmatmul.f32.gmra.mxu0 %v3894
    %v5266 = vpop.f32.mrf.mxu0
    %v5267 = vadd.f32 %v4797, %v5266
    %5268 = vmatmul.f32.gmra.mxu0 %v3895
    %v5269 = vpop.f32.mrf.mxu0
    %v5270 = vadd.f32 %v4797, %v5269
    %5271 = vmatmul.f32.gmra.mxu0 %v3896
    %v5272 = vpop.f32.mrf.mxu0
    %v5273 = vadd.f32 %v4797, %v5272
    %5274 = vmatmul.f32.gmra.mxu0 %v3897
    %v5275 = vpop.f32.mrf.mxu0
    %v5276 = vadd.f32 %v4797, %v5275
    %5277 = vmatmul.f32.gmra.mxu0 %v3898
    %v5278 = vpop.f32.mrf.mxu0
    %v5279 = vadd.f32 %v4797, %v5278
    %5280 = vmatmul.f32.gmra.mxu0 %v3899
    %v5281 = vpop.f32.mrf.mxu0
    %v5282 = vadd.f32 %v4797, %v5281
    %5283 = vmatmul.f32.gmra.mxu0 %v3900
    %v5284 = vpop.f32.mrf.mxu0
    %v5285 = vadd.f32 %v4797, %v5284
    %5286 = vmatmul.f32.gmra.mxu0 %v3901
    %v5287 = vpop.f32.mrf.mxu0
    %v5288 = vadd.f32 %v4797, %v5287
    %5289 = vmatmul.f32.gmra.mxu0 %v3902
    %v5290 = vpop.f32.mrf.mxu0
    %v5291 = vadd.f32 %v4797, %v5290
    %5292 = vmatmul.f32.gmra.mxu0 %v3903
    %v5293 = vpop.f32.mrf.mxu0
    %v5294 = vadd.f32 %v4797, %v5293
    %5295 = vmatmul.f32.gmra.mxu0 %v3904
    %v5296 = vpop.f32.mrf.mxu0
    %v5297 = vadd.f32 %v4797, %v5296
    %5298 = vmatmul.f32.gmra.mxu0 %v3905
    %v5299 = vpop.f32.mrf.mxu0
    %v5300 = vadd.f32 %v4797, %v5299
    %5301 = vmatmul.f32.gmra.mxu0 %v3906
    %v5302 = vpop.f32.mrf.mxu0
    %v5303 = vadd.f32 %v4797, %v5302
    %5304 = vmatmul.f32.gmra.mxu0 %v3907
    %v5305 = vpop.f32.mrf.mxu0
    %v5306 = vadd.f32 %v4797, %v5305
    %5307 = vmatmul.f32.gmra.mxu0 %v3908
    %v5308 = vpop.f32.mrf.mxu0
    %v5309 = vadd.f32 %v4797, %v5308
    %5310 = vmatmul.f32.gmra.mxu0 %v3909
    %v5311 = vpop.f32.mrf.mxu0
    %v5312 = vadd.f32 %v4797, %v5311
    %5313 = vmatmul.f32.gmra.mxu0 %v3910
    %v5314 = vpop.f32.mrf.mxu0
    %v5315 = vadd.f32 %v4797, %v5314
    %5316 = vmatmul.f32.gmra.mxu0 %v3911
    %v5317 = vpop.f32.mrf.mxu0
    %v5318 = vadd.f32 %v4797, %v5317
    %5319 = vmatmul.f32.gmra.mxu0 %v3912
    %v5320 = vpop.f32.mrf.mxu0
    %v5321 = vadd.f32 %v4797, %v5320
    %5322 = vmatmul.f32.gmra.mxu0 %v3913
    %v5323 = vpop.f32.mrf.mxu0
    %v5324 = vadd.f32 %v4797, %v5323
    %5325 = vdwg.mxu0
    %v5326 = vmax.f32 %v4820, 0.0
    %v5327 = vmax.f32 %v4951, 0.0
    %v5328 = vmax.f32 %v5082, 0.0
    %v5329 = vmax.f32 %v5213, 0.0
    %v5330 = vmax.f32 %v4823, 0.0
    %v5331 = vmax.f32 %v4954, 0.0
    %v5332 = vmax.f32 %v5085, 0.0
    %v5333 = vmax.f32 %v5216, 0.0
    %v5334 = vmax.f32 %v4826, 0.0
    %v5335 = vmax.f32 %v4957, 0.0
    %v5336 = vmax.f32 %v5088, 0.0
    %v5337 = vmax.f32 %v5219, 0.0
    %v5338 = vmax.f32 %v4829, 0.0
    %v5339 = vmax.f32 %v4960, 0.0
    %v5340 = vmax.f32 %v5091, 0.0
    %v5341 = vmax.f32 %v5222, 0.0
    %v5342 = vmax.f32 %v4832, 0.0
    %v5343 = vmax.f32 %v4963, 0.0
    %v5344 = vmax.f32 %v5094, 0.0
    %v5345 = vmax.f32 %v5225, 0.0
    %v5346 = vmax.f32 %v4835, 0.0
    %v5347 = vmax.f32 %v4966, 0.0
    %v5348 = vmax.f32 %v5097, 0.0
    %v5349 = vmax.f32 %v5228, 0.0
    %v5350 = vmax.f32 %v4838, 0.0
    %v5351 = vmax.f32 %v4969, 0.0
    %v5352 = vmax.f32 %v5100, 0.0
    %v5353 = vmax.f32 %v5231, 0.0
    %v5354 = vmax.f32 %v4841, 0.0
    %v5355 = vmax.f32 %v4972, 0.0
    %v5356 = vmax.f32 %v5103, 0.0
    %v5357 = vmax.f32 %v5234, 0.0
    %v5358 = vmax.f32 %v4844, 0.0
    %v5359 = vmax.f32 %v4975, 0.0
    %v5360 = vmax.f32 %v5106, 0.0
    %v5361 = vmax.f32 %v5237, 0.0
    %v5362 = vmax.f32 %v4847, 0.0
    %v5363 = vmax.f32 %v4978, 0.0
    %v5364 = vmax.f32 %v5109, 0.0
    %v5365 = vmax.f32 %v5240, 0.0
    %v5366 = vmax.f32 %v4850, 0.0
    %v5367 = vmax.f32 %v4981, 0.0
    %v5368 = vmax.f32 %v5112, 0.0
    %v5369 = vmax.f32 %v5243, 0.0
    %v5370 = vmax.f32 %v4853, 0.0
    %v5371 = vmax.f32 %v4984, 0.0
    %v5372 = vmax.f32 %v5115, 0.0
    %v5373 = vmax.f32 %v5246, 0.0
    %v5374 = vmax.f32 %v4856, 0.0
    %v5375 = vmax.f32 %v4987, 0.0
    %v5376 = vmax.f32 %v5118, 0.0
    %v5377 = vmax.f32 %v5249, 0.0
    %v5378 = vmax.f32 %v4859, 0.0
    %v5379 = vmax.f32 %v4990, 0.0
    %v5380 = vmax.f32 %v5121, 0.0
    %v5381 = vmax.f32 %v5252, 0.0
    %v5382 = vmax.f32 %v4862, 0.0
    %v5383 = vmax.f32 %v4993, 0.0
    %v5384 = vmax.f32 %v5124, 0.0
    %v5385 = vmax.f32 %v5255, 0.0
    %v5386 = vmax.f32 %v4865, 0.0
    %v5387 = vmax.f32 %v4996, 0.0
    %v5388 = vmax.f32 %v5127, 0.0
    %v5389 = vmax.f32 %v5258, 0.0
    %v5390 = vmax.f32 %v4868, 0.0
    %v5391 = vmax.f32 %v4999, 0.0
    %v5392 = vmax.f32 %v5130, 0.0
    %v5393 = vmax.f32 %v5261, 0.0
    %v5394 = vmax.f32 %v4871, 0.0
    %v5395 = vmax.f32 %v5002, 0.0
    %v5396 = vmax.f32 %v5133, 0.0
    %v5397 = vmax.f32 %v5264, 0.0
    %v5398 = vmax.f32 %v4874, 0.0
    %v5399 = vmax.f32 %v5005, 0.0
    %v5400 = vmax.f32 %v5136, 0.0
    %v5401 = vmax.f32 %v5267, 0.0
    %v5402 = vmax.f32 %v4877, 0.0
    %v5403 = vmax.f32 %v5008, 0.0
    %v5404 = vmax.f32 %v5139, 0.0
    %v5405 = vmax.f32 %v5270, 0.0
    %v5406 = vmax.f32 %v4880, 0.0
    %v5407 = vmax.f32 %v5011, 0.0
    %v5408 = vmax.f32 %v5142, 0.0
    %v5409 = vmax.f32 %v5273, 0.0
    %v5410 = vmax.f32 %v4883, 0.0
    %v5411 = vmax.f32 %v5014, 0.0
    %v5412 = vmax.f32 %v5145, 0.0
    %v5413 = vmax.f32 %v5276, 0.0
    %v5414 = vmax.f32 %v4886, 0.0
    %v5415 = vmax.f32 %v5017, 0.0
    %v5416 = vmax.f32 %v5148, 0.0
    %v5417 = vmax.f32 %v5279, 0.0
    %v5418 = vmax.f32 %v4889, 0.0
    %v5419 = vmax.f32 %v5020, 0.0
    %v5420 = vmax.f32 %v5151, 0.0
    %v5421 = vmax.f32 %v5282, 0.0
    %v5422 = vmax.f32 %v4892, 0.0
    %v5423 = vmax.f32 %v5023, 0.0
    %v5424 = vmax.f32 %v5154, 0.0
    %v5425 = vmax.f32 %v5285, 0.0
    %v5426 = vmax.f32 %v4895, 0.0
    %v5427 = vmax.f32 %v5026, 0.0
    %v5428 = vmax.f32 %v5157, 0.0
    %v5429 = vmax.f32 %v5288, 0.0
    %v5430 = vmax.f32 %v4898, 0.0
    %v5431 = vmax.f32 %v5029, 0.0
    %v5432 = vmax.f32 %v5160, 0.0
    %v5433 = vmax.f32 %v5291, 0.0
    %v5434 = vmax.f32 %v4901, 0.0
    %v5435 = vmax.f32 %v5032, 0.0
    %v5436 = vmax.f32 %v5163, 0.0
    %v5437 = vmax.f32 %v5294, 0.0
    %v5438 = vmax.f32 %v4904, 0.0
    %v5439 = vmax.f32 %v5035, 0.0
    %v5440 = vmax.f32 %v5166, 0.0
    %v5441 = vmax.f32 %v5297, 0.0
    %v5442 = vmax.f32 %v4907, 0.0
    %v5443 = vmax.f32 %v5038, 0.0
    %v5444 = vmax.f32 %v5169, 0.0
    %v5445 = vmax.f32 %v5300, 0.0
    %v5446 = vmax.f32 %v4910, 0.0
    %v5447 = vmax.f32 %v5041, 0.0
    %v5448 = vmax.f32 %v5172, 0.0
    %v5449 = vmax.f32 %v5303, 0.0
    %v5450 = vmax.f32 %v4913, 0.0
    %v5451 = vmax.f32 %v5044, 0.0
    %v5452 = vmax.f32 %v5175, 0.0
    %v5453 = vmax.f32 %v5306, 0.0
    %v5454 = vmax.f32 %v4916, 0.0
    %v5455 = vmax.f32 %v5047, 0.0
    %v5456 = vmax.f32 %v5178, 0.0
    %v5457 = vmax.f32 %v5309, 0.0
    %v5458 = vmax.f32 %v4919, 0.0
    %v5459 = vmax.f32 %v5050, 0.0
    %v5460 = vmax.f32 %v5181, 0.0
    %v5461 = vmax.f32 %v5312, 0.0
    %v5462 = vmax.f32 %v4922, 0.0
    %v5463 = vmax.f32 %v5053, 0.0
    %v5464 = vmax.f32 %v5184, 0.0
    %v5465 = vmax.f32 %v5315, 0.0
    %v5466 = vmax.f32 %v4925, 0.0
    %v5467 = vmax.f32 %v5056, 0.0
    %v5468 = vmax.f32 %v5187, 0.0
    %v5469 = vmax.f32 %v5318, 0.0
    %v5470 = vmax.f32 %v4928, 0.0
    %v5471 = vmax.f32 %v5059, 0.0
    %v5472 = vmax.f32 %v5190, 0.0
    %v5473 = vmax.f32 %v5321, 0.0
    %v5474 = vmax.f32 %v4931, 0.0
    %v5475 = vmax.f32 %v5062, 0.0
    %v5476 = vmax.f32 %v5193, 0.0
    %v5477 = vmax.f32 %v5324, 0.0
    %v5478 = vld [vmem:[#allocation12 + $0x200] sm:$0xff]
    %v5479 = vld [vmem:[#allocation12 + $0x208] sm:$0xff]
    %v5480 = vld [vmem:[#allocation12 + $0x210] sm:$0xff]
    %v5481 = vld [vmem:[#allocation12 + $0x218] sm:$0xff]
    %v5482 = vld [vmem:[#allocation12 + $0x220] sm:$0xff]
    %v5483 = vld [vmem:[#allocation12 + $0x228] sm:$0xff]
    %v5484 = vld [vmem:[#allocation12 + $0x230] sm:$0xff]
    %v5485 = vld [vmem:[#allocation12 + $0x238] sm:$0xff]
    %v5486 = vld [vmem:[#allocation12 + $0x240] sm:$0xff]
    %v5487 = vld [vmem:[#allocation12 + $0x248] sm:$0xff]
    %v5488 = vld [vmem:[#allocation12 + $0x250] sm:$0xff]
    %v5489 = vld [vmem:[#allocation12 + $0x258] sm:$0xff]
    %v5490 = vld [vmem:[#allocation12 + $0x260] sm:$0xff]
    %v5491 = vld [vmem:[#allocation12 + $0x268] sm:$0xff]
    %v5492 = vld [vmem:[#allocation12 + $0x270] sm:$0xff]
    %v5493 = vld [vmem:[#allocation12 + $0x278] sm:$0xff]
    %v5494 = vld [vmem:[#allocation12 + $0x280] sm:$0xff]
    %v5495 = vld [vmem:[#allocation12 + $0x288] sm:$0xff]
    %v5496 = vld [vmem:[#allocation12 + $0x290] sm:$0xff]
    %v5497 = vld [vmem:[#allocation12 + $0x298] sm:$0xff]
    %v5498 = vld [vmem:[#allocation12 + $0x2a0] sm:$0xff]
    %v5499 = vld [vmem:[#allocation12 + $0x2a8] sm:$0xff]
    %v5500 = vld [vmem:[#allocation12 + $0x2b0] sm:$0xff]
    %v5501 = vld [vmem:[#allocation12 + $0x2b8] sm:$0xff]
    %v5502 = vld [vmem:[#allocation12 + $0x2c0] sm:$0xff]
    %v5503 = vld [vmem:[#allocation12 + $0x2c8] sm:$0xff]
    %v5504 = vld [vmem:[#allocation12 + $0x2d0] sm:$0xff]
    %v5505 = vld [vmem:[#allocation12 + $0x2d8] sm:$0xff]
    %v5506 = vld [vmem:[#allocation12 + $0x2e0] sm:$0xff]
    %v5507 = vld [vmem:[#allocation12 + $0x2e8] sm:$0xff]
    %v5508 = vld [vmem:[#allocation12 + $0x2f0] sm:$0xff]
    %v5509 = vld [vmem:[#allocation12 + $0x2f8] sm:$0xff]
    %v5510 = vld [vmem:[#allocation12 + $0x300] sm:$0xff]
    %v5511 = vld [vmem:[#allocation12 + $0x308] sm:$0xff]
    %v5512 = vld [vmem:[#allocation12 + $0x310] sm:$0xff]
    %v5513 = vld [vmem:[#allocation12 + $0x318] sm:$0xff]
    %v5514 = vld [vmem:[#allocation12 + $0x320] sm:$0xff]
    %v5515 = vld [vmem:[#allocation12 + $0x328] sm:$0xff]
    %v5516 = vld [vmem:[#allocation12 + $0x330] sm:$0xff]
    %v5517 = vld [vmem:[#allocation12 + $0x338] sm:$0xff]
    %v5518 = vld [vmem:[#allocation12 + $0x340] sm:$0xff]
    %v5519 = vld [vmem:[#allocation12 + $0x348] sm:$0xff]
    %v5520 = vld [vmem:[#allocation12 + $0x350] sm:$0xff]
    %v5521 = vld [vmem:[#allocation12 + $0x358] sm:$0xff]
    %v5522 = vld [vmem:[#allocation12 + $0x360] sm:$0xff]
    %v5523 = vld [vmem:[#allocation12 + $0x368] sm:$0xff]
    %v5524 = vld [vmem:[#allocation12 + $0x370] sm:$0xff]
    %v5525 = vld [vmem:[#allocation12 + $0x378] sm:$0xff]
    %v5526 = vld [vmem:[#allocation12 + $0x380] sm:$0xff]
    %v5527 = vld [vmem:[#allocation12 + $0x388] sm:$0xff]
    %v5528 = vld [vmem:[#allocation12 + $0x390] sm:$0xff]
    %v5529 = vld [vmem:[#allocation12 + $0x398] sm:$0xff]
    %v5530 = vld [vmem:[#allocation12 + $0x3a0] sm:$0xff]
    %v5531 = vld [vmem:[#allocation12 + $0x3a8] sm:$0xff]
    %v5532 = vld [vmem:[#allocation12 + $0x3b0] sm:$0xff]
    %v5533 = vld [vmem:[#allocation12 + $0x3b8] sm:$0xff]
    %v5534 = vld [vmem:[#allocation12 + $0x3c0] sm:$0xff]
    %v5535 = vld [vmem:[#allocation12 + $0x3c8] sm:$0xff]
    %v5536 = vld [vmem:[#allocation12 + $0x3d0] sm:$0xff]
    %v5537 = vld [vmem:[#allocation12 + $0x3d8] sm:$0xff]
    %v5538 = vld [vmem:[#allocation12 + $0x3e0] sm:$0xff]
    %v5539 = vld [vmem:[#allocation12 + $0x3e8] sm:$0xff]
    %v5540 = vld [vmem:[#allocation12 + $0x3f0] sm:$0xff]
    %v5541 = vld [vmem:[#allocation12 + $0x3f8] sm:$0xff]
    %5542 = vmatpush.msra.mxu0 %v5493
    %5543 = vmatpush.msra.mxu0 %v5492
    %5544 = vmatpush.msra.mxu0 %v5491
    %5545 = vmatpush.msra.mxu0 %v5490
    %5546 = vmatpush.msra.mxu0 %v5489
    %5547 = vmatpush.msra.mxu0 %v5488
    %5548 = vmatpush.msra.mxu0 %v5487
    %5549 = vmatpush.msra.mxu0 %v5486
    %5550 = vmatpush.msra.mxu0 %v5485
    %5551 = vmatpush.msra.mxu0 %v5484
    %5552 = vmatpush.msra.mxu0 %v5483
    %5553 = vmatpush.msra.mxu0 %v5482
    %5554 = vmatpush.msra.mxu0 %v5481
    %5555 = vmatpush.msra.mxu0 %v5480
    %5556 = vmatpush.msra.mxu0 %v5479
    %5557 = vmatpush.msra.mxu0 %v5478
    %5558 = vmatmul.f32.gmra.mxu0 %v5326
    %v5559 = vpop.f32.mrf.mxu0
    %v5560 = vadd.f32 0.0, %v5559
    %5561 = vmatmul.f32.gmra.mxu0 %v5330
    %v5562 = vpop.f32.mrf.mxu0
    %v5563 = vadd.f32 0.0, %v5562
    %5564 = vmatmul.f32.gmra.mxu0 %v5334
    %v5565 = vpop.f32.mrf.mxu0
    %v5566 = vadd.f32 0.0, %v5565
    %5567 = vmatmul.f32.gmra.mxu0 %v5338
    %v5568 = vpop.f32.mrf.mxu0
    %v5569 = vadd.f32 0.0, %v5568
    %5570 = vmatmul.f32.gmra.mxu0 %v5342
    %v5571 = vpop.f32.mrf.mxu0
    %v5572 = vadd.f32 0.0, %v5571
    %5573 = vmatmul.f32.gmra.mxu0 %v5346
    %v5574 = vpop.f32.mrf.mxu0
    %v5575 = vadd.f32 0.0, %v5574
    %5576 = vmatmul.f32.gmra.mxu0 %v5350
    %v5577 = vpop.f32.mrf.mxu0
    %v5578 = vadd.f32 0.0, %v5577
    %5579 = vmatmul.f32.gmra.mxu0 %v5354
    %v5580 = vpop.f32.mrf.mxu0
    %v5581 = vadd.f32 0.0, %v5580
    %5582 = vmatmul.f32.gmra.mxu0 %v5358
    %v5583 = vpop.f32.mrf.mxu0
    %v5584 = vadd.f32 0.0, %v5583
    %5585 = vmatmul.f32.gmra.mxu0 %v5362
    %v5586 = vpop.f32.mrf.mxu0
    %v5587 = vadd.f32 0.0, %v5586
    %5588 = vmatmul.f32.gmra.mxu0 %v5366
    %v5589 = vpop.f32.mrf.mxu0
    %v5590 = vadd.f32 0.0, %v5589
    %5591 = vmatmul.f32.gmra.mxu0 %v5370
    %v5592 = vpop.f32.mrf.mxu0
    %v5593 = vadd.f32 0.0, %v5592
    %5594 = vmatmul.f32.gmra.mxu0 %v5374
    %v5595 = vpop.f32.mrf.mxu0
    %v5596 = vadd.f32 0.0, %v5595
    %5597 = vmatmul.f32.gmra.mxu0 %v5378
    %v5598 = vpop.f32.mrf.mxu0
    %v5599 = vadd.f32 0.0, %v5598
    %5600 = vmatmul.f32.gmra.mxu0 %v5382
    %v5601 = vpop.f32.mrf.mxu0
    %v5602 = vadd.f32 0.0, %v5601
    %5603 = vmatmul.f32.gmra.mxu0 %v5386
    %v5604 = vpop.f32.mrf.mxu0
    %v5605 = vadd.f32 0.0, %v5604
    %5606 = vmatmul.f32.gmra.mxu0 %v5390
    %v5607 = vpop.f32.mrf.mxu0
    %v5608 = vadd.f32 0.0, %v5607
    %5609 = vmatmul.f32.gmra.mxu0 %v5394
    %v5610 = vpop.f32.mrf.mxu0
    %v5611 = vadd.f32 0.0, %v5610
    %5612 = vmatmul.f32.gmra.mxu0 %v5398
    %v5613 = vpop.f32.mrf.mxu0
    %v5614 = vadd.f32 0.0, %v5613
    %5615 = vmatmul.f32.gmra.mxu0 %v5402
    %v5616 = vpop.f32.mrf.mxu0
    %v5617 = vadd.f32 0.0, %v5616
    %5618 = vmatmul.f32.gmra.mxu0 %v5406
    %v5619 = vpop.f32.mrf.mxu0
    %v5620 = vadd.f32 0.0, %v5619
    %5621 = vmatmul.f32.gmra.mxu0 %v5410
    %v5622 = vpop.f32.mrf.mxu0
    %v5623 = vadd.f32 0.0, %v5622
    %5624 = vmatmul.f32.gmra.mxu0 %v5414
    %v5625 = vpop.f32.mrf.mxu0
    %v5626 = vadd.f32 0.0, %v5625
    %5627 = vmatmul.f32.gmra.mxu0 %v5418
    %v5628 = vpop.f32.mrf.mxu0
    %v5629 = vadd.f32 0.0, %v5628
    %5630 = vmatmul.f32.gmra.mxu0 %v5422
    %v5631 = vpop.f32.mrf.mxu0
    %v5632 = vadd.f32 0.0, %v5631
    %5633 = vmatmul.f32.gmra.mxu0 %v5426
    %v5634 = vpop.f32.mrf.mxu0
    %v5635 = vadd.f32 0.0, %v5634
    %5636 = vmatmul.f32.gmra.mxu0 %v5430
    %v5637 = vpop.f32.mrf.mxu0
    %v5638 = vadd.f32 0.0, %v5637
    %5639 = vmatmul.f32.gmra.mxu0 %v5434
    %v5640 = vpop.f32.mrf.mxu0
    %v5641 = vadd.f32 0.0, %v5640
    %5642 = vmatmul.f32.gmra.mxu0 %v5438
    %v5643 = vpop.f32.mrf.mxu0
    %v5644 = vadd.f32 0.0, %v5643
    %5645 = vmatmul.f32.gmra.mxu0 %v5442
    %v5646 = vpop.f32.mrf.mxu0
    %v5647 = vadd.f32 0.0, %v5646
    %5648 = vmatmul.f32.gmra.mxu0 %v5446
    %v5649 = vpop.f32.mrf.mxu0
    %v5650 = vadd.f32 0.0, %v5649
    %5651 = vmatmul.f32.gmra.mxu0 %v5450
    %v5652 = vpop.f32.mrf.mxu0
    %v5653 = vadd.f32 0.0, %v5652
    %5654 = vmatmul.f32.gmra.mxu0 %v5454
    %v5655 = vpop.f32.mrf.mxu0
    %v5656 = vadd.f32 0.0, %v5655
    %5657 = vmatmul.f32.gmra.mxu0 %v5458
    %v5658 = vpop.f32.mrf.mxu0
    %v5659 = vadd.f32 0.0, %v5658
    %5660 = vmatmul.f32.gmra.mxu0 %v5462
    %v5661 = vpop.f32.mrf.mxu0
    %v5662 = vadd.f32 0.0, %v5661
    %5663 = vmatmul.f32.gmra.mxu0 %v5466
    %v5664 = vpop.f32.mrf.mxu0
    %v5665 = vadd.f32 0.0, %v5664
    %5666 = vmatmul.f32.gmra.mxu0 %v5470
    %v5667 = vpop.f32.mrf.mxu0
    %v5668 = vadd.f32 0.0, %v5667
    %5669 = vmatmul.f32.gmra.mxu0 %v5474
    %v5670 = vpop.f32.mrf.mxu0
    %v5671 = vadd.f32 0.0, %v5670
    %5672 = vdwg.mxu0
    %5673 = vmatpush.msra.mxu0 %v5509
    %5674 = vmatpush.msra.mxu0 %v5508
    %5675 = vmatpush.msra.mxu0 %v5507
    %5676 = vmatpush.msra.mxu0 %v5506
    %5677 = vmatpush.msra.mxu0 %v5505
    %5678 = vmatpush.msra.mxu0 %v5504
    %5679 = vmatpush.msra.mxu0 %v5503
    %5680 = vmatpush.msra.mxu0 %v5502
    %5681 = vmatpush.msra.mxu0 %v5501
    %5682 = vmatpush.msra.mxu0 %v5500
    %5683 = vmatpush.msra.mxu0 %v5499
    %5684 = vmatpush.msra.mxu0 %v5498
    %5685 = vmatpush.msra.mxu0 %v5497
    %5686 = vmatpush.msra.mxu0 %v5496
    %5687 = vmatpush.msra.mxu0 %v5495
    %5688 = vmatpush.msra.mxu0 %v5494
    %5689 = vmatmul.f32.gmra.mxu0 %v5327
    %v5690 = vpop.f32.mrf.mxu0
    %v5691 = vadd.f32 %v5560, %v5690
    %5692 = vmatmul.f32.gmra.mxu0 %v5331
    %v5693 = vpop.f32.mrf.mxu0
    %v5694 = vadd.f32 %v5563, %v5693
    %5695 = vmatmul.f32.gmra.mxu0 %v5335
    %v5696 = vpop.f32.mrf.mxu0
    %v5697 = vadd.f32 %v5566, %v5696
    %5698 = vmatmul.f32.gmra.mxu0 %v5339
    %v5699 = vpop.f32.mrf.mxu0
    %v5700 = vadd.f32 %v5569, %v5699
    %5701 = vmatmul.f32.gmra.mxu0 %v5343
    %v5702 = vpop.f32.mrf.mxu0
    %v5703 = vadd.f32 %v5572, %v5702
    %5704 = vmatmul.f32.gmra.mxu0 %v5347
    %v5705 = vpop.f32.mrf.mxu0
    %v5706 = vadd.f32 %v5575, %v5705
    %5707 = vmatmul.f32.gmra.mxu0 %v5351
    %v5708 = vpop.f32.mrf.mxu0
    %v5709 = vadd.f32 %v5578, %v5708
    %5710 = vmatmul.f32.gmra.mxu0 %v5355
    %v5711 = vpop.f32.mrf.mxu0
    %v5712 = vadd.f32 %v5581, %v5711
    %5713 = vmatmul.f32.gmra.mxu0 %v5359
    %v5714 = vpop.f32.mrf.mxu0
    %v5715 = vadd.f32 %v5584, %v5714
    %5716 = vmatmul.f32.gmra.mxu0 %v5363
    %v5717 = vpop.f32.mrf.mxu0
    %v5718 = vadd.f32 %v5587, %v5717
    %5719 = vmatmul.f32.gmra.mxu0 %v5367
    %v5720 = vpop.f32.mrf.mxu0
    %v5721 = vadd.f32 %v5590, %v5720
    %5722 = vmatmul.f32.gmra.mxu0 %v5371
    %v5723 = vpop.f32.mrf.mxu0
    %v5724 = vadd.f32 %v5593, %v5723
    %5725 = vmatmul.f32.gmra.mxu0 %v5375
    %v5726 = vpop.f32.mrf.mxu0
    %v5727 = vadd.f32 %v5596, %v5726
    %5728 = vmatmul.f32.gmra.mxu0 %v5379
    %v5729 = vpop.f32.mrf.mxu0
    %v5730 = vadd.f32 %v5599, %v5729
    %5731 = vmatmul.f32.gmra.mxu0 %v5383
    %v5732 = vpop.f32.mrf.mxu0
    %v5733 = vadd.f32 %v5602, %v5732
    %5734 = vmatmul.f32.gmra.mxu0 %v5387
    %v5735 = vpop.f32.mrf.mxu0
    %v5736 = vadd.f32 %v5605, %v5735
    %5737 = vmatmul.f32.gmra.mxu0 %v5391
    %v5738 = vpop.f32.mrf.mxu0
    %v5739 = vadd.f32 %v5608, %v5738
    %5740 = vmatmul.f32.gmra.mxu0 %v5395
    %v5741 = vpop.f32.mrf.mxu0
    %v5742 = vadd.f32 %v5611, %v5741
    %5743 = vmatmul.f32.gmra.mxu0 %v5399
    %v5744 = vpop.f32.mrf.mxu0
    %v5745 = vadd.f32 %v5614, %v5744
    %5746 = vmatmul.f32.gmra.mxu0 %v5403
    %v5747 = vpop.f32.mrf.mxu0
    %v5748 = vadd.f32 %v5617, %v5747
    %5749 = vmatmul.f32.gmra.mxu0 %v5407
    %v5750 = vpop.f32.mrf.mxu0
    %v5751 = vadd.f32 %v5620, %v5750
    %5752 = vmatmul.f32.gmra.mxu0 %v5411
    %v5753 = vpop.f32.mrf.mxu0
    %v5754 = vadd.f32 %v5623, %v5753
    %5755 = vmatmul.f32.gmra.mxu0 %v5415
    %v5756 = vpop.f32.mrf.mxu0
    %v5757 = vadd.f32 %v5626, %v5756
    %5758 = vmatmul.f32.gmra.mxu0 %v5419
    %v5759 = vpop.f32.mrf.mxu0
    %v5760 = vadd.f32 %v5629, %v5759
    %5761 = vmatmul.f32.gmra.mxu0 %v5423
    %v5762 = vpop.f32.mrf.mxu0
    %v5763 = vadd.f32 %v5632, %v5762
    %5764 = vmatmul.f32.gmra.mxu0 %v5427
    %v5765 = vpop.f32.mrf.mxu0
    %v5766 = vadd.f32 %v5635, %v5765
    %5767 = vmatmul.f32.gmra.mxu0 %v5431
    %v5768 = vpop.f32.mrf.mxu0
    %v5769 = vadd.f32 %v5638, %v5768
    %5770 = vmatmul.f32.gmra.mxu0 %v5435
    %v5771 = vpop.f32.mrf.mxu0
    %v5772 = vadd.f32 %v5641, %v5771
    %5773 = vmatmul.f32.gmra.mxu0 %v5439
    %v5774 = vpop.f32.mrf.mxu0
    %v5775 = vadd.f32 %v5644, %v5774
    %5776 = vmatmul.f32.gmra.mxu0 %v5443
    %v5777 = vpop.f32.mrf.mxu0
    %v5778 = vadd.f32 %v5647, %v5777
    %5779 = vmatmul.f32.gmra.mxu0 %v5447
    %v5780 = vpop.f32.mrf.mxu0
    %v5781 = vadd.f32 %v5650, %v5780
    %5782 = vmatmul.f32.gmra.mxu0 %v5451
    %v5783 = vpop.f32.mrf.mxu0
    %v5784 = vadd.f32 %v5653, %v5783
    %5785 = vmatmul.f32.gmra.mxu0 %v5455
    %v5786 = vpop.f32.mrf.mxu0
    %v5787 = vadd.f32 %v5656, %v5786
    %5788 = vmatmul.f32.gmra.mxu0 %v5459
    %v5789 = vpop.f32.mrf.mxu0
    %v5790 = vadd.f32 %v5659, %v5789
    %5791 = vmatmul.f32.gmra.mxu0 %v5463
    %v5792 = vpop.f32.mrf.mxu0
    %v5793 = vadd.f32 %v5662, %v5792
    %5794 = vmatmul.f32.gmra.mxu0 %v5467
    %v5795 = vpop.f32.mrf.mxu0
    %v5796 = vadd.f32 %v5665, %v5795
    %5797 = vmatmul.f32.gmra.mxu0 %v5471
    %v5798 = vpop.f32.mrf.mxu0
    %v5799 = vadd.f32 %v5668, %v5798
    %5800 = vmatmul.f32.gmra.mxu0 %v5475
    %v5801 = vpop.f32.mrf.mxu0
    %v5802 = vadd.f32 %v5671, %v5801
    %5803 = vdwg.mxu0
    %5804 = vmatpush.msra.mxu0 %v5525
    %5805 = vmatpush.msra.mxu0 %v5524
    %5806 = vmatpush.msra.mxu0 %v5523
    %5807 = vmatpush.msra.mxu0 %v5522
    %5808 = vmatpush.msra.mxu0 %v5521
    %5809 = vmatpush.msra.mxu0 %v5520
    %5810 = vmatpush.msra.mxu0 %v5519
    %5811 = vmatpush.msra.mxu0 %v5518
    %5812 = vmatpush.msra.mxu0 %v5517
    %5813 = vmatpush.msra.mxu0 %v5516
    %5814 = vmatpush.msra.mxu0 %v5515
    %5815 = vmatpush.msra.mxu0 %v5514
    %5816 = vmatpush.msra.mxu0 %v5513
    %5817 = vmatpush.msra.mxu0 %v5512
    %5818 = vmatpush.msra.mxu0 %v5511
    %5819 = vmatpush.msra.mxu0 %v5510
    %5820 = vmatmul.f32.gmra.mxu0 %v5328
    %v5821 = vpop.f32.mrf.mxu0
    %v5822 = vadd.f32 %v5691, %v5821
    %5823 = vmatmul.f32.gmra.mxu0 %v5332
    %v5824 = vpop.f32.mrf.mxu0
    %v5825 = vadd.f32 %v5694, %v5824
    %5826 = vmatmul.f32.gmra.mxu0 %v5336
    %v5827 = vpop.f32.mrf.mxu0
    %v5828 = vadd.f32 %v5697, %v5827
    %5829 = vmatmul.f32.gmra.mxu0 %v5340
    %v5830 = vpop.f32.mrf.mxu0
    %v5831 = vadd.f32 %v5700, %v5830
    %5832 = vmatmul.f32.gmra.mxu0 %v5344
    %v5833 = vpop.f32.mrf.mxu0
    %v5834 = vadd.f32 %v5703, %v5833
    %5835 = vmatmul.f32.gmra.mxu0 %v5348
    %v5836 = vpop.f32.mrf.mxu0
    %v5837 = vadd.f32 %v5706, %v5836
    %5838 = vmatmul.f32.gmra.mxu0 %v5352
    %v5839 = vpop.f32.mrf.mxu0
    %v5840 = vadd.f32 %v5709, %v5839
    %5841 = vmatmul.f32.gmra.mxu0 %v5356
    %v5842 = vpop.f32.mrf.mxu0
    %v5843 = vadd.f32 %v5712, %v5842
    %5844 = vmatmul.f32.gmra.mxu0 %v5360
    %v5845 = vpop.f32.mrf.mxu0
    %v5846 = vadd.f32 %v5715, %v5845
    %5847 = vmatmul.f32.gmra.mxu0 %v5364
    %v5848 = vpop.f32.mrf.mxu0
    %v5849 = vadd.f32 %v5718, %v5848
    %5850 = vmatmul.f32.gmra.mxu0 %v5368
    %v5851 = vpop.f32.mrf.mxu0
    %v5852 = vadd.f32 %v5721, %v5851
    %5853 = vmatmul.f32.gmra.mxu0 %v5372
    %v5854 = vpop.f32.mrf.mxu0
    %v5855 = vadd.f32 %v5724, %v5854
    %5856 = vmatmul.f32.gmra.mxu0 %v5376
    %v5857 = vpop.f32.mrf.mxu0
    %v5858 = vadd.f32 %v5727, %v5857
    %5859 = vmatmul.f32.gmra.mxu0 %v5380
    %v5860 = vpop.f32.mrf.mxu0
    %v5861 = vadd.f32 %v5730, %v5860
    %5862 = vmatmul.f32.gmra.mxu0 %v5384
    %v5863 = vpop.f32.mrf.mxu0
    %v5864 = vadd.f32 %v5733, %v5863
    %5865 = vmatmul.f32.gmra.mxu0 %v5388
    %v5866 = vpop.f32.mrf.mxu0
    %v5867 = vadd.f32 %v5736, %v5866
    %5868 = vmatmul.f32.gmra.mxu0 %v5392
    %v5869 = vpop.f32.mrf.mxu0
    %v5870 = vadd.f32 %v5739, %v5869
    %5871 = vmatmul.f32.gmra.mxu0 %v5396
    %v5872 = vpop.f32.mrf.mxu0
    %v5873 = vadd.f32 %v5742, %v5872
    %5874 = vmatmul.f32.gmra.mxu0 %v5400
    %v5875 = vpop.f32.mrf.mxu0
    %v5876 = vadd.f32 %v5745, %v5875
    %5877 = vmatmul.f32.gmra.mxu0 %v5404
    %v5878 = vpop.f32.mrf.mxu0
    %v5879 = vadd.f32 %v5748, %v5878
    %5880 = vmatmul.f32.gmra.mxu0 %v5408
    %v5881 = vpop.f32.mrf.mxu0
    %v5882 = vadd.f32 %v5751, %v5881
    %5883 = vmatmul.f32.gmra.mxu0 %v5412
    %v5884 = vpop.f32.mrf.mxu0
    %v5885 = vadd.f32 %v5754, %v5884
    %5886 = vmatmul.f32.gmra.mxu0 %v5416
    %v5887 = vpop.f32.mrf.mxu0
    %v5888 = vadd.f32 %v5757, %v5887
    %5889 = vmatmul.f32.gmra.mxu0 %v5420
    %v5890 = vpop.f32.mrf.mxu0
    %v5891 = vadd.f32 %v5760, %v5890
    %5892 = vmatmul.f32.gmra.mxu0 %v5424
    %v5893 = vpop.f32.mrf.mxu0
    %v5894 = vadd.f32 %v5763, %v5893
    %5895 = vmatmul.f32.gmra.mxu0 %v5428
    %v5896 = vpop.f32.mrf.mxu0
    %v5897 = vadd.f32 %v5766, %v5896
    %5898 = vmatmul.f32.gmra.mxu0 %v5432
    %v5899 = vpop.f32.mrf.mxu0
    %v5900 = vadd.f32 %v5769, %v5899
    %5901 = vmatmul.f32.gmra.mxu0 %v5436
    %v5902 = vpop.f32.mrf.mxu0
    %v5903 = vadd.f32 %v5772, %v5902
    %5904 = vmatmul.f32.gmra.mxu0 %v5440
    %v5905 = vpop.f32.mrf.mxu0
    %v5906 = vadd.f32 %v5775, %v5905
    %5907 = vmatmul.f32.gmra.mxu0 %v5444
    %v5908 = vpop.f32.mrf.mxu0
    %v5909 = vadd.f32 %v5778, %v5908
    %5910 = vmatmul.f32.gmra.mxu0 %v5448
    %v5911 = vpop.f32.mrf.mxu0
    %v5912 = vadd.f32 %v5781, %v5911
    %5913 = vmatmul.f32.gmra.mxu0 %v5452
    %v5914 = vpop.f32.mrf.mxu0
    %v5915 = vadd.f32 %v5784, %v5914
    %5916 = vmatmul.f32.gmra.mxu0 %v5456
    %v5917 = vpop.f32.mrf.mxu0
    %v5918 = vadd.f32 %v5787, %v5917
    %5919 = vmatmul.f32.gmra.mxu0 %v5460
    %v5920 = vpop.f32.mrf.mxu0
    %v5921 = vadd.f32 %v5790, %v5920
    %5922 = vmatmul.f32.gmra.mxu0 %v5464
    %v5923 = vpop.f32.mrf.mxu0
    %v5924 = vadd.f32 %v5793, %v5923
    %5925 = vmatmul.f32.gmra.mxu0 %v5468
    %v5926 = vpop.f32.mrf.mxu0
    %v5927 = vadd.f32 %v5796, %v5926
    %5928 = vmatmul.f32.gmra.mxu0 %v5472
    %v5929 = vpop.f32.mrf.mxu0
    %v5930 = vadd.f32 %v5799, %v5929
    %5931 = vmatmul.f32.gmra.mxu0 %v5476
    %v5932 = vpop.f32.mrf.mxu0
    %v5933 = vadd.f32 %v5802, %v5932
    %5934 = vdwg.mxu0
    %5935 = vmatpush.msra.mxu0 %v5541
    %5936 = vmatpush.msra.mxu0 %v5540
    %5937 = vmatpush.msra.mxu0 %v5539
    %5938 = vmatpush.msra.mxu0 %v5538
    %5939 = vmatpush.msra.mxu0 %v5537
    %5940 = vmatpush.msra.mxu0 %v5536
    %5941 = vmatpush.msra.mxu0 %v5535
    %5942 = vmatpush.msra.mxu0 %v5534
    %5943 = vmatpush.msra.mxu0 %v5533
    %5944 = vmatpush.msra.mxu0 %v5532
    %5945 = vmatpush.msra.mxu0 %v5531
    %5946 = vmatpush.msra.mxu0 %v5530
    %5947 = vmatpush.msra.mxu0 %v5529
    %5948 = vmatpush.msra.mxu0 %v5528
    %5949 = vmatpush.msra.mxu0 %v5527
    %5950 = vmatpush.msra.mxu0 %v5526
    %5951 = vmatmul.f32.gmra.mxu0 %v5329
    %v5952 = vpop.f32.mrf.mxu0
    %v5953 = vadd.f32 %v5822, %v5952
    %5954 = vmatmul.f32.gmra.mxu0 %v5333
    %v5955 = vpop.f32.mrf.mxu0
    %v5956 = vadd.f32 %v5825, %v5955
    %5957 = vmatmul.f32.gmra.mxu0 %v5337
    %v5958 = vpop.f32.mrf.mxu0
    %v5959 = vadd.f32 %v5828, %v5958
    %5960 = vmatmul.f32.gmra.mxu0 %v5341
    %v5961 = vpop.f32.mrf.mxu0
    %v5962 = vadd.f32 %v5831, %v5961
    %5963 = vmatmul.f32.gmra.mxu0 %v5345
    %v5964 = vpop.f32.mrf.mxu0
    %v5965 = vadd.f32 %v5834, %v5964
    %5966 = vmatmul.f32.gmra.mxu0 %v5349
    %v5967 = vpop.f32.mrf.mxu0
    %v5968 = vadd.f32 %v5837, %v5967
    %5969 = vmatmul.f32.gmra.mxu0 %v5353
    %v5970 = vpop.f32.mrf.mxu0
    %v5971 = vadd.f32 %v5840, %v5970
    %5972 = vmatmul.f32.gmra.mxu0 %v5357
    %v5973 = vpop.f32.mrf.mxu0
    %v5974 = vadd.f32 %v5843, %v5973
    %5975 = vmatmul.f32.gmra.mxu0 %v5361
    %v5976 = vpop.f32.mrf.mxu0
    %v5977 = vadd.f32 %v5846, %v5976
    %5978 = vmatmul.f32.gmra.mxu0 %v5365
    %v5979 = vpop.f32.mrf.mxu0
    %v5980 = vadd.f32 %v5849, %v5979
    %5981 = vmatmul.f32.gmra.mxu0 %v5369
    %v5982 = vpop.f32.mrf.mxu0
    %v5983 = vadd.f32 %v5852, %v5982
    %5984 = vmatmul.f32.gmra.mxu0 %v5373
    %v5985 = vpop.f32.mrf.mxu0
    %v5986 = vadd.f32 %v5855, %v5985
    %5987 = vmatmul.f32.gmra.mxu0 %v5377
    %v5988 = vpop.f32.mrf.mxu0
    %v5989 = vadd.f32 %v5858, %v5988
    %5990 = vmatmul.f32.gmra.mxu0 %v5381
    %v5991 = vpop.f32.mrf.mxu0
    %v5992 = vadd.f32 %v5861, %v5991
    %5993 = vmatmul.f32.gmra.mxu0 %v5385
    %v5994 = vpop.f32.mrf.mxu0
    %v5995 = vadd.f32 %v5864, %v5994
    %5996 = vmatmul.f32.gmra.mxu0 %v5389
    %v5997 = vpop.f32.mrf.mxu0
    %v5998 = vadd.f32 %v5867, %v5997
    %5999 = vmatmul.f32.gmra.mxu0 %v5393
    %v6000 = vpop.f32.mrf.mxu0
    %v6001 = vadd.f32 %v5870, %v6000
    %6002 = vmatmul.f32.gmra.mxu0 %v5397
    %v6003 = vpop.f32.mrf.mxu0
    %v6004 = vadd.f32 %v5873, %v6003
    %6005 = vmatmul.f32.gmra.mxu0 %v5401
    %v6006 = vpop.f32.mrf.mxu0
    %v6007 = vadd.f32 %v5876, %v6006
    %6008 = vmatmul.f32.gmra.mxu0 %v5405
    %v6009 = vpop.f32.mrf.mxu0
    %v6010 = vadd.f32 %v5879, %v6009
    %6011 = vmatmul.f32.gmra.mxu0 %v5409
    %v6012 = vpop.f32.mrf.mxu0
    %v6013 = vadd.f32 %v5882, %v6012
    %6014 = vmatmul.f32.gmra.mxu0 %v5413
    %v6015 = vpop.f32.mrf.mxu0
    %v6016 = vadd.f32 %v5885, %v6015
    %6017 = vmatmul.f32.gmra.mxu0 %v5417
    %v6018 = vpop.f32.mrf.mxu0
    %v6019 = vadd.f32 %v5888, %v6018
    %6020 = vmatmul.f32.gmra.mxu0 %v5421
    %v6021 = vpop.f32.mrf.mxu0
    %v6022 = vadd.f32 %v5891, %v6021
    %6023 = vmatmul.f32.gmra.mxu0 %v5425
    %v6024 = vpop.f32.mrf.mxu0
    %v6025 = vadd.f32 %v5894, %v6024
    %6026 = vmatmul.f32.gmra.mxu0 %v5429
    %v6027 = vpop.f32.mrf.mxu0
    %v6028 = vadd.f32 %v5897, %v6027
    %6029 = vmatmul.f32.gmra.mxu0 %v5433
    %v6030 = vpop.f32.mrf.mxu0
    %v6031 = vadd.f32 %v5900, %v6030
    %6032 = vmatmul.f32.gmra.mxu0 %v5437
    %v6033 = vpop.f32.mrf.mxu0
    %v6034 = vadd.f32 %v5903, %v6033
    %6035 = vmatmul.f32.gmra.mxu0 %v5441
    %v6036 = vpop.f32.mrf.mxu0
    %v6037 = vadd.f32 %v5906, %v6036
    %6038 = vmatmul.f32.gmra.mxu0 %v5445
    %v6039 = vpop.f32.mrf.mxu0
    %v6040 = vadd.f32 %v5909, %v6039
    %6041 = vmatmul.f32.gmra.mxu0 %v5449
    %v6042 = vpop.f32.mrf.mxu0
    %v6043 = vadd.f32 %v5912, %v6042
    %6044 = vmatmul.f32.gmra.mxu0 %v5453
    %v6045 = vpop.f32.mrf.mxu0
    %v6046 = vadd.f32 %v5915, %v6045
    %6047 = vmatmul.f32.gmra.mxu0 %v5457
    %v6048 = vpop.f32.mrf.mxu0
    %v6049 = vadd.f32 %v5918, %v6048
    %6050 = vmatmul.f32.gmra.mxu0 %v5461
    %v6051 = vpop.f32.mrf.mxu0
    %v6052 = vadd.f32 %v5921, %v6051
    %6053 = vmatmul.f32.gmra.mxu0 %v5465
    %v6054 = vpop.f32.mrf.mxu0
    %v6055 = vadd.f32 %v5924, %v6054
    %6056 = vmatmul.f32.gmra.mxu0 %v5469
    %v6057 = vpop.f32.mrf.mxu0
    %v6058 = vadd.f32 %v5927, %v6057
    %6059 = vmatmul.f32.gmra.mxu0 %v5473
    %v6060 = vpop.f32.mrf.mxu0
    %v6061 = vadd.f32 %v5930, %v6060
    %6062 = vmatmul.f32.gmra.mxu0 %v5477
    %v6063 = vpop.f32.mrf.mxu0
    %v6064 = vadd.f32 %v5933, %v6063
    %6065 = vdwg.mxu0
    %6066 = vmatpush.msra.mxu0 %v4679
    %6067 = vmatpush.msra.mxu0 %v4678
    %6068 = vmatpush.msra.mxu0 %v4677
    %6069 = vmatpush.msra.mxu0 %v4676
    %6070 = vmatpush.msra.mxu0 %v4675
    %6071 = vmatpush.msra.mxu0 %v4674
    %6072 = vmatpush.msra.mxu0 %v4673
    %6073 = vmatpush.msra.mxu0 %v4672
    %6074 = vmatpush.msra.mxu0 %v4671
    %6075 = vmatpush.msra.mxu0 %v4670
    %6076 = vmatpush.msra.mxu0 %v4669
    %6077 = vmatpush.msra.mxu0 %v4668
    %6078 = vmatpush.msra.mxu0 %v4667
    %6079 = vmatpush.msra.mxu0 %v4666
    %6080 = vmatpush.msra.mxu0 %v4665
    %6081 = vmatpush.msra.mxu0 %v4664
    %6082 = vmatmul.f32.gmra.mxu0 %v4512
    %v6083 = vpop.f32.mrf.mxu0
    %v6084 = vadd.f32 %v5953, %v6083
    %6085 = vmatmul.f32.gmra.mxu0 %v4516
    %v6086 = vpop.f32.mrf.mxu0
    %v6087 = vadd.f32 %v5956, %v6086
    %6088 = vmatmul.f32.gmra.mxu0 %v4520
    %v6089 = vpop.f32.mrf.mxu0
    %v6090 = vadd.f32 %v5959, %v6089
    %6091 = vmatmul.f32.gmra.mxu0 %v4524
    %v6092 = vpop.f32.mrf.mxu0
    %v6093 = vadd.f32 %v5962, %v6092
    %6094 = vmatmul.f32.gmra.mxu0 %v4528
    %v6095 = vpop.f32.mrf.mxu0
    %v6096 = vadd.f32 %v5965, %v6095
    %6097 = vmatmul.f32.gmra.mxu0 %v4532
    %v6098 = vpop.f32.mrf.mxu0
    %v6099 = vadd.f32 %v5968, %v6098
    %6100 = vmatmul.f32.gmra.mxu0 %v4536
    %v6101 = vpop.f32.mrf.mxu0
    %v6102 = vadd.f32 %v5971, %v6101
    %6103 = vmatmul.f32.gmra.mxu0 %v4540
    %v6104 = vpop.f32.mrf.mxu0
    %v6105 = vadd.f32 %v5974, %v6104
    %6106 = vmatmul.f32.gmra.mxu0 %v4544
    %v6107 = vpop.f32.mrf.mxu0
    %v6108 = vadd.f32 %v5977, %v6107
    %6109 = vmatmul.f32.gmra.mxu0 %v4548
    %v6110 = vpop.f32.mrf.mxu0
    %v6111 = vadd.f32 %v5980, %v6110
    %6112 = vmatmul.f32.gmra.mxu0 %v4552
    %v6113 = vpop.f32.mrf.mxu0
    %v6114 = vadd.f32 %v5983, %v6113
    %6115 = vmatmul.f32.gmra.mxu0 %v4556
    %v6116 = vpop.f32.mrf.mxu0
    %v6117 = vadd.f32 %v5986, %v6116
    %6118 = vmatmul.f32.gmra.mxu0 %v4560
    %v6119 = vpop.f32.mrf.mxu0
    %v6120 = vadd.f32 %v5989, %v6119
    %6121 = vmatmul.f32.gmra.mxu0 %v4564
    %v6122 = vpop.f32.mrf.mxu0
    %v6123 = vadd.f32 %v5992, %v6122
    %6124 = vmatmul.f32.gmra.mxu0 %v4568
    %v6125 = vpop.f32.mrf.mxu0
    %v6126 = vadd.f32 %v5995, %v6125
    %6127 = vmatmul.f32.gmra.mxu0 %v4572
    %v6128 = vpop.f32.mrf.mxu0
    %v6129 = vadd.f32 %v5998, %v6128
    %6130 = vmatmul.f32.gmra.mxu0 %v4576
    %v6131 = vpop.f32.mrf.mxu0
    %v6132 = vadd.f32 %v6001, %v6131
    %6133 = vmatmul.f32.gmra.mxu0 %v4580
    %v6134 = vpop.f32.mrf.mxu0
    %v6135 = vadd.f32 %v6004, %v6134
    %6136 = vmatmul.f32.gmra.mxu0 %v4584
    %v6137 = vpop.f32.mrf.mxu0
    %v6138 = vadd.f32 %v6007, %v6137
    %6139 = vmatmul.f32.gmra.mxu0 %v4588
    %v6140 = vpop.f32.mrf.mxu0
    %v6141 = vadd.f32 %v6010, %v6140
    %6142 = vmatmul.f32.gmra.mxu0 %v4592
    %v6143 = vpop.f32.mrf.mxu0
    %v6144 = vadd.f32 %v6013, %v6143
    %6145 = vmatmul.f32.gmra.mxu0 %v4596
    %v6146 = vpop.f32.mrf.mxu0
    %v6147 = vadd.f32 %v6016, %v6146
    %6148 = vmatmul.f32.gmra.mxu0 %v4600
    %v6149 = vpop.f32.mrf.mxu0
    %v6150 = vadd.f32 %v6019, %v6149
    %6151 = vmatmul.f32.gmra.mxu0 %v4604
    %v6152 = vpop.f32.mrf.mxu0
    %v6153 = vadd.f32 %v6022, %v6152
    %6154 = vmatmul.f32.gmra.mxu0 %v4608
    %v6155 = vpop.f32.mrf.mxu0
    %v6156 = vadd.f32 %v6025, %v6155
    %6157 = vmatmul.f32.gmra.mxu0 %v4612
    %v6158 = vpop.f32.mrf.mxu0
    %v6159 = vadd.f32 %v6028, %v6158
    %6160 = vmatmul.f32.gmra.mxu0 %v4616
    %v6161 = vpop.f32.mrf.mxu0
    %v6162 = vadd.f32 %v6031, %v6161
    %6163 = vmatmul.f32.gmra.mxu0 %v4620
    %v6164 = vpop.f32.mrf.mxu0
    %v6165 = vadd.f32 %v6034, %v6164
    %6166 = vmatmul.f32.gmra.mxu0 %v4624
    %v6167 = vpop.f32.mrf.mxu0
    %v6168 = vadd.f32 %v6037, %v6167
    %6169 = vmatmul.f32.gmra.mxu0 %v4628
    %v6170 = vpop.f32.mrf.mxu0
    %v6171 = vadd.f32 %v6040, %v6170
    %6172 = vmatmul.f32.gmra.mxu0 %v4632
    %v6173 = vpop.f32.mrf.mxu0
    %v6174 = vadd.f32 %v6043, %v6173
    %6175 = vmatmul.f32.gmra.mxu0 %v4636
    %v6176 = vpop.f32.mrf.mxu0
    %v6177 = vadd.f32 %v6046, %v6176
    %6178 = vmatmul.f32.gmra.mxu0 %v4640
    %v6179 = vpop.f32.mrf.mxu0
    %v6180 = vadd.f32 %v6049, %v6179
    %6181 = vmatmul.f32.gmra.mxu0 %v4644
    %v6182 = vpop.f32.mrf.mxu0
    %v6183 = vadd.f32 %v6052, %v6182
    %6184 = vmatmul.f32.gmra.mxu0 %v4648
    %v6185 = vpop.f32.mrf.mxu0
    %v6186 = vadd.f32 %v6055, %v6185
    %6187 = vmatmul.f32.gmra.mxu0 %v4652
    %v6188 = vpop.f32.mrf.mxu0
    %v6189 = vadd.f32 %v6058, %v6188
    %6190 = vmatmul.f32.gmra.mxu0 %v4656
    %v6191 = vpop.f32.mrf.mxu0
    %v6192 = vadd.f32 %v6061, %v6191
    %6193 = vmatmul.f32.gmra.mxu0 %v4660
    %v6194 = vpop.f32.mrf.mxu0
    %v6195 = vadd.f32 %v6064, %v6194
    %6196 = vdwg.mxu0
    %6197 = vmatpush.msra.mxu0 %v4695
    %6198 = vmatpush.msra.mxu0 %v4694
    %6199 = vmatpush.msra.mxu0 %v4693
    %6200 = vmatpush.msra.mxu0 %v4692
    %6201 = vmatpush.msra.mxu0 %v4691
    %6202 = vmatpush.msra.mxu0 %v4690
    %6203 = vmatpush.msra.mxu0 %v4689
    %6204 = vmatpush.msra.mxu0 %v4688
    %6205 = vmatpush.msra.mxu0 %v4687
    %6206 = vmatpush.msra.mxu0 %v4686
    %6207 = vmatpush.msra.mxu0 %v4685
    %6208 = vmatpush.msra.mxu0 %v4684
    %6209 = vmatpush.msra.mxu0 %v4683
    %6210 = vmatpush.msra.mxu0 %v4682
    %6211 = vmatpush.msra.mxu0 %v4681
    %6212 = vmatpush.msra.mxu0 %v4680
    %6213 = vmatmul.f32.gmra.mxu0 %v4513
    %v6214 = vpop.f32.mrf.mxu0
    %v6215 = vadd.f32 %v6084, %v6214
    %6216 = vmatmul.f32.gmra.mxu0 %v4517
    %v6217 = vpop.f32.mrf.mxu0
    %v6218 = vadd.f32 %v6087, %v6217
    %6219 = vmatmul.f32.gmra.mxu0 %v4521
    %v6220 = vpop.f32.mrf.mxu0
    %v6221 = vadd.f32 %v6090, %v6220
    %6222 = vmatmul.f32.gmra.mxu0 %v4525
    %v6223 = vpop.f32.mrf.mxu0
    %v6224 = vadd.f32 %v6093, %v6223
    %6225 = vmatmul.f32.gmra.mxu0 %v4529
    %v6226 = vpop.f32.mrf.mxu0
    %v6227 = vadd.f32 %v6096, %v6226
    %6228 = vmatmul.f32.gmra.mxu0 %v4533
    %v6229 = vpop.f32.mrf.mxu0
    %v6230 = vadd.f32 %v6099, %v6229
    %6231 = vmatmul.f32.gmra.mxu0 %v4537
    %v6232 = vpop.f32.mrf.mxu0
    %v6233 = vadd.f32 %v6102, %v6232
    %6234 = vmatmul.f32.gmra.mxu0 %v4541
    %v6235 = vpop.f32.mrf.mxu0
    %v6236 = vadd.f32 %v6105, %v6235
    %6237 = vmatmul.f32.gmra.mxu0 %v4545
    %v6238 = vpop.f32.mrf.mxu0
    %v6239 = vadd.f32 %v6108, %v6238
    %6240 = vmatmul.f32.gmra.mxu0 %v4549
    %v6241 = vpop.f32.mrf.mxu0
    %v6242 = vadd.f32 %v6111, %v6241
    %6243 = vmatmul.f32.gmra.mxu0 %v4553
    %v6244 = vpop.f32.mrf.mxu0
    %v6245 = vadd.f32 %v6114, %v6244
    %6246 = vmatmul.f32.gmra.mxu0 %v4557
    %v6247 = vpop.f32.mrf.mxu0
    %v6248 = vadd.f32 %v6117, %v6247
    %6249 = vmatmul.f32.gmra.mxu0 %v4561
    %v6250 = vpop.f32.mrf.mxu0
    %v6251 = vadd.f32 %v6120, %v6250
    %6252 = vmatmul.f32.gmra.mxu0 %v4565
    %v6253 = vpop.f32.mrf.mxu0
    %v6254 = vadd.f32 %v6123, %v6253
    %6255 = vmatmul.f32.gmra.mxu0 %v4569
    %v6256 = vpop.f32.mrf.mxu0
    %v6257 = vadd.f32 %v6126, %v6256
    %6258 = vmatmul.f32.gmra.mxu0 %v4573
    %v6259 = vpop.f32.mrf.mxu0
    %v6260 = vadd.f32 %v6129, %v6259
    %6261 = vmatmul.f32.gmra.mxu0 %v4577
    %v6262 = vpop.f32.mrf.mxu0
    %v6263 = vadd.f32 %v6132, %v6262
    %6264 = vmatmul.f32.gmra.mxu0 %v4581
    %v6265 = vpop.f32.mrf.mxu0
    %v6266 = vadd.f32 %v6135, %v6265
    %6267 = vmatmul.f32.gmra.mxu0 %v4585
    %v6268 = vpop.f32.mrf.mxu0
    %v6269 = vadd.f32 %v6138, %v6268
    %6270 = vmatmul.f32.gmra.mxu0 %v4589
    %v6271 = vpop.f32.mrf.mxu0
    %v6272 = vadd.f32 %v6141, %v6271
    %6273 = vmatmul.f32.gmra.mxu0 %v4593
    %v6274 = vpop.f32.mrf.mxu0
    %v6275 = vadd.f32 %v6144, %v6274
    %6276 = vmatmul.f32.gmra.mxu0 %v4597
    %v6277 = vpop.f32.mrf.mxu0
    %v6278 = vadd.f32 %v6147, %v6277
    %6279 = vmatmul.f32.gmra.mxu0 %v4601
    %v6280 = vpop.f32.mrf.mxu0
    %v6281 = vadd.f32 %v6150, %v6280
    %6282 = vmatmul.f32.gmra.mxu0 %v4605
    %v6283 = vpop.f32.mrf.mxu0
    %v6284 = vadd.f32 %v6153, %v6283
    %6285 = vmatmul.f32.gmra.mxu0 %v4609
    %v6286 = vpop.f32.mrf.mxu0
    %v6287 = vadd.f32 %v6156, %v6286
    %6288 = vmatmul.f32.gmra.mxu0 %v4613
    %v6289 = vpop.f32.mrf.mxu0
    %v6290 = vadd.f32 %v6159, %v6289
    %6291 = vmatmul.f32.gmra.mxu0 %v4617
    %v6292 = vpop.f32.mrf.mxu0
    %v6293 = vadd.f32 %v6162, %v6292
    %6294 = vmatmul.f32.gmra.mxu0 %v4621
    %v6295 = vpop.f32.mrf.mxu0
    %v6296 = vadd.f32 %v6165, %v6295
    %6297 = vmatmul.f32.gmra.mxu0 %v4625
    %v6298 = vpop.f32.mrf.mxu0
    %v6299 = vadd.f32 %v6168, %v6298
    %6300 = vmatmul.f32.gmra.mxu0 %v4629
    %v6301 = vpop.f32.mrf.mxu0
    %v6302 = vadd.f32 %v6171, %v6301
    %6303 = vmatmul.f32.gmra.mxu0 %v4633
    %v6304 = vpop.f32.mrf.mxu0
    %v6305 = vadd.f32 %v6174, %v6304
    %6306 = vmatmul.f32.gmra.mxu0 %v4637
    %v6307 = vpop.f32.mrf.mxu0
    %v6308 = vadd.f32 %v6177, %v6307
    %6309 = vmatmul.f32.gmra.mxu0 %v4641
    %v6310 = vpop.f32.mrf.mxu0
    %v6311 = vadd.f32 %v6180, %v6310
    %6312 = vmatmul.f32.gmra.mxu0 %v4645
    %v6313 = vpop.f32.mrf.mxu0
    %v6314 = vadd.f32 %v6183, %v6313
    %6315 = vmatmul.f32.gmra.mxu0 %v4649
    %v6316 = vpop.f32.mrf.mxu0
    %v6317 = vadd.f32 %v6186, %v6316
    %6318 = vmatmul.f32.gmra.mxu0 %v4653
    %v6319 = vpop.f32.mrf.mxu0
    %v6320 = vadd.f32 %v6189, %v6319
    %6321 = vmatmul.f32.gmra.mxu0 %v4657
    %v6322 = vpop.f32.mrf.mxu0
    %v6323 = vadd.f32 %v6192, %v6322
    %6324 = vmatmul.f32.gmra.mxu0 %v4661
    %v6325 = vpop.f32.mrf.mxu0
    %v6326 = vadd.f32 %v6195, %v6325
    %6327 = vdwg.mxu0
    %6328 = vmatpush.msra.mxu0 %v4711
    %6329 = vmatpush.msra.mxu0 %v4710
    %6330 = vmatpush.msra.mxu0 %v4709
    %6331 = vmatpush.msra.mxu0 %v4708
    %6332 = vmatpush.msra.mxu0 %v4707
    %6333 = vmatpush.msra.mxu0 %v4706
    %6334 = vmatpush.msra.mxu0 %v4705
    %6335 = vmatpush.msra.mxu0 %v4704
    %6336 = vmatpush.msra.mxu0 %v4703
    %6337 = vmatpush.msra.mxu0 %v4702
    %6338 = vmatpush.msra.mxu0 %v4701
    %6339 = vmatpush.msra.mxu0 %v4700
    %6340 = vmatpush.msra.mxu0 %v4699
    %6341 = vmatpush.msra.mxu0 %v4698
    %6342 = vmatpush.msra.mxu0 %v4697
    %6343 = vmatpush.msra.mxu0 %v4696
    %6344 = vmatmul.f32.gmra.mxu0 %v4514
    %v6345 = vpop.f32.mrf.mxu0
    %v6346 = vadd.f32 %v6215, %v6345
    %6347 = vmatmul.f32.gmra.mxu0 %v4518
    %v6348 = vpop.f32.mrf.mxu0
    %v6349 = vadd.f32 %v6218, %v6348
    %6350 = vmatmul.f32.gmra.mxu0 %v4522
    %v6351 = vpop.f32.mrf.mxu0
    %v6352 = vadd.f32 %v6221, %v6351
    %6353 = vmatmul.f32.gmra.mxu0 %v4526
    %v6354 = vpop.f32.mrf.mxu0
    %v6355 = vadd.f32 %v6224, %v6354
    %6356 = vmatmul.f32.gmra.mxu0 %v4530
    %v6357 = vpop.f32.mrf.mxu0
    %v6358 = vadd.f32 %v6227, %v6357
    %6359 = vmatmul.f32.gmra.mxu0 %v4534
    %v6360 = vpop.f32.mrf.mxu0
    %v6361 = vadd.f32 %v6230, %v6360
    %6362 = vmatmul.f32.gmra.mxu0 %v4538
    %v6363 = vpop.f32.mrf.mxu0
    %v6364 = vadd.f32 %v6233, %v6363
    %6365 = vmatmul.f32.gmra.mxu0 %v4542
    %v6366 = vpop.f32.mrf.mxu0
    %v6367 = vadd.f32 %v6236, %v6366
    %6368 = vmatmul.f32.gmra.mxu0 %v4546
    %v6369 = vpop.f32.mrf.mxu0
    %v6370 = vadd.f32 %v6239, %v6369
    %6371 = vmatmul.f32.gmra.mxu0 %v4550
    %v6372 = vpop.f32.mrf.mxu0
    %v6373 = vadd.f32 %v6242, %v6372
    %6374 = vmatmul.f32.gmra.mxu0 %v4554
    %v6375 = vpop.f32.mrf.mxu0
    %v6376 = vadd.f32 %v6245, %v6375
    %6377 = vmatmul.f32.gmra.mxu0 %v4558
    %v6378 = vpop.f32.mrf.mxu0
    %v6379 = vadd.f32 %v6248, %v6378
    %6380 = vmatmul.f32.gmra.mxu0 %v4562
    %v6381 = vpop.f32.mrf.mxu0
    %v6382 = vadd.f32 %v6251, %v6381
    %6383 = vmatmul.f32.gmra.mxu0 %v4566
    %v6384 = vpop.f32.mrf.mxu0
    %v6385 = vadd.f32 %v6254, %v6384
    %6386 = vmatmul.f32.gmra.mxu0 %v4570
    %v6387 = vpop.f32.mrf.mxu0
    %v6388 = vadd.f32 %v6257, %v6387
    %6389 = vmatmul.f32.gmra.mxu0 %v4574
    %v6390 = vpop.f32.mrf.mxu0
    %v6391 = vadd.f32 %v6260, %v6390
    %6392 = vmatmul.f32.gmra.mxu0 %v4578
    %v6393 = vpop.f32.mrf.mxu0
    %v6394 = vadd.f32 %v6263, %v6393
    %6395 = vmatmul.f32.gmra.mxu0 %v4582
    %v6396 = vpop.f32.mrf.mxu0
    %v6397 = vadd.f32 %v6266, %v6396
    %6398 = vmatmul.f32.gmra.mxu0 %v4586
    %v6399 = vpop.f32.mrf.mxu0
    %v6400 = vadd.f32 %v6269, %v6399
    %6401 = vmatmul.f32.gmra.mxu0 %v4590
    %v6402 = vpop.f32.mrf.mxu0
    %v6403 = vadd.f32 %v6272, %v6402
    %6404 = vmatmul.f32.gmra.mxu0 %v4594
    %v6405 = vpop.f32.mrf.mxu0
    %v6406 = vadd.f32 %v6275, %v6405
    %6407 = vmatmul.f32.gmra.mxu0 %v4598
    %v6408 = vpop.f32.mrf.mxu0
    %v6409 = vadd.f32 %v6278, %v6408
    %6410 = vmatmul.f32.gmra.mxu0 %v4602
    %v6411 = vpop.f32.mrf.mxu0
    %v6412 = vadd.f32 %v6281, %v6411
    %6413 = vmatmul.f32.gmra.mxu0 %v4606
    %v6414 = vpop.f32.mrf.mxu0
    %v6415 = vadd.f32 %v6284, %v6414
    %6416 = vmatmul.f32.gmra.mxu0 %v4610
    %v6417 = vpop.f32.mrf.mxu0
    %v6418 = vadd.f32 %v6287, %v6417
    %6419 = vmatmul.f32.gmra.mxu0 %v4614
    %v6420 = vpop.f32.mrf.mxu0
    %v6421 = vadd.f32 %v6290, %v6420
    %6422 = vmatmul.f32.gmra.mxu0 %v4618
    %v6423 = vpop.f32.mrf.mxu0
    %v6424 = vadd.f32 %v6293, %v6423
    %6425 = vmatmul.f32.gmra.mxu0 %v4622
    %v6426 = vpop.f32.mrf.mxu0
    %v6427 = vadd.f32 %v6296, %v6426
    %6428 = vmatmul.f32.gmra.mxu0 %v4626
    %v6429 = vpop.f32.mrf.mxu0
    %v6430 = vadd.f32 %v6299, %v6429
    %6431 = vmatmul.f32.gmra.mxu0 %v4630
    %v6432 = vpop.f32.mrf.mxu0
    %v6433 = vadd.f32 %v6302, %v6432
    %6434 = vmatmul.f32.gmra.mxu0 %v4634
    %v6435 = vpop.f32.mrf.mxu0
    %v6436 = vadd.f32 %v6305, %v6435
    %6437 = vmatmul.f32.gmra.mxu0 %v4638
    %v6438 = vpop.f32.mrf.mxu0
    %v6439 = vadd.f32 %v6308, %v6438
    %6440 = vmatmul.f32.gmra.mxu0 %v4642
    %v6441 = vpop.f32.mrf.mxu0
    %v6442 = vadd.f32 %v6311, %v6441
    %6443 = vmatmul.f32.gmra.mxu0 %v4646
    %v6444 = vpop.f32.mrf.mxu0
    %v6445 = vadd.f32 %v6314, %v6444
    %6446 = vmatmul.f32.gmra.mxu0 %v4650
    %v6447 = vpop.f32.mrf.mxu0
    %v6448 = vadd.f32 %v6317, %v6447
    %6449 = vmatmul.f32.gmra.mxu0 %v4654
    %v6450 = vpop.f32.mrf.mxu0
    %v6451 = vadd.f32 %v6320, %v6450
    %6452 = vmatmul.f32.gmra.mxu0 %v4658
    %v6453 = vpop.f32.mrf.mxu0
    %v6454 = vadd.f32 %v6323, %v6453
    %6455 = vmatmul.f32.gmra.mxu0 %v4662
    %v6456 = vpop.f32.mrf.mxu0
    %v6457 = vadd.f32 %v6326, %v6456
    %6458 = vdwg.mxu0
    %6459 = vmatpush.msra.mxu0 %v4727
    %6460 = vmatpush.msra.mxu0 %v4726
    %6461 = vmatpush.msra.mxu0 %v4725
    %6462 = vmatpush.msra.mxu0 %v4724
    %6463 = vmatpush.msra.mxu0 %v4723
    %6464 = vmatpush.msra.mxu0 %v4722
    %6465 = vmatpush.msra.mxu0 %v4721
    %6466 = vmatpush.msra.mxu0 %v4720
    %6467 = vmatpush.msra.mxu0 %v4719
    %6468 = vmatpush.msra.mxu0 %v4718
    %6469 = vmatpush.msra.mxu0 %v4717
    %6470 = vmatpush.msra.mxu0 %v4716
    %6471 = vmatpush.msra.mxu0 %v4715
    %6472 = vmatpush.msra.mxu0 %v4714
    %6473 = vmatpush.msra.mxu0 %v4713
    %6474 = vmatpush.msra.mxu0 %v4712
    %6475 = vmatmul.f32.gmra.mxu0 %v4515
    %v6476 = vpop.f32.mrf.mxu0
    %v6477 = vadd.f32 %v6346, %v6476
    %6478 = vmatmul.f32.gmra.mxu0 %v4519
    %v6479 = vpop.f32.mrf.mxu0
    %v6480 = vadd.f32 %v6349, %v6479
    %6481 = vmatmul.f32.gmra.mxu0 %v4523
    %v6482 = vpop.f32.mrf.mxu0
    %v6483 = vadd.f32 %v6352, %v6482
    %6484 = vmatmul.f32.gmra.mxu0 %v4527
    %v6485 = vpop.f32.mrf.mxu0
    %v6486 = vadd.f32 %v6355, %v6485
    %6487 = vmatmul.f32.gmra.mxu0 %v4531
    %v6488 = vpop.f32.mrf.mxu0
    %v6489 = vadd.f32 %v6358, %v6488
    %6490 = vmatmul.f32.gmra.mxu0 %v4535
    %v6491 = vpop.f32.mrf.mxu0
    %v6492 = vadd.f32 %v6361, %v6491
    %6493 = vmatmul.f32.gmra.mxu0 %v4539
    %v6494 = vpop.f32.mrf.mxu0
    %v6495 = vadd.f32 %v6364, %v6494
    %6496 = vmatmul.f32.gmra.mxu0 %v4543
    %v6497 = vpop.f32.mrf.mxu0
    %v6498 = vadd.f32 %v6367, %v6497
    %6499 = vmatmul.f32.gmra.mxu0 %v4547
    %v6500 = vpop.f32.mrf.mxu0
    %v6501 = vadd.f32 %v6370, %v6500
    %6502 = vmatmul.f32.gmra.mxu0 %v4551
    %v6503 = vpop.f32.mrf.mxu0
    %v6504 = vadd.f32 %v6373, %v6503
    %6505 = vmatmul.f32.gmra.mxu0 %v4555
    %v6506 = vpop.f32.mrf.mxu0
    %v6507 = vadd.f32 %v6376, %v6506
    %6508 = vmatmul.f32.gmra.mxu0 %v4559
    %v6509 = vpop.f32.mrf.mxu0
    %v6510 = vadd.f32 %v6379, %v6509
    %6511 = vmatmul.f32.gmra.mxu0 %v4563
    %v6512 = vpop.f32.mrf.mxu0
    %v6513 = vadd.f32 %v6382, %v6512
    %6514 = vmatmul.f32.gmra.mxu0 %v4567
    %v6515 = vpop.f32.mrf.mxu0
    %v6516 = vadd.f32 %v6385, %v6515
    %6517 = vmatmul.f32.gmra.mxu0 %v4571
    %v6518 = vpop.f32.mrf.mxu0
    %v6519 = vadd.f32 %v6388, %v6518
    %6520 = vmatmul.f32.gmra.mxu0 %v4575
    %v6521 = vpop.f32.mrf.mxu0
    %v6522 = vadd.f32 %v6391, %v6521
    %6523 = vmatmul.f32.gmra.mxu0 %v4579
    %v6524 = vpop.f32.mrf.mxu0
    %v6525 = vadd.f32 %v6394, %v6524
    %6526 = vmatmul.f32.gmra.mxu0 %v4583
    %v6527 = vpop.f32.mrf.mxu0
    %v6528 = vadd.f32 %v6397, %v6527
    %6529 = vmatmul.f32.gmra.mxu0 %v4587
    %v6530 = vpop.f32.mrf.mxu0
    %v6531 = vadd.f32 %v6400, %v6530
    %6532 = vmatmul.f32.gmra.mxu0 %v4591
    %v6533 = vpop.f32.mrf.mxu0
    %v6534 = vadd.f32 %v6403, %v6533
    %6535 = vmatmul.f32.gmra.mxu0 %v4595
    %v6536 = vpop.f32.mrf.mxu0
    %v6537 = vadd.f32 %v6406, %v6536
    %6538 = vmatmul.f32.gmra.mxu0 %v4599
    %v6539 = vpop.f32.mrf.mxu0
    %v6540 = vadd.f32 %v6409, %v6539
    %6541 = vmatmul.f32.gmra.mxu0 %v4603
    %v6542 = vpop.f32.mrf.mxu0
    %v6543 = vadd.f32 %v6412, %v6542
    %6544 = vmatmul.f32.gmra.mxu0 %v4607
    %v6545 = vpop.f32.mrf.mxu0
    %v6546 = vadd.f32 %v6415, %v6545
    %6547 = vmatmul.f32.gmra.mxu0 %v4611
    %v6548 = vpop.f32.mrf.mxu0
    %v6549 = vadd.f32 %v6418, %v6548
    %6550 = vmatmul.f32.gmra.mxu0 %v4615
    %v6551 = vpop.f32.mrf.mxu0
    %v6552 = vadd.f32 %v6421, %v6551
    %6553 = vmatmul.f32.gmra.mxu0 %v4619
    %v6554 = vpop.f32.mrf.mxu0
    %v6555 = vadd.f32 %v6424, %v6554
    %6556 = vmatmul.f32.gmra.mxu0 %v4623
    %v6557 = vpop.f32.mrf.mxu0
    %v6558 = vadd.f32 %v6427, %v6557
    %6559 = vmatmul.f32.gmra.mxu0 %v4627
    %v6560 = vpop.f32.mrf.mxu0
    %v6561 = vadd.f32 %v6430, %v6560
    %6562 = vmatmul.f32.gmra.mxu0 %v4631
    %v6563 = vpop.f32.mrf.mxu0
    %v6564 = vadd.f32 %v6433, %v6563
    %6565 = vmatmul.f32.gmra.mxu0 %v4635
    %v6566 = vpop.f32.mrf.mxu0
    %v6567 = vadd.f32 %v6436, %v6566
    %6568 = vmatmul.f32.gmra.mxu0 %v4639
    %v6569 = vpop.f32.mrf.mxu0
    %v6570 = vadd.f32 %v6439, %v6569
    %6571 = vmatmul.f32.gmra.mxu0 %v4643
    %v6572 = vpop.f32.mrf.mxu0
    %v6573 = vadd.f32 %v6442, %v6572
    %6574 = vmatmul.f32.gmra.mxu0 %v4647
    %v6575 = vpop.f32.mrf.mxu0
    %v6576 = vadd.f32 %v6445, %v6575
    %6577 = vmatmul.f32.gmra.mxu0 %v4651
    %v6578 = vpop.f32.mrf.mxu0
    %v6579 = vadd.f32 %v6448, %v6578
    %6580 = vmatmul.f32.gmra.mxu0 %v4655
    %v6581 = vpop.f32.mrf.mxu0
    %v6582 = vadd.f32 %v6451, %v6581
    %6583 = vmatmul.f32.gmra.mxu0 %v4659
    %v6584 = vpop.f32.mrf.mxu0
    %v6585 = vadd.f32 %v6454, %v6584
    %6586 = vmatmul.f32.gmra.mxu0 %v4663
    %v6587 = vpop.f32.mrf.mxu0
    %v6588 = vadd.f32 %v6457, %v6587
    %6589 = vdwg.mxu0
    %v6590 = vld [vmem:[#allocation10 + $0x40] sm:$0xff]
    %v6591 = vld [vmem:[#allocation10 + $0x48] sm:$0xff]
    %v6592 = vld [vmem:[#allocation10 + $0x50] sm:$0xff]
    %v6593 = vld [vmem:[#allocation10 + $0x58] sm:$0xff]
    %v6594 = vld [vmem:[#allocation10 + $0xc0] sm:$0xff]
    %v6595 = vld [vmem:[#allocation10 + $0xc8] sm:$0xff]
    %v6596 = vld [vmem:[#allocation10 + $0xd0] sm:$0xff]
    %v6597 = vld [vmem:[#allocation10 + $0xd8] sm:$0xff]
    %v6598 = vld [vmem:[#allocation10 + $0x140] sm:$0xff]
    %v6599 = vld [vmem:[#allocation10 + $0x148] sm:$0xff]
    %v6600 = vld [vmem:[#allocation10 + $0x150] sm:$0xff]
    %v6601 = vld [vmem:[#allocation10 + $0x158] sm:$0xff]
    %v6602 = vld [vmem:[#allocation10 + $0x1c0] sm:$0xff]
    %v6603 = vld [vmem:[#allocation10 + $0x1c8] sm:$0xff]
    %v6604 = vld [vmem:[#allocation10 + $0x1d0] sm:$0xff]
    %v6605 = vld [vmem:[#allocation10 + $0x1d8] sm:$0xff]
    %v6606 = vld [vmem:[#allocation10 + $0x240] sm:$0xff]
    %v6607 = vld [vmem:[#allocation10 + $0x248] sm:$0xff]
    %v6608 = vld [vmem:[#allocation10 + $0x250] sm:$0xff]
    %v6609 = vld [vmem:[#allocation10 + $0x258] sm:$0xff]
    %v6610 = vld [vmem:[#allocation10 + $0x2c0] sm:$0xff]
    %v6611 = vld [vmem:[#allocation10 + $0x2c8] sm:$0xff]
    %v6612 = vld [vmem:[#allocation10 + $0x2d0] sm:$0xff]
    %v6613 = vld [vmem:[#allocation10 + $0x2d8] sm:$0xff]
    %v6614 = vld [vmem:[#allocation10 + $0x340] sm:$0xff]
    %v6615 = vld [vmem:[#allocation10 + $0x348] sm:$0xff]
    %v6616 = vld [vmem:[#allocation10 + $0x350] sm:$0xff]
    %v6617 = vld [vmem:[#allocation10 + $0x358] sm:$0xff]
    %v6618 = vld [vmem:[#allocation10 + $0x3c0] sm:$0xff]
    %v6619 = vld [vmem:[#allocation10 + $0x3c8] sm:$0xff]
    %v6620 = vld [vmem:[#allocation10 + $0x3d0] sm:$0xff]
    %v6621 = vld [vmem:[#allocation10 + $0x3d8] sm:$0xff]
    %v6622 = vld [vmem:[#allocation10 + $0x440] sm:$0xff]
    %v6623 = vld [vmem:[#allocation10 + $0x448] sm:$0xff]
    %v6624 = vld [vmem:[#allocation10 + $0x450] sm:$0xff]
    %v6625 = vld [vmem:[#allocation10 + $0x458] sm:$0xff]
    %v6626 = vld [vmem:[#allocation10 + $0x4c0] sm:$0xff]
    %v6627 = vld [vmem:[#allocation10 + $0x4c8] sm:$0xff]
    %v6628 = vld [vmem:[#allocation10 + $0x4d0] sm:$0xff]
    %v6629 = vld [vmem:[#allocation10 + $0x4d8] sm:$0xff]
    %v6630 = vld [vmem:[#allocation10 + $0x540] sm:$0xff]
    %v6631 = vld [vmem:[#allocation10 + $0x548] sm:$0xff]
    %v6632 = vld [vmem:[#allocation10 + $0x550] sm:$0xff]
    %v6633 = vld [vmem:[#allocation10 + $0x558] sm:$0xff]
    %v6634 = vld [vmem:[#allocation10 + $0x5c0] sm:$0xff]
    %v6635 = vld [vmem:[#allocation10 + $0x5c8] sm:$0xff]
    %v6636 = vld [vmem:[#allocation10 + $0x5d0] sm:$0xff]
    %v6637 = vld [vmem:[#allocation10 + $0x5d8] sm:$0xff]
    %v6638 = vld [vmem:[#allocation10 + $0x640] sm:$0xff]
    %v6639 = vld [vmem:[#allocation10 + $0x648] sm:$0xff]
    %v6640 = vld [vmem:[#allocation10 + $0x650] sm:$0xff]
    %v6641 = vld [vmem:[#allocation10 + $0x658] sm:$0xff]
    %v6642 = vld [vmem:[#allocation10 + $0x6c0] sm:$0xff]
    %v6643 = vld [vmem:[#allocation10 + $0x6c8] sm:$0xff]
    %v6644 = vld [vmem:[#allocation10 + $0x6d0] sm:$0xff]
    %v6645 = vld [vmem:[#allocation10 + $0x6d8] sm:$0xff]
    %v6646 = vld [vmem:[#allocation10 + $0x740] sm:$0xff]
    %v6647 = vld [vmem:[#allocation10 + $0x748] sm:$0xff]
    %v6648 = vld [vmem:[#allocation10 + $0x750] sm:$0xff]
    %v6649 = vld [vmem:[#allocation10 + $0x758] sm:$0xff]
    %v6650 = vld [vmem:[#allocation10 + $0x7c0] sm:$0xff]
    %v6651 = vld [vmem:[#allocation10 + $0x7c8] sm:$0xff]
    %v6652 = vld [vmem:[#allocation10 + $0x7d0] sm:$0xff]
    %v6653 = vld [vmem:[#allocation10 + $0x7d8] sm:$0xff]
    %v6654 = vld [vmem:[%s9 + $0x8] sm:$0xf]
    %v6656 = vperm.slane %v6654, 0
    %v6657 = vperm.slane %v6654, 1
    %v6658 = vperm.slane %v6654, 2
    %v6659 = vperm.slane %v6654, 3
    %6664 = vmatpush.msra.mxu0 %v6650
    %6665 = vmatpush.msra.mxu0 %v6646
    %6666 = vmatpush.msra.mxu0 %v6642
    %6667 = vmatpush.msra.mxu0 %v6638
    %6668 = vmatpush.msra.mxu0 %v6634
    %6669 = vmatpush.msra.mxu0 %v6630
    %6670 = vmatpush.msra.mxu0 %v6626
    %6671 = vmatpush.msra.mxu0 %v6622
    %6672 = vmatpush.msra.mxu0 %v6618
    %6673 = vmatpush.msra.mxu0 %v6614
    %6674 = vmatpush.msra.mxu0 %v6610
    %6675 = vmatpush.msra.mxu0 %v6606
    %6676 = vmatpush.msra.mxu0 %v6602
    %6677 = vmatpush.msra.mxu0 %v6598
    %6678 = vmatpush.msra.mxu0 %v6594
    %6679 = vmatpush.msra.mxu0 %v6590
    %6680 = vmatmul.f32.gmra.mxu0 %v3876
    %v6681 = vpop.f32.mrf.mxu0
    %v6682 = vadd.f32 %v6656, %v6681
    %6683 = vmatmul.f32.gmra.mxu0 %v3877
    %v6684 = vpop.f32.mrf.mxu0
    %v6685 = vadd.f32 %v6656, %v6684
    %6686 = vmatmul.f32.gmra.mxu0 %v3878
    %v6687 = vpop.f32.mrf.mxu0
    %v6688 = vadd.f32 %v6656, %v6687
    %6689 = vmatmul.f32.gmra.mxu0 %v3879
    %v6690 = vpop.f32.mrf.mxu0
    %v6691 = vadd.f32 %v6656, %v6690
    %6692 = vmatmul.f32.gmra.mxu0 %v3880
    %v6693 = vpop.f32.mrf.mxu0
    %v6694 = vadd.f32 %v6656, %v6693
    %6695 = vmatmul.f32.gmra.mxu0 %v3881
    %v6696 = vpop.f32.mrf.mxu0
    %v6697 = vadd.f32 %v6656, %v6696
    %6698 = vmatmul.f32.gmra.mxu0 %v3882
    %v6699 = vpop.f32.mrf.mxu0
    %v6700 = vadd.f32 %v6656, %v6699
    %6701 = vmatmul.f32.gmra.mxu0 %v3883
    %v6702 = vpop.f32.mrf.mxu0
    %v6703 = vadd.f32 %v6656, %v6702
    %6704 = vmatmul.f32.gmra.mxu0 %v3884
    %v6705 = vpop.f32.mrf.mxu0
    %v6706 = vadd.f32 %v6656, %v6705
    %6707 = vmatmul.f32.gmra.mxu0 %v3885
    %v6708 = vpop.f32.mrf.mxu0
    %v6709 = vadd.f32 %v6656, %v6708
    %6710 = vmatmul.f32.gmra.mxu0 %v3886
    %v6711 = vpop.f32.mrf.mxu0
    %v6712 = vadd.f32 %v6656, %v6711
    %6713 = vmatmul.f32.gmra.mxu0 %v3887
    %v6714 = vpop.f32.mrf.mxu0
    %v6715 = vadd.f32 %v6656, %v6714
    %6716 = vmatmul.f32.gmra.mxu0 %v3888
    %v6717 = vpop.f32.mrf.mxu0
    %v6718 = vadd.f32 %v6656, %v6717
    %6719 = vmatmul.f32.gmra.mxu0 %v3889
    %v6720 = vpop.f32.mrf.mxu0
    %v6721 = vadd.f32 %v6656, %v6720
    %6722 = vmatmul.f32.gmra.mxu0 %v3890
    %v6723 = vpop.f32.mrf.mxu0
    %v6724 = vadd.f32 %v6656, %v6723
    %6725 = vmatmul.f32.gmra.mxu0 %v3891
    %v6726 = vpop.f32.mrf.mxu0
    %v6727 = vadd.f32 %v6656, %v6726
    %6728 = vmatmul.f32.gmra.mxu0 %v3892
    %v6729 = vpop.f32.mrf.mxu0
    %v6730 = vadd.f32 %v6656, %v6729
    %6731 = vmatmul.f32.gmra.mxu0 %v3893
    %v6732 = vpop.f32.mrf.mxu0
    %v6733 = vadd.f32 %v6656, %v6732
    %6734 = vmatmul.f32.gmra.mxu0 %v3894
    %v6735 = vpop.f32.mrf.mxu0
    %v6736 = vadd.f32 %v6656, %v6735
    %6737 = vmatmul.f32.gmra.mxu0 %v3895
    %v6738 = vpop.f32.mrf.mxu0
    %v6739 = vadd.f32 %v6656, %v6738
    %6740 = vmatmul.f32.gmra.mxu0 %v3896
    %v6741 = vpop.f32.mrf.mxu0
    %v6742 = vadd.f32 %v6656, %v6741
    %6743 = vmatmul.f32.gmra.mxu0 %v3897
    %v6744 = vpop.f32.mrf.mxu0
    %v6745 = vadd.f32 %v6656, %v6744
    %6746 = vmatmul.f32.gmra.mxu0 %v3898
    %v6747 = vpop.f32.mrf.mxu0
    %v6748 = vadd.f32 %v6656, %v6747
    %6749 = vmatmul.f32.gmra.mxu0 %v3899
    %v6750 = vpop.f32.mrf.mxu0
    %v6751 = vadd.f32 %v6656, %v6750
    %6752 = vmatmul.f32.gmra.mxu0 %v3900
    %v6753 = vpop.f32.mrf.mxu0
    %v6754 = vadd.f32 %v6656, %v6753
    %6755 = vmatmul.f32.gmra.mxu0 %v3901
    %v6756 = vpop.f32.mrf.mxu0
    %v6757 = vadd.f32 %v6656, %v6756
    %6758 = vmatmul.f32.gmra.mxu0 %v3902
    %v6759 = vpop.f32.mrf.mxu0
    %v6760 = vadd.f32 %v6656, %v6759
    %6761 = vmatmul.f32.gmra.mxu0 %v3903
    %v6762 = vpop.f32.mrf.mxu0
    %v6763 = vadd.f32 %v6656, %v6762
    %6764 = vmatmul.f32.gmra.mxu0 %v3904
    %v6765 = vpop.f32.mrf.mxu0
    %v6766 = vadd.f32 %v6656, %v6765
    %6767 = vmatmul.f32.gmra.mxu0 %v3905
    %v6768 = vpop.f32.mrf.mxu0
    %v6769 = vadd.f32 %v6656, %v6768
    %6770 = vmatmul.f32.gmra.mxu0 %v3906
    %v6771 = vpop.f32.mrf.mxu0
    %v6772 = vadd.f32 %v6656, %v6771
    %6773 = vmatmul.f32.gmra.mxu0 %v3907
    %v6774 = vpop.f32.mrf.mxu0
    %v6775 = vadd.f32 %v6656, %v6774
    %6776 = vmatmul.f32.gmra.mxu0 %v3908
    %v6777 = vpop.f32.mrf.mxu0
    %v6778 = vadd.f32 %v6656, %v6777
    %6779 = vmatmul.f32.gmra.mxu0 %v3909
    %v6780 = vpop.f32.mrf.mxu0
    %v6781 = vadd.f32 %v6656, %v6780
    %6782 = vmatmul.f32.gmra.mxu0 %v3910
    %v6783 = vpop.f32.mrf.mxu0
    %v6784 = vadd.f32 %v6656, %v6783
    %6785 = vmatmul.f32.gmra.mxu0 %v3911
    %v6786 = vpop.f32.mrf.mxu0
    %v6787 = vadd.f32 %v6656, %v6786
    %6788 = vmatmul.f32.gmra.mxu0 %v3912
    %v6789 = vpop.f32.mrf.mxu0
    %v6790 = vadd.f32 %v6656, %v6789
    %6791 = vmatmul.f32.gmra.mxu0 %v3913
    %v6792 = vpop.f32.mrf.mxu0
    %v6793 = vadd.f32 %v6656, %v6792
    %6794 = vdwg.mxu0
    %6795 = vmatpush.msra.mxu0 %v6651
    %6796 = vmatpush.msra.mxu0 %v6647
    %6797 = vmatpush.msra.mxu0 %v6643
    %6798 = vmatpush.msra.mxu0 %v6639
    %6799 = vmatpush.msra.mxu0 %v6635
    %6800 = vmatpush.msra.mxu0 %v6631
    %6801 = vmatpush.msra.mxu0 %v6627
    %6802 = vmatpush.msra.mxu0 %v6623
    %6803 = vmatpush.msra.mxu0 %v6619
    %6804 = vmatpush.msra.mxu0 %v6615
    %6805 = vmatpush.msra.mxu0 %v6611
    %6806 = vmatpush.msra.mxu0 %v6607
    %6807 = vmatpush.msra.mxu0 %v6603
    %6808 = vmatpush.msra.mxu0 %v6599
    %6809 = vmatpush.msra.mxu0 %v6595
    %6810 = vmatpush.msra.mxu0 %v6591
    %6811 = vmatmul.f32.gmra.mxu0 %v3876
    %v6812 = vpop.f32.mrf.mxu0
    %v6813 = vadd.f32 %v6657, %v6812
    %6814 = vmatmul.f32.gmra.mxu0 %v3877
    %v6815 = vpop.f32.mrf.mxu0
    %v6816 = vadd.f32 %v6657, %v6815
    %6817 = vmatmul.f32.gmra.mxu0 %v3878
    %v6818 = vpop.f32.mrf.mxu0
    %v6819 = vadd.f32 %v6657, %v6818
    %6820 = vmatmul.f32.gmra.mxu0 %v3879
    %v6821 = vpop.f32.mrf.mxu0
    %v6822 = vadd.f32 %v6657, %v6821
    %6823 = vmatmul.f32.gmra.mxu0 %v3880
    %v6824 = vpop.f32.mrf.mxu0
    %v6825 = vadd.f32 %v6657, %v6824
    %6826 = vmatmul.f32.gmra.mxu0 %v3881
    %v6827 = vpop.f32.mrf.mxu0
    %v6828 = vadd.f32 %v6657, %v6827
    %6829 = vmatmul.f32.gmra.mxu0 %v3882
    %v6830 = vpop.f32.mrf.mxu0
    %v6831 = vadd.f32 %v6657, %v6830
    %6832 = vmatmul.f32.gmra.mxu0 %v3883
    %v6833 = vpop.f32.mrf.mxu0
    %v6834 = vadd.f32 %v6657, %v6833
    %6835 = vmatmul.f32.gmra.mxu0 %v3884
    %v6836 = vpop.f32.mrf.mxu0
    %v6837 = vadd.f32 %v6657, %v6836
    %6838 = vmatmul.f32.gmra.mxu0 %v3885
    %v6839 = vpop.f32.mrf.mxu0
    %v6840 = vadd.f32 %v6657, %v6839
    %6841 = vmatmul.f32.gmra.mxu0 %v3886
    %v6842 = vpop.f32.mrf.mxu0
    %v6843 = vadd.f32 %v6657, %v6842
    %6844 = vmatmul.f32.gmra.mxu0 %v3887
    %v6845 = vpop.f32.mrf.mxu0
    %v6846 = vadd.f32 %v6657, %v6845
    %6847 = vmatmul.f32.gmra.mxu0 %v3888
    %v6848 = vpop.f32.mrf.mxu0
    %v6849 = vadd.f32 %v6657, %v6848
    %6850 = vmatmul.f32.gmra.mxu0 %v3889
    %v6851 = vpop.f32.mrf.mxu0
    %v6852 = vadd.f32 %v6657, %v6851
    %6853 = vmatmul.f32.gmra.mxu0 %v3890
    %v6854 = vpop.f32.mrf.mxu0
    %v6855 = vadd.f32 %v6657, %v6854
    %6856 = vmatmul.f32.gmra.mxu0 %v3891
    %v6857 = vpop.f32.mrf.mxu0
    %v6858 = vadd.f32 %v6657, %v6857
    %6859 = vmatmul.f32.gmra.mxu0 %v3892
    %v6860 = vpop.f32.mrf.mxu0
    %v6861 = vadd.f32 %v6657, %v6860
    %6862 = vmatmul.f32.gmra.mxu0 %v3893
    %v6863 = vpop.f32.mrf.mxu0
    %v6864 = vadd.f32 %v6657, %v6863
    %6865 = vmatmul.f32.gmra.mxu0 %v3894
    %v6866 = vpop.f32.mrf.mxu0
    %v6867 = vadd.f32 %v6657, %v6866
    %6868 = vmatmul.f32.gmra.mxu0 %v3895
    %v6869 = vpop.f32.mrf.mxu0
    %v6870 = vadd.f32 %v6657, %v6869
    %6871 = vmatmul.f32.gmra.mxu0 %v3896
    %v6872 = vpop.f32.mrf.mxu0
    %v6873 = vadd.f32 %v6657, %v6872
    %6874 = vmatmul.f32.gmra.mxu0 %v3897
    %v6875 = vpop.f32.mrf.mxu0
    %v6876 = vadd.f32 %v6657, %v6875
    %6877 = vmatmul.f32.gmra.mxu0 %v3898
    %v6878 = vpop.f32.mrf.mxu0
    %v6879 = vadd.f32 %v6657, %v6878
    %6880 = vmatmul.f32.gmra.mxu0 %v3899
    %v6881 = vpop.f32.mrf.mxu0
    %v6882 = vadd.f32 %v6657, %v6881
    %6883 = vmatmul.f32.gmra.mxu0 %v3900
    %v6884 = vpop.f32.mrf.mxu0
    %v6885 = vadd.f32 %v6657, %v6884
    %6886 = vmatmul.f32.gmra.mxu0 %v3901
    %v6887 = vpop.f32.mrf.mxu0
    %v6888 = vadd.f32 %v6657, %v6887
    %6889 = vmatmul.f32.gmra.mxu0 %v3902
    %v6890 = vpop.f32.mrf.mxu0
    %v6891 = vadd.f32 %v6657, %v6890
    %6892 = vmatmul.f32.gmra.mxu0 %v3903
    %v6893 = vpop.f32.mrf.mxu0
    %v6894 = vadd.f32 %v6657, %v6893
    %6895 = vmatmul.f32.gmra.mxu0 %v3904
    %v6896 = vpop.f32.mrf.mxu0
    %v6897 = vadd.f32 %v6657, %v6896
    %6898 = vmatmul.f32.gmra.mxu0 %v3905
    %v6899 = vpop.f32.mrf.mxu0
    %v6900 = vadd.f32 %v6657, %v6899
    %6901 = vmatmul.f32.gmra.mxu0 %v3906
    %v6902 = vpop.f32.mrf.mxu0
    %v6903 = vadd.f32 %v6657, %v6902
    %6904 = vmatmul.f32.gmra.mxu0 %v3907
    %v6905 = vpop.f32.mrf.mxu0
    %v6906 = vadd.f32 %v6657, %v6905
    %6907 = vmatmul.f32.gmra.mxu0 %v3908
    %v6908 = vpop.f32.mrf.mxu0
    %v6909 = vadd.f32 %v6657, %v6908
    %6910 = vmatmul.f32.gmra.mxu0 %v3909
    %v6911 = vpop.f32.mrf.mxu0
    %v6912 = vadd.f32 %v6657, %v6911
    %6913 = vmatmul.f32.gmra.mxu0 %v3910
    %v6914 = vpop.f32.mrf.mxu0
    %v6915 = vadd.f32 %v6657, %v6914
    %6916 = vmatmul.f32.gmra.mxu0 %v3911
    %v6917 = vpop.f32.mrf.mxu0
    %v6918 = vadd.f32 %v6657, %v6917
    %6919 = vmatmul.f32.gmra.mxu0 %v3912
    %v6920 = vpop.f32.mrf.mxu0
    %v6921 = vadd.f32 %v6657, %v6920
    %6922 = vmatmul.f32.gmra.mxu0 %v3913
    %v6923 = vpop.f32.mrf.mxu0
    %v6924 = vadd.f32 %v6657, %v6923
    %6925 = vdwg.mxu0
    %6926 = vmatpush.msra.mxu0 %v6652
    %6927 = vmatpush.msra.mxu0 %v6648
    %6928 = vmatpush.msra.mxu0 %v6644
    %6929 = vmatpush.msra.mxu0 %v6640
    %6930 = vmatpush.msra.mxu0 %v6636
    %6931 = vmatpush.msra.mxu0 %v6632
    %6932 = vmatpush.msra.mxu0 %v6628
    %6933 = vmatpush.msra.mxu0 %v6624
    %6934 = vmatpush.msra.mxu0 %v6620
    %6935 = vmatpush.msra.mxu0 %v6616
    %6936 = vmatpush.msra.mxu0 %v6612
    %6937 = vmatpush.msra.mxu0 %v6608
    %6938 = vmatpush.msra.mxu0 %v6604
    %6939 = vmatpush.msra.mxu0 %v6600
    %6940 = vmatpush.msra.mxu0 %v6596
    %6941 = vmatpush.msra.mxu0 %v6592
    %6942 = vmatmul.f32.gmra.mxu0 %v3876
    %v6943 = vpop.f32.mrf.mxu0
    %v6944 = vadd.f32 %v6658, %v6943
    %6945 = vmatmul.f32.gmra.mxu0 %v3877
    %v6946 = vpop.f32.mrf.mxu0
    %v6947 = vadd.f32 %v6658, %v6946
    %6948 = vmatmul.f32.gmra.mxu0 %v3878
    %v6949 = vpop.f32.mrf.mxu0
    %v6950 = vadd.f32 %v6658, %v6949
    %6951 = vmatmul.f32.gmra.mxu0 %v3879
    %v6952 = vpop.f32.mrf.mxu0
    %v6953 = vadd.f32 %v6658, %v6952
    %6954 = vmatmul.f32.gmra.mxu0 %v3880
    %v6955 = vpop.f32.mrf.mxu0
    %v6956 = vadd.f32 %v6658, %v6955
    %6957 = vmatmul.f32.gmra.mxu0 %v3881
    %v6958 = vpop.f32.mrf.mxu0
    %v6959 = vadd.f32 %v6658, %v6958
    %6960 = vmatmul.f32.gmra.mxu0 %v3882
    %v6961 = vpop.f32.mrf.mxu0
    %v6962 = vadd.f32 %v6658, %v6961
    %6963 = vmatmul.f32.gmra.mxu0 %v3883
    %v6964 = vpop.f32.mrf.mxu0
    %v6965 = vadd.f32 %v6658, %v6964
    %6966 = vmatmul.f32.gmra.mxu0 %v3884
    %v6967 = vpop.f32.mrf.mxu0
    %v6968 = vadd.f32 %v6658, %v6967
    %6969 = vmatmul.f32.gmra.mxu0 %v3885
    %v6970 = vpop.f32.mrf.mxu0
    %v6971 = vadd.f32 %v6658, %v6970
    %6972 = vmatmul.f32.gmra.mxu0 %v3886
    %v6973 = vpop.f32.mrf.mxu0
    %v6974 = vadd.f32 %v6658, %v6973
    %6975 = vmatmul.f32.gmra.mxu0 %v3887
    %v6976 = vpop.f32.mrf.mxu0
    %v6977 = vadd.f32 %v6658, %v6976
    %6978 = vmatmul.f32.gmra.mxu0 %v3888
    %v6979 = vpop.f32.mrf.mxu0
    %v6980 = vadd.f32 %v6658, %v6979
    %6981 = vmatmul.f32.gmra.mxu0 %v3889
    %v6982 = vpop.f32.mrf.mxu0
    %v6983 = vadd.f32 %v6658, %v6982
    %6984 = vmatmul.f32.gmra.mxu0 %v3890
    %v6985 = vpop.f32.mrf.mxu0
    %v6986 = vadd.f32 %v6658, %v6985
    %6987 = vmatmul.f32.gmra.mxu0 %v3891
    %v6988 = vpop.f32.mrf.mxu0
    %v6989 = vadd.f32 %v6658, %v6988
    %6990 = vmatmul.f32.gmra.mxu0 %v3892
    %v6991 = vpop.f32.mrf.mxu0
    %v6992 = vadd.f32 %v6658, %v6991
    %6993 = vmatmul.f32.gmra.mxu0 %v3893
    %v6994 = vpop.f32.mrf.mxu0
    %v6995 = vadd.f32 %v6658, %v6994
    %6996 = vmatmul.f32.gmra.mxu0 %v3894
    %v6997 = vpop.f32.mrf.mxu0
    %v6998 = vadd.f32 %v6658, %v6997
    %6999 = vmatmul.f32.gmra.mxu0 %v3895
    %v7000 = vpop.f32.mrf.mxu0
    %v7001 = vadd.f32 %v6658, %v7000
    %7002 = vmatmul.f32.gmra.mxu0 %v3896
    %v7003 = vpop.f32.mrf.mxu0
    %v7004 = vadd.f32 %v6658, %v7003
    %7005 = vmatmul.f32.gmra.mxu0 %v3897
    %v7006 = vpop.f32.mrf.mxu0
    %v7007 = vadd.f32 %v6658, %v7006
    %7008 = vmatmul.f32.gmra.mxu0 %v3898
    %v7009 = vpop.f32.mrf.mxu0
    %v7010 = vadd.f32 %v6658, %v7009
    %7011 = vmatmul.f32.gmra.mxu0 %v3899
    %v7012 = vpop.f32.mrf.mxu0
    %v7013 = vadd.f32 %v6658, %v7012
    %7014 = vmatmul.f32.gmra.mxu0 %v3900
    %v7015 = vpop.f32.mrf.mxu0
    %v7016 = vadd.f32 %v6658, %v7015
    %7017 = vmatmul.f32.gmra.mxu0 %v3901
    %v7018 = vpop.f32.mrf.mxu0
    %v7019 = vadd.f32 %v6658, %v7018
    %7020 = vmatmul.f32.gmra.mxu0 %v3902
    %v7021 = vpop.f32.mrf.mxu0
    %v7022 = vadd.f32 %v6658, %v7021
    %7023 = vmatmul.f32.gmra.mxu0 %v3903
    %v7024 = vpop.f32.mrf.mxu0
    %v7025 = vadd.f32 %v6658, %v7024
    %7026 = vmatmul.f32.gmra.mxu0 %v3904
    %v7027 = vpop.f32.mrf.mxu0
    %v7028 = vadd.f32 %v6658, %v7027
    %7029 = vmatmul.f32.gmra.mxu0 %v3905
    %v7030 = vpop.f32.mrf.mxu0
    %v7031 = vadd.f32 %v6658, %v7030
    %7032 = vmatmul.f32.gmra.mxu0 %v3906
    %v7033 = vpop.f32.mrf.mxu0
    %v7034 = vadd.f32 %v6658, %v7033
    %7035 = vmatmul.f32.gmra.mxu0 %v3907
    %v7036 = vpop.f32.mrf.mxu0
    %v7037 = vadd.f32 %v6658, %v7036
    %7038 = vmatmul.f32.gmra.mxu0 %v3908
    %v7039 = vpop.f32.mrf.mxu0
    %v7040 = vadd.f32 %v6658, %v7039
    %7041 = vmatmul.f32.gmra.mxu0 %v3909
    %v7042 = vpop.f32.mrf.mxu0
    %v7043 = vadd.f32 %v6658, %v7042
    %7044 = vmatmul.f32.gmra.mxu0 %v3910
    %v7045 = vpop.f32.mrf.mxu0
    %v7046 = vadd.f32 %v6658, %v7045
    %7047 = vmatmul.f32.gmra.mxu0 %v3911
    %v7048 = vpop.f32.mrf.mxu0
    %v7049 = vadd.f32 %v6658, %v7048
    %7050 = vmatmul.f32.gmra.mxu0 %v3912
    %v7051 = vpop.f32.mrf.mxu0
    %v7052 = vadd.f32 %v6658, %v7051
    %7053 = vmatmul.f32.gmra.mxu0 %v3913
    %v7054 = vpop.f32.mrf.mxu0
    %v7055 = vadd.f32 %v6658, %v7054
    %7056 = vdwg.mxu0
    %7057 = vmatpush.msra.mxu0 %v6653
    %7058 = vmatpush.msra.mxu0 %v6649
    %7059 = vmatpush.msra.mxu0 %v6645
    %7060 = vmatpush.msra.mxu0 %v6641
    %7061 = vmatpush.msra.mxu0 %v6637
    %7062 = vmatpush.msra.mxu0 %v6633
    %7063 = vmatpush.msra.mxu0 %v6629
    %7064 = vmatpush.msra.mxu0 %v6625
    %7065 = vmatpush.msra.mxu0 %v6621
    %7066 = vmatpush.msra.mxu0 %v6617
    %7067 = vmatpush.msra.mxu0 %v6613
    %7068 = vmatpush.msra.mxu0 %v6609
    %7069 = vmatpush.msra.mxu0 %v6605
    %7070 = vmatpush.msra.mxu0 %v6601
    %7071 = vmatpush.msra.mxu0 %v6597
    %7072 = vmatpush.msra.mxu0 %v6593
    %7073 = vmatmul.f32.gmra.mxu0 %v3876
    %v7074 = vpop.f32.mrf.mxu0
    %v7075 = vadd.f32 %v6659, %v7074
    %7076 = vmatmul.f32.gmra.mxu0 %v3877
    %v7077 = vpop.f32.mrf.mxu0
    %v7078 = vadd.f32 %v6659, %v7077
    %7079 = vmatmul.f32.gmra.mxu0 %v3878
    %v7080 = vpop.f32.mrf.mxu0
    %v7081 = vadd.f32 %v6659, %v7080
    %7082 = vmatmul.f32.gmra.mxu0 %v3879
    %v7083 = vpop.f32.mrf.mxu0
    %v7084 = vadd.f32 %v6659, %v7083
    %7085 = vmatmul.f32.gmra.mxu0 %v3880
    %v7086 = vpop.f32.mrf.mxu0
    %v7087 = vadd.f32 %v6659, %v7086
    %7088 = vmatmul.f32.gmra.mxu0 %v3881
    %v7089 = vpop.f32.mrf.mxu0
    %v7090 = vadd.f32 %v6659, %v7089
    %7091 = vmatmul.f32.gmra.mxu0 %v3882
    %v7092 = vpop.f32.mrf.mxu0
    %v7093 = vadd.f32 %v6659, %v7092
    %7094 = vmatmul.f32.gmra.mxu0 %v3883
    %v7095 = vpop.f32.mrf.mxu0
    %v7096 = vadd.f32 %v6659, %v7095
    %7097 = vmatmul.f32.gmra.mxu0 %v3884
    %v7098 = vpop.f32.mrf.mxu0
    %v7099 = vadd.f32 %v6659, %v7098
    %7100 = vmatmul.f32.gmra.mxu0 %v3885
    %v7101 = vpop.f32.mrf.mxu0
    %v7102 = vadd.f32 %v6659, %v7101
    %7103 = vmatmul.f32.gmra.mxu0 %v3886
    %v7104 = vpop.f32.mrf.mxu0
    %v7105 = vadd.f32 %v6659, %v7104
    %7106 = vmatmul.f32.gmra.mxu0 %v3887
    %v7107 = vpop.f32.mrf.mxu0
    %v7108 = vadd.f32 %v6659, %v7107
    %7109 = vmatmul.f32.gmra.mxu0 %v3888
    %v7110 = vpop.f32.mrf.mxu0
    %v7111 = vadd.f32 %v6659, %v7110
    %7112 = vmatmul.f32.gmra.mxu0 %v3889
    %v7113 = vpop.f32.mrf.mxu0
    %v7114 = vadd.f32 %v6659, %v7113
    %7115 = vmatmul.f32.gmra.mxu0 %v3890
    %v7116 = vpop.f32.mrf.mxu0
    %v7117 = vadd.f32 %v6659, %v7116
    %7118 = vmatmul.f32.gmra.mxu0 %v3891
    %v7119 = vpop.f32.mrf.mxu0
    %v7120 = vadd.f32 %v6659, %v7119
    %7121 = vmatmul.f32.gmra.mxu0 %v3892
    %v7122 = vpop.f32.mrf.mxu0
    %v7123 = vadd.f32 %v6659, %v7122
    %7124 = vmatmul.f32.gmra.mxu0 %v3893
    %v7125 = vpop.f32.mrf.mxu0
    %v7126 = vadd.f32 %v6659, %v7125
    %7127 = vmatmul.f32.gmra.mxu0 %v3894
    %v7128 = vpop.f32.mrf.mxu0
    %v7129 = vadd.f32 %v6659, %v7128
    %7130 = vmatmul.f32.gmra.mxu0 %v3895
    %v7131 = vpop.f32.mrf.mxu0
    %v7132 = vadd.f32 %v6659, %v7131
    %7133 = vmatmul.f32.gmra.mxu0 %v3896
    %v7134 = vpop.f32.mrf.mxu0
    %v7135 = vadd.f32 %v6659, %v7134
    %7136 = vmatmul.f32.gmra.mxu0 %v3897
    %v7137 = vpop.f32.mrf.mxu0
    %v7138 = vadd.f32 %v6659, %v7137
    %7139 = vmatmul.f32.gmra.mxu0 %v3898
    %v7140 = vpop.f32.mrf.mxu0
    %v7141 = vadd.f32 %v6659, %v7140
    %7142 = vmatmul.f32.gmra.mxu0 %v3899
    %v7143 = vpop.f32.mrf.mxu0
    %v7144 = vadd.f32 %v6659, %v7143
    %7145 = vmatmul.f32.gmra.mxu0 %v3900
    %v7146 = vpop.f32.mrf.mxu0
    %v7147 = vadd.f32 %v6659, %v7146
    %7148 = vmatmul.f32.gmra.mxu0 %v3901
    %v7149 = vpop.f32.mrf.mxu0
    %v7150 = vadd.f32 %v6659, %v7149
    %7151 = vmatmul.f32.gmra.mxu0 %v3902
    %v7152 = vpop.f32.mrf.mxu0
    %v7153 = vadd.f32 %v6659, %v7152
    %7154 = vmatmul.f32.gmra.mxu0 %v3903
    %v7155 = vpop.f32.mrf.mxu0
    %v7156 = vadd.f32 %v6659, %v7155
    %7157 = vmatmul.f32.gmra.mxu0 %v3904
    %v7158 = vpop.f32.mrf.mxu0
    %v7159 = vadd.f32 %v6659, %v7158
    %7160 = vmatmul.f32.gmra.mxu0 %v3905
    %v7161 = vpop.f32.mrf.mxu0
    %v7162 = vadd.f32 %v6659, %v7161
    %7163 = vmatmul.f32.gmra.mxu0 %v3906
    %v7164 = vpop.f32.mrf.mxu0
    %v7165 = vadd.f32 %v6659, %v7164
    %7166 = vmatmul.f32.gmra.mxu0 %v3907
    %v7167 = vpop.f32.mrf.mxu0
    %v7168 = vadd.f32 %v6659, %v7167
    %7169 = vmatmul.f32.gmra.mxu0 %v3908
    %v7170 = vpop.f32.mrf.mxu0
    %v7171 = vadd.f32 %v6659, %v7170
    %7172 = vmatmul.f32.gmra.mxu0 %v3909
    %v7173 = vpop.f32.mrf.mxu0
    %v7174 = vadd.f32 %v6659, %v7173
    %7175 = vmatmul.f32.gmra.mxu0 %v3910
    %v7176 = vpop.f32.mrf.mxu0
    %v7177 = vadd.f32 %v6659, %v7176
    %7178 = vmatmul.f32.gmra.mxu0 %v3911
    %v7179 = vpop.f32.mrf.mxu0
    %v7180 = vadd.f32 %v6659, %v7179
    %7181 = vmatmul.f32.gmra.mxu0 %v3912
    %v7182 = vpop.f32.mrf.mxu0
    %v7183 = vadd.f32 %v6659, %v7182
    %7184 = vmatmul.f32.gmra.mxu0 %v3913
    %v7185 = vpop.f32.mrf.mxu0
    %v7186 = vadd.f32 %v6659, %v7185
    %7187 = vdwg.mxu0
    %v7188 = vmax.f32 %v6682, 0.0
    %v7189 = vmax.f32 %v6813, 0.0
    %v7190 = vmax.f32 %v6944, 0.0
    %v7191 = vmax.f32 %v7075, 0.0
    %v7192 = vmax.f32 %v6685, 0.0
    %v7193 = vmax.f32 %v6816, 0.0
    %v7194 = vmax.f32 %v6947, 0.0
    %v7195 = vmax.f32 %v7078, 0.0
    %v7196 = vmax.f32 %v6688, 0.0
    %v7197 = vmax.f32 %v6819, 0.0
    %v7198 = vmax.f32 %v6950, 0.0
    %v7199 = vmax.f32 %v7081, 0.0
    %v7200 = vmax.f32 %v6691, 0.0
    %v7201 = vmax.f32 %v6822, 0.0
    %v7202 = vmax.f32 %v6953, 0.0
    %v7203 = vmax.f32 %v7084, 0.0
    %v7204 = vmax.f32 %v6694, 0.0
    %v7205 = vmax.f32 %v6825, 0.0
    %v7206 = vmax.f32 %v6956, 0.0
    %v7207 = vmax.f32 %v7087, 0.0
    %v7208 = vmax.f32 %v6697, 0.0
    %v7209 = vmax.f32 %v6828, 0.0
    %v7210 = vmax.f32 %v6959, 0.0
    %v7211 = vmax.f32 %v7090, 0.0
    %v7212 = vmax.f32 %v6700, 0.0
    %v7213 = vmax.f32 %v6831, 0.0
    %v7214 = vmax.f32 %v6962, 0.0
    %v7215 = vmax.f32 %v7093, 0.0
    %v7216 = vmax.f32 %v6703, 0.0
    %v7217 = vmax.f32 %v6834, 0.0
    %v7218 = vmax.f32 %v6965, 0.0
    %v7219 = vmax.f32 %v7096, 0.0
    %v7220 = vmax.f32 %v6706, 0.0
    %v7221 = vmax.f32 %v6837, 0.0
    %v7222 = vmax.f32 %v6968, 0.0
    %v7223 = vmax.f32 %v7099, 0.0
    %v7224 = vmax.f32 %v6709, 0.0
    %v7225 = vmax.f32 %v6840, 0.0
    %v7226 = vmax.f32 %v6971, 0.0
    %v7227 = vmax.f32 %v7102, 0.0
    %v7228 = vmax.f32 %v6712, 0.0
    %v7229 = vmax.f32 %v6843, 0.0
    %v7230 = vmax.f32 %v6974, 0.0
    %v7231 = vmax.f32 %v7105, 0.0
    %v7232 = vmax.f32 %v6715, 0.0
    %v7233 = vmax.f32 %v6846, 0.0
    %v7234 = vmax.f32 %v6977, 0.0
    %v7235 = vmax.f32 %v7108, 0.0
    %v7236 = vmax.f32 %v6718, 0.0
    %v7237 = vmax.f32 %v6849, 0.0
    %v7238 = vmax.f32 %v6980, 0.0
    %v7239 = vmax.f32 %v7111, 0.0
    %v7240 = vmax.f32 %v6721, 0.0
    %v7241 = vmax.f32 %v6852, 0.0
    %v7242 = vmax.f32 %v6983, 0.0
    %v7243 = vmax.f32 %v7114, 0.0
    %v7244 = vmax.f32 %v6724, 0.0
    %v7245 = vmax.f32 %v6855, 0.0
    %v7246 = vmax.f32 %v6986, 0.0
    %v7247 = vmax.f32 %v7117, 0.0
    %v7248 = vmax.f32 %v6727, 0.0
    %v7249 = vmax.f32 %v6858, 0.0
    %v7250 = vmax.f32 %v6989, 0.0
    %v7251 = vmax.f32 %v7120, 0.0
    %v7252 = vmax.f32 %v6730, 0.0
    %v7253 = vmax.f32 %v6861, 0.0
    %v7254 = vmax.f32 %v6992, 0.0
    %v7255 = vmax.f32 %v7123, 0.0
    %v7256 = vmax.f32 %v6733, 0.0
    %v7257 = vmax.f32 %v6864, 0.0
    %v7258 = vmax.f32 %v6995, 0.0
    %v7259 = vmax.f32 %v7126, 0.0
    %v7260 = vmax.f32 %v6736, 0.0
    %v7261 = vmax.f32 %v6867, 0.0
    %v7262 = vmax.f32 %v6998, 0.0
    %v7263 = vmax.f32 %v7129, 0.0
    %v7264 = vmax.f32 %v6739, 0.0
    %v7265 = vmax.f32 %v6870, 0.0
    %v7266 = vmax.f32 %v7001, 0.0
    %v7267 = vmax.f32 %v7132, 0.0
    %v7268 = vmax.f32 %v6742, 0.0
    %v7269 = vmax.f32 %v6873, 0.0
    %v7270 = vmax.f32 %v7004, 0.0
    %v7271 = vmax.f32 %v7135, 0.0
    %v7272 = vmax.f32 %v6745, 0.0
    %v7273 = vmax.f32 %v6876, 0.0
    %v7274 = vmax.f32 %v7007, 0.0
    %v7275 = vmax.f32 %v7138, 0.0
    %v7276 = vmax.f32 %v6748, 0.0
    %v7277 = vmax.f32 %v6879, 0.0
    %v7278 = vmax.f32 %v7010, 0.0
    %v7279 = vmax.f32 %v7141, 0.0
    %v7280 = vmax.f32 %v6751, 0.0
    %v7281 = vmax.f32 %v6882, 0.0
    %v7282 = vmax.f32 %v7013, 0.0
    %v7283 = vmax.f32 %v7144, 0.0
    %v7284 = vmax.f32 %v6754, 0.0
    %v7285 = vmax.f32 %v6885, 0.0
    %v7286 = vmax.f32 %v7016, 0.0
    %v7287 = vmax.f32 %v7147, 0.0
    %v7288 = vmax.f32 %v6757, 0.0
    %v7289 = vmax.f32 %v6888, 0.0
    %v7290 = vmax.f32 %v7019, 0.0
    %v7291 = vmax.f32 %v7150, 0.0
    %v7292 = vmax.f32 %v6760, 0.0
    %v7293 = vmax.f32 %v6891, 0.0
    %v7294 = vmax.f32 %v7022, 0.0
    %v7295 = vmax.f32 %v7153, 0.0
    %v7296 = vmax.f32 %v6763, 0.0
    %v7297 = vmax.f32 %v6894, 0.0
    %v7298 = vmax.f32 %v7025, 0.0
    %v7299 = vmax.f32 %v7156, 0.0
    %v7300 = vmax.f32 %v6766, 0.0
    %v7301 = vmax.f32 %v6897, 0.0
    %v7302 = vmax.f32 %v7028, 0.0
    %v7303 = vmax.f32 %v7159, 0.0
    %v7304 = vmax.f32 %v6769, 0.0
    %v7305 = vmax.f32 %v6900, 0.0
    %v7306 = vmax.f32 %v7031, 0.0
    %v7307 = vmax.f32 %v7162, 0.0
    %v7308 = vmax.f32 %v6772, 0.0
    %v7309 = vmax.f32 %v6903, 0.0
    %v7310 = vmax.f32 %v7034, 0.0
    %v7311 = vmax.f32 %v7165, 0.0
    %v7312 = vmax.f32 %v6775, 0.0
    %v7313 = vmax.f32 %v6906, 0.0
    %v7314 = vmax.f32 %v7037, 0.0
    %v7315 = vmax.f32 %v7168, 0.0
    %v7316 = vmax.f32 %v6778, 0.0
    %v7317 = vmax.f32 %v6909, 0.0
    %v7318 = vmax.f32 %v7040, 0.0
    %v7319 = vmax.f32 %v7171, 0.0
    %v7320 = vmax.f32 %v6781, 0.0
    %v7321 = vmax.f32 %v6912, 0.0
    %v7322 = vmax.f32 %v7043, 0.0
    %v7323 = vmax.f32 %v7174, 0.0
    %v7324 = vmax.f32 %v6784, 0.0
    %v7325 = vmax.f32 %v6915, 0.0
    %v7326 = vmax.f32 %v7046, 0.0
    %v7327 = vmax.f32 %v7177, 0.0
    %v7328 = vmax.f32 %v6787, 0.0
    %v7329 = vmax.f32 %v6918, 0.0
    %v7330 = vmax.f32 %v7049, 0.0
    %v7331 = vmax.f32 %v7180, 0.0
    %v7332 = vmax.f32 %v6790, 0.0
    %v7333 = vmax.f32 %v6921, 0.0
    %v7334 = vmax.f32 %v7052, 0.0
    %v7335 = vmax.f32 %v7183, 0.0
    %v7336 = vmax.f32 %v6793, 0.0
    %v7337 = vmax.f32 %v6924, 0.0
    %v7338 = vmax.f32 %v7055, 0.0
    %v7339 = vmax.f32 %v7186, 0.0
    %v7340 = vld [vmem:[#allocation12 + $0x400] sm:$0xff]
    %v7341 = vld [vmem:[#allocation12 + $0x408] sm:$0xff]
    %v7342 = vld [vmem:[#allocation12 + $0x410] sm:$0xff]
    %v7343 = vld [vmem:[#allocation12 + $0x418] sm:$0xff]
    %v7344 = vld [vmem:[#allocation12 + $0x420] sm:$0xff]
    %v7345 = vld [vmem:[#allocation12 + $0x428] sm:$0xff]
    %v7346 = vld [vmem:[#allocation12 + $0x430] sm:$0xff]
    %v7347 = vld [vmem:[#allocation12 + $0x438] sm:$0xff]
    %v7348 = vld [vmem:[#allocation12 + $0x440] sm:$0xff]
    %v7349 = vld [vmem:[#allocation12 + $0x448] sm:$0xff]
    %v7350 = vld [vmem:[#allocation12 + $0x450] sm:$0xff]
    %v7351 = vld [vmem:[#allocation12 + $0x458] sm:$0xff]
    %v7352 = vld [vmem:[#allocation12 + $0x460] sm:$0xff]
    %v7353 = vld [vmem:[#allocation12 + $0x468] sm:$0xff]
    %v7354 = vld [vmem:[#allocation12 + $0x470] sm:$0xff]
    %v7355 = vld [vmem:[#allocation12 + $0x478] sm:$0xff]
    %v7356 = vld [vmem:[#allocation12 + $0x480] sm:$0xff]
    %v7357 = vld [vmem:[#allocation12 + $0x488] sm:$0xff]
    %v7358 = vld [vmem:[#allocation12 + $0x490] sm:$0xff]
    %v7359 = vld [vmem:[#allocation12 + $0x498] sm:$0xff]
    %v7360 = vld [vmem:[#allocation12 + $0x4a0] sm:$0xff]
    %v7361 = vld [vmem:[#allocation12 + $0x4a8] sm:$0xff]
    %v7362 = vld [vmem:[#allocation12 + $0x4b0] sm:$0xff]
    %v7363 = vld [vmem:[#allocation12 + $0x4b8] sm:$0xff]
    %v7364 = vld [vmem:[#allocation12 + $0x4c0] sm:$0xff]
    %v7365 = vld [vmem:[#allocation12 + $0x4c8] sm:$0xff]
    %v7366 = vld [vmem:[#allocation12 + $0x4d0] sm:$0xff]
    %v7367 = vld [vmem:[#allocation12 + $0x4d8] sm:$0xff]
    %v7368 = vld [vmem:[#allocation12 + $0x4e0] sm:$0xff]
    %v7369 = vld [vmem:[#allocation12 + $0x4e8] sm:$0xff]
    %v7370 = vld [vmem:[#allocation12 + $0x4f0] sm:$0xff]
    %v7371 = vld [vmem:[#allocation12 + $0x4f8] sm:$0xff]
    %v7372 = vld [vmem:[#allocation12 + $0x500] sm:$0xff]
    %v7373 = vld [vmem:[#allocation12 + $0x508] sm:$0xff]
    %v7374 = vld [vmem:[#allocation12 + $0x510] sm:$0xff]
    %v7375 = vld [vmem:[#allocation12 + $0x518] sm:$0xff]
    %v7376 = vld [vmem:[#allocation12 + $0x520] sm:$0xff]
    %v7377 = vld [vmem:[#allocation12 + $0x528] sm:$0xff]
    %v7378 = vld [vmem:[#allocation12 + $0x530] sm:$0xff]
    %v7379 = vld [vmem:[#allocation12 + $0x538] sm:$0xff]
    %v7380 = vld [vmem:[#allocation12 + $0x540] sm:$0xff]
    %v7381 = vld [vmem:[#allocation12 + $0x548] sm:$0xff]
    %v7382 = vld [vmem:[#allocation12 + $0x550] sm:$0xff]
    %v7383 = vld [vmem:[#allocation12 + $0x558] sm:$0xff]
    %v7384 = vld [vmem:[#allocation12 + $0x560] sm:$0xff]
    %v7385 = vld [vmem:[#allocation12 + $0x568] sm:$0xff]
    %v7386 = vld [vmem:[#allocation12 + $0x570] sm:$0xff]
    %v7387 = vld [vmem:[#allocation12 + $0x578] sm:$0xff]
    %v7388 = vld [vmem:[#allocation12 + $0x580] sm:$0xff]
    %v7389 = vld [vmem:[#allocation12 + $0x588] sm:$0xff]
    %v7390 = vld [vmem:[#allocation12 + $0x590] sm:$0xff]
    %v7391 = vld [vmem:[#allocation12 + $0x598] sm:$0xff]
    %v7392 = vld [vmem:[#allocation12 + $0x5a0] sm:$0xff]
    %v7393 = vld [vmem:[#allocation12 + $0x5a8] sm:$0xff]
    %v7394 = vld [vmem:[#allocation12 + $0x5b0] sm:$0xff]
    %v7395 = vld [vmem:[#allocation12 + $0x5b8] sm:$0xff]
    %v7396 = vld [vmem:[#allocation12 + $0x5c0] sm:$0xff]
    %v7397 = vld [vmem:[#allocation12 + $0x5c8] sm:$0xff]
    %v7398 = vld [vmem:[#allocation12 + $0x5d0] sm:$0xff]
    %v7399 = vld [vmem:[#allocation12 + $0x5d8] sm:$0xff]
    %v7400 = vld [vmem:[#allocation12 + $0x5e0] sm:$0xff]
    %v7401 = vld [vmem:[#allocation12 + $0x5e8] sm:$0xff]
    %v7402 = vld [vmem:[#allocation12 + $0x5f0] sm:$0xff]
    %v7403 = vld [vmem:[#allocation12 + $0x5f8] sm:$0xff]
    %7404 = vmatpush.msra.mxu0 %v7355
    %7405 = vmatpush.msra.mxu0 %v7354
    %7406 = vmatpush.msra.mxu0 %v7353
    %7407 = vmatpush.msra.mxu0 %v7352
    %7408 = vmatpush.msra.mxu0 %v7351
    %7409 = vmatpush.msra.mxu0 %v7350
    %7410 = vmatpush.msra.mxu0 %v7349
    %7411 = vmatpush.msra.mxu0 %v7348
    %7412 = vmatpush.msra.mxu0 %v7347
    %7413 = vmatpush.msra.mxu0 %v7346
    %7414 = vmatpush.msra.mxu0 %v7345
    %7415 = vmatpush.msra.mxu0 %v7344
    %7416 = vmatpush.msra.mxu0 %v7343
    %7417 = vmatpush.msra.mxu0 %v7342
    %7418 = vmatpush.msra.mxu0 %v7341
    %7419 = vmatpush.msra.mxu0 %v7340
    %7420 = vmatmul.f32.gmra.mxu0 %v7188
    %v7421 = vpop.f32.mrf.mxu0
    %v7422 = vadd.f32 0.0, %v7421
    %7423 = vmatmul.f32.gmra.mxu0 %v7192
    %v7424 = vpop.f32.mrf.mxu0
    %v7425 = vadd.f32 0.0, %v7424
    %7426 = vmatmul.f32.gmra.mxu0 %v7196
    %v7427 = vpop.f32.mrf.mxu0
    %v7428 = vadd.f32 0.0, %v7427
    %7429 = vmatmul.f32.gmra.mxu0 %v7200
    %v7430 = vpop.f32.mrf.mxu0
    %v7431 = vadd.f32 0.0, %v7430
    %7432 = vmatmul.f32.gmra.mxu0 %v7204
    %v7433 = vpop.f32.mrf.mxu0
    %v7434 = vadd.f32 0.0, %v7433
    %7435 = vmatmul.f32.gmra.mxu0 %v7208
    %v7436 = vpop.f32.mrf.mxu0
    %v7437 = vadd.f32 0.0, %v7436
    %7438 = vmatmul.f32.gmra.mxu0 %v7212
    %v7439 = vpop.f32.mrf.mxu0
    %v7440 = vadd.f32 0.0, %v7439
    %7441 = vmatmul.f32.gmra.mxu0 %v7216
    %v7442 = vpop.f32.mrf.mxu0
    %v7443 = vadd.f32 0.0, %v7442
    %7444 = vmatmul.f32.gmra.mxu0 %v7220
    %v7445 = vpop.f32.mrf.mxu0
    %v7446 = vadd.f32 0.0, %v7445
    %7447 = vmatmul.f32.gmra.mxu0 %v7224
    %v7448 = vpop.f32.mrf.mxu0
    %v7449 = vadd.f32 0.0, %v7448
    %7450 = vmatmul.f32.gmra.mxu0 %v7228
    %v7451 = vpop.f32.mrf.mxu0
    %v7452 = vadd.f32 0.0, %v7451
    %7453 = vmatmul.f32.gmra.mxu0 %v7232
    %v7454 = vpop.f32.mrf.mxu0
    %v7455 = vadd.f32 0.0, %v7454
    %7456 = vmatmul.f32.gmra.mxu0 %v7236
    %v7457 = vpop.f32.mrf.mxu0
    %v7458 = vadd.f32 0.0, %v7457
    %7459 = vmatmul.f32.gmra.mxu0 %v7240
    %v7460 = vpop.f32.mrf.mxu0
    %v7461 = vadd.f32 0.0, %v7460
    %7462 = vmatmul.f32.gmra.mxu0 %v7244
    %v7463 = vpop.f32.mrf.mxu0
    %v7464 = vadd.f32 0.0, %v7463
    %7465 = vmatmul.f32.gmra.mxu0 %v7248
    %v7466 = vpop.f32.mrf.mxu0
    %v7467 = vadd.f32 0.0, %v7466
    %7468 = vmatmul.f32.gmra.mxu0 %v7252
    %v7469 = vpop.f32.mrf.mxu0
    %v7470 = vadd.f32 0.0, %v7469
    %7471 = vmatmul.f32.gmra.mxu0 %v7256
    %v7472 = vpop.f32.mrf.mxu0
    %v7473 = vadd.f32 0.0, %v7472
    %7474 = vmatmul.f32.gmra.mxu0 %v7260
    %v7475 = vpop.f32.mrf.mxu0
    %v7476 = vadd.f32 0.0, %v7475
    %7477 = vmatmul.f32.gmra.mxu0 %v7264
    %v7478 = vpop.f32.mrf.mxu0
    %v7479 = vadd.f32 0.0, %v7478
    %7480 = vmatmul.f32.gmra.mxu0 %v7268
    %v7481 = vpop.f32.mrf.mxu0
    %v7482 = vadd.f32 0.0, %v7481
    %7483 = vmatmul.f32.gmra.mxu0 %v7272
    %v7484 = vpop.f32.mrf.mxu0
    %v7485 = vadd.f32 0.0, %v7484
    %7486 = vmatmul.f32.gmra.mxu0 %v7276
    %v7487 = vpop.f32.mrf.mxu0
    %v7488 = vadd.f32 0.0, %v7487
    %7489 = vmatmul.f32.gmra.mxu0 %v7280
    %v7490 = vpop.f32.mrf.mxu0
    %v7491 = vadd.f32 0.0, %v7490
    %7492 = vmatmul.f32.gmra.mxu0 %v7284
    %v7493 = vpop.f32.mrf.mxu0
    %v7494 = vadd.f32 0.0, %v7493
    %7495 = vmatmul.f32.gmra.mxu0 %v7288
    %v7496 = vpop.f32.mrf.mxu0
    %v7497 = vadd.f32 0.0, %v7496
    %7498 = vmatmul.f32.gmra.mxu0 %v7292
    %v7499 = vpop.f32.mrf.mxu0
    %v7500 = vadd.f32 0.0, %v7499
    %7501 = vmatmul.f32.gmra.mxu0 %v7296
    %v7502 = vpop.f32.mrf.mxu0
    %v7503 = vadd.f32 0.0, %v7502
    %7504 = vmatmul.f32.gmra.mxu0 %v7300
    %v7505 = vpop.f32.mrf.mxu0
    %v7506 = vadd.f32 0.0, %v7505
    %7507 = vmatmul.f32.gmra.mxu0 %v7304
    %v7508 = vpop.f32.mrf.mxu0
    %v7509 = vadd.f32 0.0, %v7508
    %7510 = vmatmul.f32.gmra.mxu0 %v7308
    %v7511 = vpop.f32.mrf.mxu0
    %v7512 = vadd.f32 0.0, %v7511
    %7513 = vmatmul.f32.gmra.mxu0 %v7312
    %v7514 = vpop.f32.mrf.mxu0
    %v7515 = vadd.f32 0.0, %v7514
    %7516 = vmatmul.f32.gmra.mxu0 %v7316
    %v7517 = vpop.f32.mrf.mxu0
    %v7518 = vadd.f32 0.0, %v7517
    %7519 = vmatmul.f32.gmra.mxu0 %v7320
    %v7520 = vpop.f32.mrf.mxu0
    %v7521 = vadd.f32 0.0, %v7520
    %7522 = vmatmul.f32.gmra.mxu0 %v7324
    %v7523 = vpop.f32.mrf.mxu0
    %v7524 = vadd.f32 0.0, %v7523
    %7525 = vmatmul.f32.gmra.mxu0 %v7328
    %v7526 = vpop.f32.mrf.mxu0
    %v7527 = vadd.f32 0.0, %v7526
    %7528 = vmatmul.f32.gmra.mxu0 %v7332
    %v7529 = vpop.f32.mrf.mxu0
    %v7530 = vadd.f32 0.0, %v7529
    %7531 = vmatmul.f32.gmra.mxu0 %v7336
    %v7532 = vpop.f32.mrf.mxu0
    %v7533 = vadd.f32 0.0, %v7532
    %7534 = vdwg.mxu0
    %7535 = vmatpush.msra.mxu0 %v7371
    %7536 = vmatpush.msra.mxu0 %v7370
    %7537 = vmatpush.msra.mxu0 %v7369
    %7538 = vmatpush.msra.mxu0 %v7368
    %7539 = vmatpush.msra.mxu0 %v7367
    %7540 = vmatpush.msra.mxu0 %v7366
    %7541 = vmatpush.msra.mxu0 %v7365
    %7542 = vmatpush.msra.mxu0 %v7364
    %7543 = vmatpush.msra.mxu0 %v7363
    %7544 = vmatpush.msra.mxu0 %v7362
    %7545 = vmatpush.msra.mxu0 %v7361
    %7546 = vmatpush.msra.mxu0 %v7360
    %7547 = vmatpush.msra.mxu0 %v7359
    %7548 = vmatpush.msra.mxu0 %v7358
    %7549 = vmatpush.msra.mxu0 %v7357
    %7550 = vmatpush.msra.mxu0 %v7356
    %7551 = vmatmul.f32.gmra.mxu0 %v7189
    %v7552 = vpop.f32.mrf.mxu0
    %v7553 = vadd.f32 %v7422, %v7552
    %7554 = vmatmul.f32.gmra.mxu0 %v7193
    %v7555 = vpop.f32.mrf.mxu0
    %v7556 = vadd.f32 %v7425, %v7555
    %7557 = vmatmul.f32.gmra.mxu0 %v7197
    %v7558 = vpop.f32.mrf.mxu0
    %v7559 = vadd.f32 %v7428, %v7558
    %7560 = vmatmul.f32.gmra.mxu0 %v7201
    %v7561 = vpop.f32.mrf.mxu0
    %v7562 = vadd.f32 %v7431, %v7561
    %7563 = vmatmul.f32.gmra.mxu0 %v7205
    %v7564 = vpop.f32.mrf.mxu0
    %v7565 = vadd.f32 %v7434, %v7564
    %7566 = vmatmul.f32.gmra.mxu0 %v7209
    %v7567 = vpop.f32.mrf.mxu0
    %v7568 = vadd.f32 %v7437, %v7567
    %7569 = vmatmul.f32.gmra.mxu0 %v7213
    %v7570 = vpop.f32.mrf.mxu0
    %v7571 = vadd.f32 %v7440, %v7570
    %7572 = vmatmul.f32.gmra.mxu0 %v7217
    %v7573 = vpop.f32.mrf.mxu0
    %v7574 = vadd.f32 %v7443, %v7573
    %7575 = vmatmul.f32.gmra.mxu0 %v7221
    %v7576 = vpop.f32.mrf.mxu0
    %v7577 = vadd.f32 %v7446, %v7576
    %7578 = vmatmul.f32.gmra.mxu0 %v7225
    %v7579 = vpop.f32.mrf.mxu0
    %v7580 = vadd.f32 %v7449, %v7579
    %7581 = vmatmul.f32.gmra.mxu0 %v7229
    %v7582 = vpop.f32.mrf.mxu0
    %v7583 = vadd.f32 %v7452, %v7582
    %7584 = vmatmul.f32.gmra.mxu0 %v7233
    %v7585 = vpop.f32.mrf.mxu0
    %v7586 = vadd.f32 %v7455, %v7585
    %7587 = vmatmul.f32.gmra.mxu0 %v7237
    %v7588 = vpop.f32.mrf.mxu0
    %v7589 = vadd.f32 %v7458, %v7588
    %7590 = vmatmul.f32.gmra.mxu0 %v7241
    %v7591 = vpop.f32.mrf.mxu0
    %v7592 = vadd.f32 %v7461, %v7591
    %7593 = vmatmul.f32.gmra.mxu0 %v7245
    %v7594 = vpop.f32.mrf.mxu0
    %v7595 = vadd.f32 %v7464, %v7594
    %7596 = vmatmul.f32.gmra.mxu0 %v7249
    %v7597 = vpop.f32.mrf.mxu0
    %v7598 = vadd.f32 %v7467, %v7597
    %7599 = vmatmul.f32.gmra.mxu0 %v7253
    %v7600 = vpop.f32.mrf.mxu0
    %v7601 = vadd.f32 %v7470, %v7600
    %7602 = vmatmul.f32.gmra.mxu0 %v7257
    %v7603 = vpop.f32.mrf.mxu0
    %v7604 = vadd.f32 %v7473, %v7603
    %7605 = vmatmul.f32.gmra.mxu0 %v7261
    %v7606 = vpop.f32.mrf.mxu0
    %v7607 = vadd.f32 %v7476, %v7606
    %7608 = vmatmul.f32.gmra.mxu0 %v7265
    %v7609 = vpop.f32.mrf.mxu0
    %v7610 = vadd.f32 %v7479, %v7609
    %7611 = vmatmul.f32.gmra.mxu0 %v7269
    %v7612 = vpop.f32.mrf.mxu0
    %v7613 = vadd.f32 %v7482, %v7612
    %7614 = vmatmul.f32.gmra.mxu0 %v7273
    %v7615 = vpop.f32.mrf.mxu0
    %v7616 = vadd.f32 %v7485, %v7615
    %7617 = vmatmul.f32.gmra.mxu0 %v7277
    %v7618 = vpop.f32.mrf.mxu0
    %v7619 = vadd.f32 %v7488, %v7618
    %7620 = vmatmul.f32.gmra.mxu0 %v7281
    %v7621 = vpop.f32.mrf.mxu0
    %v7622 = vadd.f32 %v7491, %v7621
    %7623 = vmatmul.f32.gmra.mxu0 %v7285
    %v7624 = vpop.f32.mrf.mxu0
    %v7625 = vadd.f32 %v7494, %v7624
    %7626 = vmatmul.f32.gmra.mxu0 %v7289
    %v7627 = vpop.f32.mrf.mxu0
    %v7628 = vadd.f32 %v7497, %v7627
    %7629 = vmatmul.f32.gmra.mxu0 %v7293
    %v7630 = vpop.f32.mrf.mxu0
    %v7631 = vadd.f32 %v7500, %v7630
    %7632 = vmatmul.f32.gmra.mxu0 %v7297
    %v7633 = vpop.f32.mrf.mxu0
    %v7634 = vadd.f32 %v7503, %v7633
    %7635 = vmatmul.f32.gmra.mxu0 %v7301
    %v7636 = vpop.f32.mrf.mxu0
    %v7637 = vadd.f32 %v7506, %v7636
    %7638 = vmatmul.f32.gmra.mxu0 %v7305
    %v7639 = vpop.f32.mrf.mxu0
    %v7640 = vadd.f32 %v7509, %v7639
    %7641 = vmatmul.f32.gmra.mxu0 %v7309
    %v7642 = vpop.f32.mrf.mxu0
    %v7643 = vadd.f32 %v7512, %v7642
    %7644 = vmatmul.f32.gmra.mxu0 %v7313
    %v7645 = vpop.f32.mrf.mxu0
    %v7646 = vadd.f32 %v7515, %v7645
    %7647 = vmatmul.f32.gmra.mxu0 %v7317
    %v7648 = vpop.f32.mrf.mxu0
    %v7649 = vadd.f32 %v7518, %v7648
    %7650 = vmatmul.f32.gmra.mxu0 %v7321
    %v7651 = vpop.f32.mrf.mxu0
    %v7652 = vadd.f32 %v7521, %v7651
    %7653 = vmatmul.f32.gmra.mxu0 %v7325
    %v7654 = vpop.f32.mrf.mxu0
    %v7655 = vadd.f32 %v7524, %v7654
    %7656 = vmatmul.f32.gmra.mxu0 %v7329
    %v7657 = vpop.f32.mrf.mxu0
    %v7658 = vadd.f32 %v7527, %v7657
    %7659 = vmatmul.f32.gmra.mxu0 %v7333
    %v7660 = vpop.f32.mrf.mxu0
    %v7661 = vadd.f32 %v7530, %v7660
    %7662 = vmatmul.f32.gmra.mxu0 %v7337
    %v7663 = vpop.f32.mrf.mxu0
    %v7664 = vadd.f32 %v7533, %v7663
    %7665 = vdwg.mxu0
    %7666 = vmatpush.msra.mxu0 %v7387
    %7667 = vmatpush.msra.mxu0 %v7386
    %7668 = vmatpush.msra.mxu0 %v7385
    %7669 = vmatpush.msra.mxu0 %v7384
    %7670 = vmatpush.msra.mxu0 %v7383
    %7671 = vmatpush.msra.mxu0 %v7382
    %7672 = vmatpush.msra.mxu0 %v7381
    %7673 = vmatpush.msra.mxu0 %v7380
    %7674 = vmatpush.msra.mxu0 %v7379
    %7675 = vmatpush.msra.mxu0 %v7378
    %7676 = vmatpush.msra.mxu0 %v7377
    %7677 = vmatpush.msra.mxu0 %v7376
    %7678 = vmatpush.msra.mxu0 %v7375
    %7679 = vmatpush.msra.mxu0 %v7374
    %7680 = vmatpush.msra.mxu0 %v7373
    %7681 = vmatpush.msra.mxu0 %v7372
    %7682 = vmatmul.f32.gmra.mxu0 %v7190
    %v7683 = vpop.f32.mrf.mxu0
    %v7684 = vadd.f32 %v7553, %v7683
    %7685 = vmatmul.f32.gmra.mxu0 %v7194
    %v7686 = vpop.f32.mrf.mxu0
    %v7687 = vadd.f32 %v7556, %v7686
    %7688 = vmatmul.f32.gmra.mxu0 %v7198
    %v7689 = vpop.f32.mrf.mxu0
    %v7690 = vadd.f32 %v7559, %v7689
    %7691 = vmatmul.f32.gmra.mxu0 %v7202
    %v7692 = vpop.f32.mrf.mxu0
    %v7693 = vadd.f32 %v7562, %v7692
    %7694 = vmatmul.f32.gmra.mxu0 %v7206
    %v7695 = vpop.f32.mrf.mxu0
    %v7696 = vadd.f32 %v7565, %v7695
    %7697 = vmatmul.f32.gmra.mxu0 %v7210
    %v7698 = vpop.f32.mrf.mxu0
    %v7699 = vadd.f32 %v7568, %v7698
    %7700 = vmatmul.f32.gmra.mxu0 %v7214
    %v7701 = vpop.f32.mrf.mxu0
    %v7702 = vadd.f32 %v7571, %v7701
    %7703 = vmatmul.f32.gmra.mxu0 %v7218
    %v7704 = vpop.f32.mrf.mxu0
    %v7705 = vadd.f32 %v7574, %v7704
    %7706 = vmatmul.f32.gmra.mxu0 %v7222
    %v7707 = vpop.f32.mrf.mxu0
    %v7708 = vadd.f32 %v7577, %v7707
    %7709 = vmatmul.f32.gmra.mxu0 %v7226
    %v7710 = vpop.f32.mrf.mxu0
    %v7711 = vadd.f32 %v7580, %v7710
    %7712 = vmatmul.f32.gmra.mxu0 %v7230
    %v7713 = vpop.f32.mrf.mxu0
    %v7714 = vadd.f32 %v7583, %v7713
    %7715 = vmatmul.f32.gmra.mxu0 %v7234
    %v7716 = vpop.f32.mrf.mxu0
    %v7717 = vadd.f32 %v7586, %v7716
    %7718 = vmatmul.f32.gmra.mxu0 %v7238
    %v7719 = vpop.f32.mrf.mxu0
    %v7720 = vadd.f32 %v7589, %v7719
    %7721 = vmatmul.f32.gmra.mxu0 %v7242
    %v7722 = vpop.f32.mrf.mxu0
    %v7723 = vadd.f32 %v7592, %v7722
    %7724 = vmatmul.f32.gmra.mxu0 %v7246
    %v7725 = vpop.f32.mrf.mxu0
    %v7726 = vadd.f32 %v7595, %v7725
    %7727 = vmatmul.f32.gmra.mxu0 %v7250
    %v7728 = vpop.f32.mrf.mxu0
    %v7729 = vadd.f32 %v7598, %v7728
    %7730 = vmatmul.f32.gmra.mxu0 %v7254
    %v7731 = vpop.f32.mrf.mxu0
    %v7732 = vadd.f32 %v7601, %v7731
    %7733 = vmatmul.f32.gmra.mxu0 %v7258
    %v7734 = vpop.f32.mrf.mxu0
    %v7735 = vadd.f32 %v7604, %v7734
    %7736 = vmatmul.f32.gmra.mxu0 %v7262
    %v7737 = vpop.f32.mrf.mxu0
    %v7738 = vadd.f32 %v7607, %v7737
    %7739 = vmatmul.f32.gmra.mxu0 %v7266
    %v7740 = vpop.f32.mrf.mxu0
    %v7741 = vadd.f32 %v7610, %v7740
    %7742 = vmatmul.f32.gmra.mxu0 %v7270
    %v7743 = vpop.f32.mrf.mxu0
    %v7744 = vadd.f32 %v7613, %v7743
    %7745 = vmatmul.f32.gmra.mxu0 %v7274
    %v7746 = vpop.f32.mrf.mxu0
    %v7747 = vadd.f32 %v7616, %v7746
    %7748 = vmatmul.f32.gmra.mxu0 %v7278
    %v7749 = vpop.f32.mrf.mxu0
    %v7750 = vadd.f32 %v7619, %v7749
    %7751 = vmatmul.f32.gmra.mxu0 %v7282
    %v7752 = vpop.f32.mrf.mxu0
    %v7753 = vadd.f32 %v7622, %v7752
    %7754 = vmatmul.f32.gmra.mxu0 %v7286
    %v7755 = vpop.f32.mrf.mxu0
    %v7756 = vadd.f32 %v7625, %v7755
    %7757 = vmatmul.f32.gmra.mxu0 %v7290
    %v7758 = vpop.f32.mrf.mxu0
    %v7759 = vadd.f32 %v7628, %v7758
    %7760 = vmatmul.f32.gmra.mxu0 %v7294
    %v7761 = vpop.f32.mrf.mxu0
    %v7762 = vadd.f32 %v7631, %v7761
    %7763 = vmatmul.f32.gmra.mxu0 %v7298
    %v7764 = vpop.f32.mrf.mxu0
    %v7765 = vadd.f32 %v7634, %v7764
    %7766 = vmatmul.f32.gmra.mxu0 %v7302
    %v7767 = vpop.f32.mrf.mxu0
    %v7768 = vadd.f32 %v7637, %v7767
    %7769 = vmatmul.f32.gmra.mxu0 %v7306
    %v7770 = vpop.f32.mrf.mxu0
    %v7771 = vadd.f32 %v7640, %v7770
    %7772 = vmatmul.f32.gmra.mxu0 %v7310
    %v7773 = vpop.f32.mrf.mxu0
    %v7774 = vadd.f32 %v7643, %v7773
    %7775 = vmatmul.f32.gmra.mxu0 %v7314
    %v7776 = vpop.f32.mrf.mxu0
    %v7777 = vadd.f32 %v7646, %v7776
    %7778 = vmatmul.f32.gmra.mxu0 %v7318
    %v7779 = vpop.f32.mrf.mxu0
    %v7780 = vadd.f32 %v7649, %v7779
    %7781 = vmatmul.f32.gmra.mxu0 %v7322
    %v7782 = vpop.f32.mrf.mxu0
    %v7783 = vadd.f32 %v7652, %v7782
    %7784 = vmatmul.f32.gmra.mxu0 %v7326
    %v7785 = vpop.f32.mrf.mxu0
    %v7786 = vadd.f32 %v7655, %v7785
    %7787 = vmatmul.f32.gmra.mxu0 %v7330
    %v7788 = vpop.f32.mrf.mxu0
    %v7789 = vadd.f32 %v7658, %v7788
    %7790 = vmatmul.f32.gmra.mxu0 %v7334
    %v7791 = vpop.f32.mrf.mxu0
    %v7792 = vadd.f32 %v7661, %v7791
    %7793 = vmatmul.f32.gmra.mxu0 %v7338
    %v7794 = vpop.f32.mrf.mxu0
    %v7795 = vadd.f32 %v7664, %v7794
    %7796 = vdwg.mxu0
    %7797 = vmatpush.msra.mxu0 %v7403
    %7798 = vmatpush.msra.mxu0 %v7402
    %7799 = vmatpush.msra.mxu0 %v7401
    %7800 = vmatpush.msra.mxu0 %v7400
    %7801 = vmatpush.msra.mxu0 %v7399
    %7802 = vmatpush.msra.mxu0 %v7398
    %7803 = vmatpush.msra.mxu0 %v7397
    %7804 = vmatpush.msra.mxu0 %v7396
    %7805 = vmatpush.msra.mxu0 %v7395
    %7806 = vmatpush.msra.mxu0 %v7394
    %7807 = vmatpush.msra.mxu0 %v7393
    %7808 = vmatpush.msra.mxu0 %v7392
    %7809 = vmatpush.msra.mxu0 %v7391
    %7810 = vmatpush.msra.mxu0 %v7390
    %7811 = vmatpush.msra.mxu0 %v7389
    %7812 = vmatpush.msra.mxu0 %v7388
    %7813 = vmatmul.f32.gmra.mxu0 %v7191
    %v7814 = vpop.f32.mrf.mxu0
    %v7815 = vadd.f32 %v7684, %v7814
    %7816 = vmatmul.f32.gmra.mxu0 %v7195
    %v7817 = vpop.f32.mrf.mxu0
    %v7818 = vadd.f32 %v7687, %v7817
    %7819 = vmatmul.f32.gmra.mxu0 %v7199
    %v7820 = vpop.f32.mrf.mxu0
    %v7821 = vadd.f32 %v7690, %v7820
    %7822 = vmatmul.f32.gmra.mxu0 %v7203
    %v7823 = vpop.f32.mrf.mxu0
    %v7824 = vadd.f32 %v7693, %v7823
    %7825 = vmatmul.f32.gmra.mxu0 %v7207
    %v7826 = vpop.f32.mrf.mxu0
    %v7827 = vadd.f32 %v7696, %v7826
    %7828 = vmatmul.f32.gmra.mxu0 %v7211
    %v7829 = vpop.f32.mrf.mxu0
    %v7830 = vadd.f32 %v7699, %v7829
    %7831 = vmatmul.f32.gmra.mxu0 %v7215
    %v7832 = vpop.f32.mrf.mxu0
    %v7833 = vadd.f32 %v7702, %v7832
    %7834 = vmatmul.f32.gmra.mxu0 %v7219
    %v7835 = vpop.f32.mrf.mxu0
    %v7836 = vadd.f32 %v7705, %v7835
    %7837 = vmatmul.f32.gmra.mxu0 %v7223
    %v7838 = vpop.f32.mrf.mxu0
    %v7839 = vadd.f32 %v7708, %v7838
    %7840 = vmatmul.f32.gmra.mxu0 %v7227
    %v7841 = vpop.f32.mrf.mxu0
    %v7842 = vadd.f32 %v7711, %v7841
    %7843 = vmatmul.f32.gmra.mxu0 %v7231
    %v7844 = vpop.f32.mrf.mxu0
    %v7845 = vadd.f32 %v7714, %v7844
    %7846 = vmatmul.f32.gmra.mxu0 %v7235
    %v7847 = vpop.f32.mrf.mxu0
    %v7848 = vadd.f32 %v7717, %v7847
    %7849 = vmatmul.f32.gmra.mxu0 %v7239
    %v7850 = vpop.f32.mrf.mxu0
    %v7851 = vadd.f32 %v7720, %v7850
    %7852 = vmatmul.f32.gmra.mxu0 %v7243
    %v7853 = vpop.f32.mrf.mxu0
    %v7854 = vadd.f32 %v7723, %v7853
    %7855 = vmatmul.f32.gmra.mxu0 %v7247
    %v7856 = vpop.f32.mrf.mxu0
    %v7857 = vadd.f32 %v7726, %v7856
    %7858 = vmatmul.f32.gmra.mxu0 %v7251
    %v7859 = vpop.f32.mrf.mxu0
    %v7860 = vadd.f32 %v7729, %v7859
    %7861 = vmatmul.f32.gmra.mxu0 %v7255
    %v7862 = vpop.f32.mrf.mxu0
    %v7863 = vadd.f32 %v7732, %v7862
    %7864 = vmatmul.f32.gmra.mxu0 %v7259
    %v7865 = vpop.f32.mrf.mxu0
    %v7866 = vadd.f32 %v7735, %v7865
    %7867 = vmatmul.f32.gmra.mxu0 %v7263
    %v7868 = vpop.f32.mrf.mxu0
    %v7869 = vadd.f32 %v7738, %v7868
    %7870 = vmatmul.f32.gmra.mxu0 %v7267
    %v7871 = vpop.f32.mrf.mxu0
    %v7872 = vadd.f32 %v7741, %v7871
    %7873 = vmatmul.f32.gmra.mxu0 %v7271
    %v7874 = vpop.f32.mrf.mxu0
    %v7875 = vadd.f32 %v7744, %v7874
    %7876 = vmatmul.f32.gmra.mxu0 %v7275
    %v7877 = vpop.f32.mrf.mxu0
    %v7878 = vadd.f32 %v7747, %v7877
    %7879 = vmatmul.f32.gmra.mxu0 %v7279
    %v7880 = vpop.f32.mrf.mxu0
    %v7881 = vadd.f32 %v7750, %v7880
    %7882 = vmatmul.f32.gmra.mxu0 %v7283
    %v7883 = vpop.f32.mrf.mxu0
    %v7884 = vadd.f32 %v7753, %v7883
    %7885 = vmatmul.f32.gmra.mxu0 %v7287
    %v7886 = vpop.f32.mrf.mxu0
    %v7887 = vadd.f32 %v7756, %v7886
    %7888 = vmatmul.f32.gmra.mxu0 %v7291
    %v7889 = vpop.f32.mrf.mxu0
    %v7890 = vadd.f32 %v7759, %v7889
    %7891 = vmatmul.f32.gmra.mxu0 %v7295
    %v7892 = vpop.f32.mrf.mxu0
    %v7893 = vadd.f32 %v7762, %v7892
    %7894 = vmatmul.f32.gmra.mxu0 %v7299
    %v7895 = vpop.f32.mrf.mxu0
    %v7896 = vadd.f32 %v7765, %v7895
    %7897 = vmatmul.f32.gmra.mxu0 %v7303
    %v7898 = vpop.f32.mrf.mxu0
    %v7899 = vadd.f32 %v7768, %v7898
    %7900 = vmatmul.f32.gmra.mxu0 %v7307
    %v7901 = vpop.f32.mrf.mxu0
    %v7902 = vadd.f32 %v7771, %v7901
    %7903 = vmatmul.f32.gmra.mxu0 %v7311
    %v7904 = vpop.f32.mrf.mxu0
    %v7905 = vadd.f32 %v7774, %v7904
    %7906 = vmatmul.f32.gmra.mxu0 %v7315
    %v7907 = vpop.f32.mrf.mxu0
    %v7908 = vadd.f32 %v7777, %v7907
    %7909 = vmatmul.f32.gmra.mxu0 %v7319
    %v7910 = vpop.f32.mrf.mxu0
    %v7911 = vadd.f32 %v7780, %v7910
    %7912 = vmatmul.f32.gmra.mxu0 %v7323
    %v7913 = vpop.f32.mrf.mxu0
    %v7914 = vadd.f32 %v7783, %v7913
    %7915 = vmatmul.f32.gmra.mxu0 %v7327
    %v7916 = vpop.f32.mrf.mxu0
    %v7917 = vadd.f32 %v7786, %v7916
    %7918 = vmatmul.f32.gmra.mxu0 %v7331
    %v7919 = vpop.f32.mrf.mxu0
    %v7920 = vadd.f32 %v7789, %v7919
    %7921 = vmatmul.f32.gmra.mxu0 %v7335
    %v7922 = vpop.f32.mrf.mxu0
    %v7923 = vadd.f32 %v7792, %v7922
    %7924 = vmatmul.f32.gmra.mxu0 %v7339
    %v7925 = vpop.f32.mrf.mxu0
    %v7926 = vadd.f32 %v7795, %v7925
    %7927 = vdwg.mxu0
    %v7928 = vadd.f32 %v6477, %v7815
    %v7929 = vadd.f32 %v6480, %v7818
    %v7930 = vadd.f32 %v6483, %v7821
    %v7931 = vadd.f32 %v6486, %v7824
    %v7932 = vadd.f32 %v6489, %v7827
    %v7933 = vadd.f32 %v6492, %v7830
    %v7934 = vadd.f32 %v6495, %v7833
    %v7935 = vadd.f32 %v6498, %v7836
    %v7936 = vadd.f32 %v6501, %v7839
    %v7937 = vadd.f32 %v6504, %v7842
    %v7938 = vadd.f32 %v6507, %v7845
    %v7939 = vadd.f32 %v6510, %v7848
    %v7940 = vadd.f32 %v6513, %v7851
    %v7941 = vadd.f32 %v6516, %v7854
    %v7942 = vadd.f32 %v6519, %v7857
    %v7943 = vadd.f32 %v6522, %v7860
    %v7944 = vadd.f32 %v6525, %v7863
    %v7945 = vadd.f32 %v6528, %v7866
    %v7946 = vadd.f32 %v6531, %v7869
    %v7947 = vadd.f32 %v6534, %v7872
    %v7948 = vadd.f32 %v6537, %v7875
    %v7949 = vadd.f32 %v6540, %v7878
    %v7950 = vadd.f32 %v6543, %v7881
    %v7951 = vadd.f32 %v6546, %v7884
    %v7952 = vadd.f32 %v6549, %v7887
    %v7953 = vadd.f32 %v6552, %v7890
    %v7954 = vadd.f32 %v6555, %v7893
    %v7955 = vadd.f32 %v6558, %v7896
    %v7956 = vadd.f32 %v6561, %v7899
    %v7957 = vadd.f32 %v6564, %v7902
    %v7958 = vadd.f32 %v6567, %v7905
    %v7959 = vadd.f32 %v6570, %v7908
    %v7960 = vadd.f32 %v6573, %v7911
    %v7961 = vadd.f32 %v6576, %v7914
    %v7962 = vadd.f32 %v6579, %v7917
    %v7963 = vadd.f32 %v6582, %v7920
    %v7964 = vadd.f32 %v6585, %v7923
    %v7965 = vadd.f32 %v6588, %v7926
    %v7966 = vld [vmem:[#allocation10 + $0x60] sm:$0xff]
    %v7967 = vld [vmem:[#allocation10 + $0x68] sm:$0xff]
    %v7968 = vld [vmem:[#allocation10 + $0x70] sm:$0xff]
    %v7969 = vld [vmem:[#allocation10 + $0x78] sm:$0xff]
    %v7970 = vld [vmem:[#allocation10 + $0xe0] sm:$0xff]
    %v7971 = vld [vmem:[#allocation10 + $0xe8] sm:$0xff]
    %v7972 = vld [vmem:[#allocation10 + $0xf0] sm:$0xff]
    %v7973 = vld [vmem:[#allocation10 + $0xf8] sm:$0xff]
    %v7974 = vld [vmem:[#allocation10 + $0x160] sm:$0xff]
    %v7975 = vld [vmem:[#allocation10 + $0x168] sm:$0xff]
    %v7976 = vld [vmem:[#allocation10 + $0x170] sm:$0xff]
    %v7977 = vld [vmem:[#allocation10 + $0x178] sm:$0xff]
    %v7978 = vld [vmem:[#allocation10 + $0x1e0] sm:$0xff]
    %v7979 = vld [vmem:[#allocation10 + $0x1e8] sm:$0xff]
    %v7980 = vld [vmem:[#allocation10 + $0x1f0] sm:$0xff]
    %v7981 = vld [vmem:[#allocation10 + $0x1f8] sm:$0xff]
    %v7982 = vld [vmem:[#allocation10 + $0x260] sm:$0xff]
    %v7983 = vld [vmem:[#allocation10 + $0x268] sm:$0xff]
    %v7984 = vld [vmem:[#allocation10 + $0x270] sm:$0xff]
    %v7985 = vld [vmem:[#allocation10 + $0x278] sm:$0xff]
    %v7986 = vld [vmem:[#allocation10 + $0x2e0] sm:$0xff]
    %v7987 = vld [vmem:[#allocation10 + $0x2e8] sm:$0xff]
    %v7988 = vld [vmem:[#allocation10 + $0x2f0] sm:$0xff]
    %v7989 = vld [vmem:[#allocation10 + $0x2f8] sm:$0xff]
    %v7990 = vld [vmem:[#allocation10 + $0x360] sm:$0xff]
    %v7991 = vld [vmem:[#allocation10 + $0x368] sm:$0xff]
    %v7992 = vld [vmem:[#allocation10 + $0x370] sm:$0xff]
    %v7993 = vld [vmem:[#allocation10 + $0x378] sm:$0xff]
    %v7994 = vld [vmem:[#allocation10 + $0x3e0] sm:$0xff]
    %v7995 = vld [vmem:[#allocation10 + $0x3e8] sm:$0xff]
    %v7996 = vld [vmem:[#allocation10 + $0x3f0] sm:$0xff]
    %v7997 = vld [vmem:[#allocation10 + $0x3f8] sm:$0xff]
    %v7998 = vld [vmem:[#allocation10 + $0x460] sm:$0xff]
    %v7999 = vld [vmem:[#allocation10 + $0x468] sm:$0xff]
    %v8000 = vld [vmem:[#allocation10 + $0x470] sm:$0xff]
    %v8001 = vld [vmem:[#allocation10 + $0x478] sm:$0xff]
    %v8002 = vld [vmem:[#allocation10 + $0x4e0] sm:$0xff]
    %v8003 = vld [vmem:[#allocation10 + $0x4e8] sm:$0xff]
    %v8004 = vld [vmem:[#allocation10 + $0x4f0] sm:$0xff]
    %v8005 = vld [vmem:[#allocation10 + $0x4f8] sm:$0xff]
    %v8006 = vld [vmem:[#allocation10 + $0x560] sm:$0xff]
    %v8007 = vld [vmem:[#allocation10 + $0x568] sm:$0xff]
    %v8008 = vld [vmem:[#allocation10 + $0x570] sm:$0xff]
    %v8009 = vld [vmem:[#allocation10 + $0x578] sm:$0xff]
    %v8010 = vld [vmem:[#allocation10 + $0x5e0] sm:$0xff]
    %v8011 = vld [vmem:[#allocation10 + $0x5e8] sm:$0xff]
    %v8012 = vld [vmem:[#allocation10 + $0x5f0] sm:$0xff]
    %v8013 = vld [vmem:[#allocation10 + $0x5f8] sm:$0xff]
    %v8014 = vld [vmem:[#allocation10 + $0x660] sm:$0xff]
    %v8015 = vld [vmem:[#allocation10 + $0x668] sm:$0xff]
    %v8016 = vld [vmem:[#allocation10 + $0x670] sm:$0xff]
    %v8017 = vld [vmem:[#allocation10 + $0x678] sm:$0xff]
    %v8018 = vld [vmem:[#allocation10 + $0x6e0] sm:$0xff]
    %v8019 = vld [vmem:[#allocation10 + $0x6e8] sm:$0xff]
    %v8020 = vld [vmem:[#allocation10 + $0x6f0] sm:$0xff]
    %v8021 = vld [vmem:[#allocation10 + $0x6f8] sm:$0xff]
    %v8022 = vld [vmem:[#allocation10 + $0x760] sm:$0xff]
    %v8023 = vld [vmem:[#allocation10 + $0x768] sm:$0xff]
    %v8024 = vld [vmem:[#allocation10 + $0x770] sm:$0xff]
    %v8025 = vld [vmem:[#allocation10 + $0x778] sm:$0xff]
    %v8026 = vld [vmem:[#allocation10 + $0x7e0] sm:$0xff]
    %v8027 = vld [vmem:[#allocation10 + $0x7e8] sm:$0xff]
    %v8028 = vld [vmem:[#allocation10 + $0x7f0] sm:$0xff]
    %v8029 = vld [vmem:[#allocation10 + $0x7f8] sm:$0xff]
    %v8030 = vld [vmem:[%s9 + $0xc] sm:$0xf]
    %v8032 = vperm.slane %v8030, 0
    %v8033 = vperm.slane %v8030, 1
    %v8034 = vperm.slane %v8030, 2
    %v8035 = vperm.slane %v8030, 3
    %8040 = vmatpush.msra.mxu0 %v8026
    %8041 = vmatpush.msra.mxu0 %v8022
    %8042 = vmatpush.msra.mxu0 %v8018
    %8043 = vmatpush.msra.mxu0 %v8014
    %8044 = vmatpush.msra.mxu0 %v8010
    %8045 = vmatpush.msra.mxu0 %v8006
    %8046 = vmatpush.msra.mxu0 %v8002
    %8047 = vmatpush.msra.mxu0 %v7998
    %8048 = vmatpush.msra.mxu0 %v7994
    %8049 = vmatpush.msra.mxu0 %v7990
    %8050 = vmatpush.msra.mxu0 %v7986
    %8051 = vmatpush.msra.mxu0 %v7982
    %8052 = vmatpush.msra.mxu0 %v7978
    %8053 = vmatpush.msra.mxu0 %v7974
    %8054 = vmatpush.msra.mxu0 %v7970
    %8055 = vmatpush.msra.mxu0 %v7966
    %8056 = vmatmul.f32.gmra.mxu0 %v3876
    %v8057 = vpop.f32.mrf.mxu0
    %v8058 = vadd.f32 %v8032, %v8057
    %8059 = vmatmul.f32.gmra.mxu0 %v3877
    %v8060 = vpop.f32.mrf.mxu0
    %v8061 = vadd.f32 %v8032, %v8060
    %8062 = vmatmul.f32.gmra.mxu0 %v3878
    %v8063 = vpop.f32.mrf.mxu0
    %v8064 = vadd.f32 %v8032, %v8063
    %8065 = vmatmul.f32.gmra.mxu0 %v3879
    %v8066 = vpop.f32.mrf.mxu0
    %v8067 = vadd.f32 %v8032, %v8066
    %8068 = vmatmul.f32.gmra.mxu0 %v3880
    %v8069 = vpop.f32.mrf.mxu0
    %v8070 = vadd.f32 %v8032, %v8069
    %8071 = vmatmul.f32.gmra.mxu0 %v3881
    %v8072 = vpop.f32.mrf.mxu0
    %v8073 = vadd.f32 %v8032, %v8072
    %8074 = vmatmul.f32.gmra.mxu0 %v3882
    %v8075 = vpop.f32.mrf.mxu0
    %v8076 = vadd.f32 %v8032, %v8075
    %8077 = vmatmul.f32.gmra.mxu0 %v3883
    %v8078 = vpop.f32.mrf.mxu0
    %v8079 = vadd.f32 %v8032, %v8078
    %8080 = vmatmul.f32.gmra.mxu0 %v3884
    %v8081 = vpop.f32.mrf.mxu0
    %v8082 = vadd.f32 %v8032, %v8081
    %8083 = vmatmul.f32.gmra.mxu0 %v3885
    %v8084 = vpop.f32.mrf.mxu0
    %v8085 = vadd.f32 %v8032, %v8084
    %8086 = vmatmul.f32.gmra.mxu0 %v3886
    %v8087 = vpop.f32.mrf.mxu0
    %v8088 = vadd.f32 %v8032, %v8087
    %8089 = vmatmul.f32.gmra.mxu0 %v3887
    %v8090 = vpop.f32.mrf.mxu0
    %v8091 = vadd.f32 %v8032, %v8090
    %8092 = vmatmul.f32.gmra.mxu0 %v3888
    %v8093 = vpop.f32.mrf.mxu0
    %v8094 = vadd.f32 %v8032, %v8093
    %8095 = vmatmul.f32.gmra.mxu0 %v3889
    %v8096 = vpop.f32.mrf.mxu0
    %v8097 = vadd.f32 %v8032, %v8096
    %8098 = vmatmul.f32.gmra.mxu0 %v3890
    %v8099 = vpop.f32.mrf.mxu0
    %v8100 = vadd.f32 %v8032, %v8099
    %8101 = vmatmul.f32.gmra.mxu0 %v3891
    %v8102 = vpop.f32.mrf.mxu0
    %v8103 = vadd.f32 %v8032, %v8102
    %8104 = vmatmul.f32.gmra.mxu0 %v3892
    %v8105 = vpop.f32.mrf.mxu0
    %v8106 = vadd.f32 %v8032, %v8105
    %8107 = vmatmul.f32.gmra.mxu0 %v3893
    %v8108 = vpop.f32.mrf.mxu0
    %v8109 = vadd.f32 %v8032, %v8108
    %8110 = vmatmul.f32.gmra.mxu0 %v3894
    %v8111 = vpop.f32.mrf.mxu0
    %v8112 = vadd.f32 %v8032, %v8111
    %8113 = vmatmul.f32.gmra.mxu0 %v3895
    %v8114 = vpop.f32.mrf.mxu0
    %v8115 = vadd.f32 %v8032, %v8114
    %8116 = vmatmul.f32.gmra.mxu0 %v3896
    %v8117 = vpop.f32.mrf.mxu0
    %v8118 = vadd.f32 %v8032, %v8117
    %8119 = vmatmul.f32.gmra.mxu0 %v3897
    %v8120 = vpop.f32.mrf.mxu0
    %v8121 = vadd.f32 %v8032, %v8120
    %8122 = vmatmul.f32.gmra.mxu0 %v3898
    %v8123 = vpop.f32.mrf.mxu0
    %v8124 = vadd.f32 %v8032, %v8123
    %8125 = vmatmul.f32.gmra.mxu0 %v3899
    %v8126 = vpop.f32.mrf.mxu0
    %v8127 = vadd.f32 %v8032, %v8126
    %8128 = vmatmul.f32.gmra.mxu0 %v3900
    %v8129 = vpop.f32.mrf.mxu0
    %v8130 = vadd.f32 %v8032, %v8129
    %8131 = vmatmul.f32.gmra.mxu0 %v3901
    %v8132 = vpop.f32.mrf.mxu0
    %v8133 = vadd.f32 %v8032, %v8132
    %8134 = vmatmul.f32.gmra.mxu0 %v3902
    %v8135 = vpop.f32.mrf.mxu0
    %v8136 = vadd.f32 %v8032, %v8135
    %8137 = vmatmul.f32.gmra.mxu0 %v3903
    %v8138 = vpop.f32.mrf.mxu0
    %v8139 = vadd.f32 %v8032, %v8138
    %8140 = vmatmul.f32.gmra.mxu0 %v3904
    %v8141 = vpop.f32.mrf.mxu0
    %v8142 = vadd.f32 %v8032, %v8141
    %8143 = vmatmul.f32.gmra.mxu0 %v3905
    %v8144 = vpop.f32.mrf.mxu0
    %v8145 = vadd.f32 %v8032, %v8144
    %8146 = vmatmul.f32.gmra.mxu0 %v3906
    %v8147 = vpop.f32.mrf.mxu0
    %v8148 = vadd.f32 %v8032, %v8147
    %8149 = vmatmul.f32.gmra.mxu0 %v3907
    %v8150 = vpop.f32.mrf.mxu0
    %v8151 = vadd.f32 %v8032, %v8150
    %8152 = vmatmul.f32.gmra.mxu0 %v3908
    %v8153 = vpop.f32.mrf.mxu0
    %v8154 = vadd.f32 %v8032, %v8153
    %8155 = vmatmul.f32.gmra.mxu0 %v3909
    %v8156 = vpop.f32.mrf.mxu0
    %v8157 = vadd.f32 %v8032, %v8156
    %8158 = vmatmul.f32.gmra.mxu0 %v3910
    %v8159 = vpop.f32.mrf.mxu0
    %v8160 = vadd.f32 %v8032, %v8159
    %8161 = vmatmul.f32.gmra.mxu0 %v3911
    %v8162 = vpop.f32.mrf.mxu0
    %v8163 = vadd.f32 %v8032, %v8162
    %8164 = vmatmul.f32.gmra.mxu0 %v3912
    %v8165 = vpop.f32.mrf.mxu0
    %v8166 = vadd.f32 %v8032, %v8165
    %8167 = vmatmul.f32.gmra.mxu0 %v3913
    %v8168 = vpop.f32.mrf.mxu0
    %v8169 = vadd.f32 %v8032, %v8168
    %8170 = vdwg.mxu0
    %8171 = vmatpush.msra.mxu0 %v8027
    %8172 = vmatpush.msra.mxu0 %v8023
    %8173 = vmatpush.msra.mxu0 %v8019
    %8174 = vmatpush.msra.mxu0 %v8015
    %8175 = vmatpush.msra.mxu0 %v8011
    %8176 = vmatpush.msra.mxu0 %v8007
    %8177 = vmatpush.msra.mxu0 %v8003
    %8178 = vmatpush.msra.mxu0 %v7999
    %8179 = vmatpush.msra.mxu0 %v7995
    %8180 = vmatpush.msra.mxu0 %v7991
    %8181 = vmatpush.msra.mxu0 %v7987
    %8182 = vmatpush.msra.mxu0 %v7983
    %8183 = vmatpush.msra.mxu0 %v7979
    %8184 = vmatpush.msra.mxu0 %v7975
    %8185 = vmatpush.msra.mxu0 %v7971
    %8186 = vmatpush.msra.mxu0 %v7967
    %8187 = vmatmul.f32.gmra.mxu0 %v3876
    %v8188 = vpop.f32.mrf.mxu0
    %v8189 = vadd.f32 %v8033, %v8188
    %8190 = vmatmul.f32.gmra.mxu0 %v3877
    %v8191 = vpop.f32.mrf.mxu0
    %v8192 = vadd.f32 %v8033, %v8191
    %8193 = vmatmul.f32.gmra.mxu0 %v3878
    %v8194 = vpop.f32.mrf.mxu0
    %v8195 = vadd.f32 %v8033, %v8194
    %8196 = vmatmul.f32.gmra.mxu0 %v3879
    %v8197 = vpop.f32.mrf.mxu0
    %v8198 = vadd.f32 %v8033, %v8197
    %8199 = vmatmul.f32.gmra.mxu0 %v3880
    %v8200 = vpop.f32.mrf.mxu0
    %v8201 = vadd.f32 %v8033, %v8200
    %8202 = vmatmul.f32.gmra.mxu0 %v3881
    %v8203 = vpop.f32.mrf.mxu0
    %v8204 = vadd.f32 %v8033, %v8203
    %8205 = vmatmul.f32.gmra.mxu0 %v3882
    %v8206 = vpop.f32.mrf.mxu0
    %v8207 = vadd.f32 %v8033, %v8206
    %8208 = vmatmul.f32.gmra.mxu0 %v3883
    %v8209 = vpop.f32.mrf.mxu0
    %v8210 = vadd.f32 %v8033, %v8209
    %8211 = vmatmul.f32.gmra.mxu0 %v3884
    %v8212 = vpop.f32.mrf.mxu0
    %v8213 = vadd.f32 %v8033, %v8212
    %8214 = vmatmul.f32.gmra.mxu0 %v3885
    %v8215 = vpop.f32.mrf.mxu0
    %v8216 = vadd.f32 %v8033, %v8215
    %8217 = vmatmul.f32.gmra.mxu0 %v3886
    %v8218 = vpop.f32.mrf.mxu0
    %v8219 = vadd.f32 %v8033, %v8218
    %8220 = vmatmul.f32.gmra.mxu0 %v3887
    %v8221 = vpop.f32.mrf.mxu0
    %v8222 = vadd.f32 %v8033, %v8221
    %8223 = vmatmul.f32.gmra.mxu0 %v3888
    %v8224 = vpop.f32.mrf.mxu0
    %v8225 = vadd.f32 %v8033, %v8224
    %8226 = vmatmul.f32.gmra.mxu0 %v3889
    %v8227 = vpop.f32.mrf.mxu0
    %v8228 = vadd.f32 %v8033, %v8227
    %8229 = vmatmul.f32.gmra.mxu0 %v3890
    %v8230 = vpop.f32.mrf.mxu0
    %v8231 = vadd.f32 %v8033, %v8230
    %8232 = vmatmul.f32.gmra.mxu0 %v3891
    %v8233 = vpop.f32.mrf.mxu0
    %v8234 = vadd.f32 %v8033, %v8233
    %8235 = vmatmul.f32.gmra.mxu0 %v3892
    %v8236 = vpop.f32.mrf.mxu0
    %v8237 = vadd.f32 %v8033, %v8236
    %8238 = vmatmul.f32.gmra.mxu0 %v3893
    %v8239 = vpop.f32.mrf.mxu0
    %v8240 = vadd.f32 %v8033, %v8239
    %8241 = vmatmul.f32.gmra.mxu0 %v3894
    %v8242 = vpop.f32.mrf.mxu0
    %v8243 = vadd.f32 %v8033, %v8242
    %8244 = vmatmul.f32.gmra.mxu0 %v3895
    %v8245 = vpop.f32.mrf.mxu0
    %v8246 = vadd.f32 %v8033, %v8245
    %8247 = vmatmul.f32.gmra.mxu0 %v3896
    %v8248 = vpop.f32.mrf.mxu0
    %v8249 = vadd.f32 %v8033, %v8248
    %8250 = vmatmul.f32.gmra.mxu0 %v3897
    %v8251 = vpop.f32.mrf.mxu0
    %v8252 = vadd.f32 %v8033, %v8251
    %8253 = vmatmul.f32.gmra.mxu0 %v3898
    %v8254 = vpop.f32.mrf.mxu0
    %v8255 = vadd.f32 %v8033, %v8254
    %8256 = vmatmul.f32.gmra.mxu0 %v3899
    %v8257 = vpop.f32.mrf.mxu0
    %v8258 = vadd.f32 %v8033, %v8257
    %8259 = vmatmul.f32.gmra.mxu0 %v3900
    %v8260 = vpop.f32.mrf.mxu0
    %v8261 = vadd.f32 %v8033, %v8260
    %8262 = vmatmul.f32.gmra.mxu0 %v3901
    %v8263 = vpop.f32.mrf.mxu0
    %v8264 = vadd.f32 %v8033, %v8263
    %8265 = vmatmul.f32.gmra.mxu0 %v3902
    %v8266 = vpop.f32.mrf.mxu0
    %v8267 = vadd.f32 %v8033, %v8266
    %8268 = vmatmul.f32.gmra.mxu0 %v3903
    %v8269 = vpop.f32.mrf.mxu0
    %v8270 = vadd.f32 %v8033, %v8269
    %8271 = vmatmul.f32.gmra.mxu0 %v3904
    %v8272 = vpop.f32.mrf.mxu0
    %v8273 = vadd.f32 %v8033, %v8272
    %8274 = vmatmul.f32.gmra.mxu0 %v3905
    %v8275 = vpop.f32.mrf.mxu0
    %v8276 = vadd.f32 %v8033, %v8275
    %8277 = vmatmul.f32.gmra.mxu0 %v3906
    %v8278 = vpop.f32.mrf.mxu0
    %v8279 = vadd.f32 %v8033, %v8278
    %8280 = vmatmul.f32.gmra.mxu0 %v3907
    %v8281 = vpop.f32.mrf.mxu0
    %v8282 = vadd.f32 %v8033, %v8281
    %8283 = vmatmul.f32.gmra.mxu0 %v3908
    %v8284 = vpop.f32.mrf.mxu0
    %v8285 = vadd.f32 %v8033, %v8284
    %8286 = vmatmul.f32.gmra.mxu0 %v3909
    %v8287 = vpop.f32.mrf.mxu0
    %v8288 = vadd.f32 %v8033, %v8287
    %8289 = vmatmul.f32.gmra.mxu0 %v3910
    %v8290 = vpop.f32.mrf.mxu0
    %v8291 = vadd.f32 %v8033, %v8290
    %8292 = vmatmul.f32.gmra.mxu0 %v3911
    %v8293 = vpop.f32.mrf.mxu0
    %v8294 = vadd.f32 %v8033, %v8293
    %8295 = vmatmul.f32.gmra.mxu0 %v3912
    %v8296 = vpop.f32.mrf.mxu0
    %v8297 = vadd.f32 %v8033, %v8296
    %8298 = vmatmul.f32.gmra.mxu0 %v3913
    %v8299 = vpop.f32.mrf.mxu0
    %v8300 = vadd.f32 %v8033, %v8299
    %8301 = vdwg.mxu0
    %8302 = vmatpush.msra.mxu0 %v8028
    %8303 = vmatpush.msra.mxu0 %v8024
    %8304 = vmatpush.msra.mxu0 %v8020
    %8305 = vmatpush.msra.mxu0 %v8016
    %8306 = vmatpush.msra.mxu0 %v8012
    %8307 = vmatpush.msra.mxu0 %v8008
    %8308 = vmatpush.msra.mxu0 %v8004
    %8309 = vmatpush.msra.mxu0 %v8000
    %8310 = vmatpush.msra.mxu0 %v7996
    %8311 = vmatpush.msra.mxu0 %v7992
    %8312 = vmatpush.msra.mxu0 %v7988
    %8313 = vmatpush.msra.mxu0 %v7984
    %8314 = vmatpush.msra.mxu0 %v7980
    %8315 = vmatpush.msra.mxu0 %v7976
    %8316 = vmatpush.msra.mxu0 %v7972
    %8317 = vmatpush.msra.mxu0 %v7968
    %8318 = vmatmul.f32.gmra.mxu0 %v3876
    %v8319 = vpop.f32.mrf.mxu0
    %v8320 = vadd.f32 %v8034, %v8319
    %8321 = vmatmul.f32.gmra.mxu0 %v3877
    %v8322 = vpop.f32.mrf.mxu0
    %v8323 = vadd.f32 %v8034, %v8322
    %8324 = vmatmul.f32.gmra.mxu0 %v3878
    %v8325 = vpop.f32.mrf.mxu0
    %v8326 = vadd.f32 %v8034, %v8325
    %8327 = vmatmul.f32.gmra.mxu0 %v3879
    %v8328 = vpop.f32.mrf.mxu0
    %v8329 = vadd.f32 %v8034, %v8328
    %8330 = vmatmul.f32.gmra.mxu0 %v3880
    %v8331 = vpop.f32.mrf.mxu0
    %v8332 = vadd.f32 %v8034, %v8331
    %8333 = vmatmul.f32.gmra.mxu0 %v3881
    %v8334 = vpop.f32.mrf.mxu0
    %v8335 = vadd.f32 %v8034, %v8334
    %8336 = vmatmul.f32.gmra.mxu0 %v3882
    %v8337 = vpop.f32.mrf.mxu0
    %v8338 = vadd.f32 %v8034, %v8337
    %8339 = vmatmul.f32.gmra.mxu0 %v3883
    %v8340 = vpop.f32.mrf.mxu0
    %v8341 = vadd.f32 %v8034, %v8340
    %8342 = vmatmul.f32.gmra.mxu0 %v3884
    %v8343 = vpop.f32.mrf.mxu0
    %v8344 = vadd.f32 %v8034, %v8343
    %8345 = vmatmul.f32.gmra.mxu0 %v3885
    %v8346 = vpop.f32.mrf.mxu0
    %v8347 = vadd.f32 %v8034, %v8346
    %8348 = vmatmul.f32.gmra.mxu0 %v3886
    %v8349 = vpop.f32.mrf.mxu0
    %v8350 = vadd.f32 %v8034, %v8349
    %8351 = vmatmul.f32.gmra.mxu0 %v3887
    %v8352 = vpop.f32.mrf.mxu0
    %v8353 = vadd.f32 %v8034, %v8352
    %8354 = vmatmul.f32.gmra.mxu0 %v3888
    %v8355 = vpop.f32.mrf.mxu0
    %v8356 = vadd.f32 %v8034, %v8355
    %8357 = vmatmul.f32.gmra.mxu0 %v3889
    %v8358 = vpop.f32.mrf.mxu0
    %v8359 = vadd.f32 %v8034, %v8358
    %8360 = vmatmul.f32.gmra.mxu0 %v3890
    %v8361 = vpop.f32.mrf.mxu0
    %v8362 = vadd.f32 %v8034, %v8361
    %8363 = vmatmul.f32.gmra.mxu0 %v3891
    %v8364 = vpop.f32.mrf.mxu0
    %v8365 = vadd.f32 %v8034, %v8364
    %8366 = vmatmul.f32.gmra.mxu0 %v3892
    %v8367 = vpop.f32.mrf.mxu0
    %v8368 = vadd.f32 %v8034, %v8367
    %8369 = vmatmul.f32.gmra.mxu0 %v3893
    %v8370 = vpop.f32.mrf.mxu0
    %v8371 = vadd.f32 %v8034, %v8370
    %8372 = vmatmul.f32.gmra.mxu0 %v3894
    %v8373 = vpop.f32.mrf.mxu0
    %v8374 = vadd.f32 %v8034, %v8373
    %8375 = vmatmul.f32.gmra.mxu0 %v3895
    %v8376 = vpop.f32.mrf.mxu0
    %v8377 = vadd.f32 %v8034, %v8376
    %8378 = vmatmul.f32.gmra.mxu0 %v3896
    %v8379 = vpop.f32.mrf.mxu0
    %v8380 = vadd.f32 %v8034, %v8379
    %8381 = vmatmul.f32.gmra.mxu0 %v3897
    %v8382 = vpop.f32.mrf.mxu0
    %v8383 = vadd.f32 %v8034, %v8382
    %8384 = vmatmul.f32.gmra.mxu0 %v3898
    %v8385 = vpop.f32.mrf.mxu0
    %v8386 = vadd.f32 %v8034, %v8385
    %8387 = vmatmul.f32.gmra.mxu0 %v3899
    %v8388 = vpop.f32.mrf.mxu0
    %v8389 = vadd.f32 %v8034, %v8388
    %8390 = vmatmul.f32.gmra.mxu0 %v3900
    %v8391 = vpop.f32.mrf.mxu0
    %v8392 = vadd.f32 %v8034, %v8391
    %8393 = vmatmul.f32.gmra.mxu0 %v3901
    %v8394 = vpop.f32.mrf.mxu0
    %v8395 = vadd.f32 %v8034, %v8394
    %8396 = vmatmul.f32.gmra.mxu0 %v3902
    %v8397 = vpop.f32.mrf.mxu0
    %v8398 = vadd.f32 %v8034, %v8397
    %8399 = vmatmul.f32.gmra.mxu0 %v3903
    %v8400 = vpop.f32.mrf.mxu0
    %v8401 = vadd.f32 %v8034, %v8400
    %8402 = vmatmul.f32.gmra.mxu0 %v3904
    %v8403 = vpop.f32.mrf.mxu0
    %v8404 = vadd.f32 %v8034, %v8403
    %8405 = vmatmul.f32.gmra.mxu0 %v3905
    %v8406 = vpop.f32.mrf.mxu0
    %v8407 = vadd.f32 %v8034, %v8406
    %8408 = vmatmul.f32.gmra.mxu0 %v3906
    %v8409 = vpop.f32.mrf.mxu0
    %v8410 = vadd.f32 %v8034, %v8409
    %8411 = vmatmul.f32.gmra.mxu0 %v3907
    %v8412 = vpop.f32.mrf.mxu0
    %v8413 = vadd.f32 %v8034, %v8412
    %8414 = vmatmul.f32.gmra.mxu0 %v3908
    %v8415 = vpop.f32.mrf.mxu0
    %v8416 = vadd.f32 %v8034, %v8415
    %8417 = vmatmul.f32.gmra.mxu0 %v3909
    %v8418 = vpop.f32.mrf.mxu0
    %v8419 = vadd.f32 %v8034, %v8418
    %8420 = vmatmul.f32.gmra.mxu0 %v3910
    %v8421 = vpop.f32.mrf.mxu0
    %v8422 = vadd.f32 %v8034, %v8421
    %8423 = vmatmul.f32.gmra.mxu0 %v3911
    %v8424 = vpop.f32.mrf.mxu0
    %v8425 = vadd.f32 %v8034, %v8424
    %8426 = vmatmul.f32.gmra.mxu0 %v3912
    %v8427 = vpop.f32.mrf.mxu0
    %v8428 = vadd.f32 %v8034, %v8427
    %8429 = vmatmul.f32.gmra.mxu0 %v3913
    %v8430 = vpop.f32.mrf.mxu0
    %v8431 = vadd.f32 %v8034, %v8430
    %8432 = vdwg.mxu0
    %8433 = vmatpush.msra.mxu0 %v8029
    %8434 = vmatpush.msra.mxu0 %v8025
    %8435 = vmatpush.msra.mxu0 %v8021
    %8436 = vmatpush.msra.mxu0 %v8017
    %8437 = vmatpush.msra.mxu0 %v8013
    %8438 = vmatpush.msra.mxu0 %v8009
    %8439 = vmatpush.msra.mxu0 %v8005
    %8440 = vmatpush.msra.mxu0 %v8001
    %8441 = vmatpush.msra.mxu0 %v7997
    %8442 = vmatpush.msra.mxu0 %v7993
    %8443 = vmatpush.msra.mxu0 %v7989
    %8444 = vmatpush.msra.mxu0 %v7985
    %8445 = vmatpush.msra.mxu0 %v7981
    %8446 = vmatpush.msra.mxu0 %v7977
    %8447 = vmatpush.msra.mxu0 %v7973
    %8448 = vmatpush.msra.mxu0 %v7969
    %8449 = vmatmul.f32.gmra.mxu0 %v3876
    %v8450 = vpop.f32.mrf.mxu0
    %v8451 = vadd.f32 %v8035, %v8450
    %8452 = vmatmul.f32.gmra.mxu0 %v3877
    %v8453 = vpop.f32.mrf.mxu0
    %v8454 = vadd.f32 %v8035, %v8453
    %8455 = vmatmul.f32.gmra.mxu0 %v3878
    %v8456 = vpop.f32.mrf.mxu0
    %v8457 = vadd.f32 %v8035, %v8456
    %8458 = vmatmul.f32.gmra.mxu0 %v3879
    %v8459 = vpop.f32.mrf.mxu0
    %v8460 = vadd.f32 %v8035, %v8459
    %8461 = vmatmul.f32.gmra.mxu0 %v3880
    %v8462 = vpop.f32.mrf.mxu0
    %v8463 = vadd.f32 %v8035, %v8462
    %8464 = vmatmul.f32.gmra.mxu0 %v3881
    %v8465 = vpop.f32.mrf.mxu0
    %v8466 = vadd.f32 %v8035, %v8465
    %8467 = vmatmul.f32.gmra.mxu0 %v3882
    %v8468 = vpop.f32.mrf.mxu0
    %v8469 = vadd.f32 %v8035, %v8468
    %8470 = vmatmul.f32.gmra.mxu0 %v3883
    %v8471 = vpop.f32.mrf.mxu0
    %v8472 = vadd.f32 %v8035, %v8471
    %8473 = vmatmul.f32.gmra.mxu0 %v3884
    %v8474 = vpop.f32.mrf.mxu0
    %v8475 = vadd.f32 %v8035, %v8474
    %8476 = vmatmul.f32.gmra.mxu0 %v3885
    %v8477 = vpop.f32.mrf.mxu0
    %v8478 = vadd.f32 %v8035, %v8477
    %8479 = vmatmul.f32.gmra.mxu0 %v3886
    %v8480 = vpop.f32.mrf.mxu0
    %v8481 = vadd.f32 %v8035, %v8480
    %8482 = vmatmul.f32.gmra.mxu0 %v3887
    %v8483 = vpop.f32.mrf.mxu0
    %v8484 = vadd.f32 %v8035, %v8483
    %8485 = vmatmul.f32.gmra.mxu0 %v3888
    %v8486 = vpop.f32.mrf.mxu0
    %v8487 = vadd.f32 %v8035, %v8486
    %8488 = vmatmul.f32.gmra.mxu0 %v3889
    %v8489 = vpop.f32.mrf.mxu0
    %v8490 = vadd.f32 %v8035, %v8489
    %8491 = vmatmul.f32.gmra.mxu0 %v3890
    %v8492 = vpop.f32.mrf.mxu0
    %v8493 = vadd.f32 %v8035, %v8492
    %8494 = vmatmul.f32.gmra.mxu0 %v3891
    %v8495 = vpop.f32.mrf.mxu0
    %v8496 = vadd.f32 %v8035, %v8495
    %8497 = vmatmul.f32.gmra.mxu0 %v3892
    %v8498 = vpop.f32.mrf.mxu0
    %v8499 = vadd.f32 %v8035, %v8498
    %8500 = vmatmul.f32.gmra.mxu0 %v3893
    %v8501 = vpop.f32.mrf.mxu0
    %v8502 = vadd.f32 %v8035, %v8501
    %8503 = vmatmul.f32.gmra.mxu0 %v3894
    %v8504 = vpop.f32.mrf.mxu0
    %v8505 = vadd.f32 %v8035, %v8504
    %8506 = vmatmul.f32.gmra.mxu0 %v3895
    %v8507 = vpop.f32.mrf.mxu0
    %v8508 = vadd.f32 %v8035, %v8507
    %8509 = vmatmul.f32.gmra.mxu0 %v3896
    %v8510 = vpop.f32.mrf.mxu0
    %v8511 = vadd.f32 %v8035, %v8510
    %8512 = vmatmul.f32.gmra.mxu0 %v3897
    %v8513 = vpop.f32.mrf.mxu0
    %v8514 = vadd.f32 %v8035, %v8513
    %8515 = vmatmul.f32.gmra.mxu0 %v3898
    %v8516 = vpop.f32.mrf.mxu0
    %v8517 = vadd.f32 %v8035, %v8516
    %8518 = vmatmul.f32.gmra.mxu0 %v3899
    %v8519 = vpop.f32.mrf.mxu0
    %v8520 = vadd.f32 %v8035, %v8519
    %8521 = vmatmul.f32.gmra.mxu0 %v3900
    %v8522 = vpop.f32.mrf.mxu0
    %v8523 = vadd.f32 %v8035, %v8522
    %8524 = vmatmul.f32.gmra.mxu0 %v3901
    %v8525 = vpop.f32.mrf.mxu0
    %v8526 = vadd.f32 %v8035, %v8525
    %8527 = vmatmul.f32.gmra.mxu0 %v3902
    %v8528 = vpop.f32.mrf.mxu0
    %v8529 = vadd.f32 %v8035, %v8528
    %8530 = vmatmul.f32.gmra.mxu0 %v3903
    %v8531 = vpop.f32.mrf.mxu0
    %v8532 = vadd.f32 %v8035, %v8531
    %8533 = vmatmul.f32.gmra.mxu0 %v3904
    %v8534 = vpop.f32.mrf.mxu0
    %v8535 = vadd.f32 %v8035, %v8534
    %8536 = vmatmul.f32.gmra.mxu0 %v3905
    %v8537 = vpop.f32.mrf.mxu0
    %v8538 = vadd.f32 %v8035, %v8537
    %8539 = vmatmul.f32.gmra.mxu0 %v3906
    %v8540 = vpop.f32.mrf.mxu0
    %v8541 = vadd.f32 %v8035, %v8540
    %8542 = vmatmul.f32.gmra.mxu0 %v3907
    %v8543 = vpop.f32.mrf.mxu0
    %v8544 = vadd.f32 %v8035, %v8543
    %8545 = vmatmul.f32.gmra.mxu0 %v3908
    %v8546 = vpop.f32.mrf.mxu0
    %v8547 = vadd.f32 %v8035, %v8546
    %8548 = vmatmul.f32.gmra.mxu0 %v3909
    %v8549 = vpop.f32.mrf.mxu0
    %v8550 = vadd.f32 %v8035, %v8549
    %8551 = vmatmul.f32.gmra.mxu0 %v3910
    %v8552 = vpop.f32.mrf.mxu0
    %v8553 = vadd.f32 %v8035, %v8552
    %8554 = vmatmul.f32.gmra.mxu0 %v3911
    %v8555 = vpop.f32.mrf.mxu0
    %v8556 = vadd.f32 %v8035, %v8555
    %8557 = vmatmul.f32.gmra.mxu0 %v3912
    %v8558 = vpop.f32.mrf.mxu0
    %v8559 = vadd.f32 %v8035, %v8558
    %8560 = vmatmul.f32.gmra.mxu0 %v3913
    %v8561 = vpop.f32.mrf.mxu0
    %v8562 = vadd.f32 %v8035, %v8561
    %8563 = vdwg.mxu0
    %v8564 = vmax.f32 %v8058, 0.0
    %v8565 = vmax.f32 %v8189, 0.0
    %v8566 = vmax.f32 %v8320, 0.0
    %v8567 = vmax.f32 %v8451, 0.0
    %v8568 = vmax.f32 %v8061, 0.0
    %v8569 = vmax.f32 %v8192, 0.0
    %v8570 = vmax.f32 %v8323, 0.0
    %v8571 = vmax.f32 %v8454, 0.0
    %v8572 = vmax.f32 %v8064, 0.0
    %v8573 = vmax.f32 %v8195, 0.0
    %v8574 = vmax.f32 %v8326, 0.0
    %v8575 = vmax.f32 %v8457, 0.0
    %v8576 = vmax.f32 %v8067, 0.0
    %v8577 = vmax.f32 %v8198, 0.0
    %v8578 = vmax.f32 %v8329, 0.0
    %v8579 = vmax.f32 %v8460, 0.0
    %v8580 = vmax.f32 %v8070, 0.0
    %v8581 = vmax.f32 %v8201, 0.0
    %v8582 = vmax.f32 %v8332, 0.0
    %v8583 = vmax.f32 %v8463, 0.0
    %v8584 = vmax.f32 %v8073, 0.0
    %v8585 = vmax.f32 %v8204, 0.0
    %v8586 = vmax.f32 %v8335, 0.0
    %v8587 = vmax.f32 %v8466, 0.0
    %v8588 = vmax.f32 %v8076, 0.0
    %v8589 = vmax.f32 %v8207, 0.0
    %v8590 = vmax.f32 %v8338, 0.0
    %v8591 = vmax.f32 %v8469, 0.0
    %v8592 = vmax.f32 %v8079, 0.0
    %v8593 = vmax.f32 %v8210, 0.0
    %v8594 = vmax.f32 %v8341, 0.0
    %v8595 = vmax.f32 %v8472, 0.0
    %v8596 = vmax.f32 %v8082, 0.0
    %v8597 = vmax.f32 %v8213, 0.0
    %v8598 = vmax.f32 %v8344, 0.0
    %v8599 = vmax.f32 %v8475, 0.0
    %v8600 = vmax.f32 %v8085, 0.0
    %v8601 = vmax.f32 %v8216, 0.0
    %v8602 = vmax.f32 %v8347, 0.0
    %v8603 = vmax.f32 %v8478, 0.0
    %v8604 = vmax.f32 %v8088, 0.0
    %v8605 = vmax.f32 %v8219, 0.0
    %v8606 = vmax.f32 %v8350, 0.0
    %v8607 = vmax.f32 %v8481, 0.0
    %v8608 = vmax.f32 %v8091, 0.0
    %v8609 = vmax.f32 %v8222, 0.0
    %v8610 = vmax.f32 %v8353, 0.0
    %v8611 = vmax.f32 %v8484, 0.0
    %v8612 = vmax.f32 %v8094, 0.0
    %v8613 = vmax.f32 %v8225, 0.0
    %v8614 = vmax.f32 %v8356, 0.0
    %v8615 = vmax.f32 %v8487, 0.0
    %v8616 = vmax.f32 %v8097, 0.0
    %v8617 = vmax.f32 %v8228, 0.0
    %v8618 = vmax.f32 %v8359, 0.0
    %v8619 = vmax.f32 %v8490, 0.0
    %v8620 = vmax.f32 %v8100, 0.0
    %v8621 = vmax.f32 %v8231, 0.0
    %v8622 = vmax.f32 %v8362, 0.0
    %v8623 = vmax.f32 %v8493, 0.0
    %v8624 = vmax.f32 %v8103, 0.0
    %v8625 = vmax.f32 %v8234, 0.0
    %v8626 = vmax.f32 %v8365, 0.0
    %v8627 = vmax.f32 %v8496, 0.0
    %v8628 = vmax.f32 %v8106, 0.0
    %v8629 = vmax.f32 %v8237, 0.0
    %v8630 = vmax.f32 %v8368, 0.0
    %v8631 = vmax.f32 %v8499, 0.0
    %v8632 = vmax.f32 %v8109, 0.0
    %v8633 = vmax.f32 %v8240, 0.0
    %v8634 = vmax.f32 %v8371, 0.0
    %v8635 = vmax.f32 %v8502, 0.0
    %v8636 = vmax.f32 %v8112, 0.0
    %v8637 = vmax.f32 %v8243, 0.0
    %v8638 = vmax.f32 %v8374, 0.0
    %v8639 = vmax.f32 %v8505, 0.0
    %v8640 = vmax.f32 %v8115, 0.0
    %v8641 = vmax.f32 %v8246, 0.0
    %v8642 = vmax.f32 %v8377, 0.0
    %v8643 = vmax.f32 %v8508, 0.0
    %v8644 = vmax.f32 %v8118, 0.0
    %v8645 = vmax.f32 %v8249, 0.0
    %v8646 = vmax.f32 %v8380, 0.0
    %v8647 = vmax.f32 %v8511, 0.0
    %v8648 = vmax.f32 %v8121, 0.0
    %v8649 = vmax.f32 %v8252, 0.0
    %v8650 = vmax.f32 %v8383, 0.0
    %v8651 = vmax.f32 %v8514, 0.0
    %v8652 = vmax.f32 %v8124, 0.0
    %v8653 = vmax.f32 %v8255, 0.0
    %v8654 = vmax.f32 %v8386, 0.0
    %v8655 = vmax.f32 %v8517, 0.0
    %v8656 = vmax.f32 %v8127, 0.0
    %v8657 = vmax.f32 %v8258, 0.0
    %v8658 = vmax.f32 %v8389, 0.0
    %v8659 = vmax.f32 %v8520, 0.0
    %v8660 = vmax.f32 %v8130, 0.0
    %v8661 = vmax.f32 %v8261, 0.0
    %v8662 = vmax.f32 %v8392, 0.0
    %v8663 = vmax.f32 %v8523, 0.0
    %v8664 = vmax.f32 %v8133, 0.0
    %v8665 = vmax.f32 %v8264, 0.0
    %v8666 = vmax.f32 %v8395, 0.0
    %v8667 = vmax.f32 %v8526, 0.0
    %v8668 = vmax.f32 %v8136, 0.0
    %v8669 = vmax.f32 %v8267, 0.0
    %v8670 = vmax.f32 %v8398, 0.0
    %v8671 = vmax.f32 %v8529, 0.0
    %v8672 = vmax.f32 %v8139, 0.0
    %v8673 = vmax.f32 %v8270, 0.0
    %v8674 = vmax.f32 %v8401, 0.0
    %v8675 = vmax.f32 %v8532, 0.0
    %v8676 = vmax.f32 %v8142, 0.0
    %v8677 = vmax.f32 %v8273, 0.0
    %v8678 = vmax.f32 %v8404, 0.0
    %v8679 = vmax.f32 %v8535, 0.0
    %v8680 = vmax.f32 %v8145, 0.0
    %v8681 = vmax.f32 %v8276, 0.0
    %v8682 = vmax.f32 %v8407, 0.0
    %v8683 = vmax.f32 %v8538, 0.0
    %v8684 = vmax.f32 %v8148, 0.0
    %v8685 = vmax.f32 %v8279, 0.0
    %v8686 = vmax.f32 %v8410, 0.0
    %v8687 = vmax.f32 %v8541, 0.0
    %v8688 = vmax.f32 %v8151, 0.0
    %v8689 = vmax.f32 %v8282, 0.0
    %v8690 = vmax.f32 %v8413, 0.0
    %v8691 = vmax.f32 %v8544, 0.0
    %v8692 = vmax.f32 %v8154, 0.0
    %v8693 = vmax.f32 %v8285, 0.0
    %v8694 = vmax.f32 %v8416, 0.0
    %v8695 = vmax.f32 %v8547, 0.0
    %v8696 = vmax.f32 %v8157, 0.0
    %v8697 = vmax.f32 %v8288, 0.0
    %v8698 = vmax.f32 %v8419, 0.0
    %v8699 = vmax.f32 %v8550, 0.0
    %v8700 = vmax.f32 %v8160, 0.0
    %v8701 = vmax.f32 %v8291, 0.0
    %v8702 = vmax.f32 %v8422, 0.0
    %v8703 = vmax.f32 %v8553, 0.0
    %v8704 = vmax.f32 %v8163, 0.0
    %v8705 = vmax.f32 %v8294, 0.0
    %v8706 = vmax.f32 %v8425, 0.0
    %v8707 = vmax.f32 %v8556, 0.0
    %v8708 = vmax.f32 %v8166, 0.0
    %v8709 = vmax.f32 %v8297, 0.0
    %v8710 = vmax.f32 %v8428, 0.0
    %v8711 = vmax.f32 %v8559, 0.0
    %v8712 = vmax.f32 %v8169, 0.0
    %v8713 = vmax.f32 %v8300, 0.0
    %v8714 = vmax.f32 %v8431, 0.0
    %v8715 = vmax.f32 %v8562, 0.0
    %v8716 = vld [vmem:[#allocation12 + $0x600] sm:$0xff]
    %v8717 = vld [vmem:[#allocation12 + $0x608] sm:$0xff]
    %v8718 = vld [vmem:[#allocation12 + $0x610] sm:$0xff]
    %v8719 = vld [vmem:[#allocation12 + $0x618] sm:$0xff]
    %v8720 = vld [vmem:[#allocation12 + $0x620] sm:$0xff]
    %v8721 = vld [vmem:[#allocation12 + $0x628] sm:$0xff]
    %v8722 = vld [vmem:[#allocation12 + $0x630] sm:$0xff]
    %v8723 = vld [vmem:[#allocation12 + $0x638] sm:$0xff]
    %v8724 = vld [vmem:[#allocation12 + $0x640] sm:$0xff]
    %v8725 = vld [vmem:[#allocation12 + $0x648] sm:$0xff]
    %v8726 = vld [vmem:[#allocation12 + $0x650] sm:$0xff]
    %v8727 = vld [vmem:[#allocation12 + $0x658] sm:$0xff]
    %v8728 = vld [vmem:[#allocation12 + $0x660] sm:$0xff]
    %v8729 = vld [vmem:[#allocation12 + $0x668] sm:$0xff]
    %v8730 = vld [vmem:[#allocation12 + $0x670] sm:$0xff]
    %v8731 = vld [vmem:[#allocation12 + $0x678] sm:$0xff]
    %v8732 = vld [vmem:[#allocation12 + $0x680] sm:$0xff]
    %v8733 = vld [vmem:[#allocation12 + $0x688] sm:$0xff]
    %v8734 = vld [vmem:[#allocation12 + $0x690] sm:$0xff]
    %v8735 = vld [vmem:[#allocation12 + $0x698] sm:$0xff]
    %v8736 = vld [vmem:[#allocation12 + $0x6a0] sm:$0xff]
    %v8737 = vld [vmem:[#allocation12 + $0x6a8] sm:$0xff]
    %v8738 = vld [vmem:[#allocation12 + $0x6b0] sm:$0xff]
    %v8739 = vld [vmem:[#allocation12 + $0x6b8] sm:$0xff]
    %v8740 = vld [vmem:[#allocation12 + $0x6c0] sm:$0xff]
    %v8741 = vld [vmem:[#allocation12 + $0x6c8] sm:$0xff]
    %v8742 = vld [vmem:[#allocation12 + $0x6d0] sm:$0xff]
    %v8743 = vld [vmem:[#allocation12 + $0x6d8] sm:$0xff]
    %v8744 = vld [vmem:[#allocation12 + $0x6e0] sm:$0xff]
    %v8745 = vld [vmem:[#allocation12 + $0x6e8] sm:$0xff]
    %v8746 = vld [vmem:[#allocation12 + $0x6f0] sm:$0xff]
    %v8747 = vld [vmem:[#allocation12 + $0x6f8] sm:$0xff]
    %v8748 = vld [vmem:[#allocation12 + $0x700] sm:$0xff]
    %v8749 = vld [vmem:[#allocation12 + $0x708] sm:$0xff]
    %v8750 = vld [vmem:[#allocation12 + $0x710] sm:$0xff]
    %v8751 = vld [vmem:[#allocation12 + $0x718] sm:$0xff]
    %v8752 = vld [vmem:[#allocation12 + $0x720] sm:$0xff]
    %v8753 = vld [vmem:[#allocation12 + $0x728] sm:$0xff]
    %v8754 = vld [vmem:[#allocation12 + $0x730] sm:$0xff]
    %v8755 = vld [vmem:[#allocation12 + $0x738] sm:$0xff]
    %v8756 = vld [vmem:[#allocation12 + $0x740] sm:$0xff]
    %v8757 = vld [vmem:[#allocation12 + $0x748] sm:$0xff]
    %v8758 = vld [vmem:[#allocation12 + $0x750] sm:$0xff]
    %v8759 = vld [vmem:[#allocation12 + $0x758] sm:$0xff]
    %v8760 = vld [vmem:[#allocation12 + $0x760] sm:$0xff]
    %v8761 = vld [vmem:[#allocation12 + $0x768] sm:$0xff]
    %v8762 = vld [vmem:[#allocation12 + $0x770] sm:$0xff]
    %v8763 = vld [vmem:[#allocation12 + $0x778] sm:$0xff]
    %v8764 = vld [vmem:[#allocation12 + $0x780] sm:$0xff]
    %v8765 = vld [vmem:[#allocation12 + $0x788] sm:$0xff]
    %v8766 = vld [vmem:[#allocation12 + $0x790] sm:$0xff]
    %v8767 = vld [vmem:[#allocation12 + $0x798] sm:$0xff]
    %v8768 = vld [vmem:[#allocation12 + $0x7a0] sm:$0xff]
    %v8769 = vld [vmem:[#allocation12 + $0x7a8] sm:$0xff]
    %v8770 = vld [vmem:[#allocation12 + $0x7b0] sm:$0xff]
    %v8771 = vld [vmem:[#allocation12 + $0x7b8] sm:$0xff]
    %v8772 = vld [vmem:[#allocation12 + $0x7c0] sm:$0xff]
    %v8773 = vld [vmem:[#allocation12 + $0x7c8] sm:$0xff]
    %v8774 = vld [vmem:[#allocation12 + $0x7d0] sm:$0xff]
    %v8775 = vld [vmem:[#allocation12 + $0x7d8] sm:$0xff]
    %v8776 = vld [vmem:[#allocation12 + $0x7e0] sm:$0xff]
    %v8777 = vld [vmem:[#allocation12 + $0x7e8] sm:$0xff]
    %v8778 = vld [vmem:[#allocation12 + $0x7f0] sm:$0xff]
    %v8779 = vld [vmem:[#allocation12 + $0x7f8] sm:$0xff]
    %8780 = vmatpush.msra.mxu0 %v8731
    %8781 = vmatpush.msra.mxu0 %v8730
    %8782 = vmatpush.msra.mxu0 %v8729
    %8783 = vmatpush.msra.mxu0 %v8728
    %8784 = vmatpush.msra.mxu0 %v8727
    %8785 = vmatpush.msra.mxu0 %v8726
    %8786 = vmatpush.msra.mxu0 %v8725
    %8787 = vmatpush.msra.mxu0 %v8724
    %8788 = vmatpush.msra.mxu0 %v8723
    %8789 = vmatpush.msra.mxu0 %v8722
    %8790 = vmatpush.msra.mxu0 %v8721
    %8791 = vmatpush.msra.mxu0 %v8720
    %8792 = vmatpush.msra.mxu0 %v8719
    %8793 = vmatpush.msra.mxu0 %v8718
    %8794 = vmatpush.msra.mxu0 %v8717
    %8795 = vmatpush.msra.mxu0 %v8716
    %8796 = vmatmul.f32.gmra.mxu0 %v8564
    %v8797 = vpop.f32.mrf.mxu0
    %v8798 = vadd.f32 0.0, %v8797
    %8799 = vmatmul.f32.gmra.mxu0 %v8568
    %v8800 = vpop.f32.mrf.mxu0
    %v8801 = vadd.f32 0.0, %v8800
    %8802 = vmatmul.f32.gmra.mxu0 %v8572
    %v8803 = vpop.f32.mrf.mxu0
    %v8804 = vadd.f32 0.0, %v8803
    %8805 = vmatmul.f32.gmra.mxu0 %v8576
    %v8806 = vpop.f32.mrf.mxu0
    %v8807 = vadd.f32 0.0, %v8806
    %8808 = vmatmul.f32.gmra.mxu0 %v8580
    %v8809 = vpop.f32.mrf.mxu0
    %v8810 = vadd.f32 0.0, %v8809
    %8811 = vmatmul.f32.gmra.mxu0 %v8584
    %v8812 = vpop.f32.mrf.mxu0
    %v8813 = vadd.f32 0.0, %v8812
    %8814 = vmatmul.f32.gmra.mxu0 %v8588
    %v8815 = vpop.f32.mrf.mxu0
    %v8816 = vadd.f32 0.0, %v8815
    %8817 = vmatmul.f32.gmra.mxu0 %v8592
    %v8818 = vpop.f32.mrf.mxu0
    %v8819 = vadd.f32 0.0, %v8818
    %8820 = vmatmul.f32.gmra.mxu0 %v8596
    %v8821 = vpop.f32.mrf.mxu0
    %v8822 = vadd.f32 0.0, %v8821
    %8823 = vmatmul.f32.gmra.mxu0 %v8600
    %v8824 = vpop.f32.mrf.mxu0
    %v8825 = vadd.f32 0.0, %v8824
    %8826 = vmatmul.f32.gmra.mxu0 %v8604
    %v8827 = vpop.f32.mrf.mxu0
    %v8828 = vadd.f32 0.0, %v8827
    %8829 = vmatmul.f32.gmra.mxu0 %v8608
    %v8830 = vpop.f32.mrf.mxu0
    %v8831 = vadd.f32 0.0, %v8830
    %8832 = vmatmul.f32.gmra.mxu0 %v8612
    %v8833 = vpop.f32.mrf.mxu0
    %v8834 = vadd.f32 0.0, %v8833
    %8835 = vmatmul.f32.gmra.mxu0 %v8616
    %v8836 = vpop.f32.mrf.mxu0
    %v8837 = vadd.f32 0.0, %v8836
    %8838 = vmatmul.f32.gmra.mxu0 %v8620
    %v8839 = vpop.f32.mrf.mxu0
    %v8840 = vadd.f32 0.0, %v8839
    %8841 = vmatmul.f32.gmra.mxu0 %v8624
    %v8842 = vpop.f32.mrf.mxu0
    %v8843 = vadd.f32 0.0, %v8842
    %8844 = vmatmul.f32.gmra.mxu0 %v8628
    %v8845 = vpop.f32.mrf.mxu0
    %v8846 = vadd.f32 0.0, %v8845
    %8847 = vmatmul.f32.gmra.mxu0 %v8632
    %v8848 = vpop.f32.mrf.mxu0
    %v8849 = vadd.f32 0.0, %v8848
    %8850 = vmatmul.f32.gmra.mxu0 %v8636
    %v8851 = vpop.f32.mrf.mxu0
    %v8852 = vadd.f32 0.0, %v8851
    %8853 = vmatmul.f32.gmra.mxu0 %v8640
    %v8854 = vpop.f32.mrf.mxu0
    %v8855 = vadd.f32 0.0, %v8854
    %8856 = vmatmul.f32.gmra.mxu0 %v8644
    %v8857 = vpop.f32.mrf.mxu0
    %v8858 = vadd.f32 0.0, %v8857
    %8859 = vmatmul.f32.gmra.mxu0 %v8648
    %v8860 = vpop.f32.mrf.mxu0
    %v8861 = vadd.f32 0.0, %v8860
    %8862 = vmatmul.f32.gmra.mxu0 %v8652
    %v8863 = vpop.f32.mrf.mxu0
    %v8864 = vadd.f32 0.0, %v8863
    %8865 = vmatmul.f32.gmra.mxu0 %v8656
    %v8866 = vpop.f32.mrf.mxu0
    %v8867 = vadd.f32 0.0, %v8866
    %8868 = vmatmul.f32.gmra.mxu0 %v8660
    %v8869 = vpop.f32.mrf.mxu0
    %v8870 = vadd.f32 0.0, %v8869
    %8871 = vmatmul.f32.gmra.mxu0 %v8664
    %v8872 = vpop.f32.mrf.mxu0
    %v8873 = vadd.f32 0.0, %v8872
    %8874 = vmatmul.f32.gmra.mxu0 %v8668
    %v8875 = vpop.f32.mrf.mxu0
    %v8876 = vadd.f32 0.0, %v8875
    %8877 = vmatmul.f32.gmra.mxu0 %v8672
    %v8878 = vpop.f32.mrf.mxu0
    %v8879 = vadd.f32 0.0, %v8878
    %8880 = vmatmul.f32.gmra.mxu0 %v8676
    %v8881 = vpop.f32.mrf.mxu0
    %v8882 = vadd.f32 0.0, %v8881
    %8883 = vmatmul.f32.gmra.mxu0 %v8680
    %v8884 = vpop.f32.mrf.mxu0
    %v8885 = vadd.f32 0.0, %v8884
    %8886 = vmatmul.f32.gmra.mxu0 %v8684
    %v8887 = vpop.f32.mrf.mxu0
    %v8888 = vadd.f32 0.0, %v8887
    %8889 = vmatmul.f32.gmra.mxu0 %v8688
    %v8890 = vpop.f32.mrf.mxu0
    %v8891 = vadd.f32 0.0, %v8890
    %8892 = vmatmul.f32.gmra.mxu0 %v8692
    %v8893 = vpop.f32.mrf.mxu0
    %v8894 = vadd.f32 0.0, %v8893
    %8895 = vmatmul.f32.gmra.mxu0 %v8696
    %v8896 = vpop.f32.mrf.mxu0
    %v8897 = vadd.f32 0.0, %v8896
    %8898 = vmatmul.f32.gmra.mxu0 %v8700
    %v8899 = vpop.f32.mrf.mxu0
    %v8900 = vadd.f32 0.0, %v8899
    %8901 = vmatmul.f32.gmra.mxu0 %v8704
    %v8902 = vpop.f32.mrf.mxu0
    %v8903 = vadd.f32 0.0, %v8902
    %8904 = vmatmul.f32.gmra.mxu0 %v8708
    %v8905 = vpop.f32.mrf.mxu0
    %v8906 = vadd.f32 0.0, %v8905
    %8907 = vmatmul.f32.gmra.mxu0 %v8712
    %v8908 = vpop.f32.mrf.mxu0
    %v8909 = vadd.f32 0.0, %v8908
    %8910 = vdwg.mxu0
    %8911 = vmatpush.msra.mxu0 %v8747
    %8912 = vmatpush.msra.mxu0 %v8746
    %8913 = vmatpush.msra.mxu0 %v8745
    %8914 = vmatpush.msra.mxu0 %v8744
    %8915 = vmatpush.msra.mxu0 %v8743
    %8916 = vmatpush.msra.mxu0 %v8742
    %8917 = vmatpush.msra.mxu0 %v8741
    %8918 = vmatpush.msra.mxu0 %v8740
    %8919 = vmatpush.msra.mxu0 %v8739
    %8920 = vmatpush.msra.mxu0 %v8738
    %8921 = vmatpush.msra.mxu0 %v8737
    %8922 = vmatpush.msra.mxu0 %v8736
    %8923 = vmatpush.msra.mxu0 %v8735
    %8924 = vmatpush.msra.mxu0 %v8734
    %8925 = vmatpush.msra.mxu0 %v8733
    %8926 = vmatpush.msra.mxu0 %v8732
    %8927 = vmatmul.f32.gmra.mxu0 %v8565
    %v8928 = vpop.f32.mrf.mxu0
    %v8929 = vadd.f32 %v8798, %v8928
    %8930 = vmatmul.f32.gmra.mxu0 %v8569
    %v8931 = vpop.f32.mrf.mxu0
    %v8932 = vadd.f32 %v8801, %v8931
    %8933 = vmatmul.f32.gmra.mxu0 %v8573
    %v8934 = vpop.f32.mrf.mxu0
    %v8935 = vadd.f32 %v8804, %v8934
    %8936 = vmatmul.f32.gmra.mxu0 %v8577
    %v8937 = vpop.f32.mrf.mxu0
    %v8938 = vadd.f32 %v8807, %v8937
    %8939 = vmatmul.f32.gmra.mxu0 %v8581
    %v8940 = vpop.f32.mrf.mxu0
    %v8941 = vadd.f32 %v8810, %v8940
    %8942 = vmatmul.f32.gmra.mxu0 %v8585
    %v8943 = vpop.f32.mrf.mxu0
    %v8944 = vadd.f32 %v8813, %v8943
    %8945 = vmatmul.f32.gmra.mxu0 %v8589
    %v8946 = vpop.f32.mrf.mxu0
    %v8947 = vadd.f32 %v8816, %v8946
    %8948 = vmatmul.f32.gmra.mxu0 %v8593
    %v8949 = vpop.f32.mrf.mxu0
    %v8950 = vadd.f32 %v8819, %v8949
    %8951 = vmatmul.f32.gmra.mxu0 %v8597
    %v8952 = vpop.f32.mrf.mxu0
    %v8953 = vadd.f32 %v8822, %v8952
    %8954 = vmatmul.f32.gmra.mxu0 %v8601
    %v8955 = vpop.f32.mrf.mxu0
    %v8956 = vadd.f32 %v8825, %v8955
    %8957 = vmatmul.f32.gmra.mxu0 %v8605
    %v8958 = vpop.f32.mrf.mxu0
    %v8959 = vadd.f32 %v8828, %v8958
    %8960 = vmatmul.f32.gmra.mxu0 %v8609
    %v8961 = vpop.f32.mrf.mxu0
    %v8962 = vadd.f32 %v8831, %v8961
    %8963 = vmatmul.f32.gmra.mxu0 %v8613
    %v8964 = vpop.f32.mrf.mxu0
    %v8965 = vadd.f32 %v8834, %v8964
    %8966 = vmatmul.f32.gmra.mxu0 %v8617
    %v8967 = vpop.f32.mrf.mxu0
    %v8968 = vadd.f32 %v8837, %v8967
    %8969 = vmatmul.f32.gmra.mxu0 %v8621
    %v8970 = vpop.f32.mrf.mxu0
    %v8971 = vadd.f32 %v8840, %v8970
    %8972 = vmatmul.f32.gmra.mxu0 %v8625
    %v8973 = vpop.f32.mrf.mxu0
    %v8974 = vadd.f32 %v8843, %v8973
    %8975 = vmatmul.f32.gmra.mxu0 %v8629
    %v8976 = vpop.f32.mrf.mxu0
    %v8977 = vadd.f32 %v8846, %v8976
    %8978 = vmatmul.f32.gmra.mxu0 %v8633
    %v8979 = vpop.f32.mrf.mxu0
    %v8980 = vadd.f32 %v8849, %v8979
    %8981 = vmatmul.f32.gmra.mxu0 %v8637
    %v8982 = vpop.f32.mrf.mxu0
    %v8983 = vadd.f32 %v8852, %v8982
    %8984 = vmatmul.f32.gmra.mxu0 %v8641
    %v8985 = vpop.f32.mrf.mxu0
    %v8986 = vadd.f32 %v8855, %v8985
    %8987 = vmatmul.f32.gmra.mxu0 %v8645
    %v8988 = vpop.f32.mrf.mxu0
    %v8989 = vadd.f32 %v8858, %v8988
    %8990 = vmatmul.f32.gmra.mxu0 %v8649
    %v8991 = vpop.f32.mrf.mxu0
    %v8992 = vadd.f32 %v8861, %v8991
    %8993 = vmatmul.f32.gmra.mxu0 %v8653
    %v8994 = vpop.f32.mrf.mxu0
    %v8995 = vadd.f32 %v8864, %v8994
    %8996 = vmatmul.f32.gmra.mxu0 %v8657
    %v8997 = vpop.f32.mrf.mxu0
    %v8998 = vadd.f32 %v8867, %v8997
    %8999 = vmatmul.f32.gmra.mxu0 %v8661
    %v9000 = vpop.f32.mrf.mxu0
    %v9001 = vadd.f32 %v8870, %v9000
    %9002 = vmatmul.f32.gmra.mxu0 %v8665
    %v9003 = vpop.f32.mrf.mxu0
    %v9004 = vadd.f32 %v8873, %v9003
    %9005 = vmatmul.f32.gmra.mxu0 %v8669
    %v9006 = vpop.f32.mrf.mxu0
    %v9007 = vadd.f32 %v8876, %v9006
    %9008 = vmatmul.f32.gmra.mxu0 %v8673
    %v9009 = vpop.f32.mrf.mxu0
    %v9010 = vadd.f32 %v8879, %v9009
    %9011 = vmatmul.f32.gmra.mxu0 %v8677
    %v9012 = vpop.f32.mrf.mxu0
    %v9013 = vadd.f32 %v8882, %v9012
    %9014 = vmatmul.f32.gmra.mxu0 %v8681
    %v9015 = vpop.f32.mrf.mxu0
    %v9016 = vadd.f32 %v8885, %v9015
    %9017 = vmatmul.f32.gmra.mxu0 %v8685
    %v9018 = vpop.f32.mrf.mxu0
    %v9019 = vadd.f32 %v8888, %v9018
    %9020 = vmatmul.f32.gmra.mxu0 %v8689
    %v9021 = vpop.f32.mrf.mxu0
    %v9022 = vadd.f32 %v8891, %v9021
    %9023 = vmatmul.f32.gmra.mxu0 %v8693
    %v9024 = vpop.f32.mrf.mxu0
    %v9025 = vadd.f32 %v8894, %v9024
    %9026 = vmatmul.f32.gmra.mxu0 %v8697
    %v9027 = vpop.f32.mrf.mxu0
    %v9028 = vadd.f32 %v8897, %v9027
    %9029 = vmatmul.f32.gmra.mxu0 %v8701
    %v9030 = vpop.f32.mrf.mxu0
    %v9031 = vadd.f32 %v8900, %v9030
    %9032 = vmatmul.f32.gmra.mxu0 %v8705
    %v9033 = vpop.f32.mrf.mxu0
    %v9034 = vadd.f32 %v8903, %v9033
    %9035 = vmatmul.f32.gmra.mxu0 %v8709
    %v9036 = vpop.f32.mrf.mxu0
    %v9037 = vadd.f32 %v8906, %v9036
    %9038 = vmatmul.f32.gmra.mxu0 %v8713
    %v9039 = vpop.f32.mrf.mxu0
    %v9040 = vadd.f32 %v8909, %v9039
    %9041 = vdwg.mxu0
    %9042 = vmatpush.msra.mxu0 %v8763
    %9043 = vmatpush.msra.mxu0 %v8762
    %9044 = vmatpush.msra.mxu0 %v8761
    %9045 = vmatpush.msra.mxu0 %v8760
    %9046 = vmatpush.msra.mxu0 %v8759
    %9047 = vmatpush.msra.mxu0 %v8758
    %9048 = vmatpush.msra.mxu0 %v8757
    %9049 = vmatpush.msra.mxu0 %v8756
    %9050 = vmatpush.msra.mxu0 %v8755
    %9051 = vmatpush.msra.mxu0 %v8754
    %9052 = vmatpush.msra.mxu0 %v8753
    %9053 = vmatpush.msra.mxu0 %v8752
    %9054 = vmatpush.msra.mxu0 %v8751
    %9055 = vmatpush.msra.mxu0 %v8750
    %9056 = vmatpush.msra.mxu0 %v8749
    %9057 = vmatpush.msra.mxu0 %v8748
    %9058 = vmatmul.f32.gmra.mxu0 %v8566
    %v9059 = vpop.f32.mrf.mxu0
    %v9060 = vadd.f32 %v8929, %v9059
    %9061 = vmatmul.f32.gmra.mxu0 %v8570
    %v9062 = vpop.f32.mrf.mxu0
    %v9063 = vadd.f32 %v8932, %v9062
    %9064 = vmatmul.f32.gmra.mxu0 %v8574
    %v9065 = vpop.f32.mrf.mxu0
    %v9066 = vadd.f32 %v8935, %v9065
    %9067 = vmatmul.f32.gmra.mxu0 %v8578
    %v9068 = vpop.f32.mrf.mxu0
    %v9069 = vadd.f32 %v8938, %v9068
    %9070 = vmatmul.f32.gmra.mxu0 %v8582
    %v9071 = vpop.f32.mrf.mxu0
    %v9072 = vadd.f32 %v8941, %v9071
    %9073 = vmatmul.f32.gmra.mxu0 %v8586
    %v9074 = vpop.f32.mrf.mxu0
    %v9075 = vadd.f32 %v8944, %v9074
    %9076 = vmatmul.f32.gmra.mxu0 %v8590
    %v9077 = vpop.f32.mrf.mxu0
    %v9078 = vadd.f32 %v8947, %v9077
    %9079 = vmatmul.f32.gmra.mxu0 %v8594
    %v9080 = vpop.f32.mrf.mxu0
    %v9081 = vadd.f32 %v8950, %v9080
    %9082 = vmatmul.f32.gmra.mxu0 %v8598
    %v9083 = vpop.f32.mrf.mxu0
    %v9084 = vadd.f32 %v8953, %v9083
    %9085 = vmatmul.f32.gmra.mxu0 %v8602
    %v9086 = vpop.f32.mrf.mxu0
    %v9087 = vadd.f32 %v8956, %v9086
    %9088 = vmatmul.f32.gmra.mxu0 %v8606
    %v9089 = vpop.f32.mrf.mxu0
    %v9090 = vadd.f32 %v8959, %v9089
    %9091 = vmatmul.f32.gmra.mxu0 %v8610
    %v9092 = vpop.f32.mrf.mxu0
    %v9093 = vadd.f32 %v8962, %v9092
    %9094 = vmatmul.f32.gmra.mxu0 %v8614
    %v9095 = vpop.f32.mrf.mxu0
    %v9096 = vadd.f32 %v8965, %v9095
    %9097 = vmatmul.f32.gmra.mxu0 %v8618
    %v9098 = vpop.f32.mrf.mxu0
    %v9099 = vadd.f32 %v8968, %v9098
    %9100 = vmatmul.f32.gmra.mxu0 %v8622
    %v9101 = vpop.f32.mrf.mxu0
    %v9102 = vadd.f32 %v8971, %v9101
    %9103 = vmatmul.f32.gmra.mxu0 %v8626
    %v9104 = vpop.f32.mrf.mxu0
    %v9105 = vadd.f32 %v8974, %v9104
    %9106 = vmatmul.f32.gmra.mxu0 %v8630
    %v9107 = vpop.f32.mrf.mxu0
    %v9108 = vadd.f32 %v8977, %v9107
    %9109 = vmatmul.f32.gmra.mxu0 %v8634
    %v9110 = vpop.f32.mrf.mxu0
    %v9111 = vadd.f32 %v8980, %v9110
    %9112 = vmatmul.f32.gmra.mxu0 %v8638
    %v9113 = vpop.f32.mrf.mxu0
    %v9114 = vadd.f32 %v8983, %v9113
    %9115 = vmatmul.f32.gmra.mxu0 %v8642
    %v9116 = vpop.f32.mrf.mxu0
    %v9117 = vadd.f32 %v8986, %v9116
    %9118 = vmatmul.f32.gmra.mxu0 %v8646
    %v9119 = vpop.f32.mrf.mxu0
    %v9120 = vadd.f32 %v8989, %v9119
    %9121 = vmatmul.f32.gmra.mxu0 %v8650
    %v9122 = vpop.f32.mrf.mxu0
    %v9123 = vadd.f32 %v8992, %v9122
    %9124 = vmatmul.f32.gmra.mxu0 %v8654
    %v9125 = vpop.f32.mrf.mxu0
    %v9126 = vadd.f32 %v8995, %v9125
    %9127 = vmatmul.f32.gmra.mxu0 %v8658
    %v9128 = vpop.f32.mrf.mxu0
    %v9129 = vadd.f32 %v8998, %v9128
    %9130 = vmatmul.f32.gmra.mxu0 %v8662
    %v9131 = vpop.f32.mrf.mxu0
    %v9132 = vadd.f32 %v9001, %v9131
    %9133 = vmatmul.f32.gmra.mxu0 %v8666
    %v9134 = vpop.f32.mrf.mxu0
    %v9135 = vadd.f32 %v9004, %v9134
    %9136 = vmatmul.f32.gmra.mxu0 %v8670
    %v9137 = vpop.f32.mrf.mxu0
    %v9138 = vadd.f32 %v9007, %v9137
    %9139 = vmatmul.f32.gmra.mxu0 %v8674
    %v9140 = vpop.f32.mrf.mxu0
    %v9141 = vadd.f32 %v9010, %v9140
    %9142 = vmatmul.f32.gmra.mxu0 %v8678
    %v9143 = vpop.f32.mrf.mxu0
    %v9144 = vadd.f32 %v9013, %v9143
    %9145 = vmatmul.f32.gmra.mxu0 %v8682
    %v9146 = vpop.f32.mrf.mxu0
    %v9147 = vadd.f32 %v9016, %v9146
    %9148 = vmatmul.f32.gmra.mxu0 %v8686
    %v9149 = vpop.f32.mrf.mxu0
    %v9150 = vadd.f32 %v9019, %v9149
    %9151 = vmatmul.f32.gmra.mxu0 %v8690
    %v9152 = vpop.f32.mrf.mxu0
    %v9153 = vadd.f32 %v9022, %v9152
    %9154 = vmatmul.f32.gmra.mxu0 %v8694
    %v9155 = vpop.f32.mrf.mxu0
    %v9156 = vadd.f32 %v9025, %v9155
    %9157 = vmatmul.f32.gmra.mxu0 %v8698
    %v9158 = vpop.f32.mrf.mxu0
    %v9159 = vadd.f32 %v9028, %v9158
    %9160 = vmatmul.f32.gmra.mxu0 %v8702
    %v9161 = vpop.f32.mrf.mxu0
    %v9162 = vadd.f32 %v9031, %v9161
    %9163 = vmatmul.f32.gmra.mxu0 %v8706
    %v9164 = vpop.f32.mrf.mxu0
    %v9165 = vadd.f32 %v9034, %v9164
    %9166 = vmatmul.f32.gmra.mxu0 %v8710
    %v9167 = vpop.f32.mrf.mxu0
    %v9168 = vadd.f32 %v9037, %v9167
    %9169 = vmatmul.f32.gmra.mxu0 %v8714
    %v9170 = vpop.f32.mrf.mxu0
    %v9171 = vadd.f32 %v9040, %v9170
    %9172 = vdwg.mxu0
    %9173 = vmatpush.msra.mxu0 %v8779
    %9174 = vmatpush.msra.mxu0 %v8778
    %9175 = vmatpush.msra.mxu0 %v8777
    %9176 = vmatpush.msra.mxu0 %v8776
    %9177 = vmatpush.msra.mxu0 %v8775
    %9178 = vmatpush.msra.mxu0 %v8774
    %9179 = vmatpush.msra.mxu0 %v8773
    %9180 = vmatpush.msra.mxu0 %v8772
    %9181 = vmatpush.msra.mxu0 %v8771
    %9182 = vmatpush.msra.mxu0 %v8770
    %9183 = vmatpush.msra.mxu0 %v8769
    %9184 = vmatpush.msra.mxu0 %v8768
    %9185 = vmatpush.msra.mxu0 %v8767
    %9186 = vmatpush.msra.mxu0 %v8766
    %9187 = vmatpush.msra.mxu0 %v8765
    %9188 = vmatpush.msra.mxu0 %v8764
    %9189 = vmatmul.f32.gmra.mxu0 %v8567
    %v9190 = vpop.f32.mrf.mxu0
    %v9191 = vadd.f32 %v9060, %v9190
    %9192 = vmatmul.f32.gmra.mxu0 %v8571
    %v9193 = vpop.f32.mrf.mxu0
    %v9194 = vadd.f32 %v9063, %v9193
    %9195 = vmatmul.f32.gmra.mxu0 %v8575
    %v9196 = vpop.f32.mrf.mxu0
    %v9197 = vadd.f32 %v9066, %v9196
    %9198 = vmatmul.f32.gmra.mxu0 %v8579
    %v9199 = vpop.f32.mrf.mxu0
    %v9200 = vadd.f32 %v9069, %v9199
    %9201 = vmatmul.f32.gmra.mxu0 %v8583
    %v9202 = vpop.f32.mrf.mxu0
    %v9203 = vadd.f32 %v9072, %v9202
    %9204 = vmatmul.f32.gmra.mxu0 %v8587
    %v9205 = vpop.f32.mrf.mxu0
    %v9206 = vadd.f32 %v9075, %v9205
    %9207 = vmatmul.f32.gmra.mxu0 %v8591
    %v9208 = vpop.f32.mrf.mxu0
    %v9209 = vadd.f32 %v9078, %v9208
    %9210 = vmatmul.f32.gmra.mxu0 %v8595
    %v9211 = vpop.f32.mrf.mxu0
    %v9212 = vadd.f32 %v9081, %v9211
    %9213 = vmatmul.f32.gmra.mxu0 %v8599
    %v9214 = vpop.f32.mrf.mxu0
    %v9215 = vadd.f32 %v9084, %v9214
    %9216 = vmatmul.f32.gmra.mxu0 %v8603
    %v9217 = vpop.f32.mrf.mxu0
    %v9218 = vadd.f32 %v9087, %v9217
    %9219 = vmatmul.f32.gmra.mxu0 %v8607
    %v9220 = vpop.f32.mrf.mxu0
    %v9221 = vadd.f32 %v9090, %v9220
    %9222 = vmatmul.f32.gmra.mxu0 %v8611
    %v9223 = vpop.f32.mrf.mxu0
    %v9224 = vadd.f32 %v9093, %v9223
    %9225 = vmatmul.f32.gmra.mxu0 %v8615
    %v9226 = vpop.f32.mrf.mxu0
    %v9227 = vadd.f32 %v9096, %v9226
    %9228 = vmatmul.f32.gmra.mxu0 %v8619
    %v9229 = vpop.f32.mrf.mxu0
    %v9230 = vadd.f32 %v9099, %v9229
    %9231 = vmatmul.f32.gmra.mxu0 %v8623
    %v9232 = vpop.f32.mrf.mxu0
    %v9233 = vadd.f32 %v9102, %v9232
    %9234 = vmatmul.f32.gmra.mxu0 %v8627
    %v9235 = vpop.f32.mrf.mxu0
    %v9236 = vadd.f32 %v9105, %v9235
    %9237 = vmatmul.f32.gmra.mxu0 %v8631
    %v9238 = vpop.f32.mrf.mxu0
    %v9239 = vadd.f32 %v9108, %v9238
    %9240 = vmatmul.f32.gmra.mxu0 %v8635
    %v9241 = vpop.f32.mrf.mxu0
    %v9242 = vadd.f32 %v9111, %v9241
    %9243 = vmatmul.f32.gmra.mxu0 %v8639
    %v9244 = vpop.f32.mrf.mxu0
    %v9245 = vadd.f32 %v9114, %v9244
    %9246 = vmatmul.f32.gmra.mxu0 %v8643
    %v9247 = vpop.f32.mrf.mxu0
    %v9248 = vadd.f32 %v9117, %v9247
    %9249 = vmatmul.f32.gmra.mxu0 %v8647
    %v9250 = vpop.f32.mrf.mxu0
    %v9251 = vadd.f32 %v9120, %v9250
    %9252 = vmatmul.f32.gmra.mxu0 %v8651
    %v9253 = vpop.f32.mrf.mxu0
    %v9254 = vadd.f32 %v9123, %v9253
    %9255 = vmatmul.f32.gmra.mxu0 %v8655
    %v9256 = vpop.f32.mrf.mxu0
    %v9257 = vadd.f32 %v9126, %v9256
    %9258 = vmatmul.f32.gmra.mxu0 %v8659
    %v9259 = vpop.f32.mrf.mxu0
    %v9260 = vadd.f32 %v9129, %v9259
    %9261 = vmatmul.f32.gmra.mxu0 %v8663
    %v9262 = vpop.f32.mrf.mxu0
    %v9263 = vadd.f32 %v9132, %v9262
    %9264 = vmatmul.f32.gmra.mxu0 %v8667
    %v9265 = vpop.f32.mrf.mxu0
    %v9266 = vadd.f32 %v9135, %v9265
    %9267 = vmatmul.f32.gmra.mxu0 %v8671
    %v9268 = vpop.f32.mrf.mxu0
    %v9269 = vadd.f32 %v9138, %v9268
    %9270 = vmatmul.f32.gmra.mxu0 %v8675
    %v9271 = vpop.f32.mrf.mxu0
    %v9272 = vadd.f32 %v9141, %v9271
    %9273 = vmatmul.f32.gmra.mxu0 %v8679
    %v9274 = vpop.f32.mrf.mxu0
    %v9275 = vadd.f32 %v9144, %v9274
    %9276 = vmatmul.f32.gmra.mxu0 %v8683
    %v9277 = vpop.f32.mrf.mxu0
    %v9278 = vadd.f32 %v9147, %v9277
    %9279 = vmatmul.f32.gmra.mxu0 %v8687
    %v9280 = vpop.f32.mrf.mxu0
    %v9281 = vadd.f32 %v9150, %v9280
    %9282 = vmatmul.f32.gmra.mxu0 %v8691
    %v9283 = vpop.f32.mrf.mxu0
    %v9284 = vadd.f32 %v9153, %v9283
    %9285 = vmatmul.f32.gmra.mxu0 %v8695
    %v9286 = vpop.f32.mrf.mxu0
    %v9287 = vadd.f32 %v9156, %v9286
    %9288 = vmatmul.f32.gmra.mxu0 %v8699
    %v9289 = vpop.f32.mrf.mxu0
    %v9290 = vadd.f32 %v9159, %v9289
    %9291 = vmatmul.f32.gmra.mxu0 %v8703
    %v9292 = vpop.f32.mrf.mxu0
    %v9293 = vadd.f32 %v9162, %v9292
    %9294 = vmatmul.f32.gmra.mxu0 %v8707
    %v9295 = vpop.f32.mrf.mxu0
    %v9296 = vadd.f32 %v9165, %v9295
    %9297 = vmatmul.f32.gmra.mxu0 %v8711
    %v9298 = vpop.f32.mrf.mxu0
    %v9299 = vadd.f32 %v9168, %v9298
    %9300 = vmatmul.f32.gmra.mxu0 %v8715
    %v9301 = vpop.f32.mrf.mxu0
    %v9302 = vadd.f32 %v9171, %v9301
    %9303 = vdwg.mxu0
    %v9304 = vadd.f32 %v7928, %v9191
    %v9305 = vadd.f32 %v7929, %v9194
    %v9306 = vadd.f32 %v7930, %v9197
    %v9307 = vadd.f32 %v7931, %v9200
    %v9308 = vadd.f32 %v7932, %v9203
    %v9309 = vadd.f32 %v7933, %v9206
    %v9310 = vadd.f32 %v7934, %v9209
    %v9311 = vadd.f32 %v7935, %v9212
    %v9312 = vadd.f32 %v7936, %v9215
    %v9313 = vadd.f32 %v7937, %v9218
    %v9314 = vadd.f32 %v7938, %v9221
    %v9315 = vadd.f32 %v7939, %v9224
    %v9316 = vadd.f32 %v7940, %v9227
    %v9317 = vadd.f32 %v7941, %v9230
    %v9318 = vadd.f32 %v7942, %v9233
    %v9319 = vadd.f32 %v7943, %v9236
    %v9320 = vadd.f32 %v7944, %v9239
    %v9321 = vadd.f32 %v7945, %v9242
    %v9322 = vadd.f32 %v7946, %v9245
    %v9323 = vadd.f32 %v7947, %v9248
    %v9324 = vadd.f32 %v7948, %v9251
    %v9325 = vadd.f32 %v7949, %v9254
    %v9326 = vadd.f32 %v7950, %v9257
    %v9327 = vadd.f32 %v7951, %v9260
    %v9328 = vadd.f32 %v7952, %v9263
    %v9329 = vadd.f32 %v7953, %v9266
    %v9330 = vadd.f32 %v7954, %v9269
    %v9331 = vadd.f32 %v7955, %v9272
    %v9332 = vadd.f32 %v7956, %v9275
    %v9333 = vadd.f32 %v7957, %v9278
    %v9334 = vadd.f32 %v7958, %v9281
    %v9335 = vadd.f32 %v7959, %v9284
    %v9336 = vadd.f32 %v7960, %v9287
    %v9337 = vadd.f32 %v7961, %v9290
    %v9338 = vadd.f32 %v7962, %v9293
    %v9339 = vadd.f32 %v7963, %v9296
    %v9340 = vadd.f32 %v7964, %v9299
    %v9341 = vadd.f32 %v7965, %v9302
    %v9342 = vadd.f32 %v3876, %v9304
    %v9343 = vadd.f32 %v3877, %v9305
    %v9344 = vadd.f32 %v3878, %v9306
    %v9345 = vadd.f32 %v3879, %v9307
    %v9346 = vadd.f32 %v3880, %v9308
    %v9347 = vadd.f32 %v3881, %v9309
    %v9348 = vadd.f32 %v3882, %v9310
    %v9349 = vadd.f32 %v3883, %v9311
    %v9350 = vadd.f32 %v3884, %v9312
    %v9351 = vadd.f32 %v3885, %v9313
    %v9352 = vadd.f32 %v3886, %v9314
    %v9353 = vadd.f32 %v3887, %v9315
    %v9354 = vadd.f32 %v3888, %v9316
    %v9355 = vadd.f32 %v3889, %v9317
    %v9356 = vadd.f32 %v3890, %v9318
    %v9357 = vadd.f32 %v3891, %v9319
    %v9358 = vadd.f32 %v3892, %v9320
    %v9359 = vadd.f32 %v3893, %v9321
    %v9360 = vadd.f32 %v3894, %v9322
    %v9361 = vadd.f32 %v3895, %v9323
    %v9362 = vadd.f32 %v3896, %v9324
    %v9363 = vadd.f32 %v3897, %v9325
    %v9364 = vadd.f32 %v3898, %v9326
    %v9365 = vadd.f32 %v3899, %v9327
    %v9366 = vadd.f32 %v3900, %v9328
    %v9367 = vadd.f32 %v3901, %v9329
    %v9368 = vadd.f32 %v3902, %v9330
    %v9369 = vadd.f32 %v3903, %v9331
    %v9370 = vadd.f32 %v3904, %v9332
    %v9371 = vadd.f32 %v3905, %v9333
    %v9372 = vadd.f32 %v3906, %v9334
    %v9373 = vadd.f32 %v3907, %v9335
    %v9374 = vadd.f32 %v3908, %v9336
    %v9375 = vadd.f32 %v3909, %v9337
    %v9376 = vadd.f32 %v3910, %v9338
    %v9377 = vadd.f32 %v3911, %v9339
    %v9378 = vadd.f32 %v3912, %v9340
    %v9379 = vadd.f32 %v3913, %v9341
    %v9380 = vld [vmem:[%s11] sm:$0x1]
    %v9382 = vperm.slane %v9380, 0
    %v9384 = vadd.f32 %v9342, %v9382
    %v9385 = vadd.f32 %v9343, %v9382
    %v9386 = vadd.f32 %v9344, %v9382
    %v9387 = vadd.f32 %v9345, %v9382
    %v9388 = vadd.f32 %v9346, %v9382
    %v9389 = vadd.f32 %v9347, %v9382
    %v9390 = vadd.f32 %v9348, %v9382
    %v9391 = vadd.f32 %v9349, %v9382
    %v9392 = vadd.f32 %v9350, %v9382
    %v9393 = vadd.f32 %v9351, %v9382
    %v9394 = vadd.f32 %v9352, %v9382
    %v9395 = vadd.f32 %v9353, %v9382
    %v9396 = vadd.f32 %v9354, %v9382
    %v9397 = vadd.f32 %v9355, %v9382
    %v9398 = vadd.f32 %v9356, %v9382
    %v9399 = vadd.f32 %v9357, %v9382
    %v9400 = vadd.f32 %v9358, %v9382
    %v9401 = vadd.f32 %v9359, %v9382
    %v9402 = vadd.f32 %v9360, %v9382
    %v9403 = vadd.f32 %v9361, %v9382
    %v9404 = vadd.f32 %v9362, %v9382
    %v9405 = vadd.f32 %v9363, %v9382
    %v9406 = vadd.f32 %v9364, %v9382
    %v9407 = vadd.f32 %v9365, %v9382
    %v9408 = vadd.f32 %v9366, %v9382
    %v9409 = vadd.f32 %v9367, %v9382
    %v9410 = vadd.f32 %v9368, %v9382
    %v9411 = vadd.f32 %v9369, %v9382
    %v9412 = vadd.f32 %v9370, %v9382
    %v9413 = vadd.f32 %v9371, %v9382
    %v9414 = vadd.f32 %v9372, %v9382
    %v9415 = vadd.f32 %v9373, %v9382
    %v9416 = vadd.f32 %v9374, %v9382
    %v9417 = vadd.f32 %v9375, %v9382
    %v9418 = vadd.f32 %v9376, %v9382
    %v9419 = vadd.f32 %v9377, %v9382
    %v9420 = vadd.f32 %v9378, %v9382
    %v9421 = vadd.f32 %v9379, %v9382
    %v9422 = vld [vmem:[%s12] sm:$0x1]
    %v9423 = vld [vmem:[%s13] sm:$0x1]
    %v9424 = vmul.f32 %v9384, %v145
    %v9425 = vmul.f32 %v9385, %v145
    %v9426 = vmul.f32 %v9386, %v145
    %v9427 = vmul.f32 %v9387, %v145
    %v9428 = vmul.f32 %v9388, %v145
    %v9429 = vmul.f32 %v9389, %v145
    %v9430 = vmul.f32 %v9390, %v145
    %v9431 = vmul.f32 %v9391, %v145
    %v9432 = vmul.f32 %v9392, %v145
    %v9433 = vmul.f32 %v9393, %v145
    %v9434 = vmul.f32 %v9394, %v145
    %v9435 = vmul.f32 %v9395, %v145
    %v9436 = vmul.f32 %v9396, %v145
    %v9437 = vmul.f32 %v9397, %v145
    %v9438 = vmul.f32 %v9398, %v145
    %v9439 = vmul.f32 %v9399, %v145
    %v9440 = vmul.f32 %v9400, %v145
    %v9441 = vmul.f32 %v9401, %v145
    %v9442 = vmul.f32 %v9402, %v145
    %v9443 = vmul.f32 %v9403, %v145
    %v9444 = vmul.f32 %v9404, %v145
    %v9445 = vmul.f32 %v9405, %v145
    %v9446 = vmul.f32 %v9406, %v145
    %v9447 = vmul.f32 %v9407, %v145
    %v9448 = vmul.f32 %v9408, %v145
    %v9449 = vmul.f32 %v9409, %v145
    %v9450 = vmul.f32 %v9410, %v145
    %v9451 = vmul.f32 %v9411, %v145
    %v9452 = vmul.f32 %v9412, %v145
    %v9453 = vmul.f32 %v9413, %v145
    %v9454 = vmul.f32 %v9414, %v145
    %v9455 = vmul.f32 %v9415, %v145
    %v9456 = vmul.f32 %v9416, %v145
    %v9457 = vmul.f32 %v9417, %v145
    %v9458 = vmul.f32 %v9418, %v145
    %v9459 = vmul.f32 %v9419, %v145
    %v9460 = vmul.f32 %v9420, %v145
    %v9461 = vmul.f32 %v9421, %v145
    %9462 = vadd.xlane.f32.xlu0 %v9424
    %v9463 = vpop.xlane.xlu0 %9462
    %9464 = vadd.xlane.f32.xlu0 %v9425
    %v9465 = vpop.xlane.xlu0 %9464
    %9466 = vadd.xlane.f32.xlu0 %v9426
    %v9467 = vpop.xlane.xlu0 %9466
    %9468 = vadd.xlane.f32.xlu0 %v9427
    %v9469 = vpop.xlane.xlu0 %9468
    %9470 = vadd.xlane.f32.xlu0 %v9428
    %v9471 = vpop.xlane.xlu0 %9470
    %9472 = vadd.xlane.f32.xlu0 %v9429
    %v9473 = vpop.xlane.xlu0 %9472
    %9474 = vadd.xlane.f32.xlu0 %v9430
    %v9475 = vpop.xlane.xlu0 %9474
    %9476 = vadd.xlane.f32.xlu0 %v9431
    %v9477 = vpop.xlane.xlu0 %9476
    %9478 = vadd.xlane.f32.xlu0 %v9432
    %v9479 = vpop.xlane.xlu0 %9478
    %9480 = vadd.xlane.f32.xlu0 %v9433
    %v9481 = vpop.xlane.xlu0 %9480
    %9482 = vadd.xlane.f32.xlu0 %v9434
    %v9483 = vpop.xlane.xlu0 %9482
    %9484 = vadd.xlane.f32.xlu0 %v9435
    %v9485 = vpop.xlane.xlu0 %9484
    %9486 = vadd.xlane.f32.xlu0 %v9436
    %v9487 = vpop.xlane.xlu0 %9486
    %9488 = vadd.xlane.f32.xlu0 %v9437
    %v9489 = vpop.xlane.xlu0 %9488
    %9490 = vadd.xlane.f32.xlu0 %v9438
    %v9491 = vpop.xlane.xlu0 %9490
    %9492 = vadd.xlane.f32.xlu0 %v9439
    %v9493 = vpop.xlane.xlu0 %9492
    %9494 = vadd.xlane.f32.xlu0 %v9440
    %v9495 = vpop.xlane.xlu0 %9494
    %9496 = vadd.xlane.f32.xlu0 %v9441
    %v9497 = vpop.xlane.xlu0 %9496
    %9498 = vadd.xlane.f32.xlu0 %v9442
    %v9499 = vpop.xlane.xlu0 %9498
    %9500 = vadd.xlane.f32.xlu0 %v9443
    %v9501 = vpop.xlane.xlu0 %9500
    %9502 = vadd.xlane.f32.xlu0 %v9444
    %v9503 = vpop.xlane.xlu0 %9502
    %9504 = vadd.xlane.f32.xlu0 %v9445
    %v9505 = vpop.xlane.xlu0 %9504
    %9506 = vadd.xlane.f32.xlu0 %v9446
    %v9507 = vpop.xlane.xlu0 %9506
    %9508 = vadd.xlane.f32.xlu0 %v9447
    %v9509 = vpop.xlane.xlu0 %9508
    %9510 = vadd.xlane.f32.xlu0 %v9448
    %v9511 = vpop.xlane.xlu0 %9510
    %9512 = vadd.xlane.f32.xlu0 %v9449
    %v9513 = vpop.xlane.xlu0 %9512
    %9514 = vadd.xlane.f32.xlu0 %v9450
    %v9515 = vpop.xlane.xlu0 %9514
    %9516 = vadd.xlane.f32.xlu0 %v9451
    %v9517 = vpop.xlane.xlu0 %9516
    %9518 = vadd.xlane.f32.xlu0 %v9452
    %v9519 = vpop.xlane.xlu0 %9518
    %9520 = vadd.xlane.f32.xlu0 %v9453
    %v9521 = vpop.xlane.xlu0 %9520
    %9522 = vadd.xlane.f32.xlu0 %v9454
    %v9523 = vpop.xlane.xlu0 %9522
    %9524 = vadd.xlane.f32.xlu0 %v9455
    %v9525 = vpop.xlane.xlu0 %9524
    %9526 = vadd.xlane.f32.xlu0 %v9456
    %v9527 = vpop.xlane.xlu0 %9526
    %9528 = vadd.xlane.f32.xlu0 %v9457
    %v9529 = vpop.xlane.xlu0 %9528
    %9530 = vadd.xlane.f32.xlu0 %v9458
    %v9531 = vpop.xlane.xlu0 %9530
    %9532 = vadd.xlane.f32.xlu0 %v9459
    %v9533 = vpop.xlane.xlu0 %9532
    %9534 = vadd.xlane.f32.xlu0 %v9460
    %v9535 = vpop.xlane.xlu0 %9534
    %9536 = vadd.xlane.f32.xlu0 %v9461
    %v9537 = vpop.xlane.xlu0 %9536
    %v9538 = vmul.f32 %v9463, 0.01
    %v9539 = vmul.f32 %v9465, 0.01
    %v9540 = vmul.f32 %v9467, 0.01
    %v9541 = vmul.f32 %v9469, 0.01
    %v9542 = vmul.f32 %v9471, 0.01
    %v9543 = vmul.f32 %v9473, 0.01
    %v9544 = vmul.f32 %v9475, 0.01
    %v9545 = vmul.f32 %v9477, 0.01
    %v9546 = vmul.f32 %v9479, 0.01
    %v9547 = vmul.f32 %v9481, 0.01
    %v9548 = vmul.f32 %v9483, 0.01
    %v9549 = vmul.f32 %v9485, 0.01
    %v9550 = vmul.f32 %v9487, 0.01
    %v9551 = vmul.f32 %v9489, 0.01
    %v9552 = vmul.f32 %v9491, 0.01
    %v9553 = vmul.f32 %v9493, 0.01
    %v9554 = vmul.f32 %v9495, 0.01
    %v9555 = vmul.f32 %v9497, 0.01
    %v9556 = vmul.f32 %v9499, 0.01
    %v9557 = vmul.f32 %v9501, 0.01
    %v9558 = vmul.f32 %v9503, 0.01
    %v9559 = vmul.f32 %v9505, 0.01
    %v9560 = vmul.f32 %v9507, 0.01
    %v9561 = vmul.f32 %v9509, 0.01
    %v9562 = vmul.f32 %v9511, 0.01
    %v9563 = vmul.f32 %v9513, 0.01
    %v9564 = vmul.f32 %v9515, 0.01
    %v9565 = vmul.f32 %v9517, 0.01
    %v9566 = vmul.f32 %v9519, 0.01
    %v9567 = vmul.f32 %v9521, 0.01
    %v9568 = vmul.f32 %v9523, 0.01
    %v9569 = vmul.f32 %v9525, 0.01
    %v9570 = vmul.f32 %v9527, 0.01
    %v9571 = vmul.f32 %v9529, 0.01
    %v9572 = vmul.f32 %v9531, 0.01
    %v9573 = vmul.f32 %v9533, 0.01
    %v9574 = vmul.f32 %v9535, 0.01
    %v9575 = vmul.f32 %v9537, 0.01
    %v9576 = vsub.f32 %v9424, %v9538
    %v9577 = vsub.f32 %v9425, %v9539
    %v9578 = vsub.f32 %v9426, %v9540
    %v9579 = vsub.f32 %v9427, %v9541
    %v9580 = vsub.f32 %v9428, %v9542
    %v9581 = vsub.f32 %v9429, %v9543
    %v9582 = vsub.f32 %v9430, %v9544
    %v9583 = vsub.f32 %v9431, %v9545
    %v9584 = vsub.f32 %v9432, %v9546
    %v9585 = vsub.f32 %v9433, %v9547
    %v9586 = vsub.f32 %v9434, %v9548
    %v9587 = vsub.f32 %v9435, %v9549
    %v9588 = vsub.f32 %v9436, %v9550
    %v9589 = vsub.f32 %v9437, %v9551
    %v9590 = vsub.f32 %v9438, %v9552
    %v9591 = vsub.f32 %v9439, %v9553
    %v9592 = vsub.f32 %v9440, %v9554
    %v9593 = vsub.f32 %v9441, %v9555
    %v9594 = vsub.f32 %v9442, %v9556
    %v9595 = vsub.f32 %v9443, %v9557
    %v9596 = vsub.f32 %v9444, %v9558
    %v9597 = vsub.f32 %v9445, %v9559
    %v9598 = vsub.f32 %v9446, %v9560
    %v9599 = vsub.f32 %v9447, %v9561
    %v9600 = vsub.f32 %v9448, %v9562
    %v9601 = vsub.f32 %v9449, %v9563
    %v9602 = vsub.f32 %v9450, %v9564
    %v9603 = vsub.f32 %v9451, %v9565
    %v9604 = vsub.f32 %v9452, %v9566
    %v9605 = vsub.f32 %v9453, %v9567
    %v9606 = vsub.f32 %v9454, %v9568
    %v9607 = vsub.f32 %v9455, %v9569
    %v9608 = vsub.f32 %v9456, %v9570
    %v9609 = vsub.f32 %v9457, %v9571
    %v9610 = vsub.f32 %v9458, %v9572
    %v9611 = vsub.f32 %v9459, %v9573
    %v9612 = vsub.f32 %v9460, %v9574
    %v9613 = vsub.f32 %v9461, %v9575
    %v9614 = vmul.f32 %v9576, %v145
    %v9615 = vmul.f32 %v9577, %v145
    %v9616 = vmul.f32 %v9578, %v145
    %v9617 = vmul.f32 %v9579, %v145
    %v9618 = vmul.f32 %v9580, %v145
    %v9619 = vmul.f32 %v9581, %v145
    %v9620 = vmul.f32 %v9582, %v145
    %v9621 = vmul.f32 %v9583, %v145
    %v9622 = vmul.f32 %v9584, %v145
    %v9623 = vmul.f32 %v9585, %v145
    %v9624 = vmul.f32 %v9586, %v145
    %v9625 = vmul.f32 %v9587, %v145
    %v9626 = vmul.f32 %v9588, %v145
    %v9627 = vmul.f32 %v9589, %v145
    %v9628 = vmul.f32 %v9590, %v145
    %v9629 = vmul.f32 %v9591, %v145
    %v9630 = vmul.f32 %v9592, %v145
    %v9631 = vmul.f32 %v9593, %v145
    %v9632 = vmul.f32 %v9594, %v145
    %v9633 = vmul.f32 %v9595, %v145
    %v9634 = vmul.f32 %v9596, %v145
    %v9635 = vmul.f32 %v9597, %v145
    %v9636 = vmul.f32 %v9598, %v145
    %v9637 = vmul.f32 %v9599, %v145
    %v9638 = vmul.f32 %v9600, %v145
    %v9639 = vmul.f32 %v9601, %v145
    %v9640 = vmul.f32 %v9602, %v145
    %v9641 = vmul.f32 %v9603, %v145
    %v9642 = vmul.f32 %v9604, %v145
    %v9643 = vmul.f32 %v9605, %v145
    %v9644 = vmul.f32 %v9606, %v145
    %v9645 = vmul.f32 %v9607, %v145
    %v9646 = vmul.f32 %v9608, %v145
    %v9647 = vmul.f32 %v9609, %v145
    %v9648 = vmul.f32 %v9610, %v145
    %v9649 = vmul.f32 %v9611, %v145
    %v9650 = vmul.f32 %v9612, %v145
    %v9651 = vmul.f32 %v9613, %v145
    %v9652 = vmul.f32 %v9614, %v9614
    %v9653 = vmul.f32 %v9615, %v9615
    %v9654 = vmul.f32 %v9616, %v9616
    %v9655 = vmul.f32 %v9617, %v9617
    %v9656 = vmul.f32 %v9618, %v9618
    %v9657 = vmul.f32 %v9619, %v9619
    %v9658 = vmul.f32 %v9620, %v9620
    %v9659 = vmul.f32 %v9621, %v9621
    %v9660 = vmul.f32 %v9622, %v9622
    %v9661 = vmul.f32 %v9623, %v9623
    %v9662 = vmul.f32 %v9624, %v9624
    %v9663 = vmul.f32 %v9625, %v9625
    %v9664 = vmul.f32 %v9626, %v9626
    %v9665 = vmul.f32 %v9627, %v9627
    %v9666 = vmul.f32 %v9628, %v9628
    %v9667 = vmul.f32 %v9629, %v9629
    %v9668 = vmul.f32 %v9630, %v9630
    %v9669 = vmul.f32 %v9631, %v9631
    %v9670 = vmul.f32 %v9632, %v9632
    %v9671 = vmul.f32 %v9633, %v9633
    %v9672 = vmul.f32 %v9634, %v9634
    %v9673 = vmul.f32 %v9635, %v9635
    %v9674 = vmul.f32 %v9636, %v9636
    %v9675 = vmul.f32 %v9637, %v9637
    %v9676 = vmul.f32 %v9638, %v9638
    %v9677 = vmul.f32 %v9639, %v9639
    %v9678 = vmul.f32 %v9640, %v9640
    %v9679 = vmul.f32 %v9641, %v9641
    %v9680 = vmul.f32 %v9642, %v9642
    %v9681 = vmul.f32 %v9643, %v9643
    %v9682 = vmul.f32 %v9644, %v9644
    %v9683 = vmul.f32 %v9645, %v9645
    %v9684 = vmul.f32 %v9646, %v9646
    %v9685 = vmul.f32 %v9647, %v9647
    %v9686 = vmul.f32 %v9648, %v9648
    %v9687 = vmul.f32 %v9649, %v9649
    %v9688 = vmul.f32 %v9650, %v9650
    %v9689 = vmul.f32 %v9651, %v9651
    %9690 = vadd.xlane.f32.xlu0 %v9652
    %v9691 = vpop.xlane.xlu0 %9690
    %9692 = vadd.xlane.f32.xlu0 %v9653
    %v9693 = vpop.xlane.xlu0 %9692
    %9694 = vadd.xlane.f32.xlu0 %v9654
    %v9695 = vpop.xlane.xlu0 %9694
    %9696 = vadd.xlane.f32.xlu0 %v9655
    %v9697 = vpop.xlane.xlu0 %9696
    %9698 = vadd.xlane.f32.xlu0 %v9656
    %v9699 = vpop.xlane.xlu0 %9698
    %9700 = vadd.xlane.f32.xlu0 %v9657
    %v9701 = vpop.xlane.xlu0 %9700
    %9702 = vadd.xlane.f32.xlu0 %v9658
    %v9703 = vpop.xlane.xlu0 %9702
    %9704 = vadd.xlane.f32.xlu0 %v9659
    %v9705 = vpop.xlane.xlu0 %9704
    %9706 = vadd.xlane.f32.xlu0 %v9660
    %v9707 = vpop.xlane.xlu0 %9706
    %9708 = vadd.xlane.f32.xlu0 %v9661
    %v9709 = vpop.xlane.xlu0 %9708
    %9710 = vadd.xlane.f32.xlu0 %v9662
    %v9711 = vpop.xlane.xlu0 %9710
    %9712 = vadd.xlane.f32.xlu0 %v9663
    %v9713 = vpop.xlane.xlu0 %9712
    %9714 = vadd.xlane.f32.xlu0 %v9664
    %v9715 = vpop.xlane.xlu0 %9714
    %9716 = vadd.xlane.f32.xlu0 %v9665
    %v9717 = vpop.xlane.xlu0 %9716
    %9718 = vadd.xlane.f32.xlu0 %v9666
    %v9719 = vpop.xlane.xlu0 %9718
    %9720 = vadd.xlane.f32.xlu0 %v9667
    %v9721 = vpop.xlane.xlu0 %9720
    %9722 = vadd.xlane.f32.xlu0 %v9668
    %v9723 = vpop.xlane.xlu0 %9722
    %9724 = vadd.xlane.f32.xlu0 %v9669
    %v9725 = vpop.xlane.xlu0 %9724
    %9726 = vadd.xlane.f32.xlu0 %v9670
    %v9727 = vpop.xlane.xlu0 %9726
    %9728 = vadd.xlane.f32.xlu0 %v9671
    %v9729 = vpop.xlane.xlu0 %9728
    %9730 = vadd.xlane.f32.xlu0 %v9672
    %v9731 = vpop.xlane.xlu0 %9730
    %9732 = vadd.xlane.f32.xlu0 %v9673
    %v9733 = vpop.xlane.xlu0 %9732
    %9734 = vadd.xlane.f32.xlu0 %v9674
    %v9735 = vpop.xlane.xlu0 %9734
    %9736 = vadd.xlane.f32.xlu0 %v9675
    %v9737 = vpop.xlane.xlu0 %9736
    %9738 = vadd.xlane.f32.xlu0 %v9676
    %v9739 = vpop.xlane.xlu0 %9738
    %9740 = vadd.xlane.f32.xlu0 %v9677
    %v9741 = vpop.xlane.xlu0 %9740
    %9742 = vadd.xlane.f32.xlu0 %v9678
    %v9743 = vpop.xlane.xlu0 %9742
    %9744 = vadd.xlane.f32.xlu0 %v9679
    %v9745 = vpop.xlane.xlu0 %9744
    %9746 = vadd.xlane.f32.xlu0 %v9680
    %v9747 = vpop.xlane.xlu0 %9746
    %9748 = vadd.xlane.f32.xlu0 %v9681
    %v9749 = vpop.xlane.xlu0 %9748
    %9750 = vadd.xlane.f32.xlu0 %v9682
    %v9751 = vpop.xlane.xlu0 %9750
    %9752 = vadd.xlane.f32.xlu0 %v9683
    %v9753 = vpop.xlane.xlu0 %9752
    %9754 = vadd.xlane.f32.xlu0 %v9684
    %v9755 = vpop.xlane.xlu0 %9754
    %9756 = vadd.xlane.f32.xlu0 %v9685
    %v9757 = vpop.xlane.xlu0 %9756
    %9758 = vadd.xlane.f32.xlu0 %v9686
    %v9759 = vpop.xlane.xlu0 %9758
    %9760 = vadd.xlane.f32.xlu0 %v9687
    %v9761 = vpop.xlane.xlu0 %9760
    %9762 = vadd.xlane.f32.xlu0 %v9688
    %v9763 = vpop.xlane.xlu0 %9762
    %9764 = vadd.xlane.f32.xlu0 %v9689
    %v9765 = vpop.xlane.xlu0 %9764
    %v9766 = vmul.f32 %v9691, 0.01
    %v9767 = vmul.f32 %v9693, 0.01
    %v9768 = vmul.f32 %v9695, 0.01
    %v9769 = vmul.f32 %v9697, 0.01
    %v9770 = vmul.f32 %v9699, 0.01
    %v9771 = vmul.f32 %v9701, 0.01
    %v9772 = vmul.f32 %v9703, 0.01
    %v9773 = vmul.f32 %v9705, 0.01
    %v9774 = vmul.f32 %v9707, 0.01
    %v9775 = vmul.f32 %v9709, 0.01
    %v9776 = vmul.f32 %v9711, 0.01
    %v9777 = vmul.f32 %v9713, 0.01
    %v9778 = vmul.f32 %v9715, 0.01
    %v9779 = vmul.f32 %v9717, 0.01
    %v9780 = vmul.f32 %v9719, 0.01
    %v9781 = vmul.f32 %v9721, 0.01
    %v9782 = vmul.f32 %v9723, 0.01
    %v9783 = vmul.f32 %v9725, 0.01
    %v9784 = vmul.f32 %v9727, 0.01
    %v9785 = vmul.f32 %v9729, 0.01
    %v9786 = vmul.f32 %v9731, 0.01
    %v9787 = vmul.f32 %v9733, 0.01
    %v9788 = vmul.f32 %v9735, 0.01
    %v9789 = vmul.f32 %v9737, 0.01
    %v9790 = vmul.f32 %v9739, 0.01
    %v9791 = vmul.f32 %v9741, 0.01
    %v9792 = vmul.f32 %v9743, 0.01
    %v9793 = vmul.f32 %v9745, 0.01
    %v9794 = vmul.f32 %v9747, 0.01
    %v9795 = vmul.f32 %v9749, 0.01
    %v9796 = vmul.f32 %v9751, 0.01
    %v9797 = vmul.f32 %v9753, 0.01
    %v9798 = vmul.f32 %v9755, 0.01
    %v9799 = vmul.f32 %v9757, 0.01
    %v9800 = vmul.f32 %v9759, 0.01
    %v9801 = vmul.f32 %v9761, 0.01
    %v9802 = vmul.f32 %v9763, 0.01
    %v9803 = vmul.f32 %v9765, 0.01
    %v9804 = vadd.f32 %v9766, 1e-05
    %v9805 = vadd.f32 %v9767, 1e-05
    %v9806 = vadd.f32 %v9768, 1e-05
    %v9807 = vadd.f32 %v9769, 1e-05
    %v9808 = vadd.f32 %v9770, 1e-05
    %v9809 = vadd.f32 %v9771, 1e-05
    %v9810 = vadd.f32 %v9772, 1e-05
    %v9811 = vadd.f32 %v9773, 1e-05
    %v9812 = vadd.f32 %v9774, 1e-05
    %v9813 = vadd.f32 %v9775, 1e-05
    %v9814 = vadd.f32 %v9776, 1e-05
    %v9815 = vadd.f32 %v9777, 1e-05
    %v9816 = vadd.f32 %v9778, 1e-05
    %v9817 = vadd.f32 %v9779, 1e-05
    %v9818 = vadd.f32 %v9780, 1e-05
    %v9819 = vadd.f32 %v9781, 1e-05
    %v9820 = vadd.f32 %v9782, 1e-05
    %v9821 = vadd.f32 %v9783, 1e-05
    %v9822 = vadd.f32 %v9784, 1e-05
    %v9823 = vadd.f32 %v9785, 1e-05
    %v9824 = vadd.f32 %v9786, 1e-05
    %v9825 = vadd.f32 %v9787, 1e-05
    %v9826 = vadd.f32 %v9788, 1e-05
    %v9827 = vadd.f32 %v9789, 1e-05
    %v9828 = vadd.f32 %v9790, 1e-05
    %v9829 = vadd.f32 %v9791, 1e-05
    %v9830 = vadd.f32 %v9792, 1e-05
    %v9831 = vadd.f32 %v9793, 1e-05
    %v9832 = vadd.f32 %v9794, 1e-05
    %v9833 = vadd.f32 %v9795, 1e-05
    %v9834 = vadd.f32 %v9796, 1e-05
    %v9835 = vadd.f32 %v9797, 1e-05
    %v9836 = vadd.f32 %v9798, 1e-05
    %v9837 = vadd.f32 %v9799, 1e-05
    %v9838 = vadd.f32 %v9800, 1e-05
    %v9839 = vadd.f32 %v9801, 1e-05
    %v9840 = vadd.f32 %v9802, 1e-05
    %v9841 = vadd.f32 %v9803, 1e-05
    %v9842 = vrsqrt.pop %v9804
    %v9843 = vmul.f32 %v9842, %v9804
    %v9844 = vmul.f32 %v9843, %v9842
    %v9845 = vmul.f32 0.5, %v9844
    %v9846 = vsub.f32 1.5, %v9845
    %v9847 = vmul.f32 %v9842, %v9846
    %vm9848 = vweird.f32 %v9804
    %vm9849 = vweird.f32 %v9842
    %vm9850 = vmor %vm9848, %vm9849
    %v9851 = vsel %vm9850, %v9842, %v9847
    %v9852 = vrsqrt.pop %v9805
    %v9853 = vmul.f32 %v9852, %v9805
    %v9854 = vmul.f32 %v9853, %v9852
    %v9855 = vmul.f32 0.5, %v9854
    %v9856 = vsub.f32 1.5, %v9855
    %v9857 = vmul.f32 %v9852, %v9856
    %vm9858 = vweird.f32 %v9805
    %vm9859 = vweird.f32 %v9852
    %vm9860 = vmor %vm9858, %vm9859
    %v9861 = vsel %vm9860, %v9852, %v9857
    %v9862 = vrsqrt.pop %v9806
    %v9863 = vmul.f32 %v9862, %v9806
    %v9864 = vmul.f32 %v9863, %v9862
    %v9865 = vmul.f32 0.5, %v9864
    %v9866 = vsub.f32 1.5, %v9865
    %v9867 = vmul.f32 %v9862, %v9866
    %vm9868 = vweird.f32 %v9806
    %vm9869 = vweird.f32 %v9862
    %vm9870 = vmor %vm9868, %vm9869
    %v9871 = vsel %vm9870, %v9862, %v9867
    %v9872 = vrsqrt.pop %v9807
    %v9873 = vmul.f32 %v9872, %v9807
    %v9874 = vmul.f32 %v9873, %v9872
    %v9875 = vmul.f32 0.5, %v9874
    %v9876 = vsub.f32 1.5, %v9875
    %v9877 = vmul.f32 %v9872, %v9876
    %vm9878 = vweird.f32 %v9807
    %vm9879 = vweird.f32 %v9872
    %vm9880 = vmor %vm9878, %vm9879
    %v9881 = vsel %vm9880, %v9872, %v9877
    %v9882 = vrsqrt.pop %v9808
    %v9883 = vmul.f32 %v9882, %v9808
    %v9884 = vmul.f32 %v9883, %v9882
    %v9885 = vmul.f32 0.5, %v9884
    %v9886 = vsub.f32 1.5, %v9885
    %v9887 = vmul.f32 %v9882, %v9886
    %vm9888 = vweird.f32 %v9808
    %vm9889 = vweird.f32 %v9882
    %vm9890 = vmor %vm9888, %vm9889
    %v9891 = vsel %vm9890, %v9882, %v9887
    %v9892 = vrsqrt.pop %v9809
    %v9893 = vmul.f32 %v9892, %v9809
    %v9894 = vmul.f32 %v9893, %v9892
    %v9895 = vmul.f32 0.5, %v9894
    %v9896 = vsub.f32 1.5, %v9895
    %v9897 = vmul.f32 %v9892, %v9896
    %vm9898 = vweird.f32 %v9809
    %vm9899 = vweird.f32 %v9892
    %vm9900 = vmor %vm9898, %vm9899
    %v9901 = vsel %vm9900, %v9892, %v9897
    %v9902 = vrsqrt.pop %v9810
    %v9903 = vmul.f32 %v9902, %v9810
    %v9904 = vmul.f32 %v9903, %v9902
    %v9905 = vmul.f32 0.5, %v9904
    %v9906 = vsub.f32 1.5, %v9905
    %v9907 = vmul.f32 %v9902, %v9906
    %vm9908 = vweird.f32 %v9810
    %vm9909 = vweird.f32 %v9902
    %vm9910 = vmor %vm9908, %vm9909
    %v9911 = vsel %vm9910, %v9902, %v9907
    %v9912 = vrsqrt.pop %v9811
    %v9913 = vmul.f32 %v9912, %v9811
    %v9914 = vmul.f32 %v9913, %v9912
    %v9915 = vmul.f32 0.5, %v9914
    %v9916 = vsub.f32 1.5, %v9915
    %v9917 = vmul.f32 %v9912, %v9916
    %vm9918 = vweird.f32 %v9811
    %vm9919 = vweird.f32 %v9912
    %vm9920 = vmor %vm9918, %vm9919
    %v9921 = vsel %vm9920, %v9912, %v9917
    %v9922 = vrsqrt.pop %v9812
    %v9923 = vmul.f32 %v9922, %v9812
    %v9924 = vmul.f32 %v9923, %v9922
    %v9925 = vmul.f32 0.5, %v9924
    %v9926 = vsub.f32 1.5, %v9925
    %v9927 = vmul.f32 %v9922, %v9926
    %vm9928 = vweird.f32 %v9812
    %vm9929 = vweird.f32 %v9922
    %vm9930 = vmor %vm9928, %vm9929
    %v9931 = vsel %vm9930, %v9922, %v9927
    %v9932 = vrsqrt.pop %v9813
    %v9933 = vmul.f32 %v9932, %v9813
    %v9934 = vmul.f32 %v9933, %v9932
    %v9935 = vmul.f32 0.5, %v9934
    %v9936 = vsub.f32 1.5, %v9935
    %v9937 = vmul.f32 %v9932, %v9936
    %vm9938 = vweird.f32 %v9813
    %vm9939 = vweird.f32 %v9932
    %vm9940 = vmor %vm9938, %vm9939
    %v9941 = vsel %vm9940, %v9932, %v9937
    %v9942 = vrsqrt.pop %v9814
    %v9943 = vmul.f32 %v9942, %v9814
    %v9944 = vmul.f32 %v9943, %v9942
    %v9945 = vmul.f32 0.5, %v9944
    %v9946 = vsub.f32 1.5, %v9945
    %v9947 = vmul.f32 %v9942, %v9946
    %vm9948 = vweird.f32 %v9814
    %vm9949 = vweird.f32 %v9942
    %vm9950 = vmor %vm9948, %vm9949
    %v9951 = vsel %vm9950, %v9942, %v9947
    %v9952 = vrsqrt.pop %v9815
    %v9953 = vmul.f32 %v9952, %v9815
    %v9954 = vmul.f32 %v9953, %v9952
    %v9955 = vmul.f32 0.5, %v9954
    %v9956 = vsub.f32 1.5, %v9955
    %v9957 = vmul.f32 %v9952, %v9956
    %vm9958 = vweird.f32 %v9815
    %vm9959 = vweird.f32 %v9952
    %vm9960 = vmor %vm9958, %vm9959
    %v9961 = vsel %vm9960, %v9952, %v9957
    %v9962 = vrsqrt.pop %v9816
    %v9963 = vmul.f32 %v9962, %v9816
    %v9964 = vmul.f32 %v9963, %v9962
    %v9965 = vmul.f32 0.5, %v9964
    %v9966 = vsub.f32 1.5, %v9965
    %v9967 = vmul.f32 %v9962, %v9966
    %vm9968 = vweird.f32 %v9816
    %vm9969 = vweird.f32 %v9962
    %vm9970 = vmor %vm9968, %vm9969
    %v9971 = vsel %vm9970, %v9962, %v9967
    %v9972 = vrsqrt.pop %v9817
    %v9973 = vmul.f32 %v9972, %v9817
    %v9974 = vmul.f32 %v9973, %v9972
    %v9975 = vmul.f32 0.5, %v9974
    %v9976 = vsub.f32 1.5, %v9975
    %v9977 = vmul.f32 %v9972, %v9976
    %vm9978 = vweird.f32 %v9817
    %vm9979 = vweird.f32 %v9972
    %vm9980 = vmor %vm9978, %vm9979
    %v9981 = vsel %vm9980, %v9972, %v9977
    %v9982 = vrsqrt.pop %v9818
    %v9983 = vmul.f32 %v9982, %v9818
    %v9984 = vmul.f32 %v9983, %v9982
    %v9985 = vmul.f32 0.5, %v9984
    %v9986 = vsub.f32 1.5, %v9985
    %v9987 = vmul.f32 %v9982, %v9986
    %vm9988 = vweird.f32 %v9818
    %vm9989 = vweird.f32 %v9982
    %vm9990 = vmor %vm9988, %vm9989
    %v9991 = vsel %vm9990, %v9982, %v9987
    %v9992 = vrsqrt.pop %v9819
    %v9993 = vmul.f32 %v9992, %v9819
    %v9994 = vmul.f32 %v9993, %v9992
    %v9995 = vmul.f32 0.5, %v9994
    %v9996 = vsub.f32 1.5, %v9995
    %v9997 = vmul.f32 %v9992, %v9996
    %vm9998 = vweird.f32 %v9819
    %vm9999 = vweird.f32 %v9992
    %vm10000 = vmor %vm9998, %vm9999
    %v10001 = vsel %vm10000, %v9992, %v9997
    %v10002 = vrsqrt.pop %v9820
    %v10003 = vmul.f32 %v10002, %v9820
    %v10004 = vmul.f32 %v10003, %v10002
    %v10005 = vmul.f32 0.5, %v10004
    %v10006 = vsub.f32 1.5, %v10005
    %v10007 = vmul.f32 %v10002, %v10006
    %vm10008 = vweird.f32 %v9820
    %vm10009 = vweird.f32 %v10002
    %vm10010 = vmor %vm10008, %vm10009
    %v10011 = vsel %vm10010, %v10002, %v10007
    %v10012 = vrsqrt.pop %v9821
    %v10013 = vmul.f32 %v10012, %v9821
    %v10014 = vmul.f32 %v10013, %v10012
    %v10015 = vmul.f32 0.5, %v10014
    %v10016 = vsub.f32 1.5, %v10015
    %v10017 = vmul.f32 %v10012, %v10016
    %vm10018 = vweird.f32 %v9821
    %vm10019 = vweird.f32 %v10012
    %vm10020 = vmor %vm10018, %vm10019
    %v10021 = vsel %vm10020, %v10012, %v10017
    %v10022 = vrsqrt.pop %v9822
    %v10023 = vmul.f32 %v10022, %v9822
    %v10024 = vmul.f32 %v10023, %v10022
    %v10025 = vmul.f32 0.5, %v10024
    %v10026 = vsub.f32 1.5, %v10025
    %v10027 = vmul.f32 %v10022, %v10026
    %vm10028 = vweird.f32 %v9822
    %vm10029 = vweird.f32 %v10022
    %vm10030 = vmor %vm10028, %vm10029
    %v10031 = vsel %vm10030, %v10022, %v10027
    %v10032 = vrsqrt.pop %v9823
    %v10033 = vmul.f32 %v10032, %v9823
    %v10034 = vmul.f32 %v10033, %v10032
    %v10035 = vmul.f32 0.5, %v10034
    %v10036 = vsub.f32 1.5, %v10035
    %v10037 = vmul.f32 %v10032, %v10036
    %vm10038 = vweird.f32 %v9823
    %vm10039 = vweird.f32 %v10032
    %vm10040 = vmor %vm10038, %vm10039
    %v10041 = vsel %vm10040, %v10032, %v10037
    %v10042 = vrsqrt.pop %v9824
    %v10043 = vmul.f32 %v10042, %v9824
    %v10044 = vmul.f32 %v10043, %v10042
    %v10045 = vmul.f32 0.5, %v10044
    %v10046 = vsub.f32 1.5, %v10045
    %v10047 = vmul.f32 %v10042, %v10046
    %vm10048 = vweird.f32 %v9824
    %vm10049 = vweird.f32 %v10042
    %vm10050 = vmor %vm10048, %vm10049
    %v10051 = vsel %vm10050, %v10042, %v10047
    %v10052 = vrsqrt.pop %v9825
    %v10053 = vmul.f32 %v10052, %v9825
    %v10054 = vmul.f32 %v10053, %v10052
    %v10055 = vmul.f32 0.5, %v10054
    %v10056 = vsub.f32 1.5, %v10055
    %v10057 = vmul.f32 %v10052, %v10056
    %vm10058 = vweird.f32 %v9825
    %vm10059 = vweird.f32 %v10052
    %vm10060 = vmor %vm10058, %vm10059
    %v10061 = vsel %vm10060, %v10052, %v10057
    %v10062 = vrsqrt.pop %v9826
    %v10063 = vmul.f32 %v10062, %v9826
    %v10064 = vmul.f32 %v10063, %v10062
    %v10065 = vmul.f32 0.5, %v10064
    %v10066 = vsub.f32 1.5, %v10065
    %v10067 = vmul.f32 %v10062, %v10066
    %vm10068 = vweird.f32 %v9826
    %vm10069 = vweird.f32 %v10062
    %vm10070 = vmor %vm10068, %vm10069
    %v10071 = vsel %vm10070, %v10062, %v10067
    %v10072 = vrsqrt.pop %v9827
    %v10073 = vmul.f32 %v10072, %v9827
    %v10074 = vmul.f32 %v10073, %v10072
    %v10075 = vmul.f32 0.5, %v10074
    %v10076 = vsub.f32 1.5, %v10075
    %v10077 = vmul.f32 %v10072, %v10076
    %vm10078 = vweird.f32 %v9827
    %vm10079 = vweird.f32 %v10072
    %vm10080 = vmor %vm10078, %vm10079
    %v10081 = vsel %vm10080, %v10072, %v10077
    %v10082 = vrsqrt.pop %v9828
    %v10083 = vmul.f32 %v10082, %v9828
    %v10084 = vmul.f32 %v10083, %v10082
    %v10085 = vmul.f32 0.5, %v10084
    %v10086 = vsub.f32 1.5, %v10085
    %v10087 = vmul.f32 %v10082, %v10086
    %vm10088 = vweird.f32 %v9828
    %vm10089 = vweird.f32 %v10082
    %vm10090 = vmor %vm10088, %vm10089
    %v10091 = vsel %vm10090, %v10082, %v10087
    %v10092 = vrsqrt.pop %v9829
    %v10093 = vmul.f32 %v10092, %v9829
    %v10094 = vmul.f32 %v10093, %v10092
    %v10095 = vmul.f32 0.5, %v10094
    %v10096 = vsub.f32 1.5, %v10095
    %v10097 = vmul.f32 %v10092, %v10096
    %vm10098 = vweird.f32 %v9829
    %vm10099 = vweird.f32 %v10092
    %vm10100 = vmor %vm10098, %vm10099
    %v10101 = vsel %vm10100, %v10092, %v10097
    %v10102 = vrsqrt.pop %v9830
    %v10103 = vmul.f32 %v10102, %v9830
    %v10104 = vmul.f32 %v10103, %v10102
    %v10105 = vmul.f32 0.5, %v10104
    %v10106 = vsub.f32 1.5, %v10105
    %v10107 = vmul.f32 %v10102, %v10106
    %vm10108 = vweird.f32 %v9830
    %vm10109 = vweird.f32 %v10102
    %vm10110 = vmor %vm10108, %vm10109
    %v10111 = vsel %vm10110, %v10102, %v10107
    %v10112 = vrsqrt.pop %v9831
    %v10113 = vmul.f32 %v10112, %v9831
    %v10114 = vmul.f32 %v10113, %v10112
    %v10115 = vmul.f32 0.5, %v10114
    %v10116 = vsub.f32 1.5, %v10115
    %v10117 = vmul.f32 %v10112, %v10116
    %vm10118 = vweird.f32 %v9831
    %vm10119 = vweird.f32 %v10112
    %vm10120 = vmor %vm10118, %vm10119
    %v10121 = vsel %vm10120, %v10112, %v10117
    %v10122 = vrsqrt.pop %v9832
    %v10123 = vmul.f32 %v10122, %v9832
    %v10124 = vmul.f32 %v10123, %v10122
    %v10125 = vmul.f32 0.5, %v10124
    %v10126 = vsub.f32 1.5, %v10125
    %v10127 = vmul.f32 %v10122, %v10126
    %vm10128 = vweird.f32 %v9832
    %vm10129 = vweird.f32 %v10122
    %vm10130 = vmor %vm10128, %vm10129
    %v10131 = vsel %vm10130, %v10122, %v10127
    %v10132 = vrsqrt.pop %v9833
    %v10133 = vmul.f32 %v10132, %v9833
    %v10134 = vmul.f32 %v10133, %v10132
    %v10135 = vmul.f32 0.5, %v10134
    %v10136 = vsub.f32 1.5, %v10135
    %v10137 = vmul.f32 %v10132, %v10136
    %vm10138 = vweird.f32 %v9833
    %vm10139 = vweird.f32 %v10132
    %vm10140 = vmor %vm10138, %vm10139
    %v10141 = vsel %vm10140, %v10132, %v10137
    %v10142 = vrsqrt.pop %v9834
    %v10143 = vmul.f32 %v10142, %v9834
    %v10144 = vmul.f32 %v10143, %v10142
    %v10145 = vmul.f32 0.5, %v10144
    %v10146 = vsub.f32 1.5, %v10145
    %v10147 = vmul.f32 %v10142, %v10146
    %vm10148 = vweird.f32 %v9834
    %vm10149 = vweird.f32 %v10142
    %vm10150 = vmor %vm10148, %vm10149
    %v10151 = vsel %vm10150, %v10142, %v10147
    %v10152 = vrsqrt.pop %v9835
    %v10153 = vmul.f32 %v10152, %v9835
    %v10154 = vmul.f32 %v10153, %v10152
    %v10155 = vmul.f32 0.5, %v10154
    %v10156 = vsub.f32 1.5, %v10155
    %v10157 = vmul.f32 %v10152, %v10156
    %vm10158 = vweird.f32 %v9835
    %vm10159 = vweird.f32 %v10152
    %vm10160 = vmor %vm10158, %vm10159
    %v10161 = vsel %vm10160, %v10152, %v10157
    %v10162 = vrsqrt.pop %v9836
    %v10163 = vmul.f32 %v10162, %v9836
    %v10164 = vmul.f32 %v10163, %v10162
    %v10165 = vmul.f32 0.5, %v10164
    %v10166 = vsub.f32 1.5, %v10165
    %v10167 = vmul.f32 %v10162, %v10166
    %vm10168 = vweird.f32 %v9836
    %vm10169 = vweird.f32 %v10162
    %vm10170 = vmor %vm10168, %vm10169
    %v10171 = vsel %vm10170, %v10162, %v10167
    %v10172 = vrsqrt.pop %v9837
    %v10173 = vmul.f32 %v10172, %v9837
    %v10174 = vmul.f32 %v10173, %v10172
    %v10175 = vmul.f32 0.5, %v10174
    %v10176 = vsub.f32 1.5, %v10175
    %v10177 = vmul.f32 %v10172, %v10176
    %vm10178 = vweird.f32 %v9837
    %vm10179 = vweird.f32 %v10172
    %vm10180 = vmor %vm10178, %vm10179
    %v10181 = vsel %vm10180, %v10172, %v10177
    %v10182 = vrsqrt.pop %v9838
    %v10183 = vmul.f32 %v10182, %v9838
    %v10184 = vmul.f32 %v10183, %v10182
    %v10185 = vmul.f32 0.5, %v10184
    %v10186 = vsub.f32 1.5, %v10185
    %v10187 = vmul.f32 %v10182, %v10186
    %vm10188 = vweird.f32 %v9838
    %vm10189 = vweird.f32 %v10182
    %vm10190 = vmor %vm10188, %vm10189
    %v10191 = vsel %vm10190, %v10182, %v10187
    %v10192 = vrsqrt.pop %v9839
    %v10193 = vmul.f32 %v10192, %v9839
    %v10194 = vmul.f32 %v10193, %v10192
    %v10195 = vmul.f32 0.5, %v10194
    %v10196 = vsub.f32 1.5, %v10195
    %v10197 = vmul.f32 %v10192, %v10196
    %vm10198 = vweird.f32 %v9839
    %vm10199 = vweird.f32 %v10192
    %vm10200 = vmor %vm10198, %vm10199
    %v10201 = vsel %vm10200, %v10192, %v10197
    %v10202 = vrsqrt.pop %v9840
    %v10203 = vmul.f32 %v10202, %v9840
    %v10204 = vmul.f32 %v10203, %v10202
    %v10205 = vmul.f32 0.5, %v10204
    %v10206 = vsub.f32 1.5, %v10205
    %v10207 = vmul.f32 %v10202, %v10206
    %vm10208 = vweird.f32 %v9840
    %vm10209 = vweird.f32 %v10202
    %vm10210 = vmor %vm10208, %vm10209
    %v10211 = vsel %vm10210, %v10202, %v10207
    %v10212 = vrsqrt.pop %v9841
    %v10213 = vmul.f32 %v10212, %v9841
    %v10214 = vmul.f32 %v10213, %v10212
    %v10215 = vmul.f32 0.5, %v10214
    %v10216 = vsub.f32 1.5, %v10215
    %v10217 = vmul.f32 %v10212, %v10216
    %vm10218 = vweird.f32 %v9841
    %vm10219 = vweird.f32 %v10212
    %vm10220 = vmor %vm10218, %vm10219
    %v10221 = vsel %vm10220, %v10212, %v10217
    %v10222 = vmul.f32 %v9614, %v9851
    %v10223 = vmul.f32 %v9615, %v9861
    %v10224 = vmul.f32 %v9616, %v9871
    %v10225 = vmul.f32 %v9617, %v9881
    %v10226 = vmul.f32 %v9618, %v9891
    %v10227 = vmul.f32 %v9619, %v9901
    %v10228 = vmul.f32 %v9620, %v9911
    %v10229 = vmul.f32 %v9621, %v9921
    %v10230 = vmul.f32 %v9622, %v9931
    %v10231 = vmul.f32 %v9623, %v9941
    %v10232 = vmul.f32 %v9624, %v9951
    %v10233 = vmul.f32 %v9625, %v9961
    %v10234 = vmul.f32 %v9626, %v9971
    %v10235 = vmul.f32 %v9627, %v9981
    %v10236 = vmul.f32 %v9628, %v9991
    %v10237 = vmul.f32 %v9629, %v10001
    %v10238 = vmul.f32 %v9630, %v10011
    %v10239 = vmul.f32 %v9631, %v10021
    %v10240 = vmul.f32 %v9632, %v10031
    %v10241 = vmul.f32 %v9633, %v10041
    %v10242 = vmul.f32 %v9634, %v10051
    %v10243 = vmul.f32 %v9635, %v10061
    %v10244 = vmul.f32 %v9636, %v10071
    %v10245 = vmul.f32 %v9637, %v10081
    %v10246 = vmul.f32 %v9638, %v10091
    %v10247 = vmul.f32 %v9639, %v10101
    %v10248 = vmul.f32 %v9640, %v10111
    %v10249 = vmul.f32 %v9641, %v10121
    %v10250 = vmul.f32 %v9642, %v10131
    %v10251 = vmul.f32 %v9643, %v10141
    %v10252 = vmul.f32 %v9644, %v10151
    %v10253 = vmul.f32 %v9645, %v10161
    %v10254 = vmul.f32 %v9646, %v10171
    %v10255 = vmul.f32 %v9647, %v10181
    %v10256 = vmul.f32 %v9648, %v10191
    %v10257 = vmul.f32 %v9649, %v10201
    %v10258 = vmul.f32 %v9650, %v10211
    %v10259 = vmul.f32 %v9651, %v10221
    %v10261 = vperm.slane %v9422, 0
    %v10263 = vmul.f32 %v10222, %v10261
    %v10264 = vmul.f32 %v10223, %v10261
    %v10265 = vmul.f32 %v10224, %v10261
    %v10266 = vmul.f32 %v10225, %v10261
    %v10267 = vmul.f32 %v10226, %v10261
    %v10268 = vmul.f32 %v10227, %v10261
    %v10269 = vmul.f32 %v10228, %v10261
    %v10270 = vmul.f32 %v10229, %v10261
    %v10271 = vmul.f32 %v10230, %v10261
    %v10272 = vmul.f32 %v10231, %v10261
    %v10273 = vmul.f32 %v10232, %v10261
    %v10274 = vmul.f32 %v10233, %v10261
    %v10275 = vmul.f32 %v10234, %v10261
    %v10276 = vmul.f32 %v10235, %v10261
    %v10277 = vmul.f32 %v10236, %v10261
    %v10278 = vmul.f32 %v10237, %v10261
    %v10279 = vmul.f32 %v10238, %v10261
    %v10280 = vmul.f32 %v10239, %v10261
    %v10281 = vmul.f32 %v10240, %v10261
    %v10282 = vmul.f32 %v10241, %v10261
    %v10283 = vmul.f32 %v10242, %v10261
    %v10284 = vmul.f32 %v10243, %v10261
    %v10285 = vmul.f32 %v10244, %v10261
    %v10286 = vmul.f32 %v10245, %v10261
    %v10287 = vmul.f32 %v10246, %v10261
    %v10288 = vmul.f32 %v10247, %v10261
    %v10289 = vmul.f32 %v10248, %v10261
    %v10290 = vmul.f32 %v10249, %v10261
    %v10291 = vmul.f32 %v10250, %v10261
    %v10292 = vmul.f32 %v10251, %v10261
    %v10293 = vmul.f32 %v10252, %v10261
    %v10294 = vmul.f32 %v10253, %v10261
    %v10295 = vmul.f32 %v10254, %v10261
    %v10296 = vmul.f32 %v10255, %v10261
    %v10297 = vmul.f32 %v10256, %v10261
    %v10298 = vmul.f32 %v10257, %v10261
    %v10299 = vmul.f32 %v10258, %v10261
    %v10300 = vmul.f32 %v10259, %v10261
    %v10302 = vperm.slane %v9423, 0
    %v10304 = vadd.f32 %v10263, %v10302
    %v10305 = vadd.f32 %v10264, %v10302
    %v10306 = vadd.f32 %v10265, %v10302
    %v10307 = vadd.f32 %v10266, %v10302
    %v10308 = vadd.f32 %v10267, %v10302
    %v10309 = vadd.f32 %v10268, %v10302
    %v10310 = vadd.f32 %v10269, %v10302
    %v10311 = vadd.f32 %v10270, %v10302
    %v10312 = vadd.f32 %v10271, %v10302
    %v10313 = vadd.f32 %v10272, %v10302
    %v10314 = vadd.f32 %v10273, %v10302
    %v10315 = vadd.f32 %v10274, %v10302
    %v10316 = vadd.f32 %v10275, %v10302
    %v10317 = vadd.f32 %v10276, %v10302
    %v10318 = vadd.f32 %v10277, %v10302
    %v10319 = vadd.f32 %v10278, %v10302
    %v10320 = vadd.f32 %v10279, %v10302
    %v10321 = vadd.f32 %v10280, %v10302
    %v10322 = vadd.f32 %v10281, %v10302
    %v10323 = vadd.f32 %v10282, %v10302
    %v10324 = vadd.f32 %v10283, %v10302
    %v10325 = vadd.f32 %v10284, %v10302
    %v10326 = vadd.f32 %v10285, %v10302
    %v10327 = vadd.f32 %v10286, %v10302
    %v10328 = vadd.f32 %v10287, %v10302
    %v10329 = vadd.f32 %v10288, %v10302
    %v10330 = vadd.f32 %v10289, %v10302
    %v10331 = vadd.f32 %v10290, %v10302
    %v10332 = vadd.f32 %v10291, %v10302
    %v10333 = vadd.f32 %v10292, %v10302
    %v10334 = vadd.f32 %v10293, %v10302
    %v10335 = vadd.f32 %v10294, %v10302
    %v10336 = vadd.f32 %v10295, %v10302
    %v10337 = vadd.f32 %v10296, %v10302
    %v10338 = vadd.f32 %v10297, %v10302
    %v10339 = vadd.f32 %v10298, %v10302
    %v10340 = vadd.f32 %v10299, %v10302
    %v10341 = vadd.f32 %v10300, %v10302
    %v10342 = vld [vmem:[%s14] sm:$0x3f]
    %10344 = vst [vmem:[#allocation1] ss:$4 sm:$0xff] %v10342
    %v10345 = vld.sshfl [vmem:[#allocation1] sm:$0xff pattern:$0x73625140]
    %v10346 = vld.sshfl [vmem:[#allocation1 + $0x8] sm:$0xff pattern:$0x73625140]
    %v10347 = vld.sshfl [vmem:[#allocation1 + $0x10] sm:$0xff pattern:$0x73625140]
    %vm10350 = vcmask 392192
    %v10351 = vsel %vm10350, %v10347, 0
    %10353 = vmatpush.msra.mxu0 %v10319
    %10354 = vmatpush.msra.mxu0 %v10318
    %10355 = vmatpush.msra.mxu0 %v10317
    %10356 = vmatpush.msra.mxu0 %v10316
    %10357 = vmatpush.msra.mxu0 %v10315
    %10358 = vmatpush.msra.mxu0 %v10314
    %10359 = vmatpush.msra.mxu0 %v10313
    %10360 = vmatpush.msra.mxu0 %v10312
    %10361 = vmatpush.msra.mxu0 %v10311
    %10362 = vmatpush.msra.mxu0 %v10310
    %10363 = vmatpush.msra.mxu0 %v10309
    %10364 = vmatpush.msra.mxu0 %v10308
    %10365 = vmatpush.msra.mxu0 %v10307
    %10366 = vmatpush.msra.mxu0 %v10306
    %10367 = vmatpush.msra.mxu0 %v10305
    %10368 = vmatpush.msra.mxu0 %v10304
    %10369 = vmatmul.f32.gmra.mxu0 %v10345
    %v10370 = vpop.f32.mrf.mxu0
    %v10371 = vadd.f32 0.0, %v10370
    %10372 = vdwg.mxu0
    %10373 = vmatpush.msra.mxu0 %v10335
    %10374 = vmatpush.msra.mxu0 %v10334
    %10375 = vmatpush.msra.mxu0 %v10333
    %10376 = vmatpush.msra.mxu0 %v10332
    %10377 = vmatpush.msra.mxu0 %v10331
    %10378 = vmatpush.msra.mxu0 %v10330
    %10379 = vmatpush.msra.mxu0 %v10329
    %10380 = vmatpush.msra.mxu0 %v10328
    %10381 = vmatpush.msra.mxu0 %v10327
    %10382 = vmatpush.msra.mxu0 %v10326
    %10383 = vmatpush.msra.mxu0 %v10325
    %10384 = vmatpush.msra.mxu0 %v10324
    %10385 = vmatpush.msra.mxu0 %v10323
    %10386 = vmatpush.msra.mxu0 %v10322
    %10387 = vmatpush.msra.mxu0 %v10321
    %10388 = vmatpush.msra.mxu0 %v10320
    %10389 = vmatmul.f32.gmra.mxu0 %v10346
    %v10390 = vpop.f32.mrf.mxu0
    %v10391 = vadd.f32 %v10371, %v10390
    %10392 = vdwg.mxu0
    %10393 = vmatpush.msra.mxu0 0.0
    %10394 = vmatpush.msra.mxu0 0.0
    %10395 = vmatpush.msra.mxu0 0.0
    %10396 = vmatpush.msra.mxu0 0.0
    %10397 = vmatpush.msra.mxu0 0.0
    %10398 = vmatpush.msra.mxu0 0.0
    %10399 = vmatpush.msra.mxu0 0.0
    %10400 = vmatpush.msra.mxu0 0.0
    %10401 = vmatpush.msra.mxu0 0.0
    %10402 = vmatpush.msra.mxu0 0.0
    %10403 = vmatpush.msra.mxu0 %v10341
    %10404 = vmatpush.msra.mxu0 %v10340
    %10405 = vmatpush.msra.mxu0 %v10339
    %10406 = vmatpush.msra.mxu0 %v10338
    %10407 = vmatpush.msra.mxu0 %v10337
    %10408 = vmatpush.msra.mxu0 %v10336
    %10409 = vmatmul.f32.gmra.mxu0 %v10351
    %v10410 = vpop.f32.mrf.mxu0
    %v10411 = vadd.f32 %v10391, %v10410
    %10412 = vdwg.mxu0
    %v10413 = vld [vmem:[%s15] sm:$0xff]
    %v10414 = vld [vmem:[%s15 + $0x8] sm:$0xff]
    %v10415 = vld [vmem:[%s15 + $0x10] sm:$0xff]
    %v10416 = vld [vmem:[%s15 + $0x18] sm:$0xff]
    %v10417 = vld [vmem:[%s15 + $0x20] sm:$0xff]
    %v10418 = vld [vmem:[%s15 + $0x28] sm:$0xff]
    %v10419 = vld [vmem:[%s15 + $0x30] sm:$0xff]
    %v10420 = vld [vmem:[%s15 + $0x38] sm:$0xff]
    %v10421 = vld [vmem:[%s15 + $0x40] sm:$0xff]
    %v10422 = vld [vmem:[%s15 + $0x48] sm:$0xff]
    %v10423 = vld [vmem:[%s15 + $0x50] sm:$0xff]
    %v10424 = vld [vmem:[%s15 + $0x58] sm:$0xff]
    %v10425 = vld [vmem:[%s15 + $0x60] sm:$0xff]
    %v10426 = vld [vmem:[%s15 + $0x68] sm:$0xff]
    %v10427 = vld [vmem:[%s15 + $0x70] sm:$0xff]
    %v10428 = vld [vmem:[%s15 + $0x78] sm:$0xff]
    %v10429 = vld [vmem:[%s16] sm:$0x1]
    %v10431 = vperm.slane %v10429, 0
    %10433 = vmatpush.msra.mxu0 %v10428
    %10434 = vmatpush.msra.mxu0 %v10427
    %10435 = vmatpush.msra.mxu0 %v10426
    %10436 = vmatpush.msra.mxu0 %v10425
    %10437 = vmatpush.msra.mxu0 %v10424
    %10438 = vmatpush.msra.mxu0 %v10423
    %10439 = vmatpush.msra.mxu0 %v10422
    %10440 = vmatpush.msra.mxu0 %v10421
    %10441 = vmatpush.msra.mxu0 %v10420
    %10442 = vmatpush.msra.mxu0 %v10419
    %10443 = vmatpush.msra.mxu0 %v10418
    %10444 = vmatpush.msra.mxu0 %v10417
    %10445 = vmatpush.msra.mxu0 %v10416
    %10446 = vmatpush.msra.mxu0 %v10415
    %10447 = vmatpush.msra.mxu0 %v10414
    %10448 = vmatpush.msra.mxu0 %v10413
    %10449 = vmatmul.f32.gmra.mxu0 %v10411
    %v10450 = vpop.f32.mrf.mxu0
    %v10451 = vadd.f32 %v10431, %v10450
    %10452 = vdwg.mxu0
    %vm10453 = vcmp.ge.f32.partialorder %v10451, 0.0
    %v10454 = vmul.f32 %v10451, 0.01
    %v10455 = vsel %vm10453, %v10451, %v10454
    %v10456 = vld [vmem:[%s17] sm:$0xff]
    %v10457 = vld [vmem:[%s17 + $0x8] sm:$0xff]
    %v10458 = vld [vmem:[%s17 + $0x10] sm:$0xff]
    %v10459 = vld [vmem:[%s17 + $0x18] sm:$0xff]
    %v10460 = vld [vmem:[%s17 + $0x20] sm:$0xff]
    %v10461 = vld [vmem:[%s17 + $0x28] sm:$0xff]
    %v10462 = vld [vmem:[%s17 + $0x30] sm:$0x3]
    %v10463 = vld [vmem:[%s18] sm:$0x1]
    %v10465 = vperm.slane %v10463, 0
    %vm10467 = vcmask 408576
    %v10469 = vsel %vm10467, %v10455, 0
    %vm10471 = vcmask 1041408
    %v10473 = vsel %vm10471, %v10462, 0
    %10475 = vmatpush.msra.mxu0 0.0
    %10476 = vmatpush.msra.mxu0 0.0
    %10477 = vmatpush.msra.mxu0 0.0
    %10478 = vmatpush.msra.mxu0 0.0
    %10479 = vmatpush.msra.mxu0 0.0
    %10480 = vmatpush.msra.mxu0 0.0
    %10481 = vmatpush.msra.mxu0 0.0
    %10482 = vmatpush.msra.mxu0 0.0
    %10483 = vmatpush.msra.mxu0 0.0
    %10484 = vmatpush.msra.mxu0 %v10473
    %10485 = vmatpush.msra.mxu0 %v10461
    %10486 = vmatpush.msra.mxu0 %v10460
    %10487 = vmatpush.msra.mxu0 %v10459
    %10488 = vmatpush.msra.mxu0 %v10458
    %10489 = vmatpush.msra.mxu0 %v10457
    %10490 = vmatpush.msra.mxu0 %v10456
    %10491 = vmatmul.f32.gmra.mxu0 %v10469
    %v10492 = vpop.f32.mrf.mxu0
    %v10493 = vadd.f32 %v10465, %v10492
    %10494 = vdwg.mxu0
    %v10495 = vsub.f32 0.0, %v10493
    %v10496 = vmul.f32 %v10495, 1.442695
    %v10497 = vpow.pop %v10496
    %v10498 = vadd.f32 %v10497, 1.0
    %v10499 = vrcp.pop %v10498
    %v10500 = vmul.f32 %v10498, %v10499
    %v10501 = vsub.f32 1.0, %v10500
    %v10502 = vmul.f32 %v10499, %v10501
    %v10503 = vadd.f32 %v10499, %v10502
    %vm10504 = vweird.f32 %v10498
    %vm10505 = vweird.f32 %v10499
    %vm10506 = vmor %vm10504, %vm10505
    %v10507 = vsel %vm10506, %v10499, %v10503
    %v10508 = vand.u32 2147483647, %v10498
    %vm10509 = vcmp.eq.f32.partialorder %v10508, 8.507059e+37
    %v10510 = vand.u32 %v10498, 2147483648
    %v10511 = vor.u32 1.1754944e-38, %v10510
    %v10512 = vsel %vm10509, %v10511, %v10507
    %v10513 = vmul.f32 1.0, %v10512
    %vm10514 = vcmask 17408
    %10515 = vst.msk [vmem:[#allocation13] sm:$0x3] %vm10514, %v10513
    // Predicated region
    $region112: #{tpu_custom_call.1} parent=1 // pred_check
      _
    $region113: #{tpu_custom_call.1} parent=1 // pred_check_branch
      %10517 = sbr.rel (0) target = $region115
    $region114: #{tpu_custom_call.1} parent=1 // pred_region
      %10519 = vsyncadd [#allocation6], 0
      %s10521 = sshll.u32 [#allocation13], 4
      %s10522 = int_to_ptr.vmem [resolvable:$true] %s10521
      %s10523 = sshll.u32 %s19, 4
      %s10524 = int_to_ptr.hbm [resolvable:$true] %s10523
      %10526 = dma.vmem_to_hbm [thread:$0]  %s10522, 32, %s10524, [#allocation6]
    $region115: #{tpu_custom_call.1} parent=1 // pred_fallthru
      _
    // Predicated region
    $region116: #{tpu_custom_call.1} parent=1 // pred_check
      _
    $region117: #{tpu_custom_call.1} parent=1 // pred_check_branch
      %10528 = sbr.rel (0) target = $region119
    $region118: #{tpu_custom_call.1} parent=1 // pred_region
      %10530 = dma.done [#allocation6], 32
    $region119: #{tpu_custom_call.1} parent=1 // pred_fallthru
      _
    %10531 = vsyncpa [#allocation5], 1
    %10532 = vsyncpa [#allocation8], 1
    %10533 = vsyncpa [#allocation11], 1
    %10534 = vsyncpa [#allocation6], 1

</llo_original>
